<compile_context>
chip_gen: v7x
topology: tpu7x:2x2x1
jax: 0.10.0
libtpu: 0.0.40
codegen_flags: <defaults>
</compile_context>

<pallas_src>
import functools

import jax
import jax.numpy as jnp
from jax.experimental import pallas as pl
from jax.experimental.pallas import tpu as pltpu


def _round_up(x, m):
    return ((x + m - 1) // m) * m


_VMEM_LIMIT = 32 * 1024 * 1024  # conservative; safe on v5e/v6e/v7x


def _choose_m_tiling(M, tm_target):
    if M <= tm_target:
        Mp = _round_up(M, 16)
        return Mp, Mp
    Mp = _round_up(M, tm_target)
    return Mp, tm_target


# ----------------------------------------------------------------------------
# GEMM kernels
# ----------------------------------------------------------------------------
def _mm_bias_kernel(a_ref, b_ref, bias_ref, o_ref):
    acc = jnp.dot(a_ref[...], b_ref[...], preferred_element_type=jnp.float32)
    o_ref[...] = acc + bias_ref[...]


def _mm_bias_acc_kernel(a_ref, b_ref, bias_ref, o_ref, acc_ref):
    @pl.when(pl.program_id(1) == 0)
    def _():
        acc_ref[...] = jnp.zeros_like(acc_ref)

    acc_ref[...] += jnp.dot(a_ref[...], b_ref[...],
                            preferred_element_type=jnp.float32)

    @pl.when(pl.program_id(1) == pl.num_programs(1) - 1)
    def _():
        o_ref[...] = acc_ref[...] + bias_ref[...]


def _mm_stats_kernel(a_ref, b_ref, o_ref, sum_ref, sq_ref):
    """GEMM block + resident per-channel sum / sum-of-squares accumulation."""
    @pl.when(pl.program_id(0) == 0)
    def _():
        sum_ref[...] = jnp.zeros_like(sum_ref)
        sq_ref[...] = jnp.zeros_like(sq_ref)

    acc = jnp.dot(a_ref[...], b_ref[...], preferred_element_type=jnp.float32)
    o_ref[...] = acc
    sum_ref[...] += jnp.sum(acc, axis=0, keepdims=True)
    sq_ref[...] += jnp.sum(acc * acc, axis=0, keepdims=True)


def _mm_stats_acc_kernel(a_ref, b_ref, o_ref, sum_ref, sq_ref, acc_ref):
    i = pl.program_id(0)
    k = pl.program_id(1)

    @pl.when(jnp.logical_and(i == 0, k == 0))
    def _():
        sum_ref[...] = jnp.zeros_like(sum_ref)
        sq_ref[...] = jnp.zeros_like(sq_ref)

    @pl.when(k == 0)
    def _():
        acc_ref[...] = jnp.zeros_like(acc_ref)

    acc_ref[...] += jnp.dot(a_ref[...], b_ref[...],
                            preferred_element_type=jnp.float32)

    @pl.when(k == pl.num_programs(1) - 1)
    def _():
        acc = acc_ref[...]
        o_ref[...] = acc
        sum_ref[...] += jnp.sum(acc, axis=0, keepdims=True)
        sq_ref[...] += jnp.sum(acc * acc, axis=0, keepdims=True)


# ----------------------------------------------------------------------------
# GEMM wrappers
# ----------------------------------------------------------------------------
def pallas_matmul_bias(a, b, bias, *, tm_target=256, k_single_max=2048, tk=1024):
    """(M, K) @ (K, N) + bias[N] in f32; operands cast to bf16 for the MXU."""
    M, K = a.shape
    K2, N = b.shape
    assert K == K2
    a = a.astype(jnp.bfloat16)
    b = b.astype(jnp.bfloat16)
    bias2d = bias.reshape(1, N).astype(jnp.float32)

    Mp, tm = _choose_m_tiling(M, tm_target)
    if Mp != M:
        a = jnp.pad(a, ((0, Mp - M), (0, 0)))

    if K <= k_single_max:
        out = pl.pallas_call(
            _mm_bias_kernel,
            out_shape=jax.ShapeDtypeStruct((Mp, N), jnp.float32),
            grid_spec=pltpu.PrefetchScalarGridSpec(
                num_scalar_prefetch=0,
                grid=(Mp // tm,),
                in_specs=[
                    pl.BlockSpec((tm, K), lambda i: (i, 0)),
                    pl.BlockSpec((K, N), lambda i: (0, 0)),
                    pl.BlockSpec((1, N), lambda i: (0, 0)),
                ],
                out_specs=pl.BlockSpec((tm, N), lambda i: (i, 0)),
            ),
            compiler_params=pltpu.CompilerParams(
                dimension_semantics=("parallel",),
                vmem_limit_bytes=_VMEM_LIMIT),
        )(a, b, bias2d)
    else:
        Kp = _round_up(K, tk)
        if Kp != K:
            a = jnp.pad(a, ((0, 0), (0, Kp - K)))
            b = jnp.pad(b, ((0, Kp - K), (0, 0)))
        out = pl.pallas_call(
            _mm_bias_acc_kernel,
            out_shape=jax.ShapeDtypeStruct((Mp, N), jnp.float32),
            grid_spec=pltpu.PrefetchScalarGridSpec(
                num_scalar_prefetch=0,
                grid=(Mp // tm, Kp // tk),
                in_specs=[
                    pl.BlockSpec((tm, tk), lambda i, k: (i, k)),
                    pl.BlockSpec((tk, N), lambda i, k: (k, 0)),
                    pl.BlockSpec((1, N), lambda i, k: (0, 0)),
                ],
                out_specs=pl.BlockSpec((tm, N), lambda i, k: (i, 0)),
                scratch_shapes=[pltpu.VMEM((tm, N), jnp.float32)],
            ),
            compiler_params=pltpu.CompilerParams(
                dimension_semantics=("parallel", "arbitrary"),
                vmem_limit_bytes=_VMEM_LIMIT),
        )(a, b, bias2d)

    return out[:M] if Mp != M else out


def pallas_matmul_stats(a, b, *, tm_target=256, k_single_max=2048, tk=1024):
    """(M, K) @ (K, N) in f32 plus fused per-column sum / sum-of-squares.

    Padded M rows of `a` are zero, so they contribute nothing to the stats.
    Returns (out[M, N], col_sum[N], col_sq[N]).
    """
    M, K = a.shape
    K2, N = b.shape
    assert K == K2
    a = a.astype(jnp.bfloat16)
    b = b.astype(jnp.bfloat16)

    Mp, tm = _choose_m_tiling(M, tm_target)
    if Mp != M:
        a = jnp.pad(a, ((0, Mp - M), (0, 0)))

    out_shapes = (jax.ShapeDtypeStruct((Mp, N), jnp.float32),
                  jax.ShapeDtypeStruct((1, N), jnp.float32),
                  jax.ShapeDtypeStruct((1, N), jnp.float32))

    if K <= k_single_max:
        out, s, sq = pl.pallas_call(
            _mm_stats_kernel,
            out_shape=out_shapes,
            grid_spec=pltpu.PrefetchScalarGridSpec(
                num_scalar_prefetch=0,
                grid=(Mp // tm,),
                in_specs=[
                    pl.BlockSpec((tm, K), lambda i: (i, 0)),
                    pl.BlockSpec((K, N), lambda i: (0, 0)),
                ],
                out_specs=(pl.BlockSpec((tm, N), lambda i: (i, 0)),
                           pl.BlockSpec((1, N), lambda i: (0, 0)),
                           pl.BlockSpec((1, N), lambda i: (0, 0))),
            ),
            compiler_params=pltpu.CompilerParams(
                dimension_semantics=("arbitrary",),
                vmem_limit_bytes=_VMEM_LIMIT),
        )(a, b)
    else:
        Kp = _round_up(K, tk)
        if Kp != K:
            a = jnp.pad(a, ((0, 0), (0, Kp - K)))
            b = jnp.pad(b, ((0, Kp - K), (0, 0)))
        out, s, sq = pl.pallas_call(
            _mm_stats_acc_kernel,
            out_shape=out_shapes,
            grid_spec=pltpu.PrefetchScalarGridSpec(
                num_scalar_prefetch=0,
                grid=(Mp // tm, Kp // tk),
                in_specs=[
                    pl.BlockSpec((tm, tk), lambda i, k: (i, k)),
                    pl.BlockSpec((tk, N), lambda i, k: (k, 0)),
                ],
                out_specs=(pl.BlockSpec((tm, N), lambda i, k: (i, 0)),
                           pl.BlockSpec((1, N), lambda i, k: (0, 0)),
                           pl.BlockSpec((1, N), lambda i, k: (0, 0))),
                scratch_shapes=[pltpu.VMEM((tm, N), jnp.float32)],
            ),
            compiler_params=pltpu.CompilerParams(
                dimension_semantics=("arbitrary", "arbitrary"),
                vmem_limit_bytes=_VMEM_LIMIT),
        )(a, b)

    out = out[:M] if Mp != M else out
    return out, s.reshape(N), sq.reshape(N)


# ----------------------------------------------------------------------------
# BatchNorm apply (+ optional fused residual add) (+ ReLU), lane-dense
# ----------------------------------------------------------------------------
def _bn_apply_kernel(x_ref, scale_ref, shift_ref, o_ref, *, relu):
    y = x_ref[...] * scale_ref[...] + shift_ref[...]
    if relu:
        y = jnp.maximum(y, 0.0)
    o_ref[...] = y


def _bn_apply_res_kernel(x_ref, scale_ref, shift_ref, r_ref, o_ref, *, relu):
    y = x_ref[...] * scale_ref[...] + shift_ref[...] + r_ref[...]
    if relu:
        y = jnp.maximum(y, 0.0)
    o_ref[...] = y


def _bn_scale_shift(ch_sum, ch_sq, count, gamma, beta, eps=1e-5):
    """Training-mode BN: batch mean, biased variance -> per-channel scale/shift."""
    mean = ch_sum / count
    var = jnp.maximum(ch_sq / count - mean * mean, 0.0)
    scale = gamma.astype(jnp.float32) * jax.lax.rsqrt(var + eps)
    shift = beta.astype(jnp.float32) - mean * scale
    return scale, shift


def pallas_bn_apply(h_flat, scale, shift, out_dims, *, relu, residual=None):
    """h_flat: (M, C) f32 conv output; writes relu?(h*scale + shift [+ res])."""
    B, D, H, W, C = out_dims
    M = B * D * H * W
    T = M * C

    # Lane-dense layout: channel = lane % C (needs C | 128 and 128 | T),
    # otherwise fall back to (M, C) rows (still a single full-width block).
    L = 128 if (128 % C == 0 and T % 128 == 0) else C
    R = T // L
    xf = h_flat.reshape(R, L)
    rf = residual.reshape(R, L) if residual is not None else None
    rep = L // C
    scale_l = jnp.tile(scale, rep).reshape(1, L)
    shift_l = jnp.tile(shift, rep).reshape(1, L)

    TR = _round_up(R, 8) if R <= 1024 else 1024
    Rp = _round_up(R, TR)
    if Rp != R:
        xf = jnp.pad(xf, ((0, Rp - R), (0, 0)))
        if rf is not None:
            rf = jnp.pad(rf, ((0, Rp - R), (0, 0)))
    grid = (Rp // TR,)

    if rf is None:
        kern = functools.partial(_bn_apply_kernel, relu=relu)
        inputs = (xf, scale_l, shift_l)
        in_specs = [pl.BlockSpec((TR, L), lambda i: (i, 0)),
                    pl.BlockSpec((1, L), lambda i: (0, 0)),
                    pl.BlockSpec((1, L), lambda i: (0, 0))]
    else:
        kern = functools.partial(_bn_apply_res_kernel, relu=relu)
        inputs = (xf, scale_l, shift_l, rf)
        in_specs = [pl.BlockSpec((TR, L), lambda i: (i, 0)),
                    pl.BlockSpec((1, L), lambda i: (0, 0)),
                    pl.BlockSpec((1, L), lambda i: (0, 0)),
                    pl.BlockSpec((TR, L), lambda i: (i, 0))]

    yf = pl.pallas_call(
        kern,
        out_shape=jax.ShapeDtypeStruct((Rp, L), jnp.float32),
        grid_spec=pltpu.PrefetchScalarGridSpec(
            num_scalar_prefetch=0,
            grid=grid,
            in_specs=in_specs,
            out_specs=pl.BlockSpec((TR, L), lambda i: (i, 0)),
        ),
        compiler_params=pltpu.CompilerParams(
            dimension_semantics=("parallel",),
            vmem_limit_bytes=_VMEM_LIMIT),
    )(*inputs)

    if Rp != R:
        yf = yf[:R]
    return yf.reshape(B, D, H, W, C)


# ----------------------------------------------------------------------------
# Conv3d (stride 1, "same") helpers
# ----------------------------------------------------------------------------
def _im2col(x, k, padding):
    """x: (B,D,H,W,Cin) -> bf16 patch matrix (B*D*H*W, k^3*Cin)."""
    B, D, H, W, Cin = x.shape
    xb = x.astype(jnp.bfloat16)
    if k == 1:
        return xb.reshape(B * D * H * W, Cin)
    if padding > 0:
        pad = ((0, 0), (padding, padding), (padding, padding),
               (padding, padding), (0, 0))
        xb = jnp.pad(xb, pad)
    patches = []
    for dz in range(k):
        for dy in range(k):
            for dx in range(k):
                patches.append(xb[:, dz:dz + D, dy:dy + H, dx:dx + W, :])
    return jnp.stack(patches, axis=-2).reshape(B * D * H * W, k * k * k * Cin)


def _weight_matrix(w):
    """PyTorch (Cout,Cin,k,k,k) -> (k^3*Cin, Cout) bf16, matching _im2col order."""
    Cout, Cin, k, _, _ = w.shape
    return jnp.transpose(w, (2, 3, 4, 1, 0)).reshape(k * k * k * Cin, Cout) \
              .astype(jnp.bfloat16)


def conv3d(x, w, b, padding):
    """Plain conv: im2col + GEMM with bias fused into the epilogue."""
    B, D, H, W, Cin = x.shape
    Cout = w.shape[0]
    a = _im2col(x, w.shape[2], padding)
    wm = _weight_matrix(w)
    bias = b if b is not None else jnp.zeros((Cout,), jnp.float32)
    out = pallas_matmul_bias(a, wm, bias.astype(jnp.float32))
    return out.reshape(B, D, H, W, Cout)


def conv3d_bn(x, w, gamma, beta, padding, *, relu, residual=None, eps=1e-5):
    """Conv3d -> BatchNorm3d (batch stats) [-> + residual] [-> ReLU].

    The conv bias is omitted: with batch-statistics BN a per-channel constant
    cancels exactly.  Per-channel stats are accumulated inside the GEMM, so
    only one extra elementwise pass over the activation is needed.
    """
    B, D, H, W, Cin = x.shape
    Cout = w.shape[0]
    M = B * D * H * W
    a = _im2col(x, w.shape[2], padding)
    wm = _weight_matrix(w)
    out, ch_sum, ch_sq = pallas_matmul_stats(a, wm)
    scale, shift = _bn_scale_shift(ch_sum, ch_sq, M, gamma, beta, eps)
    return pallas_bn_apply(out, scale, shift, (B, D, H, W, Cout),
                           relu=relu, residual=residual)


def maxpool3d_2(x):
    """MaxPool3d(kernel=2, stride=2) on (B, D, H, W, C). Plain-JAX glue."""
    B, D, H, W, C = x.shape
    x = x.reshape(B, D // 2, 2, H // 2, 2, W // 2, 2, C)
    return jnp.max(x, axis=(2, 4, 6))


# ----------------------------------------------------------------------------
# Parameter initialization (deterministic, synthetic)
# ----------------------------------------------------------------------------
def _conv_init(key, cout, cin, k, bias=True):
    kw, kb = jax.random.split(key)
    fan_in = cin * k * k * k
    w = jax.random.normal(kw, (cout, cin, k, k, k), jnp.float32) / jnp.sqrt(fan_in)
    b = (0.1 * jax.random.normal(kb, (cout,), jnp.float32)) if bias else None
    return w, b


def _bn_init(key, c):
    kg, kb = jax.random.split(key)
    gamma = 1.0 + 0.1 * jax.random.normal(kg, (c,), jnp.float32)
    beta = 0.1 * jax.random.normal(kb, (c,), jnp.float32)
    return gamma, beta


def init_params(key, in_dims, basic_out_dims, blocks, dims):
    """Returns (params pytree, static per-block downsample flags)."""
    keys = iter(jax.random.split(key, 256))
    params = {}

    # BasicBlock3d: Conv3d(k=7, pad=3) -> BN -> ReLU -> Conv3d(k=1)
    cw, cb = _conv_init(next(keys), basic_out_dims, in_dims, 7)
    g, be = _bn_init(next(keys), basic_out_dims)
    fw, fb = _conv_init(next(keys), basic_out_dims, basic_out_dims, 1)
    # conv_b is kept for fidelity but is mathematically inert under batch-stat BN.
    params['basic'] = dict(conv_w=cw, conv_b=cb, bn_g=g, bn_b=be, fc_w=fw, fc_b=fb)

    block_params = []
    ds_flags = []
    curr = basic_out_dims
    for idx, nblk in enumerate(blocks):
        for i in range(nblk):
            ds_flags.append(i == nblk - 1)      # static Python bool, NOT traced
            out_dims = dims[idx]
            p = {}
            if curr != out_dims:
                p['shortcut_w'], _ = _conv_init(next(keys), out_dims, curr, 1,
                                                bias=False)
            else:
                p['shortcut_w'] = None
            for name, ci, co in (('b1', curr, curr), ('b2', curr, curr),
                                 ('b3', curr, out_dims)):
                w, bb = _conv_init(next(keys), co, ci, 3)
                g2, be2 = _bn_init(next(keys), co)
                p[f'{name}_w'], p[f'{name}_b'] = w, bb     # bias inert (BN follows)
                p[f'{name}_g'], p[f'{name}_be'] = g2, be2
            block_params.append(p)
            curr = out_dims
    params['blocks'] = block_params
    params['proj_w'] = None  # proj_out_dims=None -> nn.Identity
    return params, tuple(ds_flags)


# ----------------------------------------------------------------------------
# Forward pass (mirrors the PyTorch module graph exactly)
# ----------------------------------------------------------------------------
def resnet_block_forward(x, p, downsample):
    # short_cut = Sequential(MaxPool if downsample else Identity,
    #                        1x1 conv (no bias) if dims != out_dims else Identity)
    residual = x
    if downsample:
        residual = maxpool3d_2(residual)
    if p['shortcut_w'] is not None:
        residual = conv3d(residual, p['shortcut_w'], None, padding=0)

    h = conv3d_bn(x, p['b1_w'], p['b1_g'], p['b1_be'], padding=1, relu=True)
    if downsample:
        h = maxpool3d_2(h)                                       # self.downsample
    h = conv3d_bn(h, p['b2_w'], p['b2_g'], p['b2_be'], padding=1, relu=True)
    # block3 conv + BN (no relu) + residual add + ReLU, with BN apply / add /
    # ReLU fused in a single lane-dense Pallas pass.
    return conv3d_bn(h, p['b3_w'], p['b3_g'], p['b3_be'], padding=1,
                     relu=True, residual=residual)


def deep_resnet3d_forward(x_ncdhw, params, *, downsample_flags):
    # NCDHW -> NDHWC for channels-last kernels.
    x = jnp.transpose(x_ncdhw, (0, 2, 3, 4, 1)).astype(jnp.float32)

    bp = params['basic']
    x = conv3d_bn(x, bp['conv_w'], bp['bn_g'], bp['bn_b'], padding=3, relu=True)
    x = conv3d(x, bp['fc_w'], bp['fc_b'], padding=0)             # Conv3d k=1

    for p, ds in zip(params['blocks'], downsample_flags):
        x = resnet_block_forward(x, p, ds)

    if params['proj_w'] is not None:
        x = conv3d(x, params['proj_w'], None, padding=0)         # proj_out_conv

    return jnp.transpose(x, (0, 4, 1, 2, 3))                     # back to NCDHW


# ----------------------------------------------------------------------------
# Main
# ----------------------------------------------------------------------------
if __name__ == "__main__":
    # Small, shape-consistent config:
    #   DeepResnet3d(in_dims=4, basic_out_dims=8, blocks=[1, 2], dims=[8, 16])
    in_dims, basic_out_dims = 4, 8
    blocks, dims = [1, 2], [8, 16]
    B, S = 2, 8  # batch, cubic spatial extent

    key = jax.random.PRNGKey(0)
    kx, kp = jax.random.split(key)
    x = jax.random.normal(kx, (B, in_dims, S, S, S), jnp.float32)   # NCDHW
    params, ds_flags = init_params(kp, in_dims, basic_out_dims, blocks, dims)

    fwd = jax.jit(functools.partial(deep_resnet3d_forward,
                                    downsample_flags=ds_flags))
    out = jax.block_until_ready(fwd(x, params))

    # Two downsampling blocks: spatial 8 -> 4 -> 2, channels end at dims[-1]=16.
    assert out.shape == (B, dims[-1], S // 4, S // 4, S // 4), out.shape
    assert bool(jnp.all(jnp.isfinite(out)))
    print("KERNEL_OK")
</pallas_src>

<mosaic_0001>
module attributes {stable_mosaic.version = 11 : i64} {
  func.func @_mm_stats_kernel(%arg0: i32, %arg1: memref<256x1372xbf16, #tpu.memory_space<vmem>>, %arg2: memref<1372x8xbf16, #tpu.memory_space<vmem>>, %arg3: memref<256x8xf32, #tpu.memory_space<vmem>>, %arg4: memref<1x8xf32, #tpu.memory_space<vmem>>, %arg5: memref<1x8xf32, #tpu.memory_space<vmem>>) attributes {dimension_semantics = [#tpu.dimension_semantics<arbitrary>], iteration_bounds = array<i64: 4>, scalar_prefetch = 0 : i64, scratch_operands = 0 : i64, tpu.core_type = #tpu.core_type<tc>, window_params = [{transform_indices = @transform_0, window_bounds = array<i64: 256, 1372>}, {pipeline_mode = #tpu.pipeline_mode<synchronous>, transform_indices = @transform_1, window_bounds = array<i64: 1372, 8>}, {transform_indices = @transform_2, window_bounds = array<i64: 256, 8>}, {pipeline_mode = #tpu.pipeline_mode<synchronous>, transform_indices = @transform_3, window_bounds = array<i64: 1, 8>}, {pipeline_mode = #tpu.pipeline_mode<synchronous>, transform_indices = @transform_4, window_bounds = array<i64: 1, 8>}]} {
    %c0_i32 = arith.constant 0 : i32
    %0 = arith.cmpi eq, %arg0, %c0_i32 : i32
    %1 = arith.extui %0 : i1 to i32
    %c0_i32_0 = arith.constant 0 : i32
    %2 = arith.cmpi ne, %1, %c0_i32_0 : i32
    scf.if %2 {
      %cst_16 = arith.constant 0.000000e+00 : f32
      %18 = vector.broadcast %cst_16 : f32 to vector<1x8xf32>
      %c0_17 = arith.constant 0 : index
      %c0_18 = arith.constant 0 : index
      %19 = vector.load %arg4[%c0_17, %c0_18] : memref<1x8xf32, #tpu.memory_space<vmem>>, vector<1x8xf32>
      tpu.vector_store %arg4[%c0_17, %c0_18], %18 {strides = array<i32>} : memref<1x8xf32, #tpu.memory_space<vmem>>, vector<1x8xf32>,
      %cst_19 = arith.constant 0.000000e+00 : f32
      %20 = vector.broadcast %cst_19 : f32 to vector<1x8xf32>
      %c0_20 = arith.constant 0 : index
      %c0_21 = arith.constant 0 : index
      %21 = vector.load %arg5[%c0_20, %c0_21] : memref<1x8xf32, #tpu.memory_space<vmem>>, vector<1x8xf32>
      tpu.vector_store %arg5[%c0_20, %c0_21], %20 {strides = array<i32>} : memref<1x8xf32, #tpu.memory_space<vmem>>, vector<1x8xf32>,
    } else {
    }
    %c0 = arith.constant 0 : index
    %c0_1 = arith.constant 0 : index
    %3 = vector.load %arg1[%c0, %c0_1] : memref<256x1372xbf16, #tpu.memory_space<vmem>>, vector<256x1372xbf16>
    %c0_2 = arith.constant 0 : index
    %c0_3 = arith.constant 0 : index
    %4 = vector.load %arg2[%c0_2, %c0_3] : memref<1372x8xbf16, #tpu.memory_space<vmem>>, vector<1372x8xbf16>
    %cst = arith.constant dense<0.000000e+00> : vector<256x8xf32>
    %5 = tpu.matmul %3, %4, %cst {dimension_numbers = #tpu.dot_dimension_numbers<[1], [0], [0], [1], [0, 0, 1, 1], [], []>} : vector<256x1372xbf16>, vector<1372x8xbf16>, vector<256x8xf32> -> vector<256x8xf32>
    %c0_4 = arith.constant 0 : index
    %c0_5 = arith.constant 0 : index
    %6 = vector.load %arg3[%c0_4, %c0_5] : memref<256x8xf32, #tpu.memory_space<vmem>>, vector<256x8xf32>
    tpu.vector_store %arg3[%c0_4, %c0_5], %5 {strides = array<i32>} : memref<256x8xf32, #tpu.memory_space<vmem>>, vector<256x8xf32>,
    %c0_6 = arith.constant 0 : index
    %c0_7 = arith.constant 0 : index
    %7 = vector.load %arg4[%c0_6, %c0_7] : memref<1x8xf32, #tpu.memory_space<vmem>>, vector<1x8xf32>
    %cst_8 = arith.constant dense<0.000000e+00> : vector<8xf32>
    %8 = vector.multi_reduction <add>, %5, %cst_8 [0] : vector<256x8xf32> to vector<8xf32>
    %9 = vector.shape_cast %8 : vector<8xf32> to vector<1x8xf32>
    %10 = arith.addf %7, %9 : vector<1x8xf32>
    %c0_9 = arith.constant 0 : index
    %c0_10 = arith.constant 0 : index
    %11 = vector.load %arg4[%c0_9, %c0_10] : memref<1x8xf32, #tpu.memory_space<vmem>>, vector<1x8xf32>
    tpu.vector_store %arg4[%c0_9, %c0_10], %10 {strides = array<i32>} : memref<1x8xf32, #tpu.memory_space<vmem>>, vector<1x8xf32>,
    %c0_11 = arith.constant 0 : index
    %c0_12 = arith.constant 0 : index
    %12 = vector.load %arg5[%c0_11, %c0_12] : memref<1x8xf32, #tpu.memory_space<vmem>>, vector<1x8xf32>
    %13 = arith.mulf %5, %5 : vector<256x8xf32>
    %cst_13 = arith.constant dense<0.000000e+00> : vector<8xf32>
    %14 = vector.multi_reduction <add>, %13, %cst_13 [0] : vector<256x8xf32> to vector<8xf32>
    %15 = vector.shape_cast %14 : vector<8xf32> to vector<1x8xf32>
    %16 = arith.addf %12, %15 : vector<1x8xf32>
    %c0_14 = arith.constant 0 : index
    %c0_15 = arith.constant 0 : index
    %17 = vector.load %arg5[%c0_14, %c0_15] : memref<1x8xf32, #tpu.memory_space<vmem>>, vector<1x8xf32>
    tpu.vector_store %arg5[%c0_14, %c0_15], %16 {strides = array<i32>} : memref<1x8xf32, #tpu.memory_space<vmem>>, vector<1x8xf32>,
    return
  }
  func.func @transform_0(%arg0: i32) -> (i32, i32) {
    %c0_i32 = arith.constant 0 : i32
    %c0_i32_0 = arith.constant 0 : i32
    return %arg0, %c0_i32 : i32, i32
  }
  func.func @transform_1(%arg0: i32) -> (i32, i32) {
    %c0_i32 = arith.constant 0 : i32
    %c0_i32_0 = arith.constant 0 : i32
    %c0_i32_1 = arith.constant 0 : i32
    return %c0_i32, %c0_i32_0 : i32, i32
  }
  func.func @transform_2(%arg0: i32) -> (i32, i32) {
    %c0_i32 = arith.constant 0 : i32
    %c0_i32_0 = arith.constant 0 : i32
    return %arg0, %c0_i32 : i32, i32
  }
  func.func @transform_3(%arg0: i32) -> (i32, i32) {
    %c0_i32 = arith.constant 0 : i32
    %c0_i32_0 = arith.constant 0 : i32
    %c0_i32_1 = arith.constant 0 : i32
    return %c0_i32, %c0_i32_0 : i32, i32
  }
  func.func @transform_4(%arg0: i32) -> (i32, i32) {
    %c0_i32 = arith.constant 0 : i32
    %c0_i32_0 = arith.constant 0 : i32
    %c0_i32_1 = arith.constant 0 : i32
    return %c0_i32, %c0_i32_0 : i32, i32
  }
}

module attributes {stable_mosaic.version = 11 : i64} {
  func.func @_bn_apply_kernel(%arg0: i32, %arg1: memref<64x128xf32, #tpu.memory_space<vmem>>, %arg2: memref<1x128xf32, #tpu.memory_space<vmem>>, %arg3: memref<1x128xf32, #tpu.memory_space<vmem>>, %arg4: memref<64x128xf32, #tpu.memory_space<vmem>>) attributes {dimension_semantics = [#tpu.dimension_semantics<parallel>], iteration_bounds = array<i64: 1>, scalar_prefetch = 0 : i64, scratch_operands = 0 : i64, tpu.core_type = #tpu.core_type<tc>, window_params = [{transform_indices = @transform_0, window_bounds = array<i64: 64, 128>}, {pipeline_mode = #tpu.pipeline_mode<synchronous>, transform_indices = @transform_1, window_bounds = array<i64: 1, 128>}, {pipeline_mode = #tpu.pipeline_mode<synchronous>, transform_indices = @transform_2, window_bounds = array<i64: 1, 128>}, {transform_indices = @transform_3, window_bounds = array<i64: 64, 128>}]} {
    %c0 = arith.constant 0 : index
    %c0_0 = arith.constant 0 : index
    %0 = vector.load %arg1[%c0, %c0_0] : memref<64x128xf32, #tpu.memory_space<vmem>>, vector<64x128xf32>
    %c0_1 = arith.constant 0 : index
    %c0_2 = arith.constant 0 : index
    %1 = vector.load %arg2[%c0_1, %c0_2] : memref<1x128xf32, #tpu.memory_space<vmem>>, vector<1x128xf32>
    %2 = vector.broadcast %1 : vector<1x128xf32> to vector<64x128xf32>
    %3 = arith.mulf %0, %2 : vector<64x128xf32>
    %c0_3 = arith.constant 0 : index
    %c0_4 = arith.constant 0 : index
    %4 = vector.load %arg3[%c0_3, %c0_4] : memref<1x128xf32, #tpu.memory_space<vmem>>, vector<1x128xf32>
    %5 = vector.broadcast %4 : vector<1x128xf32> to vector<64x128xf32>
    %6 = arith.addf %3, %5 : vector<64x128xf32>
    %cst = arith.constant 0.000000e+00 : f32
    %7 = vector.broadcast %cst : f32 to vector<64x128xf32>
    %8 = arith.maximumf %6, %7 : vector<64x128xf32>
    %c0_5 = arith.constant 0 : index
    %c0_6 = arith.constant 0 : index
    %9 = vector.load %arg4[%c0_5, %c0_6] : memref<64x128xf32, #tpu.memory_space<vmem>>, vector<64x128xf32>
    tpu.vector_store %arg4[%c0_5, %c0_6], %8 {strides = array<i32>} : memref<64x128xf32, #tpu.memory_space<vmem>>, vector<64x128xf32>,
    return
  }
  func.func @transform_0(%arg0: i32) -> (i32, i32) {
    %c0_i32 = arith.constant 0 : i32
    %c0_i32_0 = arith.constant 0 : i32
    return %arg0, %c0_i32 : i32, i32
  }
  func.func @transform_1(%arg0: i32) -> (i32, i32) {
    %c0_i32 = arith.constant 0 : i32
    %c0_i32_0 = arith.constant 0 : i32
    %c0_i32_1 = arith.constant 0 : i32
    return %c0_i32, %c0_i32_0 : i32, i32
  }
  func.func @transform_2(%arg0: i32) -> (i32, i32) {
    %c0_i32 = arith.constant 0 : i32
    %c0_i32_0 = arith.constant 0 : i32
    %c0_i32_1 = arith.constant 0 : i32
    return %c0_i32, %c0_i32_0 : i32, i32
  }
  func.func @transform_3(%arg0: i32) -> (i32, i32) {
    %c0_i32 = arith.constant 0 : i32
    %c0_i32_0 = arith.constant 0 : i32
    return %arg0, %c0_i32 : i32, i32
  }
}

module attributes {stable_mosaic.version = 11 : i64} {
  func.func @_mm_bias_kernel(%arg0: i32, %arg1: memref<256x8xbf16, #tpu.memory_space<vmem>>, %arg2: memref<8x8xbf16, #tpu.memory_space<vmem>>, %arg3: memref<1x8xf32, #tpu.memory_space<vmem>>, %arg4: memref<256x8xf32, #tpu.memory_space<vmem>>) attributes {dimension_semantics = [#tpu.dimension_semantics<parallel>], iteration_bounds = array<i64: 4>, scalar_prefetch = 0 : i64, scratch_operands = 0 : i64, tpu.core_type = #tpu.core_type<tc>, window_params = [{transform_indices = @transform_0, window_bounds = array<i64: 256, 8>}, {pipeline_mode = #tpu.pipeline_mode<synchronous>, transform_indices = @transform_1, window_bounds = array<i64: 8, 8>}, {pipeline_mode = #tpu.pipeline_mode<synchronous>, transform_indices = @transform_2, window_bounds = array<i64: 1, 8>}, {transform_indices = @transform_3, window_bounds = array<i64: 256, 8>}]} {
    %c0 = arith.constant 0 : index
    %c0_0 = arith.constant 0 : index
    %0 = vector.load %arg1[%c0, %c0_0] : memref<256x8xbf16, #tpu.memory_space<vmem>>, vector<256x8xbf16>
    %c0_1 = arith.constant 0 : index
    %c0_2 = arith.constant 0 : index
    %1 = vector.load %arg2[%c0_1, %c0_2] : memref<8x8xbf16, #tpu.memory_space<vmem>>, vector<8x8xbf16>
    %cst = arith.constant dense<0.000000e+00> : vector<256x8xf32>
    %2 = tpu.matmul %0, %1, %cst {dimension_numbers = #tpu.dot_dimension_numbers<[1], [0], [0], [1], [0, 0, 1, 1], [], []>} : vector<256x8xbf16>, vector<8x8xbf16>, vector<256x8xf32> -> vector<256x8xf32>
    %c0_3 = arith.constant 0 : index
    %c0_4 = arith.constant 0 : index
    %3 = vector.load %arg3[%c0_3, %c0_4] : memref<1x8xf32, #tpu.memory_space<vmem>>, vector<1x8xf32>
    %4 = vector.broadcast %3 : vector<1x8xf32> to vector<256x8xf32>
    %5 = arith.addf %2, %4 : vector<256x8xf32>
    %c0_5 = arith.constant 0 : index
    %c0_6 = arith.constant 0 : index
    %6 = vector.load %arg4[%c0_5, %c0_6] : memref<256x8xf32, #tpu.memory_space<vmem>>, vector<256x8xf32>
    tpu.vector_store %arg4[%c0_5, %c0_6], %5 {strides = array<i32>} : memref<256x8xf32, #tpu.memory_space<vmem>>, vector<256x8xf32>,
    return
  }
  func.func @transform_0(%arg0: i32) -> (i32, i32) {
    %c0_i32 = arith.constant 0 : i32
    %c0_i32_0 = arith.constant 0 : i32
    return %arg0, %c0_i32 : i32, i32
  }
  func.func @transform_1(%arg0: i32) -> (i32, i32) {
    %c0_i32 = arith.constant 0 : i32
    %c0_i32_0 = arith.constant 0 : i32
    %c0_i32_1 = arith.constant 0 : i32
    return %c0_i32, %c0_i32_0 : i32, i32
  }
  func.func @transform_2(%arg0: i32) -> (i32, i32) {
    %c0_i32 = arith.constant 0 : i32
    %c0_i32_0 = arith.constant 0 : i32
    %c0_i32_1 = arith.constant 0 : i32
    return %c0_i32, %c0_i32_0 : i32, i32
  }
  func.func @transform_3(%arg0: i32) -> (i32, i32) {
    %c0_i32 = arith.constant 0 : i32
    %c0_i32_0 = arith.constant 0 : i32
    return %arg0, %c0_i32 : i32, i32
  }
}

module attributes {stable_mosaic.version = 11 : i64} {
  func.func @_mm_stats_kernel(%arg0: i32, %arg1: memref<256x216xbf16, #tpu.memory_space<vmem>>, %arg2: memref<216x8xbf16, #tpu.memory_space<vmem>>, %arg3: memref<256x8xf32, #tpu.memory_space<vmem>>, %arg4: memref<1x8xf32, #tpu.memory_space<vmem>>, %arg5: memref<1x8xf32, #tpu.memory_space<vmem>>) attributes {dimension_semantics = [#tpu.dimension_semantics<arbitrary>], iteration_bounds = array<i64: 4>, scalar_prefetch = 0 : i64, scratch_operands = 0 : i64, tpu.core_type = #tpu.core_type<tc>, window_params = [{transform_indices = @transform_0, window_bounds = array<i64: 256, 216>}, {pipeline_mode = #tpu.pipeline_mode<synchronous>, transform_indices = @transform_1, window_bounds = array<i64: 216, 8>}, {transform_indices = @transform_2, window_bounds = array<i64: 256, 8>}, {pipeline_mode = #tpu.pipeline_mode<synchronous>, transform_indices = @transform_3, window_bounds = array<i64: 1, 8>}, {pipeline_mode = #tpu.pipeline_mode<synchronous>, transform_indices = @transform_4, window_bounds = array<i64: 1, 8>}]} {
    %c0_i32 = arith.constant 0 : i32
    %0 = arith.cmpi eq, %arg0, %c0_i32 : i32
    %1 = arith.extui %0 : i1 to i32
    %c0_i32_0 = arith.constant 0 : i32
    %2 = arith.cmpi ne, %1, %c0_i32_0 : i32
    scf.if %2 {
      %cst_16 = arith.constant 0.000000e+00 : f32
      %18 = vector.broadcast %cst_16 : f32 to vector<1x8xf32>
      %c0_17 = arith.constant 0 : index
      %c0_18 = arith.constant 0 : index
      %19 = vector.load %arg4[%c0_17, %c0_18] : memref<1x8xf32, #tpu.memory_space<vmem>>, vector<1x8xf32>
      tpu.vector_store %arg4[%c0_17, %c0_18], %18 {strides = array<i32>} : memref<1x8xf32, #tpu.memory_space<vmem>>, vector<1x8xf32>,
      %cst_19 = arith.constant 0.000000e+00 : f32
      %20 = vector.broadcast %cst_19 : f32 to vector<1x8xf32>
      %c0_20 = arith.constant 0 : index
      %c0_21 = arith.constant 0 : index
      %21 = vector.load %arg5[%c0_20, %c0_21] : memref<1x8xf32, #tpu.memory_space<vmem>>, vector<1x8xf32>
      tpu.vector_store %arg5[%c0_20, %c0_21], %20 {strides = array<i32>} : memref<1x8xf32, #tpu.memory_space<vmem>>, vector<1x8xf32>,
    } else {
    }
    %c0 = arith.constant 0 : index
    %c0_1 = arith.constant 0 : index
    %3 = vector.load %arg1[%c0, %c0_1] : memref<256x216xbf16, #tpu.memory_space<vmem>>, vector<256x216xbf16>
    %c0_2 = arith.constant 0 : index
    %c0_3 = arith.constant 0 : index
    %4 = vector.load %arg2[%c0_2, %c0_3] : memref<216x8xbf16, #tpu.memory_space<vmem>>, vector<216x8xbf16>
    %cst = arith.constant dense<0.000000e+00> : vector<256x8xf32>
    %5 = tpu.matmul %3, %4, %cst {dimension_numbers = #tpu.dot_dimension_numbers<[1], [0], [0], [1], [0, 0, 1, 1], [], []>} : vector<256x216xbf16>, vector<216x8xbf16>, vector<256x8xf32> -> vector<256x8xf32>
    %c0_4 = arith.constant 0 : index
    %c0_5 = arith.constant 0 : index
    %6 = vector.load %arg3[%c0_4, %c0_5] : memref<256x8xf32, #tpu.memory_space<vmem>>, vector<256x8xf32>
    tpu.vector_store %arg3[%c0_4, %c0_5], %5 {strides = array<i32>} : memref<256x8xf32, #tpu.memory_space<vmem>>, vector<256x8xf32>,
    %c0_6 = arith.constant 0 : index
    %c0_7 = arith.constant 0 : index
    %7 = vector.load %arg4[%c0_6, %c0_7] : memref<1x8xf32, #tpu.memory_space<vmem>>, vector<1x8xf32>
    %cst_8 = arith.constant dense<0.000000e+00> : vector<8xf32>
    %8 = vector.multi_reduction <add>, %5, %cst_8 [0] : vector<256x8xf32> to vector<8xf32>
    %9 = vector.shape_cast %8 : vector<8xf32> to vector<1x8xf32>
    %10 = arith.addf %7, %9 : vector<1x8xf32>
    %c0_9 = arith.constant 0 : index
    %c0_10 = arith.constant 0 : index
    %11 = vector.load %arg4[%c0_9, %c0_10] : memref<1x8xf32, #tpu.memory_space<vmem>>, vector<1x8xf32>
    tpu.vector_store %arg4[%c0_9, %c0_10], %10 {strides = array<i32>} : memref<1x8xf32, #tpu.memory_space<vmem>>, vector<1x8xf32>,
    %c0_11 = arith.constant 0 : index
    %c0_12 = arith.constant 0 : index
    %12 = vector.load %arg5[%c0_11, %c0_12] : memref<1x8xf32, #tpu.memory_space<vmem>>, vector<1x8xf32>
    %13 = arith.mulf %5, %5 : vector<256x8xf32>
    %cst_13 = arith.constant dense<0.000000e+00> : vector<8xf32>
    %14 = vector.multi_reduction <add>, %13, %cst_13 [0] : vector<256x8xf32> to vector<8xf32>
    %15 = vector.shape_cast %14 : vector<8xf32> to vector<1x8xf32>
    %16 = arith.addf %12, %15 : vector<1x8xf32>
    %c0_14 = arith.constant 0 : index
    %c0_15 = arith.constant 0 : index
    %17 = vector.load %arg5[%c0_14, %c0_15] : memref<1x8xf32, #tpu.memory_space<vmem>>, vector<1x8xf32>
    tpu.vector_store %arg5[%c0_14, %c0_15], %16 {strides = array<i32>} : memref<1x8xf32, #tpu.memory_space<vmem>>, vector<1x8xf32>,
    return
  }
  func.func @transform_0(%arg0: i32) -> (i32, i32) {
    %c0_i32 = arith.constant 0 : i32
    %c0_i32_0 = arith.constant 0 : i32
    return %arg0, %c0_i32 : i32, i32
  }
  func.func @transform_1(%arg0: i32) -> (i32, i32) {
    %c0_i32 = arith.constant 0 : i32
    %c0_i32_0 = arith.constant 0 : i32
    %c0_i32_1 = arith.constant 0 : i32
    return %c0_i32, %c0_i32_0 : i32, i32
  }
  func.func @transform_2(%arg0: i32) -> (i32, i32) {
    %c0_i32 = arith.constant 0 : i32
    %c0_i32_0 = arith.constant 0 : i32
    return %arg0, %c0_i32 : i32, i32
  }
  func.func @transform_3(%arg0: i32) -> (i32, i32) {
    %c0_i32 = arith.constant 0 : i32
    %c0_i32_0 = arith.constant 0 : i32
    %c0_i32_1 = arith.constant 0 : i32
    return %c0_i32, %c0_i32_0 : i32, i32
  }
  func.func @transform_4(%arg0: i32) -> (i32, i32) {
    %c0_i32 = arith.constant 0 : i32
    %c0_i32_0 = arith.constant 0 : i32
    %c0_i32_1 = arith.constant 0 : i32
    return %c0_i32, %c0_i32_0 : i32, i32
  }
}

module attributes {stable_mosaic.version = 11 : i64} {
  func.func @_mm_stats_kernel(%arg0: i32, %arg1: memref<128x216xbf16, #tpu.memory_space<vmem>>, %arg2: memref<216x8xbf16, #tpu.memory_space<vmem>>, %arg3: memref<128x8xf32, #tpu.memory_space<vmem>>, %arg4: memref<1x8xf32, #tpu.memory_space<vmem>>, %arg5: memref<1x8xf32, #tpu.memory_space<vmem>>) attributes {dimension_semantics = [#tpu.dimension_semantics<arbitrary>], iteration_bounds = array<i64: 1>, scalar_prefetch = 0 : i64, scratch_operands = 0 : i64, tpu.core_type = #tpu.core_type<tc>, window_params = [{transform_indices = @transform_0, window_bounds = array<i64: 128, 216>}, {pipeline_mode = #tpu.pipeline_mode<synchronous>, transform_indices = @transform_1, window_bounds = array<i64: 216, 8>}, {transform_indices = @transform_2, window_bounds = array<i64: 128, 8>}, {pipeline_mode = #tpu.pipeline_mode<synchronous>, transform_indices = @transform_3, window_bounds = array<i64: 1, 8>}, {pipeline_mode = #tpu.pipeline_mode<synchronous>, transform_indices = @transform_4, window_bounds = array<i64: 1, 8>}]} {
    %c0_i32 = arith.constant 0 : i32
    %0 = arith.cmpi eq, %arg0, %c0_i32 : i32
    %1 = arith.extui %0 : i1 to i32
    %c0_i32_0 = arith.constant 0 : i32
    %2 = arith.cmpi ne, %1, %c0_i32_0 : i32
    scf.if %2 {
      %cst_16 = arith.constant 0.000000e+00 : f32
      %18 = vector.broadcast %cst_16 : f32 to vector<1x8xf32>
      %c0_17 = arith.constant 0 : index
      %c0_18 = arith.constant 0 : index
      %19 = vector.load %arg4[%c0_17, %c0_18] : memref<1x8xf32, #tpu.memory_space<vmem>>, vector<1x8xf32>
      tpu.vector_store %arg4[%c0_17, %c0_18], %18 {strides = array<i32>} : memref<1x8xf32, #tpu.memory_space<vmem>>, vector<1x8xf32>,
      %cst_19 = arith.constant 0.000000e+00 : f32
      %20 = vector.broadcast %cst_19 : f32 to vector<1x8xf32>
      %c0_20 = arith.constant 0 : index
      %c0_21 = arith.constant 0 : index
      %21 = vector.load %arg5[%c0_20, %c0_21] : memref<1x8xf32, #tpu.memory_space<vmem>>, vector<1x8xf32>
      tpu.vector_store %arg5[%c0_20, %c0_21], %20 {strides = array<i32>} : memref<1x8xf32, #tpu.memory_space<vmem>>, vector<1x8xf32>,
    } else {
    }
    %c0 = arith.constant 0 : index
    %c0_1 = arith.constant 0 : index
    %3 = vector.load %arg1[%c0, %c0_1] : memref<128x216xbf16, #tpu.memory_space<vmem>>, vector<128x216xbf16>
    %c0_2 = arith.constant 0 : index
    %c0_3 = arith.constant 0 : index
    %4 = vector.load %arg2[%c0_2, %c0_3] : memref<216x8xbf16, #tpu.memory_space<vmem>>, vector<216x8xbf16>
    %cst = arith.constant dense<0.000000e+00> : vector<128x8xf32>
    %5 = tpu.matmul %3, %4, %cst {dimension_numbers = #tpu.dot_dimension_numbers<[1], [0], [0], [1], [0, 0, 1, 1], [], []>} : vector<128x216xbf16>, vector<216x8xbf16>, vector<128x8xf32> -> vector<128x8xf32>
    %c0_4 = arith.constant 0 : index
    %c0_5 = arith.constant 0 : index
    %6 = vector.load %arg3[%c0_4, %c0_5] : memref<128x8xf32, #tpu.memory_space<vmem>>, vector<128x8xf32>
    tpu.vector_store %arg3[%c0_4, %c0_5], %5 {strides = array<i32>} : memref<128x8xf32, #tpu.memory_space<vmem>>, vector<128x8xf32>,
    %c0_6 = arith.constant 0 : index
    %c0_7 = arith.constant 0 : index
    %7 = vector.load %arg4[%c0_6, %c0_7] : memref<1x8xf32, #tpu.memory_space<vmem>>, vector<1x8xf32>
    %cst_8 = arith.constant dense<0.000000e+00> : vector<8xf32>
    %8 = vector.multi_reduction <add>, %5, %cst_8 [0] : vector<128x8xf32> to vector<8xf32>
    %9 = vector.shape_cast %8 : vector<8xf32> to vector<1x8xf32>
    %10 = arith.addf %7, %9 : vector<1x8xf32>
    %c0_9 = arith.constant 0 : index
    %c0_10 = arith.constant 0 : index
    %11 = vector.load %arg4[%c0_9, %c0_10] : memref<1x8xf32, #tpu.memory_space<vmem>>, vector<1x8xf32>
    tpu.vector_store %arg4[%c0_9, %c0_10], %10 {strides = array<i32>} : memref<1x8xf32, #tpu.memory_space<vmem>>, vector<1x8xf32>,
    %c0_11 = arith.constant 0 : index
    %c0_12 = arith.constant 0 : index
    %12 = vector.load %arg5[%c0_11, %c0_12] : memref<1x8xf32, #tpu.memory_space<vmem>>, vector<1x8xf32>
    %13 = arith.mulf %5, %5 : vector<128x8xf32>
    %cst_13 = arith.constant dense<0.000000e+00> : vector<8xf32>
    %14 = vector.multi_reduction <add>, %13, %cst_13 [0] : vector<128x8xf32> to vector<8xf32>
    %15 = vector.shape_cast %14 : vector<8xf32> to vector<1x8xf32>
    %16 = arith.addf %12, %15 : vector<1x8xf32>
    %c0_14 = arith.constant 0 : index
    %c0_15 = arith.constant 0 : index
    %17 = vector.load %arg5[%c0_14, %c0_15] : memref<1x8xf32, #tpu.memory_space<vmem>>, vector<1x8xf32>
    tpu.vector_store %arg5[%c0_14, %c0_15], %16 {strides = array<i32>} : memref<1x8xf32, #tpu.memory_space<vmem>>, vector<1x8xf32>,
    return
  }
  func.func @transform_0(%arg0: i32) -> (i32, i32) {
    %c0_i32 = arith.constant 0 : i32
    %c0_i32_0 = arith.constant 0 : i32
    return %arg0, %c0_i32 : i32, i32
  }
  func.func @transform_1(%arg0: i32) -> (i32, i32) {
    %c0_i32 = arith.constant 0 : i32
    %c0_i32_0 = arith.constant 0 : i32
    %c0_i32_1 = arith.constant 0 : i32
    return %c0_i32, %c0_i32_0 : i32, i32
  }
  func.func @transform_2(%arg0: i32) -> (i32, i32) {
    %c0_i32 = arith.constant 0 : i32
    %c0_i32_0 = arith.constant 0 : i32
    return %arg0, %c0_i32 : i32, i32
  }
  func.func @transform_3(%arg0: i32) -> (i32, i32) {
    %c0_i32 = arith.constant 0 : i32
    %c0_i32_0 = arith.constant 0 : i32
    %c0_i32_1 = arith.constant 0 : i32
    return %c0_i32, %c0_i32_0 : i32, i32
  }
  func.func @transform_4(%arg0: i32) -> (i32, i32) {
    %c0_i32 = arith.constant 0 : i32
    %c0_i32_0 = arith.constant 0 : i32
    %c0_i32_1 = arith.constant 0 : i32
    return %c0_i32, %c0_i32_0 : i32, i32
  }
}

module attributes {stable_mosaic.version = 11 : i64} {
  func.func @_bn_apply_kernel(%arg0: i32, %arg1: memref<8x128xf32, #tpu.memory_space<vmem>>, %arg2: memref<1x128xf32, #tpu.memory_space<vmem>>, %arg3: memref<1x128xf32, #tpu.memory_space<vmem>>, %arg4: memref<8x128xf32, #tpu.memory_space<vmem>>) attributes {dimension_semantics = [#tpu.dimension_semantics<parallel>], iteration_bounds = array<i64: 1>, scalar_prefetch = 0 : i64, scratch_operands = 0 : i64, tpu.core_type = #tpu.core_type<tc>, window_params = [{transform_indices = @transform_0, window_bounds = array<i64: 8, 128>}, {pipeline_mode = #tpu.pipeline_mode<synchronous>, transform_indices = @transform_1, window_bounds = array<i64: 1, 128>}, {pipeline_mode = #tpu.pipeline_mode<synchronous>, transform_indices = @transform_2, window_bounds = array<i64: 1, 128>}, {transform_indices = @transform_3, window_bounds = array<i64: 8, 128>}]} {
    %c0 = arith.constant 0 : index
    %c0_0 = arith.constant 0 : index
    %0 = vector.load %arg1[%c0, %c0_0] : memref<8x128xf32, #tpu.memory_space<vmem>>, vector<8x128xf32>
    %c0_1 = arith.constant 0 : index
    %c0_2 = arith.constant 0 : index
    %1 = vector.load %arg2[%c0_1, %c0_2] : memref<1x128xf32, #tpu.memory_space<vmem>>, vector<1x128xf32>
    %2 = vector.broadcast %1 : vector<1x128xf32> to vector<8x128xf32>
    %3 = arith.mulf %0, %2 : vector<8x128xf32>
    %c0_3 = arith.constant 0 : index
    %c0_4 = arith.constant 0 : index
    %4 = vector.load %arg3[%c0_3, %c0_4] : memref<1x128xf32, #tpu.memory_space<vmem>>, vector<1x128xf32>
    %5 = vector.broadcast %4 : vector<1x128xf32> to vector<8x128xf32>
    %6 = arith.addf %3, %5 : vector<8x128xf32>
    %cst = arith.constant 0.000000e+00 : f32
    %7 = vector.broadcast %cst : f32 to vector<8x128xf32>
    %8 = arith.maximumf %6, %7 : vector<8x128xf32>
    %c0_5 = arith.constant 0 : index
    %c0_6 = arith.constant 0 : index
    %9 = vector.load %arg4[%c0_5, %c0_6] : memref<8x128xf32, #tpu.memory_space<vmem>>, vector<8x128xf32>
    tpu.vector_store %arg4[%c0_5, %c0_6], %8 {strides = array<i32>} : memref<8x128xf32, #tpu.memory_space<vmem>>, vector<8x128xf32>,
    return
  }
  func.func @transform_0(%arg0: i32) -> (i32, i32) {
    %c0_i32 = arith.constant 0 : i32
    %c0_i32_0 = arith.constant 0 : i32
    return %arg0, %c0_i32 : i32, i32
  }
  func.func @transform_1(%arg0: i32) -> (i32, i32) {
    %c0_i32 = arith.constant 0 : i32
    %c0_i32_0 = arith.constant 0 : i32
    %c0_i32_1 = arith.constant 0 : i32
    return %c0_i32, %c0_i32_0 : i32, i32
  }
  func.func @transform_2(%arg0: i32) -> (i32, i32) {
    %c0_i32 = arith.constant 0 : i32
    %c0_i32_0 = arith.constant 0 : i32
    %c0_i32_1 = arith.constant 0 : i32
    return %c0_i32, %c0_i32_0 : i32, i32
  }
  func.func @transform_3(%arg0: i32) -> (i32, i32) {
    %c0_i32 = arith.constant 0 : i32
    %c0_i32_0 = arith.constant 0 : i32
    return %arg0, %c0_i32 : i32, i32
  }
}

module attributes {stable_mosaic.version = 11 : i64} {
  func.func @_bn_apply_res_kernel(%arg0: i32, %arg1: memref<8x128xf32, #tpu.memory_space<vmem>>, %arg2: memref<1x128xf32, #tpu.memory_space<vmem>>, %arg3: memref<1x128xf32, #tpu.memory_space<vmem>>, %arg4: memref<8x128xf32, #tpu.memory_space<vmem>>, %arg5: memref<8x128xf32, #tpu.memory_space<vmem>>) attributes {dimension_semantics = [#tpu.dimension_semantics<parallel>], iteration_bounds = array<i64: 1>, scalar_prefetch = 0 : i64, scratch_operands = 0 : i64, tpu.core_type = #tpu.core_type<tc>, window_params = [{transform_indices = @transform_0, window_bounds = array<i64: 8, 128>}, {pipeline_mode = #tpu.pipeline_mode<synchronous>, transform_indices = @transform_1, window_bounds = array<i64: 1, 128>}, {pipeline_mode = #tpu.pipeline_mode<synchronous>, transform_indices = @transform_2, window_bounds = array<i64: 1, 128>}, {transform_indices = @transform_3, window_bounds = array<i64: 8, 128>}, {transform_indices = @transform_4, window_bounds = array<i64: 8, 128>}]} {
    %c0 = arith.constant 0 : index
    %c0_0 = arith.constant 0 : index
    %0 = vector.load %arg1[%c0, %c0_0] : memref<8x128xf32, #tpu.memory_space<vmem>>, vector<8x128xf32>
    %c0_1 = arith.constant 0 : index
    %c0_2 = arith.constant 0 : index
    %1 = vector.load %arg2[%c0_1, %c0_2] : memref<1x128xf32, #tpu.memory_space<vmem>>, vector<1x128xf32>
    %2 = vector.broadcast %1 : vector<1x128xf32> to vector<8x128xf32>
    %3 = arith.mulf %0, %2 : vector<8x128xf32>
    %c0_3 = arith.constant 0 : index
    %c0_4 = arith.constant 0 : index
    %4 = vector.load %arg3[%c0_3, %c0_4] : memref<1x128xf32, #tpu.memory_space<vmem>>, vector<1x128xf32>
    %5 = vector.broadcast %4 : vector<1x128xf32> to vector<8x128xf32>
    %6 = arith.addf %3, %5 : vector<8x128xf32>
    %c0_5 = arith.constant 0 : index
    %c0_6 = arith.constant 0 : index
    %7 = vector.load %arg4[%c0_5, %c0_6] : memref<8x128xf32, #tpu.memory_space<vmem>>, vector<8x128xf32>
    %8 = arith.addf %6, %7 : vector<8x128xf32>
    %cst = arith.constant 0.000000e+00 : f32
    %9 = vector.broadcast %cst : f32 to vector<8x128xf32>
    %10 = arith.maximumf %8, %9 : vector<8x128xf32>
    %c0_7 = arith.constant 0 : index
    %c0_8 = arith.constant 0 : index
    %11 = vector.load %arg5[%c0_7, %c0_8] : memref<8x128xf32, #tpu.memory_space<vmem>>, vector<8x128xf32>
    tpu.vector_store %arg5[%c0_7, %c0_8], %10 {strides = array<i32>} : memref<8x128xf32, #tpu.memory_space<vmem>>, vector<8x128xf32>,
    return
  }
  func.func @transform_0(%arg0: i32) -> (i32, i32) {
    %c0_i32 = arith.constant 0 : i32
    %c0_i32_0 = arith.constant 0 : i32
    return %arg0, %c0_i32 : i32, i32
  }
  func.func @transform_1(%arg0: i32) -> (i32, i32) {
    %c0_i32 = arith.constant 0 : i32
    %c0_i32_0 = arith.constant 0 : i32
    %c0_i32_1 = arith.constant 0 : i32
    return %c0_i32, %c0_i32_0 : i32, i32
  }
  func.func @transform_2(%arg0: i32) -> (i32, i32) {
    %c0_i32 = arith.constant 0 : i32
    %c0_i32_0 = arith.constant 0 : i32
    %c0_i32_1 = arith.constant 0 : i32
    return %c0_i32, %c0_i32_0 : i32, i32
  }
  func.func @transform_3(%arg0: i32) -> (i32, i32) {
    %c0_i32 = arith.constant 0 : i32
    %c0_i32_0 = arith.constant 0 : i32
    return %arg0, %c0_i32 : i32, i32
  }
  func.func @transform_4(%arg0: i32) -> (i32, i32) {
    %c0_i32 = arith.constant 0 : i32
    %c0_i32_0 = arith.constant 0 : i32
    return %arg0, %c0_i32 : i32, i32
  }
}

module attributes {stable_mosaic.version = 11 : i64} {
  func.func @_mm_stats_kernel(%arg0: i32, %arg1: memref<128x216xbf16, #tpu.memory_space<vmem>>, %arg2: memref<216x16xbf16, #tpu.memory_space<vmem>>, %arg3: memref<128x16xf32, #tpu.memory_space<vmem>>, %arg4: memref<1x16xf32, #tpu.memory_space<vmem>>, %arg5: memref<1x16xf32, #tpu.memory_space<vmem>>) attributes {dimension_semantics = [#tpu.dimension_semantics<arbitrary>], iteration_bounds = array<i64: 1>, scalar_prefetch = 0 : i64, scratch_operands = 0 : i64, tpu.core_type = #tpu.core_type<tc>, window_params = [{transform_indices = @transform_0, window_bounds = array<i64: 128, 216>}, {pipeline_mode = #tpu.pipeline_mode<synchronous>, transform_indices = @transform_1, window_bounds = array<i64: 216, 16>}, {transform_indices = @transform_2, window_bounds = array<i64: 128, 16>}, {pipeline_mode = #tpu.pipeline_mode<synchronous>, transform_indices = @transform_3, window_bounds = array<i64: 1, 16>}, {pipeline_mode = #tpu.pipeline_mode<synchronous>, transform_indices = @transform_4, window_bounds = array<i64: 1, 16>}]} {
    %c0_i32 = arith.constant 0 : i32
    %0 = arith.cmpi eq, %arg0, %c0_i32 : i32
    %1 = arith.extui %0 : i1 to i32
    %c0_i32_0 = arith.constant 0 : i32
    %2 = arith.cmpi ne, %1, %c0_i32_0 : i32
    scf.if %2 {
      %cst_16 = arith.constant 0.000000e+00 : f32
      %18 = vector.broadcast %cst_16 : f32 to vector<1x16xf32>
      %c0_17 = arith.constant 0 : index
      %c0_18 = arith.constant 0 : index
      %19 = vector.load %arg4[%c0_17, %c0_18] : memref<1x16xf32, #tpu.memory_space<vmem>>, vector<1x16xf32>
      tpu.vector_store %arg4[%c0_17, %c0_18], %18 {strides = array<i32>} : memref<1x16xf32, #tpu.memory_space<vmem>>, vector<1x16xf32>,
      %cst_19 = arith.constant 0.000000e+00 : f32
      %20 = vector.broadcast %cst_19 : f32 to vector<1x16xf32>
      %c0_20 = arith.constant 0 : index
      %c0_21 = arith.constant 0 : index
      %21 = vector.load %arg5[%c0_20, %c0_21] : memref<1x16xf32, #tpu.memory_space<vmem>>, vector<1x16xf32>
      tpu.vector_store %arg5[%c0_20, %c0_21], %20 {strides = array<i32>} : memref<1x16xf32, #tpu.memory_space<vmem>>, vector<1x16xf32>,
    } else {
    }
    %c0 = arith.constant 0 : index
    %c0_1 = arith.constant 0 : index
    %3 = vector.load %arg1[%c0, %c0_1] : memref<128x216xbf16, #tpu.memory_space<vmem>>, vector<128x216xbf16>
    %c0_2 = arith.constant 0 : index
    %c0_3 = arith.constant 0 : index
    %4 = vector.load %arg2[%c0_2, %c0_3] : memref<216x16xbf16, #tpu.memory_space<vmem>>, vector<216x16xbf16>
    %cst = arith.constant dense<0.000000e+00> : vector<128x16xf32>
    %5 = tpu.matmul %3, %4, %cst {dimension_numbers = #tpu.dot_dimension_numbers<[1], [0], [0], [1], [0, 0, 1, 1], [], []>} : vector<128x216xbf16>, vector<216x16xbf16>, vector<128x16xf32> -> vector<128x16xf32>
    %c0_4 = arith.constant 0 : index
    %c0_5 = arith.constant 0 : index
    %6 = vector.load %arg3[%c0_4, %c0_5] : memref<128x16xf32, #tpu.memory_space<vmem>>, vector<128x16xf32>
    tpu.vector_store %arg3[%c0_4, %c0_5], %5 {strides = array<i32>} : memref<128x16xf32, #tpu.memory_space<vmem>>, vector<128x16xf32>,
    %c0_6 = arith.constant 0 : index
    %c0_7 = arith.constant 0 : index
    %7 = vector.load %arg4[%c0_6, %c0_7] : memref<1x16xf32, #tpu.memory_space<vmem>>, vector<1x16xf32>
    %cst_8 = arith.constant dense<0.000000e+00> : vector<16xf32>
    %8 = vector.multi_reduction <add>, %5, %cst_8 [0] : vector<128x16xf32> to vector<16xf32>
    %9 = vector.shape_cast %8 : vector<16xf32> to vector<1x16xf32>
    %10 = arith.addf %7, %9 : vector<1x16xf32>
    %c0_9 = arith.constant 0 : index
    %c0_10 = arith.constant 0 : index
    %11 = vector.load %arg4[%c0_9, %c0_10] : memref<1x16xf32, #tpu.memory_space<vmem>>, vector<1x16xf32>
    tpu.vector_store %arg4[%c0_9, %c0_10], %10 {strides = array<i32>} : memref<1x16xf32, #tpu.memory_space<vmem>>, vector<1x16xf32>,
    %c0_11 = arith.constant 0 : index
    %c0_12 = arith.constant 0 : index
    %12 = vector.load %arg5[%c0_11, %c0_12] : memref<1x16xf32, #tpu.memory_space<vmem>>, vector<1x16xf32>
    %13 = arith.mulf %5, %5 : vector<128x16xf32>
    %cst_13 = arith.constant dense<0.000000e+00> : vector<16xf32>
    %14 = vector.multi_reduction <add>, %13, %cst_13 [0] : vector<128x16xf32> to vector<16xf32>
    %15 = vector.shape_cast %14 : vector<16xf32> to vector<1x16xf32>
    %16 = arith.addf %12, %15 : vector<1x16xf32>
    %c0_14 = arith.constant 0 : index
    %c0_15 = arith.constant 0 : index
    %17 = vector.load %arg5[%c0_14, %c0_15] : memref<1x16xf32, #tpu.memory_space<vmem>>, vector<1x16xf32>
    tpu.vector_store %arg5[%c0_14, %c0_15], %16 {strides = array<i32>} : memref<1x16xf32, #tpu.memory_space<vmem>>, vector<1x16xf32>,
    return
  }
  func.func @transform_0(%arg0: i32) -> (i32, i32) {
    %c0_i32 = arith.constant 0 : i32
    %c0_i32_0 = arith.constant 0 : i32
    return %arg0, %c0_i32 : i32, i32
  }
  func.func @transform_1(%arg0: i32) -> (i32, i32) {
    %c0_i32 = arith.constant 0 : i32
    %c0_i32_0 = arith.constant 0 : i32
    %c0_i32_1 = arith.constant 0 : i32
    return %c0_i32, %c0_i32_0 : i32, i32
  }
  func.func @transform_2(%arg0: i32) -> (i32, i32) {
    %c0_i32 = arith.constant 0 : i32
    %c0_i32_0 = arith.constant 0 : i32
    return %arg0, %c0_i32 : i32, i32
  }
  func.func @transform_3(%arg0: i32) -> (i32, i32) {
    %c0_i32 = arith.constant 0 : i32
    %c0_i32_0 = arith.constant 0 : i32
    %c0_i32_1 = arith.constant 0 : i32
    return %c0_i32, %c0_i32_0 : i32, i32
  }
  func.func @transform_4(%arg0: i32) -> (i32, i32) {
    %c0_i32 = arith.constant 0 : i32
    %c0_i32_0 = arith.constant 0 : i32
    %c0_i32_1 = arith.constant 0 : i32
    return %c0_i32, %c0_i32_0 : i32, i32
  }
}

module attributes {stable_mosaic.version = 11 : i64} {
  func.func @_mm_bias_kernel(%arg0: i32, %arg1: memref<128x8xbf16, #tpu.memory_space<vmem>>, %arg2: memref<8x16xbf16, #tpu.memory_space<vmem>>, %arg3: memref<1x16xf32, #tpu.memory_space<vmem>>, %arg4: memref<128x16xf32, #tpu.memory_space<vmem>>) attributes {dimension_semantics = [#tpu.dimension_semantics<parallel>], iteration_bounds = array<i64: 1>, scalar_prefetch = 0 : i64, scratch_operands = 0 : i64, tpu.core_type = #tpu.core_type<tc>, window_params = [{transform_indices = @transform_0, window_bounds = array<i64: 128, 8>}, {pipeline_mode = #tpu.pipeline_mode<synchronous>, transform_indices = @transform_1, window_bounds = array<i64: 8, 16>}, {pipeline_mode = #tpu.pipeline_mode<synchronous>, transform_indices = @transform_2, window_bounds = array<i64: 1, 16>}, {transform_indices = @transform_3, window_bounds = array<i64: 128, 16>}]} {
    %c0 = arith.constant 0 : index
    %c0_0 = arith.constant 0 : index
    %0 = vector.load %arg1[%c0, %c0_0] : memref<128x8xbf16, #tpu.memory_space<vmem>>, vector<128x8xbf16>
    %c0_1 = arith.constant 0 : index
    %c0_2 = arith.constant 0 : index
    %1 = vector.load %arg2[%c0_1, %c0_2] : memref<8x16xbf16, #tpu.memory_space<vmem>>, vector<8x16xbf16>
    %cst = arith.constant dense<0.000000e+00> : vector<128x16xf32>
    %2 = tpu.matmul %0, %1, %cst {dimension_numbers = #tpu.dot_dimension_numbers<[1], [0], [0], [1], [0, 0, 1, 1], [], []>} : vector<128x8xbf16>, vector<8x16xbf16>, vector<128x16xf32> -> vector<128x16xf32>
    %c0_3 = arith.constant 0 : index
    %c0_4 = arith.constant 0 : index
    %3 = vector.load %arg3[%c0_3, %c0_4] : memref<1x16xf32, #tpu.memory_space<vmem>>, vector<1x16xf32>
    %4 = vector.broadcast %3 : vector<1x16xf32> to vector<128x16xf32>
    %5 = arith.addf %2, %4 : vector<128x16xf32>
    %c0_5 = arith.constant 0 : index
    %c0_6 = arith.constant 0 : index
    %6 = vector.load %arg4[%c0_5, %c0_6] : memref<128x16xf32, #tpu.memory_space<vmem>>, vector<128x16xf32>
    tpu.vector_store %arg4[%c0_5, %c0_6], %5 {strides = array<i32>} : memref<128x16xf32, #tpu.memory_space<vmem>>, vector<128x16xf32>,
    return
  }
  func.func @transform_0(%arg0: i32) -> (i32, i32) {
    %c0_i32 = arith.constant 0 : i32
    %c0_i32_0 = arith.constant 0 : i32
    return %arg0, %c0_i32 : i32, i32
  }
  func.func @transform_1(%arg0: i32) -> (i32, i32) {
    %c0_i32 = arith.constant 0 : i32
    %c0_i32_0 = arith.constant 0 : i32
    %c0_i32_1 = arith.constant 0 : i32
    return %c0_i32, %c0_i32_0 : i32, i32
  }
  func.func @transform_2(%arg0: i32) -> (i32, i32) {
    %c0_i32 = arith.constant 0 : i32
    %c0_i32_0 = arith.constant 0 : i32
    %c0_i32_1 = arith.constant 0 : i32
    return %c0_i32, %c0_i32_0 : i32, i32
  }
  func.func @transform_3(%arg0: i32) -> (i32, i32) {
    %c0_i32 = arith.constant 0 : i32
    %c0_i32_0 = arith.constant 0 : i32
    return %arg0, %c0_i32 : i32, i32
  }
}

module attributes {stable_mosaic.version = 11 : i64} {
  func.func @_bn_apply_res_kernel(%arg0: i32, %arg1: memref<16x128xf32, #tpu.memory_space<vmem>>, %arg2: memref<1x128xf32, #tpu.memory_space<vmem>>, %arg3: memref<1x128xf32, #tpu.memory_space<vmem>>, %arg4: memref<16x128xf32, #tpu.memory_space<vmem>>, %arg5: memref<16x128xf32, #tpu.memory_space<vmem>>) attributes {dimension_semantics = [#tpu.dimension_semantics<parallel>], iteration_bounds = array<i64: 1>, scalar_prefetch = 0 : i64, scratch_operands = 0 : i64, tpu.core_type = #tpu.core_type<tc>, window_params = [{transform_indices = @transform_0, window_bounds = array<i64: 16, 128>}, {pipeline_mode = #tpu.pipeline_mode<synchronous>, transform_indices = @transform_1, window_bounds = array<i64: 1, 128>}, {pipeline_mode = #tpu.pipeline_mode<synchronous>, transform_indices = @transform_2, window_bounds = array<i64: 1, 128>}, {transform_indices = @transform_3, window_bounds = array<i64: 16, 128>}, {transform_indices = @transform_4, window_bounds = array<i64: 16, 128>}]} {
    %c0 = arith.constant 0 : index
    %c0_0 = arith.constant 0 : index
    %0 = vector.load %arg1[%c0, %c0_0] : memref<16x128xf32, #tpu.memory_space<vmem>>, vector<16x128xf32>
    %c0_1 = arith.constant 0 : index
    %c0_2 = arith.constant 0 : index
    %1 = vector.load %arg2[%c0_1, %c0_2] : memref<1x128xf32, #tpu.memory_space<vmem>>, vector<1x128xf32>
    %2 = vector.broadcast %1 : vector<1x128xf32> to vector<16x128xf32>
    %3 = arith.mulf %0, %2 : vector<16x128xf32>
    %c0_3 = arith.constant 0 : index
    %c0_4 = arith.constant 0 : index
    %4 = vector.load %arg3[%c0_3, %c0_4] : memref<1x128xf32, #tpu.memory_space<vmem>>, vector<1x128xf32>
    %5 = vector.broadcast %4 : vector<1x128xf32> to vector<16x128xf32>
    %6 = arith.addf %3, %5 : vector<16x128xf32>
    %c0_5 = arith.constant 0 : index
    %c0_6 = arith.constant 0 : index
    %7 = vector.load %arg4[%c0_5, %c0_6] : memref<16x128xf32, #tpu.memory_space<vmem>>, vector<16x128xf32>
    %8 = arith.addf %6, %7 : vector<16x128xf32>
    %cst = arith.constant 0.000000e+00 : f32
    %9 = vector.broadcast %cst : f32 to vector<16x128xf32>
    %10 = arith.maximumf %8, %9 : vector<16x128xf32>
    %c0_7 = arith.constant 0 : index
    %c0_8 = arith.constant 0 : index
    %11 = vector.load %arg5[%c0_7, %c0_8] : memref<16x128xf32, #tpu.memory_space<vmem>>, vector<16x128xf32>
    tpu.vector_store %arg5[%c0_7, %c0_8], %10 {strides = array<i32>} : memref<16x128xf32, #tpu.memory_space<vmem>>, vector<16x128xf32>,
    return
  }
  func.func @transform_0(%arg0: i32) -> (i32, i32) {
    %c0_i32 = arith.constant 0 : i32
    %c0_i32_0 = arith.constant 0 : i32
    return %arg0, %c0_i32 : i32, i32
  }
  func.func @transform_1(%arg0: i32) -> (i32, i32) {
    %c0_i32 = arith.constant 0 : i32
    %c0_i32_0 = arith.constant 0 : i32
    %c0_i32_1 = arith.constant 0 : i32
    return %c0_i32, %c0_i32_0 : i32, i32
  }
  func.func @transform_2(%arg0: i32) -> (i32, i32) {
    %c0_i32 = arith.constant 0 : i32
    %c0_i32_0 = arith.constant 0 : i32
    %c0_i32_1 = arith.constant 0 : i32
    return %c0_i32, %c0_i32_0 : i32, i32
  }
  func.func @transform_3(%arg0: i32) -> (i32, i32) {
    %c0_i32 = arith.constant 0 : i32
    %c0_i32_0 = arith.constant 0 : i32
    return %arg0, %c0_i32 : i32, i32
  }
  func.func @transform_4(%arg0: i32) -> (i32, i32) {
    %c0_i32 = arith.constant 0 : i32
    %c0_i32_0 = arith.constant 0 : i32
    return %arg0, %c0_i32 : i32, i32
  }
}

module attributes {stable_mosaic.version = 11 : i64} {
  func.func @_mm_stats_kernel(%arg0: i32, %arg1: memref<128x432xbf16, #tpu.memory_space<vmem>>, %arg2: memref<432x16xbf16, #tpu.memory_space<vmem>>, %arg3: memref<128x16xf32, #tpu.memory_space<vmem>>, %arg4: memref<1x16xf32, #tpu.memory_space<vmem>>, %arg5: memref<1x16xf32, #tpu.memory_space<vmem>>) attributes {dimension_semantics = [#tpu.dimension_semantics<arbitrary>], iteration_bounds = array<i64: 1>, scalar_prefetch = 0 : i64, scratch_operands = 0 : i64, tpu.core_type = #tpu.core_type<tc>, window_params = [{transform_indices = @transform_0, window_bounds = array<i64: 128, 432>}, {pipeline_mode = #tpu.pipeline_mode<synchronous>, transform_indices = @transform_1, window_bounds = array<i64: 432, 16>}, {transform_indices = @transform_2, window_bounds = array<i64: 128, 16>}, {pipeline_mode = #tpu.pipeline_mode<synchronous>, transform_indices = @transform_3, window_bounds = array<i64: 1, 16>}, {pipeline_mode = #tpu.pipeline_mode<synchronous>, transform_indices = @transform_4, window_bounds = array<i64: 1, 16>}]} {
    %c0_i32 = arith.constant 0 : i32
    %0 = arith.cmpi eq, %arg0, %c0_i32 : i32
    %1 = arith.extui %0 : i1 to i32
    %c0_i32_0 = arith.constant 0 : i32
    %2 = arith.cmpi ne, %1, %c0_i32_0 : i32
    scf.if %2 {
      %cst_16 = arith.constant 0.000000e+00 : f32
      %18 = vector.broadcast %cst_16 : f32 to vector<1x16xf32>
      %c0_17 = arith.constant 0 : index
      %c0_18 = arith.constant 0 : index
      %19 = vector.load %arg4[%c0_17, %c0_18] : memref<1x16xf32, #tpu.memory_space<vmem>>, vector<1x16xf32>
      tpu.vector_store %arg4[%c0_17, %c0_18], %18 {strides = array<i32>} : memref<1x16xf32, #tpu.memory_space<vmem>>, vector<1x16xf32>,
      %cst_19 = arith.constant 0.000000e+00 : f32
      %20 = vector.broadcast %cst_19 : f32 to vector<1x16xf32>
      %c0_20 = arith.constant 0 : index
      %c0_21 = arith.constant 0 : index
      %21 = vector.load %arg5[%c0_20, %c0_21] : memref<1x16xf32, #tpu.memory_space<vmem>>, vector<1x16xf32>
      tpu.vector_store %arg5[%c0_20, %c0_21], %20 {strides = array<i32>} : memref<1x16xf32, #tpu.memory_space<vmem>>, vector<1x16xf32>,
    } else {
    }
    %c0 = arith.constant 0 : index
    %c0_1 = arith.constant 0 : index
    %3 = vector.load %arg1[%c0, %c0_1] : memref<128x432xbf16, #tpu.memory_space<vmem>>, vector<128x432xbf16>
    %c0_2 = arith.constant 0 : index
    %c0_3 = arith.constant 0 : index
    %4 = vector.load %arg2[%c0_2, %c0_3] : memref<432x16xbf16, #tpu.memory_space<vmem>>, vector<432x16xbf16>
    %cst = arith.constant dense<0.000000e+00> : vector<128x16xf32>
    %5 = tpu.matmul %3, %4, %cst {dimension_numbers = #tpu.dot_dimension_numbers<[1], [0], [0], [1], [0, 0, 1, 1], [], []>} : vector<128x432xbf16>, vector<432x16xbf16>, vector<128x16xf32> -> vector<128x16xf32>
    %c0_4 = arith.constant 0 : index
    %c0_5 = arith.constant 0 : index
    %6 = vector.load %arg3[%c0_4, %c0_5] : memref<128x16xf32, #tpu.memory_space<vmem>>, vector<128x16xf32>
    tpu.vector_store %arg3[%c0_4, %c0_5], %5 {strides = array<i32>} : memref<128x16xf32, #tpu.memory_space<vmem>>, vector<128x16xf32>,
    %c0_6 = arith.constant 0 : index
    %c0_7 = arith.constant 0 : index
    %7 = vector.load %arg4[%c0_6, %c0_7] : memref<1x16xf32, #tpu.memory_space<vmem>>, vector<1x16xf32>
    %cst_8 = arith.constant dense<0.000000e+00> : vector<16xf32>
    %8 = vector.multi_reduction <add>, %5, %cst_8 [0] : vector<128x16xf32> to vector<16xf32>
    %9 = vector.shape_cast %8 : vector<16xf32> to vector<1x16xf32>
    %10 = arith.addf %7, %9 : vector<1x16xf32>
    %c0_9 = arith.constant 0 : index
    %c0_10 = arith.constant 0 : index
    %11 = vector.load %arg4[%c0_9, %c0_10] : memref<1x16xf32, #tpu.memory_space<vmem>>, vector<1x16xf32>
    tpu.vector_store %arg4[%c0_9, %c0_10], %10 {strides = array<i32>} : memref<1x16xf32, #tpu.memory_space<vmem>>, vector<1x16xf32>,
    %c0_11 = arith.constant 0 : index
    %c0_12 = arith.constant 0 : index
    %12 = vector.load %arg5[%c0_11, %c0_12] : memref<1x16xf32, #tpu.memory_space<vmem>>, vector<1x16xf32>
    %13 = arith.mulf %5, %5 : vector<128x16xf32>
    %cst_13 = arith.constant dense<0.000000e+00> : vector<16xf32>
    %14 = vector.multi_reduction <add>, %13, %cst_13 [0] : vector<128x16xf32> to vector<16xf32>
    %15 = vector.shape_cast %14 : vector<16xf32> to vector<1x16xf32>
    %16 = arith.addf %12, %15 : vector<1x16xf32>
    %c0_14 = arith.constant 0 : index
    %c0_15 = arith.constant 0 : index
    %17 = vector.load %arg5[%c0_14, %c0_15] : memref<1x16xf32, #tpu.memory_space<vmem>>, vector<1x16xf32>
    tpu.vector_store %arg5[%c0_14, %c0_15], %16 {strides = array<i32>} : memref<1x16xf32, #tpu.memory_space<vmem>>, vector<1x16xf32>,
    return
  }
  func.func @transform_0(%arg0: i32) -> (i32, i32) {
    %c0_i32 = arith.constant 0 : i32
    %c0_i32_0 = arith.constant 0 : i32
    return %arg0, %c0_i32 : i32, i32
  }
  func.func @transform_1(%arg0: i32) -> (i32, i32) {
    %c0_i32 = arith.constant 0 : i32
    %c0_i32_0 = arith.constant 0 : i32
    %c0_i32_1 = arith.constant 0 : i32
    return %c0_i32, %c0_i32_0 : i32, i32
  }
  func.func @transform_2(%arg0: i32) -> (i32, i32) {
    %c0_i32 = arith.constant 0 : i32
    %c0_i32_0 = arith.constant 0 : i32
    return %arg0, %c0_i32 : i32, i32
  }
  func.func @transform_3(%arg0: i32) -> (i32, i32) {
    %c0_i32 = arith.constant 0 : i32
    %c0_i32_0 = arith.constant 0 : i32
    %c0_i32_1 = arith.constant 0 : i32
    return %c0_i32, %c0_i32_0 : i32, i32
  }
  func.func @transform_4(%arg0: i32) -> (i32, i32) {
    %c0_i32 = arith.constant 0 : i32
    %c0_i32_0 = arith.constant 0 : i32
    %c0_i32_1 = arith.constant 0 : i32
    return %c0_i32, %c0_i32_0 : i32, i32
  }
}

module attributes {stable_mosaic.version = 11 : i64} {
  func.func @_bn_apply_kernel(%arg0: i32, %arg1: memref<16x128xf32, #tpu.memory_space<vmem>>, %arg2: memref<1x128xf32, #tpu.memory_space<vmem>>, %arg3: memref<1x128xf32, #tpu.memory_space<vmem>>, %arg4: memref<16x128xf32, #tpu.memory_space<vmem>>) attributes {dimension_semantics = [#tpu.dimension_semantics<parallel>], iteration_bounds = array<i64: 1>, scalar_prefetch = 0 : i64, scratch_operands = 0 : i64, tpu.core_type = #tpu.core_type<tc>, window_params = [{transform_indices = @transform_0, window_bounds = array<i64: 16, 128>}, {pipeline_mode = #tpu.pipeline_mode<synchronous>, transform_indices = @transform_1, window_bounds = array<i64: 1, 128>}, {pipeline_mode = #tpu.pipeline_mode<synchronous>, transform_indices = @transform_2, window_bounds = array<i64: 1, 128>}, {transform_indices = @transform_3, window_bounds = array<i64: 16, 128>}]} {
    %c0 = arith.constant 0 : index
    %c0_0 = arith.constant 0 : index
    %0 = vector.load %arg1[%c0, %c0_0] : memref<16x128xf32, #tpu.memory_space<vmem>>, vector<16x128xf32>
    %c0_1 = arith.constant 0 : index
    %c0_2 = arith.constant 0 : index
    %1 = vector.load %arg2[%c0_1, %c0_2] : memref<1x128xf32, #tpu.memory_space<vmem>>, vector<1x128xf32>
    %2 = vector.broadcast %1 : vector<1x128xf32> to vector<16x128xf32>
    %3 = arith.mulf %0, %2 : vector<16x128xf32>
    %c0_3 = arith.constant 0 : index
    %c0_4 = arith.constant 0 : index
    %4 = vector.load %arg3[%c0_3, %c0_4] : memref<1x128xf32, #tpu.memory_space<vmem>>, vector<1x128xf32>
    %5 = vector.broadcast %4 : vector<1x128xf32> to vector<16x128xf32>
    %6 = arith.addf %3, %5 : vector<16x128xf32>
    %cst = arith.constant 0.000000e+00 : f32
    %7 = vector.broadcast %cst : f32 to vector<16x128xf32>
    %8 = arith.maximumf %6, %7 : vector<16x128xf32>
    %c0_5 = arith.constant 0 : index
    %c0_6 = arith.constant 0 : index
    %9 = vector.load %arg4[%c0_5, %c0_6] : memref<16x128xf32, #tpu.memory_space<vmem>>, vector<16x128xf32>
    tpu.vector_store %arg4[%c0_5, %c0_6], %8 {strides = array<i32>} : memref<16x128xf32, #tpu.memory_space<vmem>>, vector<16x128xf32>,
    return
  }
  func.func @transform_0(%arg0: i32) -> (i32, i32) {
    %c0_i32 = arith.constant 0 : i32
    %c0_i32_0 = arith.constant 0 : i32
    return %arg0, %c0_i32 : i32, i32
  }
  func.func @transform_1(%arg0: i32) -> (i32, i32) {
    %c0_i32 = arith.constant 0 : i32
    %c0_i32_0 = arith.constant 0 : i32
    %c0_i32_1 = arith.constant 0 : i32
    return %c0_i32, %c0_i32_0 : i32, i32
  }
  func.func @transform_2(%arg0: i32) -> (i32, i32) {
    %c0_i32 = arith.constant 0 : i32
    %c0_i32_0 = arith.constant 0 : i32
    %c0_i32_1 = arith.constant 0 : i32
    return %c0_i32, %c0_i32_0 : i32, i32
  }
  func.func @transform_3(%arg0: i32) -> (i32, i32) {
    %c0_i32 = arith.constant 0 : i32
    %c0_i32_0 = arith.constant 0 : i32
    return %arg0, %c0_i32 : i32, i32
  }
}

module attributes {stable_mosaic.version = 11 : i64} {
  func.func @_mm_stats_kernel(%arg0: i32, %arg1: memref<16x432xbf16, #tpu.memory_space<vmem>>, %arg2: memref<432x16xbf16, #tpu.memory_space<vmem>>, %arg3: memref<16x16xf32, #tpu.memory_space<vmem>>, %arg4: memref<1x16xf32, #tpu.memory_space<vmem>>, %arg5: memref<1x16xf32, #tpu.memory_space<vmem>>) attributes {dimension_semantics = [#tpu.dimension_semantics<arbitrary>], iteration_bounds = array<i64: 1>, scalar_prefetch = 0 : i64, scratch_operands = 0 : i64, tpu.core_type = #tpu.core_type<tc>, window_params = [{transform_indices = @transform_0, window_bounds = array<i64: 16, 432>}, {pipeline_mode = #tpu.pipeline_mode<synchronous>, transform_indices = @transform_1, window_bounds = array<i64: 432, 16>}, {transform_indices = @transform_2, window_bounds = array<i64: 16, 16>}, {pipeline_mode = #tpu.pipeline_mode<synchronous>, transform_indices = @transform_3, window_bounds = array<i64: 1, 16>}, {pipeline_mode = #tpu.pipeline_mode<synchronous>, transform_indices = @transform_4, window_bounds = array<i64: 1, 16>}]} {
    %c0_i32 = arith.constant 0 : i32
    %0 = arith.cmpi eq, %arg0, %c0_i32 : i32
    %1 = arith.extui %0 : i1 to i32
    %c0_i32_0 = arith.constant 0 : i32
    %2 = arith.cmpi ne, %1, %c0_i32_0 : i32
    scf.if %2 {
      %cst_16 = arith.constant 0.000000e+00 : f32
      %18 = vector.broadcast %cst_16 : f32 to vector<1x16xf32>
      %c0_17 = arith.constant 0 : index
      %c0_18 = arith.constant 0 : index
      %19 = vector.load %arg4[%c0_17, %c0_18] : memref<1x16xf32, #tpu.memory_space<vmem>>, vector<1x16xf32>
      tpu.vector_store %arg4[%c0_17, %c0_18], %18 {strides = array<i32>} : memref<1x16xf32, #tpu.memory_space<vmem>>, vector<1x16xf32>,
      %cst_19 = arith.constant 0.000000e+00 : f32
      %20 = vector.broadcast %cst_19 : f32 to vector<1x16xf32>
      %c0_20 = arith.constant 0 : index
      %c0_21 = arith.constant 0 : index
      %21 = vector.load %arg5[%c0_20, %c0_21] : memref<1x16xf32, #tpu.memory_space<vmem>>, vector<1x16xf32>
      tpu.vector_store %arg5[%c0_20, %c0_21], %20 {strides = array<i32>} : memref<1x16xf32, #tpu.memory_space<vmem>>, vector<1x16xf32>,
    } else {
    }
    %c0 = arith.constant 0 : index
    %c0_1 = arith.constant 0 : index
    %3 = vector.load %arg1[%c0, %c0_1] : memref<16x432xbf16, #tpu.memory_space<vmem>>, vector<16x432xbf16>
    %c0_2 = arith.constant 0 : index
    %c0_3 = arith.constant 0 : index
    %4 = vector.load %arg2[%c0_2, %c0_3] : memref<432x16xbf16, #tpu.memory_space<vmem>>, vector<432x16xbf16>
    %cst = arith.constant dense<0.000000e+00> : vector<16x16xf32>
    %5 = tpu.matmul %3, %4, %cst {dimension_numbers = #tpu.dot_dimension_numbers<[1], [0], [0], [1], [0, 0, 1, 1], [], []>} : vector<16x432xbf16>, vector<432x16xbf16>, vector<16x16xf32> -> vector<16x16xf32>
    %c0_4 = arith.constant 0 : index
    %c0_5 = arith.constant 0 : index
    %6 = vector.load %arg3[%c0_4, %c0_5] : memref<16x16xf32, #tpu.memory_space<vmem>>, vector<16x16xf32>
    tpu.vector_store %arg3[%c0_4, %c0_5], %5 {strides = array<i32>} : memref<16x16xf32, #tpu.memory_space<vmem>>, vector<16x16xf32>,
    %c0_6 = arith.constant 0 : index
    %c0_7 = arith.constant 0 : index
    %7 = vector.load %arg4[%c0_6, %c0_7] : memref<1x16xf32, #tpu.memory_space<vmem>>, vector<1x16xf32>
    %cst_8 = arith.constant dense<0.000000e+00> : vector<16xf32>
    %8 = vector.multi_reduction <add>, %5, %cst_8 [0] : vector<16x16xf32> to vector<16xf32>
    %9 = vector.shape_cast %8 : vector<16xf32> to vector<1x16xf32>
    %10 = arith.addf %7, %9 : vector<1x16xf32>
    %c0_9 = arith.constant 0 : index
    %c0_10 = arith.constant 0 : index
    %11 = vector.load %arg4[%c0_9, %c0_10] : memref<1x16xf32, #tpu.memory_space<vmem>>, vector<1x16xf32>
    tpu.vector_store %arg4[%c0_9, %c0_10], %10 {strides = array<i32>} : memref<1x16xf32, #tpu.memory_space<vmem>>, vector<1x16xf32>,
    %c0_11 = arith.constant 0 : index
    %c0_12 = arith.constant 0 : index
    %12 = vector.load %arg5[%c0_11, %c0_12] : memref<1x16xf32, #tpu.memory_space<vmem>>, vector<1x16xf32>
    %13 = arith.mulf %5, %5 : vector<16x16xf32>
    %cst_13 = arith.constant dense<0.000000e+00> : vector<16xf32>
    %14 = vector.multi_reduction <add>, %13, %cst_13 [0] : vector<16x16xf32> to vector<16xf32>
    %15 = vector.shape_cast %14 : vector<16xf32> to vector<1x16xf32>
    %16 = arith.addf %12, %15 : vector<1x16xf32>
    %c0_14 = arith.constant 0 : index
    %c0_15 = arith.constant 0 : index
    %17 = vector.load %arg5[%c0_14, %c0_15] : memref<1x16xf32, #tpu.memory_space<vmem>>, vector<1x16xf32>
    tpu.vector_store %arg5[%c0_14, %c0_15], %16 {strides = array<i32>} : memref<1x16xf32, #tpu.memory_space<vmem>>, vector<1x16xf32>,
    return
  }
  func.func @transform_0(%arg0: i32) -> (i32, i32) {
    %c0_i32 = arith.constant 0 : i32
    %c0_i32_0 = arith.constant 0 : i32
    return %arg0, %c0_i32 : i32, i32
  }
  func.func @transform_1(%arg0: i32) -> (i32, i32) {
    %c0_i32 = arith.constant 0 : i32
    %c0_i32_0 = arith.constant 0 : i32
    %c0_i32_1 = arith.constant 0 : i32
    return %c0_i32, %c0_i32_0 : i32, i32
  }
  func.func @transform_2(%arg0: i32) -> (i32, i32) {
    %c0_i32 = arith.constant 0 : i32
    %c0_i32_0 = arith.constant 0 : i32
    return %arg0, %c0_i32 : i32, i32
  }
  func.func @transform_3(%arg0: i32) -> (i32, i32) {
    %c0_i32 = arith.constant 0 : i32
    %c0_i32_0 = arith.constant 0 : i32
    %c0_i32_1 = arith.constant 0 : i32
    return %c0_i32, %c0_i32_0 : i32, i32
  }
  func.func @transform_4(%arg0: i32) -> (i32, i32) {
    %c0_i32 = arith.constant 0 : i32
    %c0_i32_0 = arith.constant 0 : i32
    %c0_i32_1 = arith.constant 0 : i32
    return %c0_i32, %c0_i32_0 : i32, i32
  }
}

</mosaic_0001>

<llo_original>
// kernel: tile.103
$region0: #{tile.103}
  #allocation0 [shape = 's32[1]{0}', space=sflag, size = 0x4, scoped, tag = 'scoped memory for tile.103']
  %s0 = inlined_call_operand.vmem [shape: f32[8], index: 0, kind: input, shape index: {}]
  %s1 = inlined_call_operand.vmem [shape: f32[16,8], index: 1, kind: output, shape index: {}]
  // Predicated region
  $region2: #{tile.103} parent=0 // pred_check
    _
  $region3: #{tile.103} parent=0 // pred_check_branch
    %3 = sbr.rel (0) target = $region5
  $region4: #{tile.103} parent=0 // pred_region
    _
  $region5: #{tile.103} parent=0 // pred_fallthru
    _
  %v4 = vld [vmem:[%s0] ss:$0 sm:$0xff]
  %5 = vst [vmem:[%s1] sm:$0xff] %v4
  %s6 = scalar_lea.vmem %s1, 8
  %7 = vst [vmem:[%s6] sm:$0xff] %v4

// kernel: tile.104
$region0: #{tile.104}
  %s0 = inlined_call_operand.vmem [shape: f32[16,8], index: 0, kind: input, shape index: {}]
  %s1 = inlined_call_operand.vmem [shape: f32[1,128], index: 1, kind: output, shape index: {}]
  $region1: #{tile.104} parent=0
    #allocation0 [shape = 'u8[4096]{0}', space=vmem, size = 0x1000, scoped, tag = 'scoped mem for output reshape']
    %v2 = vld [vmem:[%s0] sm:$0x1]
    %vm3 = vcmask 64512
    %4 = vst.msk [vmem:[#allocation0] sm:$0x1] %vm3, %v2
    %s5 = scalar_lea.vmem %s0, 15
    %v6 = vld [vmem:[%s5] sm:$0x1]
    %7 = vrot.lane.b32.xlu0 %v6, 120
    %v8 = vpop.permute.xlu0 %7
    %vm9 = vcmask 1048512
    %10 = vst.msk [vmem:[#allocation0] sm:$0x1] %vm9, %v8
    %s11 = scalar_lea.vmem %s0, 14
    %v12 = vld [vmem:[%s11] sm:$0x1]
    %13 = vrot.lane.b32.xlu0 %v12, 112
    %v14 = vpop.permute.xlu0 %13
    %vm15 = vcmask 982912
    %16 = vst.msk [vmem:[#allocation0] sm:$0x1] %vm15, %v14
    %s17 = scalar_lea.vmem %s0, 13
    %v18 = vld [vmem:[%s17] sm:$0x1]
    %19 = vrot.lane.b32.xlu0 %v18, 104
    %v20 = vpop.permute.xlu0 %19
    %vm21 = vcmask 917312
    %22 = vst.msk [vmem:[#allocation0] sm:$0x1] %vm21, %v20
    %s23 = scalar_lea.vmem %s0, 12
    %v24 = vld [vmem:[%s23] sm:$0x1]
    %25 = vrot.lane.b32.xlu0 %v24, 96
    %v26 = vpop.permute.xlu0 %25
    %vm27 = vcmask 851712
    %28 = vst.msk [vmem:[#allocation0] sm:$0x1] %vm27, %v26
    %s29 = scalar_lea.vmem %s0, 11
    %v30 = vld [vmem:[%s29] sm:$0x1]
    %31 = vrot.lane.b32.xlu0 %v30, 88
    %v32 = vpop.permute.xlu0 %31
    %vm33 = vcmask 786112
    %34 = vst.msk [vmem:[#allocation0] sm:$0x1] %vm33, %v32
    %s35 = scalar_lea.vmem %s0, 10
    %v36 = vld [vmem:[%s35] sm:$0x1]
    %37 = vrot.lane.b32.xlu0 %v36, 80
    %v38 = vpop.permute.xlu0 %37
    %vm39 = vcmask 720512
    %40 = vst.msk [vmem:[#allocation0] sm:$0x1] %vm39, %v38
    %s41 = scalar_lea.vmem %s0, 9
    %v42 = vld [vmem:[%s41] sm:$0x1]
    %43 = vrot.lane.b32.xlu0 %v42, 72
    %v44 = vpop.permute.xlu0 %43
    %vm45 = vcmask 654912
    %46 = vst.msk [vmem:[#allocation0] sm:$0x1] %vm45, %v44
    %s47 = scalar_lea.vmem %s0, 8
    %v48 = vld [vmem:[%s47] sm:$0x1]
    %49 = vrot.lane.b32.xlu0 %v48, 64
    %v50 = vpop.permute.xlu0 %49
    %vm51 = vcmask 589312
    %52 = vst.msk [vmem:[#allocation0] sm:$0x1] %vm51, %v50
    %s53 = scalar_lea.vmem %s0, 7
    %v54 = vld [vmem:[%s53] sm:$0x1]
    %55 = vrot.lane.b32.xlu0 %v54, 56
    %v56 = vpop.permute.xlu0 %55
    %vm57 = vcmask 523712
    %58 = vst.msk [vmem:[#allocation0] sm:$0x1] %vm57, %v56
    %s59 = scalar_lea.vmem %s0, 6
    %v60 = vld [vmem:[%s59] sm:$0x1]
    %61 = vrot.lane.b32.xlu0 %v60, 48
    %v62 = vpop.permute.xlu0 %61
    %vm63 = vcmask 458112
    %64 = vst.msk [vmem:[#allocation0] sm:$0x1] %vm63, %v62
    %s65 = scalar_lea.vmem %s0, 5
    %v66 = vld [vmem:[%s65] sm:$0x1]
    %67 = vrot.lane.b32.xlu0 %v66, 40
    %v68 = vpop.permute.xlu0 %67
    %vm69 = vcmask 392512
    %70 = vst.msk [vmem:[#allocation0] sm:$0x1] %vm69, %v68
    %s71 = scalar_lea.vmem %s0, 4
    %v72 = vld [vmem:[%s71] sm:$0x1]
    %73 = vrot.lane.b32.xlu0 %v72, 32
    %v74 = vpop.permute.xlu0 %73
    %vm75 = vcmask 326912
    %76 = vst.msk [vmem:[#allocation0] sm:$0x1] %vm75, %v74
    %s77 = scalar_lea.vmem %s0, 3
    %v78 = vld [vmem:[%s77] sm:$0x1]
    %79 = vrot.lane.b32.xlu0 %v78, 24
    %v80 = vpop.permute.xlu0 %79
    %vm81 = vcmask 261312
    %82 = vst.msk [vmem:[#allocation0] sm:$0x1] %vm81, %v80
    %s83 = scalar_lea.vmem %s0, 2
    %v84 = vld [vmem:[%s83] sm:$0x1]
    %85 = vrot.lane.b32.xlu0 %v84, 16
    %v86 = vpop.permute.xlu0 %85
    %vm87 = vcmask 195712
    %88 = vst.msk [vmem:[#allocation0] sm:$0x1] %vm87, %v86
    %s89 = scalar_lea.vmem %s0, 1
    %v90 = vld [vmem:[%s89] sm:$0x1]
    %91 = vrot.lane.b32.xlu0 %v90, 8
    %v92 = vpop.permute.xlu0 %91
    %vm93 = vcmask 130112
    %94 = vst.msk [vmem:[#allocation0] sm:$0x1] %vm93, %v92
    %s96 = sshllo.u32 0, 1
    %v98 = vld [vmem:[#allocation0] sm:%s96]
    %s99 = sshllo.u32 0, 1
    %100 = vst [vmem:[%s1] sm:%s99] %v98

// kernel: deep_resnet3d_forward.22
$region0: #{deep_resnet3d_forward.22}
  #allocation0 [shape = 'u32[]', space=smem, size = 0x4, offset = 0x4, fixed_abs, tag = 'smem constant byte address 0x4 - core index']
  #allocation1 [shape = 'u32[144,128]{1,0:T(1,128)}', space=vmem, size = 0x12000, scoped, tag = 'internal scratch']
  %s0 = inlined_call_operand.vmem [shape: bf16[1024,1372], index: 0, kind: input, shape index: {}]
  %s1 = inlined_call_operand.vmem [shape: bf16[1372,8], index: 1, kind: input, shape index: {}]
  %s2 = inlined_call_operand.vmem [shape: f32[1024,8], index: 2, kind: output, shape index: {0}]
  %s3 = inlined_call_operand.vmem [shape: f32[1,8], index: 3, kind: output, shape index: {1}]
  %s4 = inlined_call_operand.vmem [shape: f32[1,8], index: 4, kind: output, shape index: {2}]
  %5 = xla_tuple %s2, %s3, %s4
  %s6 = sld [smem:[#allocation0]]
  $region61: #{deep_resnet3d_forward.22} parent=0
    _
  %s8 = ssub.s32 1, %s6
  %s9 = scalar_select 0, %s8, %s6
  loop: start=0, step=1, limit=6
  $region2: #{deep_resnet3d_forward.22} parent=0 // loop_pre_header
    _
  $region3: #{deep_resnet3d_forward.22} parent=0 // loop_header
    %s11 = sphi 0, %s15
    %p12 = scmp.ge.s32.totalorder %s11, 6
    %s21 = sphi 0, %s23
    %s24 = sphi 0, %s21
    %s25 = sphi 0, %s24
    %s41 = sphi 0, %s25
    %s45 = sphi 0, %s45
    %s47 = sphi 0, %s45
    %s48 = sphi 0, %s47
    %s62 = sphi 0, %s48
    %s68 = sphi 0, %s70
    %s71 = sphi 0, %s68
    %s72 = sphi 0, %s71
    %s88 = sphi 0, %s72
    %s92 = sphi 0, %s92
    %s94 = sphi 0, %s92
    %s95 = sphi 0, %s94
    %s109 = sphi 0, %s95
    %s113 = sphi 0, %s113
    %s115 = sphi 0, %s113
    %s116 = sphi 0, %s115
    %s130 = sphi 0, %s116
  $region4: #{deep_resnet3d_forward.22} parent=0 // loop_header_branch
    %14 = sbr.rel (%p12) target = $region8
  $region5: #{deep_resnet3d_forward.22} parent=0 // loop_body
    %s16 = ssub.s32 %s11, 1
    %s17 = ssub.s32 %s11, 2
    %s18 = sadd.s32 %s11, 1
    %s19 = ssub.s32 %s11, %s18
    %p20 = scmp.eq.s32.totalorder %s19, 0
    %s22 = sadd.s32 %s21, 1
    %s23 = scalar_select %p20, %s21, %s22
    %p26 = pneg %p20
    %p27 = scmp.eq.s32.totalorder %s11, 3
    %p28 = por %p26, %p27
    %p29 = scmp.ne.s32.totalorder %s21, %s24
    %p30 = scmp.eq.s32.totalorder %s11, 0
    %p31 = por %p29, %p30
    %p32 = scmp.ne.s32.totalorder %s21, %s24
    %p33 = scmp.eq.s32.totalorder %s16, 3
    %p34 = por %p32, %p33
    %p35 = scmp.ne.s32.totalorder %s24, %s25
    %p36 = scmp.eq.s32.totalorder %s16, 0
    %p37 = por %p35, %p36
    %p38 = scmp.ne.s32.totalorder %s24, %s25
    %p39 = scmp.eq.s32.totalorder %s17, 3
    %p40 = por %p38, %p39
    %p42 = scmp.ne.s32.totalorder %s25, %s41
    %p43 = scmp.eq.s32.totalorder %s17, 0
    %p44 = por %p42, %p43
    %s46 = sadd.s32 %s45, 1
    %p49 = scmp.eq.s32.totalorder %s11, 3
    %p50 = scmp.ne.s32.totalorder %s45, %s47
    %p51 = scmp.eq.s32.totalorder %s11, 0
    %p52 = por %p50, %p51
    %p53 = scmp.ne.s32.totalorder %s45, %s47
    %p54 = scmp.eq.s32.totalorder %s16, 3
    %p55 = por %p53, %p54
    %p56 = scmp.ne.s32.totalorder %s47, %s48
    %p57 = scmp.eq.s32.totalorder %s16, 0
    %p58 = por %p56, %p57
    %p59 = scmp.ne.s32.totalorder %s47, %s48
    %p60 = scmp.eq.s32.totalorder %s17, 3
    %p61 = por %p59, %p60
    %p63 = scmp.ne.s32.totalorder %s48, %s62
    %p64 = scmp.eq.s32.totalorder %s17, 0
    %p65 = por %p63, %p64
    %s66 = ssub.s32 %s11, %s18
    %p67 = scmp.eq.s32.totalorder %s66, 0
    %s69 = sadd.s32 %s68, 1
    %s70 = scalar_select %p67, %s68, %s69
    %p73 = pneg %p67
    %p74 = scmp.eq.s32.totalorder %s11, 3
    %p75 = por %p73, %p74
    %p76 = scmp.ne.s32.totalorder %s68, %s71
    %p77 = scmp.eq.s32.totalorder %s11, 0
    %p78 = por %p76, %p77
    %p79 = scmp.ne.s32.totalorder %s68, %s71
    %p80 = scmp.eq.s32.totalorder %s16, 3
    %p81 = por %p79, %p80
    %p82 = scmp.ne.s32.totalorder %s71, %s72
    %p83 = scmp.eq.s32.totalorder %s16, 0
    %p84 = por %p82, %p83
    %p85 = scmp.ne.s32.totalorder %s71, %s72
    %p86 = scmp.eq.s32.totalorder %s17, 3
    %p87 = por %p85, %p86
    %p89 = scmp.ne.s32.totalorder %s72, %s88
    %p90 = scmp.eq.s32.totalorder %s17, 0
    %p91 = por %p89, %p90
    %s93 = sadd.s32 %s92, 1
    %p96 = scmp.eq.s32.totalorder %s11, 3
    %p97 = scmp.ne.s32.totalorder %s92, %s94
    %p98 = scmp.eq.s32.totalorder %s11, 0
    %p99 = por %p97, %p98
    %p100 = scmp.ne.s32.totalorder %s92, %s94
    %p101 = scmp.eq.s32.totalorder %s16, 3
    %p102 = por %p100, %p101
    %p103 = scmp.ne.s32.totalorder %s94, %s95
    %p104 = scmp.eq.s32.totalorder %s16, 0
    %p105 = por %p103, %p104
    %p106 = scmp.ne.s32.totalorder %s94, %s95
    %p107 = scmp.eq.s32.totalorder %s17, 3
    %p108 = por %p106, %p107
    %p110 = scmp.ne.s32.totalorder %s95, %s109
    %p111 = scmp.eq.s32.totalorder %s17, 0
    %p112 = por %p110, %p111
    %s114 = sadd.s32 %s113, 1
    %p117 = scmp.eq.s32.totalorder %s11, 3
    %p118 = scmp.ne.s32.totalorder %s113, %s115
    %p119 = scmp.eq.s32.totalorder %s11, 0
    %p120 = por %p118, %p119
    %p121 = scmp.ne.s32.totalorder %s113, %s115
    %p122 = scmp.eq.s32.totalorder %s16, 3
    %p123 = por %p121, %p122
    %p124 = scmp.ne.s32.totalorder %s115, %s116
    %p125 = scmp.eq.s32.totalorder %s16, 0
    %p126 = por %p124, %p125
    %p127 = scmp.ne.s32.totalorder %s115, %s116
    %p128 = scmp.eq.s32.totalorder %s17, 3
    %p129 = por %p127, %p128
    %p131 = scmp.ne.s32.totalorder %s116, %s130
    %p132 = scmp.eq.s32.totalorder %s17, 0
    %p133 = por %p131, %p132
    %p134 = scmp.le.s32.totalorder 1, %s11
    %p135 = scmp.lt.s32.totalorder %s11, 5
    %p136 = pnand %p134, %p135
    %p137 = pneg %p136
    // Predicated region
    $region9: #{deep_resnet3d_forward.22} parent=5 // pred_check
      _
    $region10: #{deep_resnet3d_forward.22} parent=5 // pred_check_branch
      %139 = sbr.rel (%p136) target = $region12
    $region11: #{deep_resnet3d_forward.22} parent=5 // pred_region
      %s140 = ssub.s32 %s11, 1
      // Predicated region
      $region13: #{deep_resnet3d_forward.22} parent=11 // pred_check
        %p141 = pneg %p58
      $region14: #{deep_resnet3d_forward.22} parent=11 // pred_check_branch
        %143 = sbr.rel (%p141) target = $region16
      $region15: #{deep_resnet3d_forward.22} parent=11 // pred_region
        _
      $region16: #{deep_resnet3d_forward.22} parent=11 // pred_fallthru
        _
    $region12: #{deep_resnet3d_forward.22} parent=5 // pred_fallthru
      _
    %p144 = scmp.lt.s32.totalorder %s11, 4
    // Predicated region
    $region17: #{deep_resnet3d_forward.22} parent=5 // pred_check
      %p145 = pneg %p144
    $region18: #{deep_resnet3d_forward.22} parent=5 // pred_check_branch
      %147 = sbr.rel (%p145) target = $region20
    $region19: #{deep_resnet3d_forward.22} parent=5 // pred_region
      // Predicated region
      $region21: #{deep_resnet3d_forward.22} parent=19 // pred_check
        %p148 = pneg %p31
      $region22: #{deep_resnet3d_forward.22} parent=19 // pred_check_branch
        %150 = sbr.rel (%p148) target = $region24
      $region23: #{deep_resnet3d_forward.22} parent=19 // pred_region
        %s151 = smul.u32 32, %s11
        %p152 = scmp.lt.s32.totalorder %s151, 127
        %s153 = scalar_select %p152, %s151, 127
        %s154 = smul.addr %s153, 11
        %s155 = smul.addr %s154, 4
        %s156 = scalar_lea.vmem %s0, %s155
        %s157 = smul.u32 32, %s11
      $region24: #{deep_resnet3d_forward.22} parent=19 // pred_fallthru
        _
    $region20: #{deep_resnet3d_forward.22} parent=5 // pred_fallthru
      _
    %p158 = scmp.le.s32.totalorder 1, %s11
    %p159 = scmp.lt.s32.totalorder %s11, 5
    %p160 = pnand %p158, %p159
    %p161 = pneg %p160
    // Predicated region
    $region25: #{deep_resnet3d_forward.22} parent=5 // pred_check
      _
    $region26: #{deep_resnet3d_forward.22} parent=5 // pred_check_branch
      %163 = sbr.rel (%p160) target = $region28
    $region27: #{deep_resnet3d_forward.22} parent=5 // pred_region
      %s164 = ssub.s32 %s11, 1
      %s165 = smul.u32 32, %s16
      %p166 = scmp.lt.s32.totalorder %s165, 127
      %s167 = scalar_select %p166, %s165, 127
      %s168 = smul.addr %s167, 11
      %s169 = smul.addr %s168, 4
      %s170 = scalar_lea.vmem %s0, %s169
      %p171 = pneg %p37
      %p172 = pneg %p34
      %p173 = pneg %p58
      %p174 = pneg %p55
      %p175 = pneg %p84
      %p176 = pneg %p81
      %s177 = smul.u32 32, %s16
      %p178 = scmp.lt.s32.totalorder %s177, 127
      %s179 = scalar_select %p178, %s177, 127
      %s180 = smul.addr %s179, 8
      %s181 = scalar_lea.vmem %s2, %s180
      %p182 = pneg %p105
      %p183 = pneg %p102
      %p184 = pneg %p126
      %p185 = pneg %p123
      %s186 = smul.u32 32, %s16
      %p187 = scmp.lt.s32.totalorder %s186, 127
      %s188 = scalar_select %p187, %s186, 127
      %s189 = smul.addr %s188, 11
      %s190 = smul.addr %s189, 4
      %s191 = scalar_lea.vmem %s0, %s190
      %s192 = smul.u32 32, %s16
      %s193 = smul.u32 32, %s16
      %p194 = scmp.lt.s32.totalorder %s193, 127
      %s195 = scalar_select %p194, %s193, 127
      %s196 = smul.addr %s195, 8
      %s197 = scalar_lea.vmem %s2, %s196
      %s198 = smul.u32 32, %s16
      %p200 = scmp.eq.s32.totalorder %s16, 0
      // Predicated region
      $region29: #{deep_resnet3d_forward.22} parent=27 // pred_check
        %p201 = pneg %p200
      $region30: #{deep_resnet3d_forward.22} parent=27 // pred_check_branch
        %203 = sbr.rel (%p201) target = $region32
      $region31: #{deep_resnet3d_forward.22} parent=27 // pred_region
        %vm204 = vcmask 57344
        %205 = vst.msk [vmem:[%s3] sm:$0x1] %vm204, 0.0
        %206 = vst.msk [vmem:[%s4] sm:$0x1] %vm204, 0.0
      $region32: #{deep_resnet3d_forward.22} parent=27 // pred_fallthru
        _
      %v207 = vld [vmem:[%s191] sm:$0xff]
      %v208 = vld [vmem:[%s191 + $0x8] sm:$0xff]
      %v209 = vld [vmem:[%s191 + $0x10] sm:$0xff]
      %v210 = vld [vmem:[%s191 + $0x18] sm:$0xff]
      %v211 = vld [vmem:[%s191 + $0x20] sm:$0xff]
      %v212 = vld [vmem:[%s191 + $0x28] sm:$0xf]
      %v213 = vld [vmem:[%s191 + $0x2c] sm:$0xff]
      %v214 = vld [vmem:[%s191 + $0x34] sm:$0xff]
      %v215 = vld [vmem:[%s191 + $0x3c] sm:$0xff]
      %v216 = vld [vmem:[%s191 + $0x44] sm:$0xff]
      %v217 = vld [vmem:[%s191 + $0x4c] sm:$0xff]
      %v218 = vld [vmem:[%s191 + $0x54] sm:$0xf]
      %v219 = vld [vmem:[%s191 + $0x58] sm:$0xff]
      %v220 = vld [vmem:[%s191 + $0x60] sm:$0xff]
      %v221 = vld [vmem:[%s191 + $0x68] sm:$0xff]
      %v222 = vld [vmem:[%s191 + $0x70] sm:$0xff]
      %v223 = vld [vmem:[%s191 + $0x78] sm:$0xff]
      %v224 = vld [vmem:[%s191 + $0x80] sm:$0xf]
      %v225 = vld [vmem:[%s191 + $0x84] sm:$0xff]
      %v226 = vld [vmem:[%s191 + $0x8c] sm:$0xff]
      %v227 = vld [vmem:[%s191 + $0x94] sm:$0xff]
      %v228 = vld [vmem:[%s191 + $0x9c] sm:$0xff]
      %v229 = vld [vmem:[%s191 + $0xa4] sm:$0xff]
      %v230 = vld [vmem:[%s191 + $0xac] sm:$0xf]
      %v231 = vld [vmem:[%s191 + $0xb0] sm:$0xff]
      %v232 = vld [vmem:[%s191 + $0xb8] sm:$0xff]
      %v233 = vld [vmem:[%s191 + $0xc0] sm:$0xff]
      %v234 = vld [vmem:[%s191 + $0xc8] sm:$0xff]
      %v235 = vld [vmem:[%s191 + $0xd0] sm:$0xff]
      %v236 = vld [vmem:[%s191 + $0xd8] sm:$0xf]
      %v237 = vld [vmem:[%s191 + $0xdc] sm:$0xff]
      %v238 = vld [vmem:[%s191 + $0xe4] sm:$0xff]
      %v239 = vld [vmem:[%s191 + $0xec] sm:$0xff]
      %v240 = vld [vmem:[%s191 + $0xf4] sm:$0xff]
      %v241 = vld [vmem:[%s191 + $0xfc] sm:$0xff]
      %v242 = vld [vmem:[%s191 + $0x104] sm:$0xf]
      %v243 = vld [vmem:[%s191 + $0x108] sm:$0xff]
      %v244 = vld [vmem:[%s191 + $0x110] sm:$0xff]
      %v245 = vld [vmem:[%s191 + $0x118] sm:$0xff]
      %v246 = vld [vmem:[%s191 + $0x120] sm:$0xff]
      %v247 = vld [vmem:[%s191 + $0x128] sm:$0xff]
      %v248 = vld [vmem:[%s191 + $0x130] sm:$0xf]
      %v249 = vld [vmem:[%s191 + $0x134] sm:$0xff]
      %v250 = vld [vmem:[%s191 + $0x13c] sm:$0xff]
      %v251 = vld [vmem:[%s191 + $0x144] sm:$0xff]
      %v252 = vld [vmem:[%s191 + $0x14c] sm:$0xff]
      %v253 = vld [vmem:[%s191 + $0x154] sm:$0xff]
      %v254 = vld [vmem:[%s191 + $0x15c] sm:$0xf]
      %v255 = vld [vmem:[%s191 + $0x160] sm:$0xff]
      %v256 = vld [vmem:[%s191 + $0x168] sm:$0xff]
      %v257 = vld [vmem:[%s191 + $0x170] sm:$0xff]
      %v258 = vld [vmem:[%s191 + $0x178] sm:$0xff]
      %v259 = vld [vmem:[%s191 + $0x180] sm:$0xff]
      %v260 = vld [vmem:[%s191 + $0x188] sm:$0xf]
      %v261 = vld [vmem:[%s191 + $0x18c] sm:$0xff]
      %v262 = vld [vmem:[%s191 + $0x194] sm:$0xff]
      %v263 = vld [vmem:[%s191 + $0x19c] sm:$0xff]
      %v264 = vld [vmem:[%s191 + $0x1a4] sm:$0xff]
      %v265 = vld [vmem:[%s191 + $0x1ac] sm:$0xff]
      %v266 = vld [vmem:[%s191 + $0x1b4] sm:$0xf]
      %v267 = vld [vmem:[%s191 + $0x1b8] sm:$0xff]
      %v268 = vld [vmem:[%s191 + $0x1c0] sm:$0xff]
      %v269 = vld [vmem:[%s191 + $0x1c8] sm:$0xff]
      %v270 = vld [vmem:[%s191 + $0x1d0] sm:$0xff]
      %v271 = vld [vmem:[%s191 + $0x1d8] sm:$0xff]
      %v272 = vld [vmem:[%s191 + $0x1e0] sm:$0xf]
      %v273 = vld [vmem:[%s191 + $0x1e4] sm:$0xff]
      %v274 = vld [vmem:[%s191 + $0x1ec] sm:$0xff]
      %v275 = vld [vmem:[%s191 + $0x1f4] sm:$0xff]
      %v276 = vld [vmem:[%s191 + $0x1fc] sm:$0xff]
      %v277 = vld [vmem:[%s191 + $0x204] sm:$0xff]
      %v278 = vld [vmem:[%s191 + $0x20c] sm:$0xf]
      %v279 = vld [vmem:[%s191 + $0x210] sm:$0xff]
      %v280 = vld [vmem:[%s191 + $0x218] sm:$0xff]
      %v281 = vld [vmem:[%s191 + $0x220] sm:$0xff]
      %v282 = vld [vmem:[%s191 + $0x228] sm:$0xff]
      %v283 = vld [vmem:[%s191 + $0x230] sm:$0xff]
      %v284 = vld [vmem:[%s191 + $0x238] sm:$0xf]
      %v285 = vld [vmem:[%s191 + $0x23c] sm:$0xff]
      %v286 = vld [vmem:[%s191 + $0x244] sm:$0xff]
      %v287 = vld [vmem:[%s191 + $0x24c] sm:$0xff]
      %v288 = vld [vmem:[%s191 + $0x254] sm:$0xff]
      %v289 = vld [vmem:[%s191 + $0x25c] sm:$0xff]
      %v290 = vld [vmem:[%s191 + $0x264] sm:$0xf]
      %v291 = vld [vmem:[%s191 + $0x268] sm:$0xff]
      %v292 = vld [vmem:[%s191 + $0x270] sm:$0xff]
      %v293 = vld [vmem:[%s191 + $0x278] sm:$0xff]
      %v294 = vld [vmem:[%s191 + $0x280] sm:$0xff]
      %v295 = vld [vmem:[%s191 + $0x288] sm:$0xff]
      %v296 = vld [vmem:[%s191 + $0x290] sm:$0xf]
      %v297 = vld [vmem:[%s191 + $0x294] sm:$0xff]
      %v298 = vld [vmem:[%s191 + $0x29c] sm:$0xff]
      %v299 = vld [vmem:[%s191 + $0x2a4] sm:$0xff]
      %v300 = vld [vmem:[%s191 + $0x2ac] sm:$0xff]
      %v301 = vld [vmem:[%s191 + $0x2b4] sm:$0xff]
      %v302 = vld [vmem:[%s191 + $0x2bc] sm:$0xf]
      %v303 = vld [vmem:[%s191 + $0x2c0] sm:$0xff]
      %v304 = vld [vmem:[%s191 + $0x2c8] sm:$0xff]
      %v305 = vld [vmem:[%s191 + $0x2d0] sm:$0xff]
      %v306 = vld [vmem:[%s191 + $0x2d8] sm:$0xff]
      %v307 = vld [vmem:[%s191 + $0x2e0] sm:$0xff]
      %v308 = vld [vmem:[%s191 + $0x2e8] sm:$0xf]
      %v309 = vld [vmem:[%s191 + $0x2ec] sm:$0xff]
      %v310 = vld [vmem:[%s191 + $0x2f4] sm:$0xff]
      %v311 = vld [vmem:[%s191 + $0x2fc] sm:$0xff]
      %v312 = vld [vmem:[%s191 + $0x304] sm:$0xff]
      %v313 = vld [vmem:[%s191 + $0x30c] sm:$0xff]
      %v314 = vld [vmem:[%s191 + $0x314] sm:$0xf]
      %v315 = vld [vmem:[%s191 + $0x318] sm:$0xff]
      %v316 = vld [vmem:[%s191 + $0x320] sm:$0xff]
      %v317 = vld [vmem:[%s191 + $0x328] sm:$0xff]
      %v318 = vld [vmem:[%s191 + $0x330] sm:$0xff]
      %v319 = vld [vmem:[%s191 + $0x338] sm:$0xff]
      %v320 = vld [vmem:[%s191 + $0x340] sm:$0xf]
      %v321 = vld [vmem:[%s191 + $0x344] sm:$0xff]
      %v322 = vld [vmem:[%s191 + $0x34c] sm:$0xff]
      %v323 = vld [vmem:[%s191 + $0x354] sm:$0xff]
      %v324 = vld [vmem:[%s191 + $0x35c] sm:$0xff]
      %v325 = vld [vmem:[%s191 + $0x364] sm:$0xff]
      %v326 = vld [vmem:[%s191 + $0x36c] sm:$0xf]
      %v327 = vld [vmem:[%s191 + $0x370] sm:$0xff]
      %v328 = vld [vmem:[%s191 + $0x378] sm:$0xff]
      %v329 = vld [vmem:[%s191 + $0x380] sm:$0xff]
      %v330 = vld [vmem:[%s191 + $0x388] sm:$0xff]
      %v331 = vld [vmem:[%s191 + $0x390] sm:$0xff]
      %v332 = vld [vmem:[%s191 + $0x398] sm:$0xf]
      %v333 = vld [vmem:[%s191 + $0x39c] sm:$0xff]
      %v334 = vld [vmem:[%s191 + $0x3a4] sm:$0xff]
      %v335 = vld [vmem:[%s191 + $0x3ac] sm:$0xff]
      %v336 = vld [vmem:[%s191 + $0x3b4] sm:$0xff]
      %v337 = vld [vmem:[%s191 + $0x3bc] sm:$0xff]
      %v338 = vld [vmem:[%s191 + $0x3c4] sm:$0xf]
      %v339 = vld [vmem:[%s191 + $0x3c8] sm:$0xff]
      %v340 = vld [vmem:[%s191 + $0x3d0] sm:$0xff]
      %v341 = vld [vmem:[%s191 + $0x3d8] sm:$0xff]
      %v342 = vld [vmem:[%s191 + $0x3e0] sm:$0xff]
      %v343 = vld [vmem:[%s191 + $0x3e8] sm:$0xff]
      %v344 = vld [vmem:[%s191 + $0x3f0] sm:$0xf]
      %v345 = vld [vmem:[%s191 + $0x3f4] sm:$0xff]
      %v346 = vld [vmem:[%s191 + $0x3fc] sm:$0xff]
      %v347 = vld [vmem:[%s191 + $0x404] sm:$0xff]
      %v348 = vld [vmem:[%s191 + $0x40c] sm:$0xff]
      %v349 = vld [vmem:[%s191 + $0x414] sm:$0xff]
      %v350 = vld [vmem:[%s191 + $0x41c] sm:$0xf]
      %v351 = vld [vmem:[%s191 + $0x420] sm:$0xff]
      %v352 = vld [vmem:[%s191 + $0x428] sm:$0xff]
      %v353 = vld [vmem:[%s191 + $0x430] sm:$0xff]
      %v354 = vld [vmem:[%s191 + $0x438] sm:$0xff]
      %v355 = vld [vmem:[%s191 + $0x440] sm:$0xff]
      %v356 = vld [vmem:[%s191 + $0x448] sm:$0xf]
      %v357 = vld [vmem:[%s191 + $0x44c] sm:$0xff]
      %v358 = vld [vmem:[%s191 + $0x454] sm:$0xff]
      %v359 = vld [vmem:[%s191 + $0x45c] sm:$0xff]
      %v360 = vld [vmem:[%s191 + $0x464] sm:$0xff]
      %v361 = vld [vmem:[%s191 + $0x46c] sm:$0xff]
      %v362 = vld [vmem:[%s191 + $0x474] sm:$0xf]
      %v363 = vld [vmem:[%s191 + $0x478] sm:$0xff]
      %v364 = vld [vmem:[%s191 + $0x480] sm:$0xff]
      %v365 = vld [vmem:[%s191 + $0x488] sm:$0xff]
      %v366 = vld [vmem:[%s191 + $0x490] sm:$0xff]
      %v367 = vld [vmem:[%s191 + $0x498] sm:$0xff]
      %v368 = vld [vmem:[%s191 + $0x4a0] sm:$0xf]
      %v369 = vld [vmem:[%s191 + $0x4a4] sm:$0xff]
      %v370 = vld [vmem:[%s191 + $0x4ac] sm:$0xff]
      %v371 = vld [vmem:[%s191 + $0x4b4] sm:$0xff]
      %v372 = vld [vmem:[%s191 + $0x4bc] sm:$0xff]
      %v373 = vld [vmem:[%s191 + $0x4c4] sm:$0xff]
      %v374 = vld [vmem:[%s191 + $0x4cc] sm:$0xf]
      %v375 = vld [vmem:[%s191 + $0x4d0] sm:$0xff]
      %v376 = vld [vmem:[%s191 + $0x4d8] sm:$0xff]
      %v377 = vld [vmem:[%s191 + $0x4e0] sm:$0xff]
      %v378 = vld [vmem:[%s191 + $0x4e8] sm:$0xff]
      %v379 = vld [vmem:[%s191 + $0x4f0] sm:$0xff]
      %v380 = vld [vmem:[%s191 + $0x4f8] sm:$0xf]
      %v381 = vld [vmem:[%s191 + $0x4fc] sm:$0xff]
      %v382 = vld [vmem:[%s191 + $0x504] sm:$0xff]
      %v383 = vld [vmem:[%s191 + $0x50c] sm:$0xff]
      %v384 = vld [vmem:[%s191 + $0x514] sm:$0xff]
      %v385 = vld [vmem:[%s191 + $0x51c] sm:$0xff]
      %v386 = vld [vmem:[%s191 + $0x524] sm:$0xf]
      %v387 = vld [vmem:[%s191 + $0x528] sm:$0xff]
      %v388 = vld [vmem:[%s191 + $0x530] sm:$0xff]
      %v389 = vld [vmem:[%s191 + $0x538] sm:$0xff]
      %v390 = vld [vmem:[%s191 + $0x540] sm:$0xff]
      %v391 = vld [vmem:[%s191 + $0x548] sm:$0xff]
      %v392 = vld [vmem:[%s191 + $0x550] sm:$0xf]
      %v393 = vld [vmem:[%s191 + $0x554] sm:$0xff]
      %v394 = vld [vmem:[%s191 + $0x55c] sm:$0xff]
      %v395 = vld [vmem:[%s191 + $0x564] sm:$0xff]
      %v396 = vld [vmem:[%s191 + $0x56c] sm:$0xff]
      %v397 = vld [vmem:[%s191 + $0x574] sm:$0xff]
      %v398 = vld [vmem:[%s191 + $0x57c] sm:$0xf]
      %v399 = vld [vmem:[%s1] sm:$0xf]
      %v400 = vld [vmem:[%s1 + $0x4] sm:$0xf]
      %v401 = vld [vmem:[%s1 + $0x8] sm:$0xf]
      %v402 = vld [vmem:[%s1 + $0xc] sm:$0xf]
      %v403 = vld [vmem:[%s1 + $0x10] sm:$0xf]
      %v404 = vld [vmem:[%s1 + $0x14] sm:$0xf]
      %v405 = vld [vmem:[%s1 + $0x18] sm:$0xf]
      %v406 = vld [vmem:[%s1 + $0x1c] sm:$0xf]
      %v407 = vld [vmem:[%s1 + $0x20] sm:$0xf]
      %v408 = vld [vmem:[%s1 + $0x24] sm:$0xf]
      %v409 = vld [vmem:[%s1 + $0x28] sm:$0xf]
      %v410 = vld [vmem:[%s1 + $0x2c] sm:$0xf]
      %v411 = vld [vmem:[%s1 + $0x30] sm:$0xf]
      %v412 = vld [vmem:[%s1 + $0x34] sm:$0xf]
      %v413 = vld [vmem:[%s1 + $0x38] sm:$0xf]
      %v414 = vld [vmem:[%s1 + $0x3c] sm:$0xf]
      %v415 = vld [vmem:[%s1 + $0x40] sm:$0xf]
      %v416 = vld [vmem:[%s1 + $0x44] sm:$0xf]
      %v417 = vld [vmem:[%s1 + $0x48] sm:$0xf]
      %v418 = vld [vmem:[%s1 + $0x4c] sm:$0xf]
      %v419 = vld [vmem:[%s1 + $0x50] sm:$0xf]
      %v420 = vld [vmem:[%s1 + $0x54] sm:$0xf]
      %v421 = vld [vmem:[%s1 + $0x58] sm:$0xf]
      %v422 = vld [vmem:[%s1 + $0x5c] sm:$0xf]
      %v423 = vld [vmem:[%s1 + $0x60] sm:$0xf]
      %v424 = vld [vmem:[%s1 + $0x64] sm:$0xf]
      %v425 = vld [vmem:[%s1 + $0x68] sm:$0xf]
      %v426 = vld [vmem:[%s1 + $0x6c] sm:$0xf]
      %v427 = vld [vmem:[%s1 + $0x70] sm:$0xf]
      %v428 = vld [vmem:[%s1 + $0x74] sm:$0xf]
      %v429 = vld [vmem:[%s1 + $0x78] sm:$0xf]
      %v430 = vld [vmem:[%s1 + $0x7c] sm:$0xf]
      %v431 = vld [vmem:[%s1 + $0x80] sm:$0xf]
      %v432 = vld [vmem:[%s1 + $0x84] sm:$0xf]
      %v433 = vld [vmem:[%s1 + $0x88] sm:$0xf]
      %v434 = vld [vmem:[%s1 + $0x8c] sm:$0xf]
      %v435 = vld [vmem:[%s1 + $0x90] sm:$0xf]
      %v436 = vld [vmem:[%s1 + $0x94] sm:$0xf]
      %v437 = vld [vmem:[%s1 + $0x98] sm:$0xf]
      %v438 = vld [vmem:[%s1 + $0x9c] sm:$0xf]
      %v439 = vld [vmem:[%s1 + $0xa0] sm:$0xf]
      %v440 = vld [vmem:[%s1 + $0xa4] sm:$0xf]
      %v441 = vld [vmem:[%s1 + $0xa8] sm:$0xf]
      %v442 = vld [vmem:[%s1 + $0xac] sm:$0xf]
      %v443 = vld [vmem:[%s1 + $0xb0] sm:$0xf]
      %v444 = vld [vmem:[%s1 + $0xb4] sm:$0xf]
      %v445 = vld [vmem:[%s1 + $0xb8] sm:$0xf]
      %v446 = vld [vmem:[%s1 + $0xbc] sm:$0xf]
      %v447 = vld [vmem:[%s1 + $0xc0] sm:$0xf]
      %v448 = vld [vmem:[%s1 + $0xc4] sm:$0xf]
      %v449 = vld [vmem:[%s1 + $0xc8] sm:$0xf]
      %v450 = vld [vmem:[%s1 + $0xcc] sm:$0xf]
      %v451 = vld [vmem:[%s1 + $0xd0] sm:$0xf]
      %v452 = vld [vmem:[%s1 + $0xd4] sm:$0xf]
      %v453 = vld [vmem:[%s1 + $0xd8] sm:$0xf]
      %v454 = vld [vmem:[%s1 + $0xdc] sm:$0xf]
      %v455 = vld [vmem:[%s1 + $0xe0] sm:$0xf]
      %v456 = vld [vmem:[%s1 + $0xe4] sm:$0xf]
      %v457 = vld [vmem:[%s1 + $0xe8] sm:$0xf]
      %v458 = vld [vmem:[%s1 + $0xec] sm:$0xf]
      %v459 = vld [vmem:[%s1 + $0xf0] sm:$0xf]
      %v460 = vld [vmem:[%s1 + $0xf4] sm:$0xf]
      %v461 = vld [vmem:[%s1 + $0xf8] sm:$0xf]
      %v462 = vld [vmem:[%s1 + $0xfc] sm:$0xf]
      %v463 = vld [vmem:[%s1 + $0x100] sm:$0xf]
      %v464 = vld [vmem:[%s1 + $0x104] sm:$0xf]
      %v465 = vld [vmem:[%s1 + $0x108] sm:$0xf]
      %v466 = vld [vmem:[%s1 + $0x10c] sm:$0xf]
      %v467 = vld [vmem:[%s1 + $0x110] sm:$0xf]
      %v468 = vld [vmem:[%s1 + $0x114] sm:$0xf]
      %v469 = vld [vmem:[%s1 + $0x118] sm:$0xf]
      %v470 = vld [vmem:[%s1 + $0x11c] sm:$0xf]
      %v471 = vld [vmem:[%s1 + $0x120] sm:$0xf]
      %v472 = vld [vmem:[%s1 + $0x124] sm:$0xf]
      %v473 = vld [vmem:[%s1 + $0x128] sm:$0xf]
      %v474 = vld [vmem:[%s1 + $0x12c] sm:$0xf]
      %v475 = vld [vmem:[%s1 + $0x130] sm:$0xf]
      %v476 = vld [vmem:[%s1 + $0x134] sm:$0xf]
      %v477 = vld [vmem:[%s1 + $0x138] sm:$0xf]
      %v478 = vld [vmem:[%s1 + $0x13c] sm:$0xf]
      %v479 = vld [vmem:[%s1 + $0x140] sm:$0xf]
      %v480 = vld [vmem:[%s1 + $0x144] sm:$0xf]
      %v481 = vld [vmem:[%s1 + $0x148] sm:$0xf]
      %v482 = vld [vmem:[%s1 + $0x14c] sm:$0xf]
      %v483 = vld [vmem:[%s1 + $0x150] sm:$0xf]
      %v484 = vld [vmem:[%s1 + $0x154] sm:$0xf]
      %v485 = vld [vmem:[%s1 + $0x158] sm:$0xf]
      %v486 = vld [vmem:[%s1 + $0x15c] sm:$0xf]
      %v487 = vld [vmem:[%s1 + $0x160] sm:$0xf]
      %v488 = vld [vmem:[%s1 + $0x164] sm:$0xf]
      %v489 = vld [vmem:[%s1 + $0x168] sm:$0xf]
      %v490 = vld [vmem:[%s1 + $0x16c] sm:$0xf]
      %v491 = vld [vmem:[%s1 + $0x170] sm:$0xf]
      %v492 = vld [vmem:[%s1 + $0x174] sm:$0xf]
      %v493 = vld [vmem:[%s1 + $0x178] sm:$0xf]
      %v494 = vld [vmem:[%s1 + $0x17c] sm:$0xf]
      %v495 = vld [vmem:[%s1 + $0x180] sm:$0xf]
      %v496 = vld [vmem:[%s1 + $0x184] sm:$0xf]
      %v497 = vld [vmem:[%s1 + $0x188] sm:$0xf]
      %v498 = vld [vmem:[%s1 + $0x18c] sm:$0xf]
      %v499 = vld [vmem:[%s1 + $0x190] sm:$0xf]
      %v500 = vld [vmem:[%s1 + $0x194] sm:$0xf]
      %v501 = vld [vmem:[%s1 + $0x198] sm:$0xf]
      %v502 = vld [vmem:[%s1 + $0x19c] sm:$0xf]
      %v503 = vld [vmem:[%s1 + $0x1a0] sm:$0xf]
      %v504 = vld [vmem:[%s1 + $0x1a4] sm:$0xf]
      %v505 = vld [vmem:[%s1 + $0x1a8] sm:$0xf]
      %v506 = vld [vmem:[%s1 + $0x1ac] sm:$0xf]
      %v507 = vld [vmem:[%s1 + $0x1b0] sm:$0xf]
      %v508 = vld [vmem:[%s1 + $0x1b4] sm:$0xf]
      %v509 = vld [vmem:[%s1 + $0x1b8] sm:$0xf]
      %v510 = vld [vmem:[%s1 + $0x1bc] sm:$0xf]
      %v511 = vld [vmem:[%s1 + $0x1c0] sm:$0xf]
      %v512 = vld [vmem:[%s1 + $0x1c4] sm:$0xf]
      %v513 = vld [vmem:[%s1 + $0x1c8] sm:$0xf]
      %v514 = vld [vmem:[%s1 + $0x1cc] sm:$0xf]
      %v515 = vld [vmem:[%s1 + $0x1d0] sm:$0xf]
      %v516 = vld [vmem:[%s1 + $0x1d4] sm:$0xf]
      %v517 = vld [vmem:[%s1 + $0x1d8] sm:$0xf]
      %v518 = vld [vmem:[%s1 + $0x1dc] sm:$0xf]
      %v519 = vld [vmem:[%s1 + $0x1e0] sm:$0xf]
      %v520 = vld [vmem:[%s1 + $0x1e4] sm:$0xf]
      %v521 = vld [vmem:[%s1 + $0x1e8] sm:$0xf]
      %v522 = vld [vmem:[%s1 + $0x1ec] sm:$0xf]
      %v523 = vld [vmem:[%s1 + $0x1f0] sm:$0xf]
      %v524 = vld [vmem:[%s1 + $0x1f4] sm:$0xf]
      %v525 = vld [vmem:[%s1 + $0x1f8] sm:$0xf]
      %v526 = vld [vmem:[%s1 + $0x1fc] sm:$0xf]
      %v527 = vld [vmem:[%s1 + $0x200] sm:$0xf]
      %v528 = vld [vmem:[%s1 + $0x204] sm:$0xf]
      %v529 = vld [vmem:[%s1 + $0x208] sm:$0xf]
      %v530 = vld [vmem:[%s1 + $0x20c] sm:$0xf]
      %v531 = vld [vmem:[%s1 + $0x210] sm:$0xf]
      %v532 = vld [vmem:[%s1 + $0x214] sm:$0xf]
      %v533 = vld [vmem:[%s1 + $0x218] sm:$0xf]
      %v534 = vld [vmem:[%s1 + $0x21c] sm:$0xf]
      %v535 = vld [vmem:[%s1 + $0x220] sm:$0xf]
      %v536 = vld [vmem:[%s1 + $0x224] sm:$0xf]
      %v537 = vld [vmem:[%s1 + $0x228] sm:$0xf]
      %v538 = vld [vmem:[%s1 + $0x22c] sm:$0xf]
      %v539 = vld [vmem:[%s1 + $0x230] sm:$0xf]
      %v540 = vld [vmem:[%s1 + $0x234] sm:$0xf]
      %v541 = vld [vmem:[%s1 + $0x238] sm:$0xf]
      %v542 = vld [vmem:[%s1 + $0x23c] sm:$0xf]
      %v543 = vld [vmem:[%s1 + $0x240] sm:$0xf]
      %v544 = vld [vmem:[%s1 + $0x244] sm:$0xf]
      %v545 = vld [vmem:[%s1 + $0x248] sm:$0xf]
      %v546 = vld [vmem:[%s1 + $0x24c] sm:$0xf]
      %v547 = vld [vmem:[%s1 + $0x250] sm:$0xf]
      %v548 = vld [vmem:[%s1 + $0x254] sm:$0xf]
      %v549 = vld [vmem:[%s1 + $0x258] sm:$0xf]
      %v550 = vld [vmem:[%s1 + $0x25c] sm:$0xf]
      %v551 = vld [vmem:[%s1 + $0x260] sm:$0xf]
      %v552 = vld [vmem:[%s1 + $0x264] sm:$0xf]
      %v553 = vld [vmem:[%s1 + $0x268] sm:$0xf]
      %v554 = vld [vmem:[%s1 + $0x26c] sm:$0xf]
      %v555 = vld [vmem:[%s1 + $0x270] sm:$0xf]
      %v556 = vld [vmem:[%s1 + $0x274] sm:$0xf]
      %v557 = vld [vmem:[%s1 + $0x278] sm:$0xf]
      %v558 = vld [vmem:[%s1 + $0x27c] sm:$0xf]
      %v559 = vld [vmem:[%s1 + $0x280] sm:$0xf]
      %v560 = vld [vmem:[%s1 + $0x284] sm:$0xf]
      %v561 = vld [vmem:[%s1 + $0x288] sm:$0xf]
      %v562 = vld [vmem:[%s1 + $0x28c] sm:$0xf]
      %v563 = vld [vmem:[%s1 + $0x290] sm:$0xf]
      %v564 = vld [vmem:[%s1 + $0x294] sm:$0xf]
      %v565 = vld [vmem:[%s1 + $0x298] sm:$0xf]
      %v566 = vld [vmem:[%s1 + $0x29c] sm:$0xf]
      %v567 = vld [vmem:[%s1 + $0x2a0] sm:$0xf]
      %v568 = vld [vmem:[%s1 + $0x2a4] sm:$0xf]
      %v569 = vld [vmem:[%s1 + $0x2a8] sm:$0xf]
      %v570 = vld [vmem:[%s1 + $0x2ac] sm:$0x3]
      %v763 = vunpack.c.l.b16 %v207
      %v764 = vunpack.c.h.b16 %v207
      %v765 = vunpack.c.l.b16 %v208
      %v766 = vunpack.c.h.b16 %v208
      %v767 = vunpack.c.l.b16 %v209
      %v768 = vunpack.c.h.b16 %v209
      %v769 = vunpack.c.l.b16 %v210
      %v770 = vunpack.c.h.b16 %v210
      %v771 = vunpack.c.l.b16 %v211
      %v772 = vunpack.c.h.b16 %v211
      %v773 = vunpack.c.l.b16 %v212
      %v774 = vunpack.c.l.b16 %v213
      %v775 = vunpack.c.h.b16 %v213
      %v776 = vunpack.c.l.b16 %v214
      %v777 = vunpack.c.h.b16 %v214
      %v778 = vunpack.c.l.b16 %v215
      %v779 = vunpack.c.h.b16 %v215
      %v780 = vunpack.c.l.b16 %v216
      %v781 = vunpack.c.h.b16 %v216
      %v782 = vunpack.c.l.b16 %v217
      %v783 = vunpack.c.h.b16 %v217
      %v784 = vunpack.c.l.b16 %v218
      %v785 = vunpack.c.l.b16 %v219
      %v786 = vunpack.c.h.b16 %v219
      %v787 = vunpack.c.l.b16 %v220
      %v788 = vunpack.c.h.b16 %v220
      %v789 = vunpack.c.l.b16 %v221
      %v790 = vunpack.c.h.b16 %v221
      %v791 = vunpack.c.l.b16 %v222
      %v792 = vunpack.c.h.b16 %v222
      %v793 = vunpack.c.l.b16 %v223
      %v794 = vunpack.c.h.b16 %v223
      %v795 = vunpack.c.l.b16 %v224
      %v796 = vunpack.c.l.b16 %v225
      %v797 = vunpack.c.h.b16 %v225
      %v798 = vunpack.c.l.b16 %v226
      %v799 = vunpack.c.h.b16 %v226
      %v800 = vunpack.c.l.b16 %v227
      %v801 = vunpack.c.h.b16 %v227
      %v802 = vunpack.c.l.b16 %v228
      %v803 = vunpack.c.h.b16 %v228
      %v804 = vunpack.c.l.b16 %v229
      %v805 = vunpack.c.h.b16 %v229
      %v806 = vunpack.c.l.b16 %v230
      %v807 = vunpack.c.l.b16 %v231
      %v808 = vunpack.c.h.b16 %v231
      %v809 = vunpack.c.l.b16 %v232
      %v810 = vunpack.c.h.b16 %v232
      %v811 = vunpack.c.l.b16 %v233
      %v812 = vunpack.c.h.b16 %v233
      %v813 = vunpack.c.l.b16 %v234
      %v814 = vunpack.c.h.b16 %v234
      %v815 = vunpack.c.l.b16 %v235
      %v816 = vunpack.c.h.b16 %v235
      %v817 = vunpack.c.l.b16 %v236
      %v818 = vunpack.c.l.b16 %v237
      %v819 = vunpack.c.h.b16 %v237
      %v820 = vunpack.c.l.b16 %v238
      %v821 = vunpack.c.h.b16 %v238
      %v822 = vunpack.c.l.b16 %v239
      %v823 = vunpack.c.h.b16 %v239
      %v824 = vunpack.c.l.b16 %v240
      %v825 = vunpack.c.h.b16 %v240
      %v826 = vunpack.c.l.b16 %v241
      %v827 = vunpack.c.h.b16 %v241
      %v828 = vunpack.c.l.b16 %v242
      %v829 = vunpack.c.l.b16 %v243
      %v830 = vunpack.c.h.b16 %v243
      %v831 = vunpack.c.l.b16 %v244
      %v832 = vunpack.c.h.b16 %v244
      %v833 = vunpack.c.l.b16 %v245
      %v834 = vunpack.c.h.b16 %v245
      %v835 = vunpack.c.l.b16 %v246
      %v836 = vunpack.c.h.b16 %v246
      %v837 = vunpack.c.l.b16 %v247
      %v838 = vunpack.c.h.b16 %v247
      %v839 = vunpack.c.l.b16 %v248
      %v840 = vunpack.c.l.b16 %v249
      %v841 = vunpack.c.h.b16 %v249
      %v842 = vunpack.c.l.b16 %v250
      %v843 = vunpack.c.h.b16 %v250
      %v844 = vunpack.c.l.b16 %v251
      %v845 = vunpack.c.h.b16 %v251
      %v846 = vunpack.c.l.b16 %v252
      %v847 = vunpack.c.h.b16 %v252
      %v848 = vunpack.c.l.b16 %v253
      %v849 = vunpack.c.h.b16 %v253
      %v850 = vunpack.c.l.b16 %v254
      %v851 = vunpack.c.l.b16 %v255
      %v852 = vunpack.c.h.b16 %v255
      %v853 = vunpack.c.l.b16 %v256
      %v854 = vunpack.c.h.b16 %v256
      %v855 = vunpack.c.l.b16 %v257
      %v856 = vunpack.c.h.b16 %v257
      %v857 = vunpack.c.l.b16 %v258
      %v858 = vunpack.c.h.b16 %v258
      %v859 = vunpack.c.l.b16 %v259
      %v860 = vunpack.c.h.b16 %v259
      %v861 = vunpack.c.l.b16 %v260
      %v862 = vunpack.c.l.b16 %v261
      %v863 = vunpack.c.h.b16 %v261
      %v864 = vunpack.c.l.b16 %v262
      %v865 = vunpack.c.h.b16 %v262
      %v866 = vunpack.c.l.b16 %v263
      %v867 = vunpack.c.h.b16 %v263
      %v868 = vunpack.c.l.b16 %v264
      %v869 = vunpack.c.h.b16 %v264
      %v870 = vunpack.c.l.b16 %v265
      %v871 = vunpack.c.h.b16 %v265
      %v872 = vunpack.c.l.b16 %v266
      %v873 = vunpack.c.l.b16 %v267
      %v874 = vunpack.c.h.b16 %v267
      %v875 = vunpack.c.l.b16 %v268
      %v876 = vunpack.c.h.b16 %v268
      %v877 = vunpack.c.l.b16 %v269
      %v878 = vunpack.c.h.b16 %v269
      %v879 = vunpack.c.l.b16 %v270
      %v880 = vunpack.c.h.b16 %v270
      %v881 = vunpack.c.l.b16 %v271
      %v882 = vunpack.c.h.b16 %v271
      %v883 = vunpack.c.l.b16 %v272
      %v884 = vunpack.c.l.b16 %v273
      %v885 = vunpack.c.h.b16 %v273
      %v886 = vunpack.c.l.b16 %v274
      %v887 = vunpack.c.h.b16 %v274
      %v888 = vunpack.c.l.b16 %v275
      %v889 = vunpack.c.h.b16 %v275
      %v890 = vunpack.c.l.b16 %v276
      %v891 = vunpack.c.h.b16 %v276
      %v892 = vunpack.c.l.b16 %v277
      %v893 = vunpack.c.h.b16 %v277
      %v894 = vunpack.c.l.b16 %v278
      %v895 = vunpack.c.l.b16 %v279
      %v896 = vunpack.c.h.b16 %v279
      %v897 = vunpack.c.l.b16 %v280
      %v898 = vunpack.c.h.b16 %v280
      %v899 = vunpack.c.l.b16 %v281
      %v900 = vunpack.c.h.b16 %v281
      %v901 = vunpack.c.l.b16 %v282
      %v902 = vunpack.c.h.b16 %v282
      %v903 = vunpack.c.l.b16 %v283
      %v904 = vunpack.c.h.b16 %v283
      %v905 = vunpack.c.l.b16 %v284
      %v906 = vunpack.c.l.b16 %v285
      %v907 = vunpack.c.h.b16 %v285
      %v908 = vunpack.c.l.b16 %v286
      %v909 = vunpack.c.h.b16 %v286
      %v910 = vunpack.c.l.b16 %v287
      %v911 = vunpack.c.h.b16 %v287
      %v912 = vunpack.c.l.b16 %v288
      %v913 = vunpack.c.h.b16 %v288
      %v914 = vunpack.c.l.b16 %v289
      %v915 = vunpack.c.h.b16 %v289
      %v916 = vunpack.c.l.b16 %v290
      %v917 = vunpack.c.l.b16 %v291
      %v918 = vunpack.c.h.b16 %v291
      %v919 = vunpack.c.l.b16 %v292
      %v920 = vunpack.c.h.b16 %v292
      %v921 = vunpack.c.l.b16 %v293
      %v922 = vunpack.c.h.b16 %v293
      %v923 = vunpack.c.l.b16 %v294
      %v924 = vunpack.c.h.b16 %v294
      %v925 = vunpack.c.l.b16 %v295
      %v926 = vunpack.c.h.b16 %v295
      %v927 = vunpack.c.l.b16 %v296
      %v928 = vunpack.c.l.b16 %v297
      %v929 = vunpack.c.h.b16 %v297
      %v930 = vunpack.c.l.b16 %v298
      %v931 = vunpack.c.h.b16 %v298
      %v932 = vunpack.c.l.b16 %v299
      %v933 = vunpack.c.h.b16 %v299
      %v934 = vunpack.c.l.b16 %v300
      %v935 = vunpack.c.h.b16 %v300
      %v936 = vunpack.c.l.b16 %v301
      %v937 = vunpack.c.h.b16 %v301
      %v938 = vunpack.c.l.b16 %v302
      %v939 = vunpack.c.l.b16 %v303
      %v940 = vunpack.c.h.b16 %v303
      %v941 = vunpack.c.l.b16 %v304
      %v942 = vunpack.c.h.b16 %v304
      %v943 = vunpack.c.l.b16 %v305
      %v944 = vunpack.c.h.b16 %v305
      %v945 = vunpack.c.l.b16 %v306
      %v946 = vunpack.c.h.b16 %v306
      %v947 = vunpack.c.l.b16 %v307
      %v948 = vunpack.c.h.b16 %v307
      %v949 = vunpack.c.l.b16 %v308
      %v950 = vunpack.c.l.b16 %v309
      %v951 = vunpack.c.h.b16 %v309
      %v952 = vunpack.c.l.b16 %v310
      %v953 = vunpack.c.h.b16 %v310
      %v954 = vunpack.c.l.b16 %v311
      %v955 = vunpack.c.h.b16 %v311
      %v956 = vunpack.c.l.b16 %v312
      %v957 = vunpack.c.h.b16 %v312
      %v958 = vunpack.c.l.b16 %v313
      %v959 = vunpack.c.h.b16 %v313
      %v960 = vunpack.c.l.b16 %v314
      %v961 = vunpack.c.l.b16 %v315
      %v962 = vunpack.c.h.b16 %v315
      %v963 = vunpack.c.l.b16 %v316
      %v964 = vunpack.c.h.b16 %v316
      %v965 = vunpack.c.l.b16 %v317
      %v966 = vunpack.c.h.b16 %v317
      %v967 = vunpack.c.l.b16 %v318
      %v968 = vunpack.c.h.b16 %v318
      %v969 = vunpack.c.l.b16 %v319
      %v970 = vunpack.c.h.b16 %v319
      %v971 = vunpack.c.l.b16 %v320
      %v972 = vunpack.c.l.b16 %v321
      %v973 = vunpack.c.h.b16 %v321
      %v974 = vunpack.c.l.b16 %v322
      %v975 = vunpack.c.h.b16 %v322
      %v976 = vunpack.c.l.b16 %v323
      %v977 = vunpack.c.h.b16 %v323
      %v978 = vunpack.c.l.b16 %v324
      %v979 = vunpack.c.h.b16 %v324
      %v980 = vunpack.c.l.b16 %v325
      %v981 = vunpack.c.h.b16 %v325
      %v982 = vunpack.c.l.b16 %v326
      %v983 = vunpack.c.l.b16 %v327
      %v984 = vunpack.c.h.b16 %v327
      %v985 = vunpack.c.l.b16 %v328
      %v986 = vunpack.c.h.b16 %v328
      %v987 = vunpack.c.l.b16 %v329
      %v988 = vunpack.c.h.b16 %v329
      %v989 = vunpack.c.l.b16 %v330
      %v990 = vunpack.c.h.b16 %v330
      %v991 = vunpack.c.l.b16 %v331
      %v992 = vunpack.c.h.b16 %v331
      %v993 = vunpack.c.l.b16 %v332
      %v994 = vunpack.c.l.b16 %v333
      %v995 = vunpack.c.h.b16 %v333
      %v996 = vunpack.c.l.b16 %v334
      %v997 = vunpack.c.h.b16 %v334
      %v998 = vunpack.c.l.b16 %v335
      %v999 = vunpack.c.h.b16 %v335
      %v1000 = vunpack.c.l.b16 %v336
      %v1001 = vunpack.c.h.b16 %v336
      %v1002 = vunpack.c.l.b16 %v337
      %v1003 = vunpack.c.h.b16 %v337
      %v1004 = vunpack.c.l.b16 %v338
      %v1005 = vunpack.c.l.b16 %v339
      %v1006 = vunpack.c.h.b16 %v339
      %v1007 = vunpack.c.l.b16 %v340
      %v1008 = vunpack.c.h.b16 %v340
      %v1009 = vunpack.c.l.b16 %v341
      %v1010 = vunpack.c.h.b16 %v341
      %v1011 = vunpack.c.l.b16 %v342
      %v1012 = vunpack.c.h.b16 %v342
      %v1013 = vunpack.c.l.b16 %v343
      %v1014 = vunpack.c.h.b16 %v343
      %v1015 = vunpack.c.l.b16 %v344
      %v1016 = vunpack.c.l.b16 %v345
      %v1017 = vunpack.c.h.b16 %v345
      %v1018 = vunpack.c.l.b16 %v346
      %v1019 = vunpack.c.h.b16 %v346
      %v1020 = vunpack.c.l.b16 %v347
      %v1021 = vunpack.c.h.b16 %v347
      %v1022 = vunpack.c.l.b16 %v348
      %v1023 = vunpack.c.h.b16 %v348
      %v1024 = vunpack.c.l.b16 %v349
      %v1025 = vunpack.c.h.b16 %v349
      %v1026 = vunpack.c.l.b16 %v350
      %v1027 = vunpack.c.l.b16 %v351
      %v1028 = vunpack.c.h.b16 %v351
      %v1029 = vunpack.c.l.b16 %v352
      %v1030 = vunpack.c.h.b16 %v352
      %v1031 = vunpack.c.l.b16 %v353
      %v1032 = vunpack.c.h.b16 %v353
      %v1033 = vunpack.c.l.b16 %v354
      %v1034 = vunpack.c.h.b16 %v354
      %v1035 = vunpack.c.l.b16 %v355
      %v1036 = vunpack.c.h.b16 %v355
      %v1037 = vunpack.c.l.b16 %v356
      %v1038 = vunpack.c.l.b16 %v357
      %v1039 = vunpack.c.h.b16 %v357
      %v1040 = vunpack.c.l.b16 %v358
      %v1041 = vunpack.c.h.b16 %v358
      %v1042 = vunpack.c.l.b16 %v359
      %v1043 = vunpack.c.h.b16 %v359
      %v1044 = vunpack.c.l.b16 %v360
      %v1045 = vunpack.c.h.b16 %v360
      %v1046 = vunpack.c.l.b16 %v361
      %v1047 = vunpack.c.h.b16 %v361
      %v1048 = vunpack.c.l.b16 %v362
      %v1049 = vunpack.c.l.b16 %v363
      %v1050 = vunpack.c.h.b16 %v363
      %v1051 = vunpack.c.l.b16 %v364
      %v1052 = vunpack.c.h.b16 %v364
      %v1053 = vunpack.c.l.b16 %v365
      %v1054 = vunpack.c.h.b16 %v365
      %v1055 = vunpack.c.l.b16 %v366
      %v1056 = vunpack.c.h.b16 %v366
      %v1057 = vunpack.c.l.b16 %v367
      %v1058 = vunpack.c.h.b16 %v367
      %v1059 = vunpack.c.l.b16 %v368
      %v1060 = vunpack.c.l.b16 %v369
      %v1061 = vunpack.c.h.b16 %v369
      %v1062 = vunpack.c.l.b16 %v370
      %v1063 = vunpack.c.h.b16 %v370
      %v1064 = vunpack.c.l.b16 %v371
      %v1065 = vunpack.c.h.b16 %v371
      %v1066 = vunpack.c.l.b16 %v372
      %v1067 = vunpack.c.h.b16 %v372
      %v1068 = vunpack.c.l.b16 %v373
      %v1069 = vunpack.c.h.b16 %v373
      %v1070 = vunpack.c.l.b16 %v374
      %v1071 = vunpack.c.l.b16 %v375
      %v1072 = vunpack.c.h.b16 %v375
      %v1073 = vunpack.c.l.b16 %v376
      %v1074 = vunpack.c.h.b16 %v376
      %v1075 = vunpack.c.l.b16 %v377
      %v1076 = vunpack.c.h.b16 %v377
      %v1077 = vunpack.c.l.b16 %v378
      %v1078 = vunpack.c.h.b16 %v378
      %v1079 = vunpack.c.l.b16 %v379
      %v1080 = vunpack.c.h.b16 %v379
      %v1081 = vunpack.c.l.b16 %v380
      %v1082 = vunpack.c.l.b16 %v381
      %v1083 = vunpack.c.h.b16 %v381
      %v1084 = vunpack.c.l.b16 %v382
      %v1085 = vunpack.c.h.b16 %v382
      %v1086 = vunpack.c.l.b16 %v383
      %v1087 = vunpack.c.h.b16 %v383
      %v1088 = vunpack.c.l.b16 %v384
      %v1089 = vunpack.c.h.b16 %v384
      %v1090 = vunpack.c.l.b16 %v385
      %v1091 = vunpack.c.h.b16 %v385
      %v1092 = vunpack.c.l.b16 %v386
      %v1093 = vunpack.c.l.b16 %v387
      %v1094 = vunpack.c.h.b16 %v387
      %v1095 = vunpack.c.l.b16 %v388
      %v1096 = vunpack.c.h.b16 %v388
      %v1097 = vunpack.c.l.b16 %v389
      %v1098 = vunpack.c.h.b16 %v389
      %v1099 = vunpack.c.l.b16 %v390
      %v1100 = vunpack.c.h.b16 %v390
      %v1101 = vunpack.c.l.b16 %v391
      %v1102 = vunpack.c.h.b16 %v391
      %v1103 = vunpack.c.l.b16 %v392
      %v1104 = vunpack.c.l.b16 %v393
      %v1105 = vunpack.c.h.b16 %v393
      %v1106 = vunpack.c.l.b16 %v394
      %v1107 = vunpack.c.h.b16 %v394
      %v1108 = vunpack.c.l.b16 %v395
      %v1109 = vunpack.c.h.b16 %v395
      %v1110 = vunpack.c.l.b16 %v396
      %v1111 = vunpack.c.h.b16 %v396
      %v1112 = vunpack.c.l.b16 %v397
      %v1113 = vunpack.c.h.b16 %v397
      %v1114 = vunpack.c.l.b16 %v398
      %v1115 = vpack.c.b16 %v774, %v763
      %v1116 = vpack.c.b16 %v775, %v764
      %v1117 = vpack.c.b16 %v776, %v765
      %v1118 = vpack.c.b16 %v777, %v766
      %v1119 = vpack.c.b16 %v778, %v767
      %v1120 = vpack.c.b16 %v779, %v768
      %v1121 = vpack.c.b16 %v780, %v769
      %v1122 = vpack.c.b16 %v781, %v770
      %v1123 = vpack.c.b16 %v782, %v771
      %v1124 = vpack.c.b16 %v783, %v772
      %v1125 = vpack.c.b16 %v784, %v773
      %v1126 = vpack.c.b16 %v796, %v785
      %v1127 = vpack.c.b16 %v797, %v786
      %v1128 = vpack.c.b16 %v798, %v787
      %v1129 = vpack.c.b16 %v799, %v788
      %v1130 = vpack.c.b16 %v800, %v789
      %v1131 = vpack.c.b16 %v801, %v790
      %v1132 = vpack.c.b16 %v802, %v791
      %v1133 = vpack.c.b16 %v803, %v792
      %v1134 = vpack.c.b16 %v804, %v793
      %v1135 = vpack.c.b16 %v805, %v794
      %v1136 = vpack.c.b16 %v806, %v795
      %v1137 = vpack.c.b16 %v818, %v807
      %v1138 = vpack.c.b16 %v819, %v808
      %v1139 = vpack.c.b16 %v820, %v809
      %v1140 = vpack.c.b16 %v821, %v810
      %v1141 = vpack.c.b16 %v822, %v811
      %v1142 = vpack.c.b16 %v823, %v812
      %v1143 = vpack.c.b16 %v824, %v813
      %v1144 = vpack.c.b16 %v825, %v814
      %v1145 = vpack.c.b16 %v826, %v815
      %v1146 = vpack.c.b16 %v827, %v816
      %v1147 = vpack.c.b16 %v828, %v817
      %v1148 = vpack.c.b16 %v840, %v829
      %v1149 = vpack.c.b16 %v841, %v830
      %v1150 = vpack.c.b16 %v842, %v831
      %v1151 = vpack.c.b16 %v843, %v832
      %v1152 = vpack.c.b16 %v844, %v833
      %v1153 = vpack.c.b16 %v845, %v834
      %v1154 = vpack.c.b16 %v846, %v835
      %v1155 = vpack.c.b16 %v847, %v836
      %v1156 = vpack.c.b16 %v848, %v837
      %v1157 = vpack.c.b16 %v849, %v838
      %v1158 = vpack.c.b16 %v850, %v839
      %v1159 = vpack.c.b16 %v862, %v851
      %v1160 = vpack.c.b16 %v863, %v852
      %v1161 = vpack.c.b16 %v864, %v853
      %v1162 = vpack.c.b16 %v865, %v854
      %v1163 = vpack.c.b16 %v866, %v855
      %v1164 = vpack.c.b16 %v867, %v856
      %v1165 = vpack.c.b16 %v868, %v857
      %v1166 = vpack.c.b16 %v869, %v858
      %v1167 = vpack.c.b16 %v870, %v859
      %v1168 = vpack.c.b16 %v871, %v860
      %v1169 = vpack.c.b16 %v872, %v861
      %v1170 = vpack.c.b16 %v884, %v873
      %v1171 = vpack.c.b16 %v885, %v874
      %v1172 = vpack.c.b16 %v886, %v875
      %v1173 = vpack.c.b16 %v887, %v876
      %v1174 = vpack.c.b16 %v888, %v877
      %v1175 = vpack.c.b16 %v889, %v878
      %v1176 = vpack.c.b16 %v890, %v879
      %v1177 = vpack.c.b16 %v891, %v880
      %v1178 = vpack.c.b16 %v892, %v881
      %v1179 = vpack.c.b16 %v893, %v882
      %v1180 = vpack.c.b16 %v894, %v883
      %v1181 = vpack.c.b16 %v906, %v895
      %v1182 = vpack.c.b16 %v907, %v896
      %v1183 = vpack.c.b16 %v908, %v897
      %v1184 = vpack.c.b16 %v909, %v898
      %v1185 = vpack.c.b16 %v910, %v899
      %v1186 = vpack.c.b16 %v911, %v900
      %v1187 = vpack.c.b16 %v912, %v901
      %v1188 = vpack.c.b16 %v913, %v902
      %v1189 = vpack.c.b16 %v914, %v903
      %v1190 = vpack.c.b16 %v915, %v904
      %v1191 = vpack.c.b16 %v916, %v905
      %v1192 = vpack.c.b16 %v928, %v917
      %v1193 = vpack.c.b16 %v929, %v918
      %v1194 = vpack.c.b16 %v930, %v919
      %v1195 = vpack.c.b16 %v931, %v920
      %v1196 = vpack.c.b16 %v932, %v921
      %v1197 = vpack.c.b16 %v933, %v922
      %v1198 = vpack.c.b16 %v934, %v923
      %v1199 = vpack.c.b16 %v935, %v924
      %v1200 = vpack.c.b16 %v936, %v925
      %v1201 = vpack.c.b16 %v937, %v926
      %v1202 = vpack.c.b16 %v938, %v927
      %v1203 = vpack.c.b16 %v950, %v939
      %v1204 = vpack.c.b16 %v951, %v940
      %v1205 = vpack.c.b16 %v952, %v941
      %v1206 = vpack.c.b16 %v953, %v942
      %v1207 = vpack.c.b16 %v954, %v943
      %v1208 = vpack.c.b16 %v955, %v944
      %v1209 = vpack.c.b16 %v956, %v945
      %v1210 = vpack.c.b16 %v957, %v946
      %v1211 = vpack.c.b16 %v958, %v947
      %v1212 = vpack.c.b16 %v959, %v948
      %v1213 = vpack.c.b16 %v960, %v949
      %v1214 = vpack.c.b16 %v972, %v961
      %v1215 = vpack.c.b16 %v973, %v962
      %v1216 = vpack.c.b16 %v974, %v963
      %v1217 = vpack.c.b16 %v975, %v964
      %v1218 = vpack.c.b16 %v976, %v965
      %v1219 = vpack.c.b16 %v977, %v966
      %v1220 = vpack.c.b16 %v978, %v967
      %v1221 = vpack.c.b16 %v979, %v968
      %v1222 = vpack.c.b16 %v980, %v969
      %v1223 = vpack.c.b16 %v981, %v970
      %v1224 = vpack.c.b16 %v982, %v971
      %v1225 = vpack.c.b16 %v994, %v983
      %v1226 = vpack.c.b16 %v995, %v984
      %v1227 = vpack.c.b16 %v996, %v985
      %v1228 = vpack.c.b16 %v997, %v986
      %v1229 = vpack.c.b16 %v998, %v987
      %v1230 = vpack.c.b16 %v999, %v988
      %v1231 = vpack.c.b16 %v1000, %v989
      %v1232 = vpack.c.b16 %v1001, %v990
      %v1233 = vpack.c.b16 %v1002, %v991
      %v1234 = vpack.c.b16 %v1003, %v992
      %v1235 = vpack.c.b16 %v1004, %v993
      %v1236 = vpack.c.b16 %v1016, %v1005
      %v1237 = vpack.c.b16 %v1017, %v1006
      %v1238 = vpack.c.b16 %v1018, %v1007
      %v1239 = vpack.c.b16 %v1019, %v1008
      %v1240 = vpack.c.b16 %v1020, %v1009
      %v1241 = vpack.c.b16 %v1021, %v1010
      %v1242 = vpack.c.b16 %v1022, %v1011
      %v1243 = vpack.c.b16 %v1023, %v1012
      %v1244 = vpack.c.b16 %v1024, %v1013
      %v1245 = vpack.c.b16 %v1025, %v1014
      %v1246 = vpack.c.b16 %v1026, %v1015
      %v1247 = vpack.c.b16 %v1038, %v1027
      %v1248 = vpack.c.b16 %v1039, %v1028
      %v1249 = vpack.c.b16 %v1040, %v1029
      %v1250 = vpack.c.b16 %v1041, %v1030
      %v1251 = vpack.c.b16 %v1042, %v1031
      %v1252 = vpack.c.b16 %v1043, %v1032
      %v1253 = vpack.c.b16 %v1044, %v1033
      %v1254 = vpack.c.b16 %v1045, %v1034
      %v1255 = vpack.c.b16 %v1046, %v1035
      %v1256 = vpack.c.b16 %v1047, %v1036
      %v1257 = vpack.c.b16 %v1048, %v1037
      %v1258 = vpack.c.b16 %v1060, %v1049
      %v1259 = vpack.c.b16 %v1061, %v1050
      %v1260 = vpack.c.b16 %v1062, %v1051
      %v1261 = vpack.c.b16 %v1063, %v1052
      %v1262 = vpack.c.b16 %v1064, %v1053
      %v1263 = vpack.c.b16 %v1065, %v1054
      %v1264 = vpack.c.b16 %v1066, %v1055
      %v1265 = vpack.c.b16 %v1067, %v1056
      %v1266 = vpack.c.b16 %v1068, %v1057
      %v1267 = vpack.c.b16 %v1069, %v1058
      %v1268 = vpack.c.b16 %v1070, %v1059
      %v1269 = vpack.c.b16 %v1082, %v1071
      %v1270 = vpack.c.b16 %v1083, %v1072
      %v1271 = vpack.c.b16 %v1084, %v1073
      %v1272 = vpack.c.b16 %v1085, %v1074
      %v1273 = vpack.c.b16 %v1086, %v1075
      %v1274 = vpack.c.b16 %v1087, %v1076
      %v1275 = vpack.c.b16 %v1088, %v1077
      %v1276 = vpack.c.b16 %v1089, %v1078
      %v1277 = vpack.c.b16 %v1090, %v1079
      %v1278 = vpack.c.b16 %v1091, %v1080
      %v1279 = vpack.c.b16 %v1092, %v1081
      %v1280 = vpack.c.b16 %v1104, %v1093
      %v1281 = vpack.c.b16 %v1105, %v1094
      %v1282 = vpack.c.b16 %v1106, %v1095
      %v1283 = vpack.c.b16 %v1107, %v1096
      %v1284 = vpack.c.b16 %v1108, %v1097
      %v1285 = vpack.c.b16 %v1109, %v1098
      %v1286 = vpack.c.b16 %v1110, %v1099
      %v1287 = vpack.c.b16 %v1111, %v1100
      %v1288 = vpack.c.b16 %v1112, %v1101
      %v1289 = vpack.c.b16 %v1113, %v1102
      %v1290 = vpack.c.b16 %v1114, %v1103
      %v1623 = vunpack.c.l.b16 %v399
      %v1624 = vunpack.c.l.b16 %v400
      %v1625 = vunpack.c.l.b16 %v401
      %v1626 = vunpack.c.l.b16 %v402
      %v1627 = vunpack.c.l.b16 %v403
      %v1628 = vunpack.c.l.b16 %v404
      %v1629 = vunpack.c.l.b16 %v405
      %v1630 = vunpack.c.l.b16 %v406
      %v1631 = vunpack.c.l.b16 %v407
      %v1632 = vunpack.c.l.b16 %v408
      %v1633 = vunpack.c.l.b16 %v409
      %v1634 = vunpack.c.l.b16 %v410
      %v1635 = vunpack.c.l.b16 %v411
      %v1636 = vunpack.c.l.b16 %v412
      %v1637 = vunpack.c.l.b16 %v413
      %v1638 = vunpack.c.l.b16 %v414
      %v1639 = vunpack.c.l.b16 %v415
      %v1640 = vunpack.c.l.b16 %v416
      %v1641 = vunpack.c.l.b16 %v417
      %v1642 = vunpack.c.l.b16 %v418
      %v1643 = vunpack.c.l.b16 %v419
      %v1644 = vunpack.c.l.b16 %v420
      %v1645 = vunpack.c.l.b16 %v421
      %v1646 = vunpack.c.l.b16 %v422
      %v1647 = vunpack.c.l.b16 %v423
      %v1648 = vunpack.c.l.b16 %v424
      %v1649 = vunpack.c.l.b16 %v425
      %v1650 = vunpack.c.l.b16 %v426
      %v1651 = vunpack.c.l.b16 %v427
      %v1652 = vunpack.c.l.b16 %v428
      %v1653 = vunpack.c.l.b16 %v429
      %v1654 = vunpack.c.l.b16 %v430
      %v1655 = vunpack.c.l.b16 %v431
      %v1656 = vunpack.c.l.b16 %v432
      %v1657 = vunpack.c.l.b16 %v433
      %v1658 = vunpack.c.l.b16 %v434
      %v1659 = vunpack.c.l.b16 %v435
      %v1660 = vunpack.c.l.b16 %v436
      %v1661 = vunpack.c.l.b16 %v437
      %v1662 = vunpack.c.l.b16 %v438
      %v1663 = vunpack.c.l.b16 %v439
      %v1664 = vunpack.c.l.b16 %v440
      %v1665 = vunpack.c.l.b16 %v441
      %v1666 = vunpack.c.l.b16 %v442
      %v1667 = vunpack.c.l.b16 %v443
      %v1668 = vunpack.c.l.b16 %v444
      %v1669 = vunpack.c.l.b16 %v445
      %v1670 = vunpack.c.l.b16 %v446
      %v1671 = vunpack.c.l.b16 %v447
      %v1672 = vunpack.c.l.b16 %v448
      %v1673 = vunpack.c.l.b16 %v449
      %v1674 = vunpack.c.l.b16 %v450
      %v1675 = vunpack.c.l.b16 %v451
      %v1676 = vunpack.c.l.b16 %v452
      %v1677 = vunpack.c.l.b16 %v453
      %v1678 = vunpack.c.l.b16 %v454
      %v1679 = vunpack.c.l.b16 %v455
      %v1680 = vunpack.c.l.b16 %v456
      %v1681 = vunpack.c.l.b16 %v457
      %v1682 = vunpack.c.l.b16 %v458
      %v1683 = vunpack.c.l.b16 %v459
      %v1684 = vunpack.c.l.b16 %v460
      %v1685 = vunpack.c.l.b16 %v461
      %v1686 = vunpack.c.l.b16 %v462
      %v1687 = vunpack.c.l.b16 %v463
      %v1688 = vunpack.c.l.b16 %v464
      %v1689 = vunpack.c.l.b16 %v465
      %v1690 = vunpack.c.l.b16 %v466
      %v1691 = vunpack.c.l.b16 %v467
      %v1692 = vunpack.c.l.b16 %v468
      %v1693 = vunpack.c.l.b16 %v469
      %v1694 = vunpack.c.l.b16 %v470
      %v1695 = vunpack.c.l.b16 %v471
      %v1696 = vunpack.c.l.b16 %v472
      %v1697 = vunpack.c.l.b16 %v473
      %v1698 = vunpack.c.l.b16 %v474
      %v1699 = vunpack.c.l.b16 %v475
      %v1700 = vunpack.c.l.b16 %v476
      %v1701 = vunpack.c.l.b16 %v477
      %v1702 = vunpack.c.l.b16 %v478
      %v1703 = vunpack.c.l.b16 %v479
      %v1704 = vunpack.c.l.b16 %v480
      %v1705 = vunpack.c.l.b16 %v481
      %v1706 = vunpack.c.l.b16 %v482
      %v1707 = vunpack.c.l.b16 %v483
      %v1708 = vunpack.c.l.b16 %v484
      %v1709 = vunpack.c.l.b16 %v485
      %v1710 = vunpack.c.l.b16 %v486
      %v1711 = vunpack.c.l.b16 %v487
      %v1712 = vunpack.c.l.b16 %v488
      %v1713 = vunpack.c.l.b16 %v489
      %v1714 = vunpack.c.l.b16 %v490
      %v1715 = vunpack.c.l.b16 %v491
      %v1716 = vunpack.c.l.b16 %v492
      %v1717 = vunpack.c.l.b16 %v493
      %v1718 = vunpack.c.l.b16 %v494
      %v1719 = vunpack.c.l.b16 %v495
      %v1720 = vunpack.c.l.b16 %v496
      %v1721 = vunpack.c.l.b16 %v497
      %v1722 = vunpack.c.l.b16 %v498
      %v1723 = vunpack.c.l.b16 %v499
      %v1724 = vunpack.c.l.b16 %v500
      %v1725 = vunpack.c.l.b16 %v501
      %v1726 = vunpack.c.l.b16 %v502
      %v1727 = vunpack.c.l.b16 %v503
      %v1728 = vunpack.c.l.b16 %v504
      %v1729 = vunpack.c.l.b16 %v505
      %v1730 = vunpack.c.l.b16 %v506
      %v1731 = vunpack.c.l.b16 %v507
      %v1732 = vunpack.c.l.b16 %v508
      %v1733 = vunpack.c.l.b16 %v509
      %v1734 = vunpack.c.l.b16 %v510
      %v1735 = vunpack.c.l.b16 %v511
      %v1736 = vunpack.c.l.b16 %v512
      %v1737 = vunpack.c.l.b16 %v513
      %v1738 = vunpack.c.l.b16 %v514
      %v1739 = vunpack.c.l.b16 %v515
      %v1740 = vunpack.c.l.b16 %v516
      %v1741 = vunpack.c.l.b16 %v517
      %v1742 = vunpack.c.l.b16 %v518
      %v1743 = vunpack.c.l.b16 %v519
      %v1744 = vunpack.c.l.b16 %v520
      %v1745 = vunpack.c.l.b16 %v521
      %v1746 = vunpack.c.l.b16 %v522
      %v1747 = vunpack.c.l.b16 %v523
      %v1748 = vunpack.c.l.b16 %v524
      %v1749 = vunpack.c.l.b16 %v525
      %v1750 = vunpack.c.l.b16 %v526
      %v1751 = vunpack.c.l.b16 %v527
      %v1752 = vunpack.c.l.b16 %v528
      %v1753 = vunpack.c.l.b16 %v529
      %v1754 = vunpack.c.l.b16 %v530
      %v1755 = vunpack.c.l.b16 %v531
      %v1756 = vunpack.c.l.b16 %v532
      %v1757 = vunpack.c.l.b16 %v533
      %v1758 = vunpack.c.l.b16 %v534
      %v1759 = vunpack.c.l.b16 %v535
      %v1760 = vunpack.c.l.b16 %v536
      %v1761 = vunpack.c.l.b16 %v537
      %v1762 = vunpack.c.l.b16 %v538
      %v1763 = vunpack.c.l.b16 %v539
      %v1764 = vunpack.c.l.b16 %v540
      %v1765 = vunpack.c.l.b16 %v541
      %v1766 = vunpack.c.l.b16 %v542
      %v1767 = vunpack.c.l.b16 %v543
      %v1768 = vunpack.c.l.b16 %v544
      %v1769 = vunpack.c.l.b16 %v545
      %v1770 = vunpack.c.l.b16 %v546
      %v1771 = vunpack.c.l.b16 %v547
      %v1772 = vunpack.c.l.b16 %v548
      %v1773 = vunpack.c.l.b16 %v549
      %v1774 = vunpack.c.l.b16 %v550
      %v1775 = vunpack.c.l.b16 %v551
      %v1776 = vunpack.c.l.b16 %v552
      %v1777 = vunpack.c.l.b16 %v553
      %v1778 = vunpack.c.l.b16 %v554
      %v1779 = vunpack.c.l.b16 %v555
      %v1780 = vunpack.c.l.b16 %v556
      %v1781 = vunpack.c.l.b16 %v557
      %v1782 = vunpack.c.l.b16 %v558
      %v1783 = vunpack.c.l.b16 %v559
      %v1784 = vunpack.c.l.b16 %v560
      %v1785 = vunpack.c.l.b16 %v561
      %v1786 = vunpack.c.l.b16 %v562
      %v1787 = vunpack.c.l.b16 %v563
      %v1788 = vunpack.c.l.b16 %v564
      %v1789 = vunpack.c.l.b16 %v565
      %v1790 = vunpack.c.l.b16 %v566
      %v1791 = vunpack.c.l.b16 %v567
      %v1792 = vunpack.c.l.b16 %v568
      %v1793 = vunpack.c.l.b16 %v569
      %v1794 = vunpack.c.l.b16 %v570
      %v1795 = vpack.c.b16 %v1624, %v1623
      %v1796 = vpack.c.b16 %v1626, %v1625
      %v1797 = vpack.c.b16 %v1628, %v1627
      %v1798 = vpack.c.b16 %v1630, %v1629
      %v1799 = vpack.c.b16 %v1632, %v1631
      %v1800 = vpack.c.b16 %v1634, %v1633
      %v1801 = vpack.c.b16 %v1636, %v1635
      %v1802 = vpack.c.b16 %v1638, %v1637
      %v1803 = vpack.c.b16 %v1640, %v1639
      %v1804 = vpack.c.b16 %v1642, %v1641
      %v1805 = vpack.c.b16 %v1644, %v1643
      %v1806 = vpack.c.b16 %v1646, %v1645
      %v1807 = vpack.c.b16 %v1648, %v1647
      %v1808 = vpack.c.b16 %v1650, %v1649
      %v1809 = vpack.c.b16 %v1652, %v1651
      %v1810 = vpack.c.b16 %v1654, %v1653
      %v1811 = vpack.c.b16 %v1656, %v1655
      %v1812 = vpack.c.b16 %v1658, %v1657
      %v1813 = vpack.c.b16 %v1660, %v1659
      %v1814 = vpack.c.b16 %v1662, %v1661
      %v1815 = vpack.c.b16 %v1664, %v1663
      %v1816 = vpack.c.b16 %v1666, %v1665
      %v1817 = vpack.c.b16 %v1668, %v1667
      %v1818 = vpack.c.b16 %v1670, %v1669
      %v1819 = vpack.c.b16 %v1672, %v1671
      %v1820 = vpack.c.b16 %v1674, %v1673
      %v1821 = vpack.c.b16 %v1676, %v1675
      %v1822 = vpack.c.b16 %v1678, %v1677
      %v1823 = vpack.c.b16 %v1680, %v1679
      %v1824 = vpack.c.b16 %v1682, %v1681
      %v1825 = vpack.c.b16 %v1684, %v1683
      %v1826 = vpack.c.b16 %v1686, %v1685
      %v1827 = vpack.c.b16 %v1688, %v1687
      %v1828 = vpack.c.b16 %v1690, %v1689
      %v1829 = vpack.c.b16 %v1692, %v1691
      %v1830 = vpack.c.b16 %v1694, %v1693
      %v1831 = vpack.c.b16 %v1696, %v1695
      %v1832 = vpack.c.b16 %v1698, %v1697
      %v1833 = vpack.c.b16 %v1700, %v1699
      %v1834 = vpack.c.b16 %v1702, %v1701
      %v1835 = vpack.c.b16 %v1704, %v1703
      %v1836 = vpack.c.b16 %v1706, %v1705
      %v1837 = vpack.c.b16 %v1708, %v1707
      %v1838 = vpack.c.b16 %v1710, %v1709
      %v1839 = vpack.c.b16 %v1712, %v1711
      %v1840 = vpack.c.b16 %v1714, %v1713
      %v1841 = vpack.c.b16 %v1716, %v1715
      %v1842 = vpack.c.b16 %v1718, %v1717
      %v1843 = vpack.c.b16 %v1720, %v1719
      %v1844 = vpack.c.b16 %v1722, %v1721
      %v1845 = vpack.c.b16 %v1724, %v1723
      %v1846 = vpack.c.b16 %v1726, %v1725
      %v1847 = vpack.c.b16 %v1728, %v1727
      %v1848 = vpack.c.b16 %v1730, %v1729
      %v1849 = vpack.c.b16 %v1732, %v1731
      %v1850 = vpack.c.b16 %v1734, %v1733
      %v1851 = vpack.c.b16 %v1736, %v1735
      %v1852 = vpack.c.b16 %v1738, %v1737
      %v1853 = vpack.c.b16 %v1740, %v1739
      %v1854 = vpack.c.b16 %v1742, %v1741
      %v1855 = vpack.c.b16 %v1744, %v1743
      %v1856 = vpack.c.b16 %v1746, %v1745
      %v1857 = vpack.c.b16 %v1748, %v1747
      %v1858 = vpack.c.b16 %v1750, %v1749
      %v1859 = vpack.c.b16 %v1752, %v1751
      %v1860 = vpack.c.b16 %v1754, %v1753
      %v1861 = vpack.c.b16 %v1756, %v1755
      %v1862 = vpack.c.b16 %v1758, %v1757
      %v1863 = vpack.c.b16 %v1760, %v1759
      %v1864 = vpack.c.b16 %v1762, %v1761
      %v1865 = vpack.c.b16 %v1764, %v1763
      %v1866 = vpack.c.b16 %v1766, %v1765
      %v1867 = vpack.c.b16 %v1768, %v1767
      %v1868 = vpack.c.b16 %v1770, %v1769
      %v1869 = vpack.c.b16 %v1772, %v1771
      %v1870 = vpack.c.b16 %v1774, %v1773
      %v1871 = vpack.c.b16 %v1776, %v1775
      %v1872 = vpack.c.b16 %v1778, %v1777
      %v1873 = vpack.c.b16 %v1780, %v1779
      %v1874 = vpack.c.b16 %v1782, %v1781
      %v1875 = vpack.c.b16 %v1784, %v1783
      %v1876 = vpack.c.b16 %v1786, %v1785
      %v1877 = vpack.c.b16 %v1788, %v1787
      %v1878 = vpack.c.b16 %v1790, %v1789
      %v1879 = vpack.c.b16 %v1792, %v1791
      %v1880 = vpack.c.b16 %v1794, %v1793
      %vm1966 = vcmask 752640
      %v1968 = vsel %vm1966, %v1125, 0
      %v1971 = vsel %vm1966, %v1136, 0
      %v1974 = vsel %vm1966, %v1147, 0
      %v1977 = vsel %vm1966, %v1158, 0
      %v1980 = vsel %vm1966, %v1169, 0
      %v1983 = vsel %vm1966, %v1180, 0
      %v1986 = vsel %vm1966, %v1191, 0
      %v1989 = vsel %vm1966, %v1202, 0
      %v1992 = vsel %vm1966, %v1213, 0
      %v1995 = vsel %vm1966, %v1224, 0
      %v1998 = vsel %vm1966, %v1235, 0
      %v2001 = vsel %vm1966, %v1246, 0
      %v2004 = vsel %vm1966, %v1257, 0
      %v2007 = vsel %vm1966, %v1268, 0
      %v2010 = vsel %vm1966, %v1279, 0
      %v2013 = vsel %vm1966, %v1290, 0
      %vm2015 = vcmask 1045504
      %v2017 = vsel %vm2015, %v1880, 0
      %2019 = vmatprep.subr.bf16.mxu0 0
      %2020 = vmatpush1.bf16.msra.mxu0 %v1795
      %2021 = vmatprep.subr.bf16.mxu0 0
      %2022 = vmatpush1.bf16.msra.mxu0 %v1796
      %2023 = vmatprep.subr.bf16.mxu0 0
      %2024 = vmatpush1.bf16.msra.mxu0 %v1797
      %2025 = vmatprep.subr.bf16.mxu0 0
      %2026 = vmatpush1.bf16.msra.mxu0 %v1798
      %2027 = vmatprep.subr.bf16.mxu0 0
      %2028 = vmatpush1.bf16.msra.mxu0 %v1799
      %2029 = vmatprep.subr.bf16.mxu0 0
      %2030 = vmatpush1.bf16.msra.mxu0 %v1800
      %2031 = vmatprep.subr.bf16.mxu0 0
      %2032 = vmatpush1.bf16.msra.mxu0 %v1801
      %2033 = vmatprep.subr.bf16.mxu0 0
      %2034 = vmatpush1.bf16.msra.mxu0 %v1802
      %2035 = vmatprep.subr.bf16.mxu0 0
      %2036 = vmatpush1.bf16.msra.mxu0 %v1803
      %2037 = vmatprep.subr.bf16.mxu0 0
      %2038 = vmatpush1.bf16.msra.mxu0 %v1804
      %2039 = vmatprep.subr.bf16.mxu0 0
      %2040 = vmatpush1.bf16.msra.mxu0 %v1805
      %2041 = vmatprep.subr.bf16.mxu0 0
      %2042 = vmatpush1.bf16.msra.mxu0 %v1806
      %2043 = vmatprep.subr.bf16.mxu0 0
      %2044 = vmatpush1.bf16.msra.mxu0 %v1807
      %2045 = vmatprep.subr.bf16.mxu0 0
      %2046 = vmatpush1.bf16.msra.mxu0 %v1808
      %2047 = vmatprep.subr.bf16.mxu0 0
      %2048 = vmatpush1.bf16.msra.mxu0 %v1809
      %2049 = vmatprep.subr.bf16.mxu0 0
      %2050 = vmatpush1.bf16.msra.mxu0 %v1810
      %2051 = vmatprep.mubr.bf16.mxu0 %v1116
      %2052 = vmatmul.mubr.bf16.gmra.mrb[0].mxu0 %v1115
      %v2053 = vpop.f32.mrb[0].mxu0
      %v2054 = vadd.f32 0.0, %v2053
      %v2055 = vpop.f32.mrb[0].mxu0
      %v2056 = vpop.f32.mrb[0].mxu0
      %v2057 = vadd.f32 0.0, %v2056
      %v2058 = vpop.f32.mrb[0].mxu0
      %2059 = vmatprep.mubr.bf16.mxu0 %v1127
      %2060 = vmatmul.mubr.bf16.gmra.mrb[0].mxu0 %v1126
      %v2061 = vpop.f32.mrb[0].mxu0
      %v2062 = vadd.f32 0.0, %v2061
      %v2063 = vpop.f32.mrb[0].mxu0
      %v2064 = vpop.f32.mrb[0].mxu0
      %v2065 = vadd.f32 0.0, %v2064
      %v2066 = vpop.f32.mrb[0].mxu0
      %2067 = vmatprep.mubr.bf16.mxu0 %v1138
      %2068 = vmatmul.mubr.bf16.gmra.mrb[0].mxu0 %v1137
      %v2069 = vpop.f32.mrb[0].mxu0
      %v2070 = vadd.f32 0.0, %v2069
      %v2071 = vpop.f32.mrb[0].mxu0
      %v2072 = vpop.f32.mrb[0].mxu0
      %v2073 = vadd.f32 0.0, %v2072
      %v2074 = vpop.f32.mrb[0].mxu0
      %2075 = vmatprep.mubr.bf16.mxu0 %v1149
      %2076 = vmatmul.mubr.bf16.gmra.mrb[0].mxu0 %v1148
      %v2077 = vpop.f32.mrb[0].mxu0
      %v2078 = vadd.f32 0.0, %v2077
      %v2079 = vpop.f32.mrb[0].mxu0
      %v2080 = vpop.f32.mrb[0].mxu0
      %v2081 = vadd.f32 0.0, %v2080
      %v2082 = vpop.f32.mrb[0].mxu0
      %2083 = vmatprep.mubr.bf16.mxu0 %v1160
      %2084 = vmatmul.mubr.bf16.gmra.mrb[0].mxu0 %v1159
      %v2085 = vpop.f32.mrb[0].mxu0
      %v2086 = vadd.f32 0.0, %v2085
      %v2087 = vpop.f32.mrb[0].mxu0
      %v2088 = vpop.f32.mrb[0].mxu0
      %v2089 = vadd.f32 0.0, %v2088
      %v2090 = vpop.f32.mrb[0].mxu0
      %2091 = vmatprep.mubr.bf16.mxu0 %v1171
      %2092 = vmatmul.mubr.bf16.gmra.mrb[0].mxu0 %v1170
      %v2093 = vpop.f32.mrb[0].mxu0
      %v2094 = vadd.f32 0.0, %v2093
      %v2095 = vpop.f32.mrb[0].mxu0
      %v2096 = vpop.f32.mrb[0].mxu0
      %v2097 = vadd.f32 0.0, %v2096
      %v2098 = vpop.f32.mrb[0].mxu0
      %2099 = vmatprep.mubr.bf16.mxu0 %v1182
      %2100 = vmatmul.mubr.bf16.gmra.mrb[0].mxu0 %v1181
      %v2101 = vpop.f32.mrb[0].mxu0
      %v2102 = vadd.f32 0.0, %v2101
      %v2103 = vpop.f32.mrb[0].mxu0
      %v2104 = vpop.f32.mrb[0].mxu0
      %v2105 = vadd.f32 0.0, %v2104
      %v2106 = vpop.f32.mrb[0].mxu0
      %2107 = vmatprep.mubr.bf16.mxu0 %v1193
      %2108 = vmatmul.mubr.bf16.gmra.mrb[0].mxu0 %v1192
      %v2109 = vpop.f32.mrb[0].mxu0
      %v2110 = vadd.f32 0.0, %v2109
      %v2111 = vpop.f32.mrb[0].mxu0
      %v2112 = vpop.f32.mrb[0].mxu0
      %v2113 = vadd.f32 0.0, %v2112
      %v2114 = vpop.f32.mrb[0].mxu0
      %2115 = vmatprep.mubr.bf16.mxu0 %v1204
      %2116 = vmatmul.mubr.bf16.gmra.mrb[0].mxu0 %v1203
      %v2117 = vpop.f32.mrb[0].mxu0
      %v2118 = vadd.f32 0.0, %v2117
      %v2119 = vpop.f32.mrb[0].mxu0
      %v2120 = vpop.f32.mrb[0].mxu0
      %v2121 = vadd.f32 0.0, %v2120
      %v2122 = vpop.f32.mrb[0].mxu0
      %2123 = vmatprep.mubr.bf16.mxu0 %v1215
      %2124 = vmatmul.mubr.bf16.gmra.mrb[0].mxu0 %v1214
      %v2125 = vpop.f32.mrb[0].mxu0
      %v2126 = vadd.f32 0.0, %v2125
      %v2127 = vpop.f32.mrb[0].mxu0
      %v2128 = vpop.f32.mrb[0].mxu0
      %v2129 = vadd.f32 0.0, %v2128
      %v2130 = vpop.f32.mrb[0].mxu0
      %2131 = vmatprep.mubr.bf16.mxu0 %v1226
      %2132 = vmatmul.mubr.bf16.gmra.mrb[0].mxu0 %v1225
      %v2133 = vpop.f32.mrb[0].mxu0
      %v2134 = vadd.f32 0.0, %v2133
      %v2135 = vpop.f32.mrb[0].mxu0
      %v2136 = vpop.f32.mrb[0].mxu0
      %v2137 = vadd.f32 0.0, %v2136
      %v2138 = vpop.f32.mrb[0].mxu0
      %2139 = vmatprep.mubr.bf16.mxu0 %v1237
      %2140 = vmatmul.mubr.bf16.gmra.mrb[0].mxu0 %v1236
      %v2141 = vpop.f32.mrb[0].mxu0
      %v2142 = vadd.f32 0.0, %v2141
      %v2143 = vpop.f32.mrb[0].mxu0
      %v2144 = vpop.f32.mrb[0].mxu0
      %v2145 = vadd.f32 0.0, %v2144
      %v2146 = vpop.f32.mrb[0].mxu0
      %2147 = vmatprep.mubr.bf16.mxu0 %v1248
      %2148 = vmatmul.mubr.bf16.gmra.mrb[0].mxu0 %v1247
      %v2149 = vpop.f32.mrb[0].mxu0
      %v2150 = vadd.f32 0.0, %v2149
      %v2151 = vpop.f32.mrb[0].mxu0
      %v2152 = vpop.f32.mrb[0].mxu0
      %v2153 = vadd.f32 0.0, %v2152
      %v2154 = vpop.f32.mrb[0].mxu0
      %2155 = vmatprep.mubr.bf16.mxu0 %v1259
      %2156 = vmatmul.mubr.bf16.gmra.mrb[0].mxu0 %v1258
      %v2157 = vpop.f32.mrb[0].mxu0
      %v2158 = vadd.f32 0.0, %v2157
      %v2159 = vpop.f32.mrb[0].mxu0
      %v2160 = vpop.f32.mrb[0].mxu0
      %v2161 = vadd.f32 0.0, %v2160
      %v2162 = vpop.f32.mrb[0].mxu0
      %2163 = vmatprep.mubr.bf16.mxu0 %v1270
      %2164 = vmatmul.mubr.bf16.gmra.mrb[0].mxu0 %v1269
      %v2165 = vpop.f32.mrb[0].mxu0
      %v2166 = vadd.f32 0.0, %v2165
      %v2167 = vpop.f32.mrb[0].mxu0
      %v2168 = vpop.f32.mrb[0].mxu0
      %v2169 = vadd.f32 0.0, %v2168
      %v2170 = vpop.f32.mrb[0].mxu0
      %2171 = vmatprep.mubr.bf16.mxu0 %v1281
      %2172 = vmatmul.mubr.bf16.gmra.mrb[0].mxu0 %v1280
      %v2173 = vpop.f32.mrb[0].mxu0
      %v2174 = vadd.f32 0.0, %v2173
      %v2175 = vpop.f32.mrb[0].mxu0
      %v2176 = vpop.f32.mrb[0].mxu0
      %v2177 = vadd.f32 0.0, %v2176
      %v2178 = vpop.f32.mrb[0].mxu0
      %2179 = vdwg.mxu0
      %2180 = vmatprep.subr.bf16.mxu0 0
      %2181 = vmatpush1.bf16.msra.mxu0 %v1811
      %2182 = vmatprep.subr.bf16.mxu0 0
      %2183 = vmatpush1.bf16.msra.mxu0 %v1812
      %2184 = vmatprep.subr.bf16.mxu0 0
      %2185 = vmatpush1.bf16.msra.mxu0 %v1813
      %2186 = vmatprep.subr.bf16.mxu0 0
      %2187 = vmatpush1.bf16.msra.mxu0 %v1814
      %2188 = vmatprep.subr.bf16.mxu0 0
      %2189 = vmatpush1.bf16.msra.mxu0 %v1815
      %2190 = vmatprep.subr.bf16.mxu0 0
      %2191 = vmatpush1.bf16.msra.mxu0 %v1816
      %2192 = vmatprep.subr.bf16.mxu0 0
      %2193 = vmatpush1.bf16.msra.mxu0 %v1817
      %2194 = vmatprep.subr.bf16.mxu0 0
      %2195 = vmatpush1.bf16.msra.mxu0 %v1818
      %2196 = vmatprep.subr.bf16.mxu0 0
      %2197 = vmatpush1.bf16.msra.mxu0 %v1819
      %2198 = vmatprep.subr.bf16.mxu0 0
      %2199 = vmatpush1.bf16.msra.mxu0 %v1820
      %2200 = vmatprep.subr.bf16.mxu0 0
      %2201 = vmatpush1.bf16.msra.mxu0 %v1821
      %2202 = vmatprep.subr.bf16.mxu0 0
      %2203 = vmatpush1.bf16.msra.mxu0 %v1822
      %2204 = vmatprep.subr.bf16.mxu0 0
      %2205 = vmatpush1.bf16.msra.mxu0 %v1823
      %2206 = vmatprep.subr.bf16.mxu0 0
      %2207 = vmatpush1.bf16.msra.mxu0 %v1824
      %2208 = vmatprep.subr.bf16.mxu0 0
      %2209 = vmatpush1.bf16.msra.mxu0 %v1825
      %2210 = vmatprep.subr.bf16.mxu0 0
      %2211 = vmatpush1.bf16.msra.mxu0 %v1826
      %2212 = vmatprep.mubr.bf16.mxu0 %v1118
      %2213 = vmatmul.mubr.bf16.gmra.mrb[0].mxu0 %v1117
      %v2214 = vpop.f32.mrb[0].mxu0
      %v2215 = vadd.f32 %v2054, %v2214
      %v2216 = vpop.f32.mrb[0].mxu0
      %v2217 = vpop.f32.mrb[0].mxu0
      %v2218 = vadd.f32 %v2057, %v2217
      %v2219 = vpop.f32.mrb[0].mxu0
      %2220 = vmatprep.mubr.bf16.mxu0 %v1129
      %2221 = vmatmul.mubr.bf16.gmra.mrb[0].mxu0 %v1128
      %v2222 = vpop.f32.mrb[0].mxu0
      %v2223 = vadd.f32 %v2062, %v2222
      %v2224 = vpop.f32.mrb[0].mxu0
      %v2225 = vpop.f32.mrb[0].mxu0
      %v2226 = vadd.f32 %v2065, %v2225
      %v2227 = vpop.f32.mrb[0].mxu0
      %2228 = vmatprep.mubr.bf16.mxu0 %v1140
      %2229 = vmatmul.mubr.bf16.gmra.mrb[0].mxu0 %v1139
      %v2230 = vpop.f32.mrb[0].mxu0
      %v2231 = vadd.f32 %v2070, %v2230
      %v2232 = vpop.f32.mrb[0].mxu0
      %v2233 = vpop.f32.mrb[0].mxu0
      %v2234 = vadd.f32 %v2073, %v2233
      %v2235 = vpop.f32.mrb[0].mxu0
      %2236 = vmatprep.mubr.bf16.mxu0 %v1151
      %2237 = vmatmul.mubr.bf16.gmra.mrb[0].mxu0 %v1150
      %v2238 = vpop.f32.mrb[0].mxu0
      %v2239 = vadd.f32 %v2078, %v2238
      %v2240 = vpop.f32.mrb[0].mxu0
      %v2241 = vpop.f32.mrb[0].mxu0
      %v2242 = vadd.f32 %v2081, %v2241
      %v2243 = vpop.f32.mrb[0].mxu0
      %2244 = vmatprep.mubr.bf16.mxu0 %v1162
      %2245 = vmatmul.mubr.bf16.gmra.mrb[0].mxu0 %v1161
      %v2246 = vpop.f32.mrb[0].mxu0
      %v2247 = vadd.f32 %v2086, %v2246
      %v2248 = vpop.f32.mrb[0].mxu0
      %v2249 = vpop.f32.mrb[0].mxu0
      %v2250 = vadd.f32 %v2089, %v2249
      %v2251 = vpop.f32.mrb[0].mxu0
      %2252 = vmatprep.mubr.bf16.mxu0 %v1173
      %2253 = vmatmul.mubr.bf16.gmra.mrb[0].mxu0 %v1172
      %v2254 = vpop.f32.mrb[0].mxu0
      %v2255 = vadd.f32 %v2094, %v2254
      %v2256 = vpop.f32.mrb[0].mxu0
      %v2257 = vpop.f32.mrb[0].mxu0
      %v2258 = vadd.f32 %v2097, %v2257
      %v2259 = vpop.f32.mrb[0].mxu0
      %2260 = vmatprep.mubr.bf16.mxu0 %v1184
      %2261 = vmatmul.mubr.bf16.gmra.mrb[0].mxu0 %v1183
      %v2262 = vpop.f32.mrb[0].mxu0
      %v2263 = vadd.f32 %v2102, %v2262
      %v2264 = vpop.f32.mrb[0].mxu0
      %v2265 = vpop.f32.mrb[0].mxu0
      %v2266 = vadd.f32 %v2105, %v2265
      %v2267 = vpop.f32.mrb[0].mxu0
      %2268 = vmatprep.mubr.bf16.mxu0 %v1195
      %2269 = vmatmul.mubr.bf16.gmra.mrb[0].mxu0 %v1194
      %v2270 = vpop.f32.mrb[0].mxu0
      %v2271 = vadd.f32 %v2110, %v2270
      %v2272 = vpop.f32.mrb[0].mxu0
      %v2273 = vpop.f32.mrb[0].mxu0
      %v2274 = vadd.f32 %v2113, %v2273
      %v2275 = vpop.f32.mrb[0].mxu0
      %2276 = vmatprep.mubr.bf16.mxu0 %v1206
      %2277 = vmatmul.mubr.bf16.gmra.mrb[0].mxu0 %v1205
      %v2278 = vpop.f32.mrb[0].mxu0
      %v2279 = vadd.f32 %v2118, %v2278
      %v2280 = vpop.f32.mrb[0].mxu0
      %v2281 = vpop.f32.mrb[0].mxu0
      %v2282 = vadd.f32 %v2121, %v2281
      %v2283 = vpop.f32.mrb[0].mxu0
      %2284 = vmatprep.mubr.bf16.mxu0 %v1217
      %2285 = vmatmul.mubr.bf16.gmra.mrb[0].mxu0 %v1216
      %v2286 = vpop.f32.mrb[0].mxu0
      %v2287 = vadd.f32 %v2126, %v2286
      %v2288 = vpop.f32.mrb[0].mxu0
      %v2289 = vpop.f32.mrb[0].mxu0
      %v2290 = vadd.f32 %v2129, %v2289
      %v2291 = vpop.f32.mrb[0].mxu0
      %2292 = vmatprep.mubr.bf16.mxu0 %v1228
      %2293 = vmatmul.mubr.bf16.gmra.mrb[0].mxu0 %v1227
      %v2294 = vpop.f32.mrb[0].mxu0
      %v2295 = vadd.f32 %v2134, %v2294
      %v2296 = vpop.f32.mrb[0].mxu0
      %v2297 = vpop.f32.mrb[0].mxu0
      %v2298 = vadd.f32 %v2137, %v2297
      %v2299 = vpop.f32.mrb[0].mxu0
      %2300 = vmatprep.mubr.bf16.mxu0 %v1239
      %2301 = vmatmul.mubr.bf16.gmra.mrb[0].mxu0 %v1238
      %v2302 = vpop.f32.mrb[0].mxu0
      %v2303 = vadd.f32 %v2142, %v2302
      %v2304 = vpop.f32.mrb[0].mxu0
      %v2305 = vpop.f32.mrb[0].mxu0
      %v2306 = vadd.f32 %v2145, %v2305
      %v2307 = vpop.f32.mrb[0].mxu0
      %2308 = vmatprep.mubr.bf16.mxu0 %v1250
      %2309 = vmatmul.mubr.bf16.gmra.mrb[0].mxu0 %v1249
      %v2310 = vpop.f32.mrb[0].mxu0
      %v2311 = vadd.f32 %v2150, %v2310
      %v2312 = vpop.f32.mrb[0].mxu0
      %v2313 = vpop.f32.mrb[0].mxu0
      %v2314 = vadd.f32 %v2153, %v2313
      %v2315 = vpop.f32.mrb[0].mxu0
      %2316 = vmatprep.mubr.bf16.mxu0 %v1261
      %2317 = vmatmul.mubr.bf16.gmra.mrb[0].mxu0 %v1260
      %v2318 = vpop.f32.mrb[0].mxu0
      %v2319 = vadd.f32 %v2158, %v2318
      %v2320 = vpop.f32.mrb[0].mxu0
      %v2321 = vpop.f32.mrb[0].mxu0
      %v2322 = vadd.f32 %v2161, %v2321
      %v2323 = vpop.f32.mrb[0].mxu0
      %2324 = vmatprep.mubr.bf16.mxu0 %v1272
      %2325 = vmatmul.mubr.bf16.gmra.mrb[0].mxu0 %v1271
      %v2326 = vpop.f32.mrb[0].mxu0
      %v2327 = vadd.f32 %v2166, %v2326
      %v2328 = vpop.f32.mrb[0].mxu0
      %v2329 = vpop.f32.mrb[0].mxu0
      %v2330 = vadd.f32 %v2169, %v2329
      %v2331 = vpop.f32.mrb[0].mxu0
      %2332 = vmatprep.mubr.bf16.mxu0 %v1283
      %2333 = vmatmul.mubr.bf16.gmra.mrb[0].mxu0 %v1282
      %v2334 = vpop.f32.mrb[0].mxu0
      %v2335 = vadd.f32 %v2174, %v2334
      %v2336 = vpop.f32.mrb[0].mxu0
      %v2337 = vpop.f32.mrb[0].mxu0
      %v2338 = vadd.f32 %v2177, %v2337
      %v2339 = vpop.f32.mrb[0].mxu0
      %2340 = vdwg.mxu0
      %2341 = vmatprep.subr.bf16.mxu0 0
      %2342 = vmatpush1.bf16.msra.mxu0 %v1827
      %2343 = vmatprep.subr.bf16.mxu0 0
      %2344 = vmatpush1.bf16.msra.mxu0 %v1828
      %2345 = vmatprep.subr.bf16.mxu0 0
      %2346 = vmatpush1.bf16.msra.mxu0 %v1829
      %2347 = vmatprep.subr.bf16.mxu0 0
      %2348 = vmatpush1.bf16.msra.mxu0 %v1830
      %2349 = vmatprep.subr.bf16.mxu0 0
      %2350 = vmatpush1.bf16.msra.mxu0 %v1831
      %2351 = vmatprep.subr.bf16.mxu0 0
      %2352 = vmatpush1.bf16.msra.mxu0 %v1832
      %2353 = vmatprep.subr.bf16.mxu0 0
      %2354 = vmatpush1.bf16.msra.mxu0 %v1833
      %2355 = vmatprep.subr.bf16.mxu0 0
      %2356 = vmatpush1.bf16.msra.mxu0 %v1834
      %2357 = vmatprep.subr.bf16.mxu0 0
      %2358 = vmatpush1.bf16.msra.mxu0 %v1835
      %2359 = vmatprep.subr.bf16.mxu0 0
      %2360 = vmatpush1.bf16.msra.mxu0 %v1836
      %2361 = vmatprep.subr.bf16.mxu0 0
      %2362 = vmatpush1.bf16.msra.mxu0 %v1837
      %2363 = vmatprep.subr.bf16.mxu0 0
      %2364 = vmatpush1.bf16.msra.mxu0 %v1838
      %2365 = vmatprep.subr.bf16.mxu0 0
      %2366 = vmatpush1.bf16.msra.mxu0 %v1839
      %2367 = vmatprep.subr.bf16.mxu0 0
      %2368 = vmatpush1.bf16.msra.mxu0 %v1840
      %2369 = vmatprep.subr.bf16.mxu0 0
      %2370 = vmatpush1.bf16.msra.mxu0 %v1841
      %2371 = vmatprep.subr.bf16.mxu0 0
      %2372 = vmatpush1.bf16.msra.mxu0 %v1842
      %2373 = vmatprep.mubr.bf16.mxu0 %v1120
      %2374 = vmatmul.mubr.bf16.gmra.mrb[0].mxu0 %v1119
      %v2375 = vpop.f32.mrb[0].mxu0
      %v2376 = vadd.f32 %v2215, %v2375
      %v2377 = vpop.f32.mrb[0].mxu0
      %v2378 = vpop.f32.mrb[0].mxu0
      %v2379 = vadd.f32 %v2218, %v2378
      %v2380 = vpop.f32.mrb[0].mxu0
      %2381 = vmatprep.mubr.bf16.mxu0 %v1131
      %2382 = vmatmul.mubr.bf16.gmra.mrb[0].mxu0 %v1130
      %v2383 = vpop.f32.mrb[0].mxu0
      %v2384 = vadd.f32 %v2223, %v2383
      %v2385 = vpop.f32.mrb[0].mxu0
      %v2386 = vpop.f32.mrb[0].mxu0
      %v2387 = vadd.f32 %v2226, %v2386
      %v2388 = vpop.f32.mrb[0].mxu0
      %2389 = vmatprep.mubr.bf16.mxu0 %v1142
      %2390 = vmatmul.mubr.bf16.gmra.mrb[0].mxu0 %v1141
      %v2391 = vpop.f32.mrb[0].mxu0
      %v2392 = vadd.f32 %v2231, %v2391
      %v2393 = vpop.f32.mrb[0].mxu0
      %v2394 = vpop.f32.mrb[0].mxu0
      %v2395 = vadd.f32 %v2234, %v2394
      %v2396 = vpop.f32.mrb[0].mxu0
      %2397 = vmatprep.mubr.bf16.mxu0 %v1153
      %2398 = vmatmul.mubr.bf16.gmra.mrb[0].mxu0 %v1152
      %v2399 = vpop.f32.mrb[0].mxu0
      %v2400 = vadd.f32 %v2239, %v2399
      %v2401 = vpop.f32.mrb[0].mxu0
      %v2402 = vpop.f32.mrb[0].mxu0
      %v2403 = vadd.f32 %v2242, %v2402
      %v2404 = vpop.f32.mrb[0].mxu0
      %2405 = vmatprep.mubr.bf16.mxu0 %v1164
      %2406 = vmatmul.mubr.bf16.gmra.mrb[0].mxu0 %v1163
      %v2407 = vpop.f32.mrb[0].mxu0
      %v2408 = vadd.f32 %v2247, %v2407
      %v2409 = vpop.f32.mrb[0].mxu0
      %v2410 = vpop.f32.mrb[0].mxu0
      %v2411 = vadd.f32 %v2250, %v2410
      %v2412 = vpop.f32.mrb[0].mxu0
      %2413 = vmatprep.mubr.bf16.mxu0 %v1175
      %2414 = vmatmul.mubr.bf16.gmra.mrb[0].mxu0 %v1174
      %v2415 = vpop.f32.mrb[0].mxu0
      %v2416 = vadd.f32 %v2255, %v2415
      %v2417 = vpop.f32.mrb[0].mxu0
      %v2418 = vpop.f32.mrb[0].mxu0
      %v2419 = vadd.f32 %v2258, %v2418
      %v2420 = vpop.f32.mrb[0].mxu0
      %2421 = vmatprep.mubr.bf16.mxu0 %v1186
      %2422 = vmatmul.mubr.bf16.gmra.mrb[0].mxu0 %v1185
      %v2423 = vpop.f32.mrb[0].mxu0
      %v2424 = vadd.f32 %v2263, %v2423
      %v2425 = vpop.f32.mrb[0].mxu0
      %v2426 = vpop.f32.mrb[0].mxu0
      %v2427 = vadd.f32 %v2266, %v2426
      %v2428 = vpop.f32.mrb[0].mxu0
      %2429 = vmatprep.mubr.bf16.mxu0 %v1197
      %2430 = vmatmul.mubr.bf16.gmra.mrb[0].mxu0 %v1196
      %v2431 = vpop.f32.mrb[0].mxu0
      %v2432 = vadd.f32 %v2271, %v2431
      %v2433 = vpop.f32.mrb[0].mxu0
      %v2434 = vpop.f32.mrb[0].mxu0
      %v2435 = vadd.f32 %v2274, %v2434
      %v2436 = vpop.f32.mrb[0].mxu0
      %2437 = vmatprep.mubr.bf16.mxu0 %v1208
      %2438 = vmatmul.mubr.bf16.gmra.mrb[0].mxu0 %v1207
      %v2439 = vpop.f32.mrb[0].mxu0
      %v2440 = vadd.f32 %v2279, %v2439
      %v2441 = vpop.f32.mrb[0].mxu0
      %v2442 = vpop.f32.mrb[0].mxu0
      %v2443 = vadd.f32 %v2282, %v2442
      %v2444 = vpop.f32.mrb[0].mxu0
      %2445 = vmatprep.mubr.bf16.mxu0 %v1219
      %2446 = vmatmul.mubr.bf16.gmra.mrb[0].mxu0 %v1218
      %v2447 = vpop.f32.mrb[0].mxu0
      %v2448 = vadd.f32 %v2287, %v2447
      %v2449 = vpop.f32.mrb[0].mxu0
      %v2450 = vpop.f32.mrb[0].mxu0
      %v2451 = vadd.f32 %v2290, %v2450
      %v2452 = vpop.f32.mrb[0].mxu0
      %2453 = vmatprep.mubr.bf16.mxu0 %v1230
      %2454 = vmatmul.mubr.bf16.gmra.mrb[0].mxu0 %v1229
      %v2455 = vpop.f32.mrb[0].mxu0
      %v2456 = vadd.f32 %v2295, %v2455
      %v2457 = vpop.f32.mrb[0].mxu0
      %v2458 = vpop.f32.mrb[0].mxu0
      %v2459 = vadd.f32 %v2298, %v2458
      %v2460 = vpop.f32.mrb[0].mxu0
      %2461 = vmatprep.mubr.bf16.mxu0 %v1241
      %2462 = vmatmul.mubr.bf16.gmra.mrb[0].mxu0 %v1240
      %v2463 = vpop.f32.mrb[0].mxu0
      %v2464 = vadd.f32 %v2303, %v2463
      %v2465 = vpop.f32.mrb[0].mxu0
      %v2466 = vpop.f32.mrb[0].mxu0
      %v2467 = vadd.f32 %v2306, %v2466
      %v2468 = vpop.f32.mrb[0].mxu0
      %2469 = vmatprep.mubr.bf16.mxu0 %v1252
      %2470 = vmatmul.mubr.bf16.gmra.mrb[0].mxu0 %v1251
      %v2471 = vpop.f32.mrb[0].mxu0
      %v2472 = vadd.f32 %v2311, %v2471
      %v2473 = vpop.f32.mrb[0].mxu0
      %v2474 = vpop.f32.mrb[0].mxu0
      %v2475 = vadd.f32 %v2314, %v2474
      %v2476 = vpop.f32.mrb[0].mxu0
      %2477 = vmatprep.mubr.bf16.mxu0 %v1263
      %2478 = vmatmul.mubr.bf16.gmra.mrb[0].mxu0 %v1262
      %v2479 = vpop.f32.mrb[0].mxu0
      %v2480 = vadd.f32 %v2319, %v2479
      %v2481 = vpop.f32.mrb[0].mxu0
      %v2482 = vpop.f32.mrb[0].mxu0
      %v2483 = vadd.f32 %v2322, %v2482
      %v2484 = vpop.f32.mrb[0].mxu0
      %2485 = vmatprep.mubr.bf16.mxu0 %v1274
      %2486 = vmatmul.mubr.bf16.gmra.mrb[0].mxu0 %v1273
      %v2487 = vpop.f32.mrb[0].mxu0
      %v2488 = vadd.f32 %v2327, %v2487
      %v2489 = vpop.f32.mrb[0].mxu0
      %v2490 = vpop.f32.mrb[0].mxu0
      %v2491 = vadd.f32 %v2330, %v2490
      %v2492 = vpop.f32.mrb[0].mxu0
      %2493 = vmatprep.mubr.bf16.mxu0 %v1285
      %2494 = vmatmul.mubr.bf16.gmra.mrb[0].mxu0 %v1284
      %v2495 = vpop.f32.mrb[0].mxu0
      %v2496 = vadd.f32 %v2335, %v2495
      %v2497 = vpop.f32.mrb[0].mxu0
      %v2498 = vpop.f32.mrb[0].mxu0
      %v2499 = vadd.f32 %v2338, %v2498
      %v2500 = vpop.f32.mrb[0].mxu0
      %2501 = vdwg.mxu0
      %2502 = vmatprep.subr.bf16.mxu0 0
      %2503 = vmatpush1.bf16.msra.mxu0 %v1843
      %2504 = vmatprep.subr.bf16.mxu0 0
      %2505 = vmatpush1.bf16.msra.mxu0 %v1844
      %2506 = vmatprep.subr.bf16.mxu0 0
      %2507 = vmatpush1.bf16.msra.mxu0 %v1845
      %2508 = vmatprep.subr.bf16.mxu0 0
      %2509 = vmatpush1.bf16.msra.mxu0 %v1846
      %2510 = vmatprep.subr.bf16.mxu0 0
      %2511 = vmatpush1.bf16.msra.mxu0 %v1847
      %2512 = vmatprep.subr.bf16.mxu0 0
      %2513 = vmatpush1.bf16.msra.mxu0 %v1848
      %2514 = vmatprep.subr.bf16.mxu0 0
      %2515 = vmatpush1.bf16.msra.mxu0 %v1849
      %2516 = vmatprep.subr.bf16.mxu0 0
      %2517 = vmatpush1.bf16.msra.mxu0 %v1850
      %2518 = vmatprep.subr.bf16.mxu0 0
      %2519 = vmatpush1.bf16.msra.mxu0 %v1851
      %2520 = vmatprep.subr.bf16.mxu0 0
      %2521 = vmatpush1.bf16.msra.mxu0 %v1852
      %2522 = vmatprep.subr.bf16.mxu0 0
      %2523 = vmatpush1.bf16.msra.mxu0 %v1853
      %2524 = vmatprep.subr.bf16.mxu0 0
      %2525 = vmatpush1.bf16.msra.mxu0 %v1854
      %2526 = vmatprep.subr.bf16.mxu0 0
      %2527 = vmatpush1.bf16.msra.mxu0 %v1855
      %2528 = vmatprep.subr.bf16.mxu0 0
      %2529 = vmatpush1.bf16.msra.mxu0 %v1856
      %2530 = vmatprep.subr.bf16.mxu0 0
      %2531 = vmatpush1.bf16.msra.mxu0 %v1857
      %2532 = vmatprep.subr.bf16.mxu0 0
      %2533 = vmatpush1.bf16.msra.mxu0 %v1858
      %2534 = vmatprep.mubr.bf16.mxu0 %v1122
      %2535 = vmatmul.mubr.bf16.gmra.mrb[0].mxu0 %v1121
      %v2536 = vpop.f32.mrb[0].mxu0
      %v2537 = vadd.f32 %v2376, %v2536
      %v2538 = vpop.f32.mrb[0].mxu0
      %v2539 = vpop.f32.mrb[0].mxu0
      %v2540 = vadd.f32 %v2379, %v2539
      %v2541 = vpop.f32.mrb[0].mxu0
      %2542 = vmatprep.mubr.bf16.mxu0 %v1133
      %2543 = vmatmul.mubr.bf16.gmra.mrb[0].mxu0 %v1132
      %v2544 = vpop.f32.mrb[0].mxu0
      %v2545 = vadd.f32 %v2384, %v2544
      %v2546 = vpop.f32.mrb[0].mxu0
      %v2547 = vpop.f32.mrb[0].mxu0
      %v2548 = vadd.f32 %v2387, %v2547
      %v2549 = vpop.f32.mrb[0].mxu0
      %2550 = vmatprep.mubr.bf16.mxu0 %v1144
      %2551 = vmatmul.mubr.bf16.gmra.mrb[0].mxu0 %v1143
      %v2552 = vpop.f32.mrb[0].mxu0
      %v2553 = vadd.f32 %v2392, %v2552
      %v2554 = vpop.f32.mrb[0].mxu0
      %v2555 = vpop.f32.mrb[0].mxu0
      %v2556 = vadd.f32 %v2395, %v2555
      %v2557 = vpop.f32.mrb[0].mxu0
      %2558 = vmatprep.mubr.bf16.mxu0 %v1155
      %2559 = vmatmul.mubr.bf16.gmra.mrb[0].mxu0 %v1154
      %v2560 = vpop.f32.mrb[0].mxu0
      %v2561 = vadd.f32 %v2400, %v2560
      %v2562 = vpop.f32.mrb[0].mxu0
      %v2563 = vpop.f32.mrb[0].mxu0
      %v2564 = vadd.f32 %v2403, %v2563
      %v2565 = vpop.f32.mrb[0].mxu0
      %2566 = vmatprep.mubr.bf16.mxu0 %v1166
      %2567 = vmatmul.mubr.bf16.gmra.mrb[0].mxu0 %v1165
      %v2568 = vpop.f32.mrb[0].mxu0
      %v2569 = vadd.f32 %v2408, %v2568
      %v2570 = vpop.f32.mrb[0].mxu0
      %v2571 = vpop.f32.mrb[0].mxu0
      %v2572 = vadd.f32 %v2411, %v2571
      %v2573 = vpop.f32.mrb[0].mxu0
      %2574 = vmatprep.mubr.bf16.mxu0 %v1177
      %2575 = vmatmul.mubr.bf16.gmra.mrb[0].mxu0 %v1176
      %v2576 = vpop.f32.mrb[0].mxu0
      %v2577 = vadd.f32 %v2416, %v2576
      %v2578 = vpop.f32.mrb[0].mxu0
      %v2579 = vpop.f32.mrb[0].mxu0
      %v2580 = vadd.f32 %v2419, %v2579
      %v2581 = vpop.f32.mrb[0].mxu0
      %2582 = vmatprep.mubr.bf16.mxu0 %v1188
      %2583 = vmatmul.mubr.bf16.gmra.mrb[0].mxu0 %v1187
      %v2584 = vpop.f32.mrb[0].mxu0
      %v2585 = vadd.f32 %v2424, %v2584
      %v2586 = vpop.f32.mrb[0].mxu0
      %v2587 = vpop.f32.mrb[0].mxu0
      %v2588 = vadd.f32 %v2427, %v2587
      %v2589 = vpop.f32.mrb[0].mxu0
      %2590 = vmatprep.mubr.bf16.mxu0 %v1199
      %2591 = vmatmul.mubr.bf16.gmra.mrb[0].mxu0 %v1198
      %v2592 = vpop.f32.mrb[0].mxu0
      %v2593 = vadd.f32 %v2432, %v2592
      %v2594 = vpop.f32.mrb[0].mxu0
      %v2595 = vpop.f32.mrb[0].mxu0
      %v2596 = vadd.f32 %v2435, %v2595
      %v2597 = vpop.f32.mrb[0].mxu0
      %2598 = vmatprep.mubr.bf16.mxu0 %v1210
      %2599 = vmatmul.mubr.bf16.gmra.mrb[0].mxu0 %v1209
      %v2600 = vpop.f32.mrb[0].mxu0
      %v2601 = vadd.f32 %v2440, %v2600
      %v2602 = vpop.f32.mrb[0].mxu0
      %v2603 = vpop.f32.mrb[0].mxu0
      %v2604 = vadd.f32 %v2443, %v2603
      %v2605 = vpop.f32.mrb[0].mxu0
      %2606 = vmatprep.mubr.bf16.mxu0 %v1221
      %2607 = vmatmul.mubr.bf16.gmra.mrb[0].mxu0 %v1220
      %v2608 = vpop.f32.mrb[0].mxu0
      %v2609 = vadd.f32 %v2448, %v2608
      %v2610 = vpop.f32.mrb[0].mxu0
      %v2611 = vpop.f32.mrb[0].mxu0
      %v2612 = vadd.f32 %v2451, %v2611
      %v2613 = vpop.f32.mrb[0].mxu0
      %2614 = vmatprep.mubr.bf16.mxu0 %v1232
      %2615 = vmatmul.mubr.bf16.gmra.mrb[0].mxu0 %v1231
      %v2616 = vpop.f32.mrb[0].mxu0
      %v2617 = vadd.f32 %v2456, %v2616
      %v2618 = vpop.f32.mrb[0].mxu0
      %v2619 = vpop.f32.mrb[0].mxu0
      %v2620 = vadd.f32 %v2459, %v2619
      %v2621 = vpop.f32.mrb[0].mxu0
      %2622 = vmatprep.mubr.bf16.mxu0 %v1243
      %2623 = vmatmul.mubr.bf16.gmra.mrb[0].mxu0 %v1242
      %v2624 = vpop.f32.mrb[0].mxu0
      %v2625 = vadd.f32 %v2464, %v2624
      %v2626 = vpop.f32.mrb[0].mxu0
      %v2627 = vpop.f32.mrb[0].mxu0
      %v2628 = vadd.f32 %v2467, %v2627
      %v2629 = vpop.f32.mrb[0].mxu0
      %2630 = vmatprep.mubr.bf16.mxu0 %v1254
      %2631 = vmatmul.mubr.bf16.gmra.mrb[0].mxu0 %v1253
      %v2632 = vpop.f32.mrb[0].mxu0
      %v2633 = vadd.f32 %v2472, %v2632
      %v2634 = vpop.f32.mrb[0].mxu0
      %v2635 = vpop.f32.mrb[0].mxu0
      %v2636 = vadd.f32 %v2475, %v2635
      %v2637 = vpop.f32.mrb[0].mxu0
      %2638 = vmatprep.mubr.bf16.mxu0 %v1265
      %2639 = vmatmul.mubr.bf16.gmra.mrb[0].mxu0 %v1264
      %v2640 = vpop.f32.mrb[0].mxu0
      %v2641 = vadd.f32 %v2480, %v2640
      %v2642 = vpop.f32.mrb[0].mxu0
      %v2643 = vpop.f32.mrb[0].mxu0
      %v2644 = vadd.f32 %v2483, %v2643
      %v2645 = vpop.f32.mrb[0].mxu0
      %2646 = vmatprep.mubr.bf16.mxu0 %v1276
      %2647 = vmatmul.mubr.bf16.gmra.mrb[0].mxu0 %v1275
      %v2648 = vpop.f32.mrb[0].mxu0
      %v2649 = vadd.f32 %v2488, %v2648
      %v2650 = vpop.f32.mrb[0].mxu0
      %v2651 = vpop.f32.mrb[0].mxu0
      %v2652 = vadd.f32 %v2491, %v2651
      %v2653 = vpop.f32.mrb[0].mxu0
      %2654 = vmatprep.mubr.bf16.mxu0 %v1287
      %2655 = vmatmul.mubr.bf16.gmra.mrb[0].mxu0 %v1286
      %v2656 = vpop.f32.mrb[0].mxu0
      %v2657 = vadd.f32 %v2496, %v2656
      %v2658 = vpop.f32.mrb[0].mxu0
      %v2659 = vpop.f32.mrb[0].mxu0
      %v2660 = vadd.f32 %v2499, %v2659
      %v2661 = vpop.f32.mrb[0].mxu0
      %2662 = vdwg.mxu0
      %2663 = vmatprep.subr.bf16.mxu0 0
      %2664 = vmatpush1.bf16.msra.mxu0 %v1859
      %2665 = vmatprep.subr.bf16.mxu0 0
      %2666 = vmatpush1.bf16.msra.mxu0 %v1860
      %2667 = vmatprep.subr.bf16.mxu0 0
      %2668 = vmatpush1.bf16.msra.mxu0 %v1861
      %2669 = vmatprep.subr.bf16.mxu0 0
      %2670 = vmatpush1.bf16.msra.mxu0 %v1862
      %2671 = vmatprep.subr.bf16.mxu0 0
      %2672 = vmatpush1.bf16.msra.mxu0 %v1863
      %2673 = vmatprep.subr.bf16.mxu0 0
      %2674 = vmatpush1.bf16.msra.mxu0 %v1864
      %2675 = vmatprep.subr.bf16.mxu0 0
      %2676 = vmatpush1.bf16.msra.mxu0 %v1865
      %2677 = vmatprep.subr.bf16.mxu0 0
      %2678 = vmatpush1.bf16.msra.mxu0 %v1866
      %2679 = vmatprep.subr.bf16.mxu0 0
      %2680 = vmatpush1.bf16.msra.mxu0 %v1867
      %2681 = vmatprep.subr.bf16.mxu0 0
      %2682 = vmatpush1.bf16.msra.mxu0 %v1868
      %2683 = vmatprep.subr.bf16.mxu0 0
      %2684 = vmatpush1.bf16.msra.mxu0 %v1869
      %2685 = vmatprep.subr.bf16.mxu0 0
      %2686 = vmatpush1.bf16.msra.mxu0 %v1870
      %2687 = vmatprep.subr.bf16.mxu0 0
      %2688 = vmatpush1.bf16.msra.mxu0 %v1871
      %2689 = vmatprep.subr.bf16.mxu0 0
      %2690 = vmatpush1.bf16.msra.mxu0 %v1872
      %2691 = vmatprep.subr.bf16.mxu0 0
      %2692 = vmatpush1.bf16.msra.mxu0 %v1873
      %2693 = vmatprep.subr.bf16.mxu0 0
      %2694 = vmatpush1.bf16.msra.mxu0 %v1874
      %2695 = vmatprep.mubr.bf16.mxu0 %v1124
      %2696 = vmatmul.mubr.bf16.gmra.mrb[0].mxu0 %v1123
      %v2697 = vpop.f32.mrb[0].mxu0
      %v2698 = vadd.f32 %v2537, %v2697
      %v2699 = vpop.f32.mrb[0].mxu0
      %v2700 = vpop.f32.mrb[0].mxu0
      %v2701 = vadd.f32 %v2540, %v2700
      %v2702 = vpop.f32.mrb[0].mxu0
      %2703 = vmatprep.mubr.bf16.mxu0 %v1135
      %2704 = vmatmul.mubr.bf16.gmra.mrb[0].mxu0 %v1134
      %v2705 = vpop.f32.mrb[0].mxu0
      %v2706 = vadd.f32 %v2545, %v2705
      %v2707 = vpop.f32.mrb[0].mxu0
      %v2708 = vpop.f32.mrb[0].mxu0
      %v2709 = vadd.f32 %v2548, %v2708
      %v2710 = vpop.f32.mrb[0].mxu0
      %2711 = vmatprep.mubr.bf16.mxu0 %v1146
      %2712 = vmatmul.mubr.bf16.gmra.mrb[0].mxu0 %v1145
      %v2713 = vpop.f32.mrb[0].mxu0
      %v2714 = vadd.f32 %v2553, %v2713
      %v2715 = vpop.f32.mrb[0].mxu0
      %v2716 = vpop.f32.mrb[0].mxu0
      %v2717 = vadd.f32 %v2556, %v2716
      %v2718 = vpop.f32.mrb[0].mxu0
      %2719 = vmatprep.mubr.bf16.mxu0 %v1157
      %2720 = vmatmul.mubr.bf16.gmra.mrb[0].mxu0 %v1156
      %v2721 = vpop.f32.mrb[0].mxu0
      %v2722 = vadd.f32 %v2561, %v2721
      %v2723 = vpop.f32.mrb[0].mxu0
      %v2724 = vpop.f32.mrb[0].mxu0
      %v2725 = vadd.f32 %v2564, %v2724
      %v2726 = vpop.f32.mrb[0].mxu0
      %2727 = vmatprep.mubr.bf16.mxu0 %v1168
      %2728 = vmatmul.mubr.bf16.gmra.mrb[0].mxu0 %v1167
      %v2729 = vpop.f32.mrb[0].mxu0
      %v2730 = vadd.f32 %v2569, %v2729
      %v2731 = vpop.f32.mrb[0].mxu0
      %v2732 = vpop.f32.mrb[0].mxu0
      %v2733 = vadd.f32 %v2572, %v2732
      %v2734 = vpop.f32.mrb[0].mxu0
      %2735 = vmatprep.mubr.bf16.mxu0 %v1179
      %2736 = vmatmul.mubr.bf16.gmra.mrb[0].mxu0 %v1178
      %v2737 = vpop.f32.mrb[0].mxu0
      %v2738 = vadd.f32 %v2577, %v2737
      %v2739 = vpop.f32.mrb[0].mxu0
      %v2740 = vpop.f32.mrb[0].mxu0
      %v2741 = vadd.f32 %v2580, %v2740
      %v2742 = vpop.f32.mrb[0].mxu0
      %2743 = vmatprep.mubr.bf16.mxu0 %v1190
      %2744 = vmatmul.mubr.bf16.gmra.mrb[0].mxu0 %v1189
      %v2745 = vpop.f32.mrb[0].mxu0
      %v2746 = vadd.f32 %v2585, %v2745
      %v2747 = vpop.f32.mrb[0].mxu0
      %v2748 = vpop.f32.mrb[0].mxu0
      %v2749 = vadd.f32 %v2588, %v2748
      %v2750 = vpop.f32.mrb[0].mxu0
      %2751 = vmatprep.mubr.bf16.mxu0 %v1201
      %2752 = vmatmul.mubr.bf16.gmra.mrb[0].mxu0 %v1200
      %v2753 = vpop.f32.mrb[0].mxu0
      %v2754 = vadd.f32 %v2593, %v2753
      %v2755 = vpop.f32.mrb[0].mxu0
      %v2756 = vpop.f32.mrb[0].mxu0
      %v2757 = vadd.f32 %v2596, %v2756
      %v2758 = vpop.f32.mrb[0].mxu0
      %2759 = vmatprep.mubr.bf16.mxu0 %v1212
      %2760 = vmatmul.mubr.bf16.gmra.mrb[0].mxu0 %v1211
      %v2761 = vpop.f32.mrb[0].mxu0
      %v2762 = vadd.f32 %v2601, %v2761
      %v2763 = vpop.f32.mrb[0].mxu0
      %v2764 = vpop.f32.mrb[0].mxu0
      %v2765 = vadd.f32 %v2604, %v2764
      %v2766 = vpop.f32.mrb[0].mxu0
      %2767 = vmatprep.mubr.bf16.mxu0 %v1223
      %2768 = vmatmul.mubr.bf16.gmra.mrb[0].mxu0 %v1222
      %v2769 = vpop.f32.mrb[0].mxu0
      %v2770 = vadd.f32 %v2609, %v2769
      %v2771 = vpop.f32.mrb[0].mxu0
      %v2772 = vpop.f32.mrb[0].mxu0
      %v2773 = vadd.f32 %v2612, %v2772
      %v2774 = vpop.f32.mrb[0].mxu0
      %2775 = vmatprep.mubr.bf16.mxu0 %v1234
      %2776 = vmatmul.mubr.bf16.gmra.mrb[0].mxu0 %v1233
      %v2777 = vpop.f32.mrb[0].mxu0
      %v2778 = vadd.f32 %v2617, %v2777
      %v2779 = vpop.f32.mrb[0].mxu0
      %v2780 = vpop.f32.mrb[0].mxu0
      %v2781 = vadd.f32 %v2620, %v2780
      %v2782 = vpop.f32.mrb[0].mxu0
      %2783 = vmatprep.mubr.bf16.mxu0 %v1245
      %2784 = vmatmul.mubr.bf16.gmra.mrb[0].mxu0 %v1244
      %v2785 = vpop.f32.mrb[0].mxu0
      %v2786 = vadd.f32 %v2625, %v2785
      %v2787 = vpop.f32.mrb[0].mxu0
      %v2788 = vpop.f32.mrb[0].mxu0
      %v2789 = vadd.f32 %v2628, %v2788
      %v2790 = vpop.f32.mrb[0].mxu0
      %2791 = vmatprep.mubr.bf16.mxu0 %v1256
      %2792 = vmatmul.mubr.bf16.gmra.mrb[0].mxu0 %v1255
      %v2793 = vpop.f32.mrb[0].mxu0
      %v2794 = vadd.f32 %v2633, %v2793
      %v2795 = vpop.f32.mrb[0].mxu0
      %v2796 = vpop.f32.mrb[0].mxu0
      %v2797 = vadd.f32 %v2636, %v2796
      %v2798 = vpop.f32.mrb[0].mxu0
      %2799 = vmatprep.mubr.bf16.mxu0 %v1267
      %2800 = vmatmul.mubr.bf16.gmra.mrb[0].mxu0 %v1266
      %v2801 = vpop.f32.mrb[0].mxu0
      %v2802 = vadd.f32 %v2641, %v2801
      %v2803 = vpop.f32.mrb[0].mxu0
      %v2804 = vpop.f32.mrb[0].mxu0
      %v2805 = vadd.f32 %v2644, %v2804
      %v2806 = vpop.f32.mrb[0].mxu0
      %2807 = vmatprep.mubr.bf16.mxu0 %v1278
      %2808 = vmatmul.mubr.bf16.gmra.mrb[0].mxu0 %v1277
      %v2809 = vpop.f32.mrb[0].mxu0
      %v2810 = vadd.f32 %v2649, %v2809
      %v2811 = vpop.f32.mrb[0].mxu0
      %v2812 = vpop.f32.mrb[0].mxu0
      %v2813 = vadd.f32 %v2652, %v2812
      %v2814 = vpop.f32.mrb[0].mxu0
      %2815 = vmatprep.mubr.bf16.mxu0 %v1289
      %2816 = vmatmul.mubr.bf16.gmra.mrb[0].mxu0 %v1288
      %v2817 = vpop.f32.mrb[0].mxu0
      %v2818 = vadd.f32 %v2657, %v2817
      %v2819 = vpop.f32.mrb[0].mxu0
      %v2820 = vpop.f32.mrb[0].mxu0
      %v2821 = vadd.f32 %v2660, %v2820
      %v2822 = vpop.f32.mrb[0].mxu0
      %2823 = vdwg.mxu0
      %2824 = vmatprep.subr.bf16.mxu0 0
      %2825 = vmatpush1.bf16.msra.mxu0 %v1875
      %2826 = vmatprep.subr.bf16.mxu0 0
      %2827 = vmatpush1.bf16.msra.mxu0 %v1876
      %2828 = vmatprep.subr.bf16.mxu0 0
      %2829 = vmatpush1.bf16.msra.mxu0 %v1877
      %2830 = vmatprep.subr.bf16.mxu0 0
      %2831 = vmatpush1.bf16.msra.mxu0 %v1878
      %2832 = vmatprep.subr.bf16.mxu0 0
      %2833 = vmatpush1.bf16.msra.mxu0 %v1879
      %2834 = vmatprep.subr.bf16.mxu0 0
      %2835 = vmatpush1.bf16.msra.mxu0 %v2017
      %2836 = vmatprep.subr.bf16.mxu0 0
      %2837 = vmatpush1.bf16.msra.mxu0 0
      %2838 = vmatprep.subr.bf16.mxu0 0
      %2839 = vmatpush1.bf16.msra.mxu0 0
      %2840 = vmatprep.subr.bf16.mxu0 0
      %2841 = vmatpush1.bf16.msra.mxu0 0
      %2842 = vmatprep.subr.bf16.mxu0 0
      %2843 = vmatpush1.bf16.msra.mxu0 0
      %2844 = vmatprep.subr.bf16.mxu0 0
      %2845 = vmatpush1.bf16.msra.mxu0 0
      %2846 = vmatprep.subr.bf16.mxu0 0
      %2847 = vmatpush1.bf16.msra.mxu0 0
      %2848 = vmatprep.subr.bf16.mxu0 0
      %2849 = vmatpush1.bf16.msra.mxu0 0
      %2850 = vmatprep.subr.bf16.mxu0 0
      %2851 = vmatpush1.bf16.msra.mxu0 0
      %2852 = vmatprep.subr.bf16.mxu0 0
      %2853 = vmatpush1.bf16.msra.mxu0 0
      %2854 = vmatprep.subr.bf16.mxu0 0
      %2855 = vmatpush1.bf16.msra.mxu0 0
      %2856 = vmatprep.mubr.bf16.mxu0 0
      %2857 = vmatmul.mubr.bf16.gmra.mrb[0].mxu0 %v1968
      %v2858 = vpop.f32.mrb[0].mxu0
      %v2859 = vadd.f32 %v2698, %v2858
      %v2860 = vpop.f32.mrb[0].mxu0
      %v2861 = vpop.f32.mrb[0].mxu0
      %v2862 = vadd.f32 %v2701, %v2861
      %v2863 = vpop.f32.mrb[0].mxu0
      %2864 = vmatprep.mubr.bf16.mxu0 0
      %2865 = vmatmul.mubr.bf16.gmra.mrb[0].mxu0 %v1971
      %v2866 = vpop.f32.mrb[0].mxu0
      %v2867 = vadd.f32 %v2706, %v2866
      %v2868 = vpop.f32.mrb[0].mxu0
      %v2869 = vpop.f32.mrb[0].mxu0
      %v2870 = vadd.f32 %v2709, %v2869
      %v2871 = vpop.f32.mrb[0].mxu0
      %2872 = vmatprep.mubr.bf16.mxu0 0
      %2873 = vmatmul.mubr.bf16.gmra.mrb[0].mxu0 %v1974
      %v2874 = vpop.f32.mrb[0].mxu0
      %v2875 = vadd.f32 %v2714, %v2874
      %v2876 = vpop.f32.mrb[0].mxu0
      %v2877 = vpop.f32.mrb[0].mxu0
      %v2878 = vadd.f32 %v2717, %v2877
      %v2879 = vpop.f32.mrb[0].mxu0
      %2880 = vmatprep.mubr.bf16.mxu0 0
      %2881 = vmatmul.mubr.bf16.gmra.mrb[0].mxu0 %v1977
      %v2882 = vpop.f32.mrb[0].mxu0
      %v2883 = vadd.f32 %v2722, %v2882
      %v2884 = vpop.f32.mrb[0].mxu0
      %v2885 = vpop.f32.mrb[0].mxu0
      %v2886 = vadd.f32 %v2725, %v2885
      %v2887 = vpop.f32.mrb[0].mxu0
      %2888 = vmatprep.mubr.bf16.mxu0 0
      %2889 = vmatmul.mubr.bf16.gmra.mrb[0].mxu0 %v1980
      %v2890 = vpop.f32.mrb[0].mxu0
      %v2891 = vadd.f32 %v2730, %v2890
      %v2892 = vpop.f32.mrb[0].mxu0
      %v2893 = vpop.f32.mrb[0].mxu0
      %v2894 = vadd.f32 %v2733, %v2893
      %v2895 = vpop.f32.mrb[0].mxu0
      %2896 = vmatprep.mubr.bf16.mxu0 0
      %2897 = vmatmul.mubr.bf16.gmra.mrb[0].mxu0 %v1983
      %v2898 = vpop.f32.mrb[0].mxu0
      %v2899 = vadd.f32 %v2738, %v2898
      %v2900 = vpop.f32.mrb[0].mxu0
      %v2901 = vpop.f32.mrb[0].mxu0
      %v2902 = vadd.f32 %v2741, %v2901
      %v2903 = vpop.f32.mrb[0].mxu0
      %2904 = vmatprep.mubr.bf16.mxu0 0
      %2905 = vmatmul.mubr.bf16.gmra.mrb[0].mxu0 %v1986
      %v2906 = vpop.f32.mrb[0].mxu0
      %v2907 = vadd.f32 %v2746, %v2906
      %v2908 = vpop.f32.mrb[0].mxu0
      %v2909 = vpop.f32.mrb[0].mxu0
      %v2910 = vadd.f32 %v2749, %v2909
      %v2911 = vpop.f32.mrb[0].mxu0
      %2912 = vmatprep.mubr.bf16.mxu0 0
      %2913 = vmatmul.mubr.bf16.gmra.mrb[0].mxu0 %v1989
      %v2914 = vpop.f32.mrb[0].mxu0
      %v2915 = vadd.f32 %v2754, %v2914
      %v2916 = vpop.f32.mrb[0].mxu0
      %v2917 = vpop.f32.mrb[0].mxu0
      %v2918 = vadd.f32 %v2757, %v2917
      %v2919 = vpop.f32.mrb[0].mxu0
      %2920 = vmatprep.mubr.bf16.mxu0 0
      %2921 = vmatmul.mubr.bf16.gmra.mrb[0].mxu0 %v1992
      %v2922 = vpop.f32.mrb[0].mxu0
      %v2923 = vadd.f32 %v2762, %v2922
      %v2924 = vpop.f32.mrb[0].mxu0
      %v2925 = vpop.f32.mrb[0].mxu0
      %v2926 = vadd.f32 %v2765, %v2925
      %v2927 = vpop.f32.mrb[0].mxu0
      %2928 = vmatprep.mubr.bf16.mxu0 0
      %2929 = vmatmul.mubr.bf16.gmra.mrb[0].mxu0 %v1995
      %v2930 = vpop.f32.mrb[0].mxu0
      %v2931 = vadd.f32 %v2770, %v2930
      %v2932 = vpop.f32.mrb[0].mxu0
      %v2933 = vpop.f32.mrb[0].mxu0
      %v2934 = vadd.f32 %v2773, %v2933
      %v2935 = vpop.f32.mrb[0].mxu0
      %2936 = vmatprep.mubr.bf16.mxu0 0
      %2937 = vmatmul.mubr.bf16.gmra.mrb[0].mxu0 %v1998
      %v2938 = vpop.f32.mrb[0].mxu0
      %v2939 = vadd.f32 %v2778, %v2938
      %v2940 = vpop.f32.mrb[0].mxu0
      %v2941 = vpop.f32.mrb[0].mxu0
      %v2942 = vadd.f32 %v2781, %v2941
      %v2943 = vpop.f32.mrb[0].mxu0
      %2944 = vmatprep.mubr.bf16.mxu0 0
      %2945 = vmatmul.mubr.bf16.gmra.mrb[0].mxu0 %v2001
      %v2946 = vpop.f32.mrb[0].mxu0
      %v2947 = vadd.f32 %v2786, %v2946
      %v2948 = vpop.f32.mrb[0].mxu0
      %v2949 = vpop.f32.mrb[0].mxu0
      %v2950 = vadd.f32 %v2789, %v2949
      %v2951 = vpop.f32.mrb[0].mxu0
      %2952 = vmatprep.mubr.bf16.mxu0 0
      %2953 = vmatmul.mubr.bf16.gmra.mrb[0].mxu0 %v2004
      %v2954 = vpop.f32.mrb[0].mxu0
      %v2955 = vadd.f32 %v2794, %v2954
      %v2956 = vpop.f32.mrb[0].mxu0
      %v2957 = vpop.f32.mrb[0].mxu0
      %v2958 = vadd.f32 %v2797, %v2957
      %v2959 = vpop.f32.mrb[0].mxu0
      %2960 = vmatprep.mubr.bf16.mxu0 0
      %2961 = vmatmul.mubr.bf16.gmra.mrb[0].mxu0 %v2007
      %v2962 = vpop.f32.mrb[0].mxu0
      %v2963 = vadd.f32 %v2802, %v2962
      %v2964 = vpop.f32.mrb[0].mxu0
      %v2965 = vpop.f32.mrb[0].mxu0
      %v2966 = vadd.f32 %v2805, %v2965
      %v2967 = vpop.f32.mrb[0].mxu0
      %2968 = vmatprep.mubr.bf16.mxu0 0
      %2969 = vmatmul.mubr.bf16.gmra.mrb[0].mxu0 %v2010
      %v2970 = vpop.f32.mrb[0].mxu0
      %v2971 = vadd.f32 %v2810, %v2970
      %v2972 = vpop.f32.mrb[0].mxu0
      %v2973 = vpop.f32.mrb[0].mxu0
      %v2974 = vadd.f32 %v2813, %v2973
      %v2975 = vpop.f32.mrb[0].mxu0
      %2976 = vmatprep.mubr.bf16.mxu0 0
      %2977 = vmatmul.mubr.bf16.gmra.mrb[0].mxu0 %v2013
      %v2978 = vpop.f32.mrb[0].mxu0
      %v2979 = vadd.f32 %v2818, %v2978
      %v2980 = vpop.f32.mrb[0].mxu0
      %v2981 = vpop.f32.mrb[0].mxu0
      %v2982 = vadd.f32 %v2821, %v2981
      %v2983 = vpop.f32.mrb[0].mxu0
      %2984 = vdwg.mxu0
      %vm2985 = vcmask 64512
      %2986 = vst.msk [vmem:[%s197] sm:$0xff] %vm2985, %v2859
      %2987 = vst.msk [vmem:[%s197 + $0x8] sm:$0xff] %vm2985, %v2862
      %2988 = vst.msk [vmem:[%s197 + $0x10] sm:$0xff] %vm2985, %v2867
      %2989 = vst.msk [vmem:[%s197 + $0x18] sm:$0xff] %vm2985, %v2870
      %2990 = vst.msk [vmem:[%s197 + $0x20] sm:$0xff] %vm2985, %v2875
      %2991 = vst.msk [vmem:[%s197 + $0x28] sm:$0xff] %vm2985, %v2878
      %2992 = vst.msk [vmem:[%s197 + $0x30] sm:$0xff] %vm2985, %v2883
      %2993 = vst.msk [vmem:[%s197 + $0x38] sm:$0xff] %vm2985, %v2886
      %2994 = vst.msk [vmem:[%s197 + $0x40] sm:$0xff] %vm2985, %v2891
      %2995 = vst.msk [vmem:[%s197 + $0x48] sm:$0xff] %vm2985, %v2894
      %2996 = vst.msk [vmem:[%s197 + $0x50] sm:$0xff] %vm2985, %v2899
      %2997 = vst.msk [vmem:[%s197 + $0x58] sm:$0xff] %vm2985, %v2902
      %2998 = vst.msk [vmem:[%s197 + $0x60] sm:$0xff] %vm2985, %v2907
      %2999 = vst.msk [vmem:[%s197 + $0x68] sm:$0xff] %vm2985, %v2910
      %3000 = vst.msk [vmem:[%s197 + $0x70] sm:$0xff] %vm2985, %v2915
      %3001 = vst.msk [vmem:[%s197 + $0x78] sm:$0xff] %vm2985, %v2918
      %3002 = vst.msk [vmem:[%s197 + $0x80] sm:$0xff] %vm2985, %v2923
      %3003 = vst.msk [vmem:[%s197 + $0x88] sm:$0xff] %vm2985, %v2926
      %3004 = vst.msk [vmem:[%s197 + $0x90] sm:$0xff] %vm2985, %v2931
      %3005 = vst.msk [vmem:[%s197 + $0x98] sm:$0xff] %vm2985, %v2934
      %3006 = vst.msk [vmem:[%s197 + $0xa0] sm:$0xff] %vm2985, %v2939
      %3007 = vst.msk [vmem:[%s197 + $0xa8] sm:$0xff] %vm2985, %v2942
      %3008 = vst.msk [vmem:[%s197 + $0xb0] sm:$0xff] %vm2985, %v2947
      %3009 = vst.msk [vmem:[%s197 + $0xb8] sm:$0xff] %vm2985, %v2950
      %3010 = vst.msk [vmem:[%s197 + $0xc0] sm:$0xff] %vm2985, %v2955
      %3011 = vst.msk [vmem:[%s197 + $0xc8] sm:$0xff] %vm2985, %v2958
      %3012 = vst.msk [vmem:[%s197 + $0xd0] sm:$0xff] %vm2985, %v2963
      %3013 = vst.msk [vmem:[%s197 + $0xd8] sm:$0xff] %vm2985, %v2966
      %3014 = vst.msk [vmem:[%s197 + $0xe0] sm:$0xff] %vm2985, %v2971
      %3015 = vst.msk [vmem:[%s197 + $0xe8] sm:$0xff] %vm2985, %v2974
      %3016 = vst.msk [vmem:[%s197 + $0xf0] sm:$0xff] %vm2985, %v2979
      %3017 = vst.msk [vmem:[%s197 + $0xf8] sm:$0xff] %vm2985, %v2982
      %v3018 = vld [vmem:[%s3] sm:$0x1]
      %v3019 = vsel %vm2985, %v2859, 0.0
      %v3020 = vsel %vm2985, %v2862, 0.0
      %v3021 = vadd.f32 %v3019, %v3020
      %v3022 = vsel %vm2985, %v2867, 0.0
      %v3023 = vadd.f32 %v3021, %v3022
      %v3024 = vsel %vm2985, %v2870, 0.0
      %v3025 = vadd.f32 %v3023, %v3024
      %v3026 = vsel %vm2985, %v2875, 0.0
      %v3027 = vadd.f32 %v3025, %v3026
      %v3028 = vsel %vm2985, %v2878, 0.0
      %v3029 = vadd.f32 %v3027, %v3028
      %v3030 = vsel %vm2985, %v2883, 0.0
      %v3031 = vadd.f32 %v3029, %v3030
      %v3032 = vsel %vm2985, %v2886, 0.0
      %v3033 = vadd.f32 %v3031, %v3032
      %v3034 = vsel %vm2985, %v2891, 0.0
      %v3035 = vadd.f32 %v3033, %v3034
      %v3036 = vsel %vm2985, %v2894, 0.0
      %v3037 = vadd.f32 %v3035, %v3036
      %v3038 = vsel %vm2985, %v2899, 0.0
      %v3039 = vadd.f32 %v3037, %v3038
      %v3040 = vsel %vm2985, %v2902, 0.0
      %v3041 = vadd.f32 %v3039, %v3040
      %v3042 = vsel %vm2985, %v2907, 0.0
      %v3043 = vadd.f32 %v3041, %v3042
      %v3044 = vsel %vm2985, %v2910, 0.0
      %v3045 = vadd.f32 %v3043, %v3044
      %v3046 = vsel %vm2985, %v2915, 0.0
      %v3047 = vadd.f32 %v3045, %v3046
      %v3048 = vsel %vm2985, %v2918, 0.0
      %v3049 = vadd.f32 %v3047, %v3048
      %v3050 = vsel %vm2985, %v2923, 0.0
      %v3051 = vadd.f32 %v3049, %v3050
      %v3052 = vsel %vm2985, %v2926, 0.0
      %v3053 = vadd.f32 %v3051, %v3052
      %v3054 = vsel %vm2985, %v2931, 0.0
      %v3055 = vadd.f32 %v3053, %v3054
      %v3056 = vsel %vm2985, %v2934, 0.0
      %v3057 = vadd.f32 %v3055, %v3056
      %v3058 = vsel %vm2985, %v2939, 0.0
      %v3059 = vadd.f32 %v3057, %v3058
      %v3060 = vsel %vm2985, %v2942, 0.0
      %v3061 = vadd.f32 %v3059, %v3060
      %v3062 = vsel %vm2985, %v2947, 0.0
      %v3063 = vadd.f32 %v3061, %v3062
      %v3064 = vsel %vm2985, %v2950, 0.0
      %v3065 = vadd.f32 %v3063, %v3064
      %v3066 = vsel %vm2985, %v2955, 0.0
      %v3067 = vadd.f32 %v3065, %v3066
      %v3068 = vsel %vm2985, %v2958, 0.0
      %v3069 = vadd.f32 %v3067, %v3068
      %v3070 = vsel %vm2985, %v2963, 0.0
      %v3071 = vadd.f32 %v3069, %v3070
      %v3072 = vsel %vm2985, %v2966, 0.0
      %v3073 = vadd.f32 %v3071, %v3072
      %v3074 = vsel %vm2985, %v2971, 0.0
      %v3075 = vadd.f32 %v3073, %v3074
      %v3076 = vsel %vm2985, %v2974, 0.0
      %v3077 = vadd.f32 %v3075, %v3076
      %v3078 = vsel %vm2985, %v2979, 0.0
      %v3079 = vadd.f32 %v3077, %v3078
      %v3080 = vsel %vm2985, %v2982, 0.0
      %v3081 = vadd.f32 %v3079, %v3080
      %v3082 = vrot.slane %v3081, 4
      %v3083 = vadd.f32 %v3081, %v3082
      %v3084 = vrot.slane %v3083, 2
      %v3085 = vadd.f32 %v3083, %v3084
      %v3086 = vrot.slane %v3085, 1
      %v3087 = vadd.f32 %v3085, %v3086
      %v3088 = vadd.f32 %v3018, %v3087
      %vm3089 = vcmask 57344
      %3090 = vst.msk [vmem:[%s3] sm:$0x1] %vm3089, %v3088
      %v3091 = vld [vmem:[%s4] sm:$0x1]
      %v3092 = vmul.f32 %v2859, %v2859
      %v3093 = vmul.f32 %v2862, %v2862
      %v3094 = vmul.f32 %v2867, %v2867
      %v3095 = vmul.f32 %v2870, %v2870
      %v3096 = vmul.f32 %v2875, %v2875
      %v3097 = vmul.f32 %v2878, %v2878
      %v3098 = vmul.f32 %v2883, %v2883
      %v3099 = vmul.f32 %v2886, %v2886
      %v3100 = vmul.f32 %v2891, %v2891
      %v3101 = vmul.f32 %v2894, %v2894
      %v3102 = vmul.f32 %v2899, %v2899
      %v3103 = vmul.f32 %v2902, %v2902
      %v3104 = vmul.f32 %v2907, %v2907
      %v3105 = vmul.f32 %v2910, %v2910
      %v3106 = vmul.f32 %v2915, %v2915
      %v3107 = vmul.f32 %v2918, %v2918
      %v3108 = vmul.f32 %v2923, %v2923
      %v3109 = vmul.f32 %v2926, %v2926
      %v3110 = vmul.f32 %v2931, %v2931
      %v3111 = vmul.f32 %v2934, %v2934
      %v3112 = vmul.f32 %v2939, %v2939
      %v3113 = vmul.f32 %v2942, %v2942
      %v3114 = vmul.f32 %v2947, %v2947
      %v3115 = vmul.f32 %v2950, %v2950
      %v3116 = vmul.f32 %v2955, %v2955
      %v3117 = vmul.f32 %v2958, %v2958
      %v3118 = vmul.f32 %v2963, %v2963
      %v3119 = vmul.f32 %v2966, %v2966
      %v3120 = vmul.f32 %v2971, %v2971
      %v3121 = vmul.f32 %v2974, %v2974
      %v3122 = vmul.f32 %v2979, %v2979
      %v3123 = vmul.f32 %v2982, %v2982
      %v3124 = vsel %vm2985, %v3092, 0.0
      %v3125 = vsel %vm2985, %v3093, 0.0
      %v3126 = vadd.f32 %v3124, %v3125
      %v3127 = vsel %vm2985, %v3094, 0.0
      %v3128 = vadd.f32 %v3126, %v3127
      %v3129 = vsel %vm2985, %v3095, 0.0
      %v3130 = vadd.f32 %v3128, %v3129
      %v3131 = vsel %vm2985, %v3096, 0.0
      %v3132 = vadd.f32 %v3130, %v3131
      %v3133 = vsel %vm2985, %v3097, 0.0
      %v3134 = vadd.f32 %v3132, %v3133
      %v3135 = vsel %vm2985, %v3098, 0.0
      %v3136 = vadd.f32 %v3134, %v3135
      %v3137 = vsel %vm2985, %v3099, 0.0
      %v3138 = vadd.f32 %v3136, %v3137
      %v3139 = vsel %vm2985, %v3100, 0.0
      %v3140 = vadd.f32 %v3138, %v3139
      %v3141 = vsel %vm2985, %v3101, 0.0
      %v3142 = vadd.f32 %v3140, %v3141
      %v3143 = vsel %vm2985, %v3102, 0.0
      %v3144 = vadd.f32 %v3142, %v3143
      %v3145 = vsel %vm2985, %v3103, 0.0
      %v3146 = vadd.f32 %v3144, %v3145
      %v3147 = vsel %vm2985, %v3104, 0.0
      %v3148 = vadd.f32 %v3146, %v3147
      %v3149 = vsel %vm2985, %v3105, 0.0
      %v3150 = vadd.f32 %v3148, %v3149
      %v3151 = vsel %vm2985, %v3106, 0.0
      %v3152 = vadd.f32 %v3150, %v3151
      %v3153 = vsel %vm2985, %v3107, 0.0
      %v3154 = vadd.f32 %v3152, %v3153
      %v3155 = vsel %vm2985, %v3108, 0.0
      %v3156 = vadd.f32 %v3154, %v3155
      %v3157 = vsel %vm2985, %v3109, 0.0
      %v3158 = vadd.f32 %v3156, %v3157
      %v3159 = vsel %vm2985, %v3110, 0.0
      %v3160 = vadd.f32 %v3158, %v3159
      %v3161 = vsel %vm2985, %v3111, 0.0
      %v3162 = vadd.f32 %v3160, %v3161
      %v3163 = vsel %vm2985, %v3112, 0.0
      %v3164 = vadd.f32 %v3162, %v3163
      %v3165 = vsel %vm2985, %v3113, 0.0
      %v3166 = vadd.f32 %v3164, %v3165
      %v3167 = vsel %vm2985, %v3114, 0.0
      %v3168 = vadd.f32 %v3166, %v3167
      %v3169 = vsel %vm2985, %v3115, 0.0
      %v3170 = vadd.f32 %v3168, %v3169
      %v3171 = vsel %vm2985, %v3116, 0.0
      %v3172 = vadd.f32 %v3170, %v3171
      %v3173 = vsel %vm2985, %v3117, 0.0
      %v3174 = vadd.f32 %v3172, %v3173
      %v3175 = vsel %vm2985, %v3118, 0.0
      %v3176 = vadd.f32 %v3174, %v3175
      %v3177 = vsel %vm2985, %v3119, 0.0
      %v3178 = vadd.f32 %v3176, %v3177
      %v3179 = vsel %vm2985, %v3120, 0.0
      %v3180 = vadd.f32 %v3178, %v3179
      %v3181 = vsel %vm2985, %v3121, 0.0
      %v3182 = vadd.f32 %v3180, %v3181
      %v3183 = vsel %vm2985, %v3122, 0.0
      %v3184 = vadd.f32 %v3182, %v3183
      %v3185 = vsel %vm2985, %v3123, 0.0
      %v3186 = vadd.f32 %v3184, %v3185
      %v3187 = vrot.slane %v3186, 4
      %v3188 = vadd.f32 %v3186, %v3187
      %v3189 = vrot.slane %v3188, 2
      %v3190 = vadd.f32 %v3188, %v3189
      %v3191 = vrot.slane %v3190, 1
      %v3192 = vadd.f32 %v3190, %v3191
      %v3193 = vadd.f32 %v3091, %v3192
      %3194 = vst.msk [vmem:[%s4] sm:$0x1] %vm3089, %v3193
      %s3195 = smul.u32 32, %s16
      %p3196 = scmp.lt.s32.totalorder %s3195, 127
      %s3197 = scalar_select %p3196, %s3195, 127
      %s3198 = smul.addr %s3197, 8
      %s3199 = scalar_lea.vmem %s2, %s3198
      // Predicated region
      $region33: #{deep_resnet3d_forward.22} parent=27 // pred_check
        %p3200 = pneg %p81
      $region34: #{deep_resnet3d_forward.22} parent=27 // pred_check_branch
        %3202 = sbr.rel (%p3200) target = $region36
      $region35: #{deep_resnet3d_forward.22} parent=27 // pred_region
        %s3203 = smul.u32 32, %s16
      $region36: #{deep_resnet3d_forward.22} parent=27 // pred_fallthru
        _
      // Predicated region
      $region37: #{deep_resnet3d_forward.22} parent=27 // pred_check
        %p3204 = pneg %p102
      $region38: #{deep_resnet3d_forward.22} parent=27 // pred_check_branch
        %3206 = sbr.rel (%p3204) target = $region40
      $region39: #{deep_resnet3d_forward.22} parent=27 // pred_region
        _
      $region40: #{deep_resnet3d_forward.22} parent=27 // pred_fallthru
        _
      // Predicated region
      $region41: #{deep_resnet3d_forward.22} parent=27 // pred_check
        %p3207 = pneg %p123
      $region42: #{deep_resnet3d_forward.22} parent=27 // pred_check_branch
        %3209 = sbr.rel (%p3207) target = $region44
      $region43: #{deep_resnet3d_forward.22} parent=27 // pred_region
        _
      $region44: #{deep_resnet3d_forward.22} parent=27 // pred_fallthru
        _
      // Predicated region
      $region45: #{deep_resnet3d_forward.22} parent=27 // pred_check
        %p3210 = pneg %p102
      $region46: #{deep_resnet3d_forward.22} parent=27 // pred_check_branch
        %3212 = sbr.rel (%p3210) target = $region48
      $region47: #{deep_resnet3d_forward.22} parent=27 // pred_region
        _
      $region48: #{deep_resnet3d_forward.22} parent=27 // pred_fallthru
        _
      // Predicated region
      $region49: #{deep_resnet3d_forward.22} parent=27 // pred_check
        %p3213 = pneg %p123
      $region50: #{deep_resnet3d_forward.22} parent=27 // pred_check_branch
        %3215 = sbr.rel (%p3213) target = $region52
      $region51: #{deep_resnet3d_forward.22} parent=27 // pred_region
        _
      $region52: #{deep_resnet3d_forward.22} parent=27 // pred_fallthru
        _
    $region28: #{deep_resnet3d_forward.22} parent=5 // pred_fallthru
      _
    %p3216 = scmp.le.s32.totalorder 2, %s11
    // Predicated region
    $region53: #{deep_resnet3d_forward.22} parent=5 // pred_check
      %p3217 = pneg %p3216
    $region54: #{deep_resnet3d_forward.22} parent=5 // pred_check_branch
      %3219 = sbr.rel (%p3217) target = $region56
    $region55: #{deep_resnet3d_forward.22} parent=5 // pred_region
      %s3220 = ssub.s32 %s11, 2
      // Predicated region
      $region57: #{deep_resnet3d_forward.22} parent=55 // pred_check
        %p3221 = pneg %p87
      $region58: #{deep_resnet3d_forward.22} parent=55 // pred_check_branch
        %3223 = sbr.rel (%p3221) target = $region60
      $region59: #{deep_resnet3d_forward.22} parent=55 // pred_region
        %s3224 = smul.u32 32, %s17
        %p3225 = scmp.lt.s32.totalorder %s3224, 127
        %s3226 = scalar_select %p3225, %s3224, 127
        %s3227 = smul.addr %s3226, 8
        %s3228 = scalar_lea.vmem %s2, %s3227
      $region60: #{deep_resnet3d_forward.22} parent=55 // pred_fallthru
        _
    $region56: #{deep_resnet3d_forward.22} parent=5 // pred_fallthru
      _
  $region6: #{deep_resnet3d_forward.22} parent=0 // loop_footer
    %s15 = sadd.s32 1, %s11
  $region7: #{deep_resnet3d_forward.22} parent=0 // loop_footer_branch
    %10 = sbr.rel target = $region3
  $region8: #{deep_resnet3d_forward.22} parent=0 // loop_exit
    _

// kernel: deep_resnet3d_forward.23
$region0: #{deep_resnet3d_forward.23}
  #allocation0 [shape = 'u32[]', space=smem, size = 0x4, offset = 0x4, fixed_abs, tag = 'smem constant byte address 0x4 - core index']
  #allocation1 [shape = 'u32[144,128]{1,0:T(1,128)}', space=vmem, size = 0x12000, scoped, tag = 'internal scratch']
  %s0 = inlined_call_operand.vmem [shape: f32[64,128], index: 0, kind: input, shape index: {}]
  %s1 = inlined_call_operand.vmem [shape: f32[1,128], index: 1, kind: input, shape index: {}]
  %s2 = inlined_call_operand.vmem [shape: f32[1,128], index: 2, kind: input, shape index: {}]
  %s3 = inlined_call_operand.vmem [shape: f32[64,128], index: 3, kind: output, shape index: {}]
  %s4 = sld [smem:[#allocation0]]
  $region22: #{deep_resnet3d_forward.23} parent=0
    _
  %s6 = ssub.s32 1, %s4
  %s7 = scalar_select 0, %s6, %s4
  // Predicated region
  $region2: #{deep_resnet3d_forward.23} parent=0 // pred_check
    _
  $region3: #{deep_resnet3d_forward.23} parent=0 // pred_check_branch
    %9 = sbr.rel (0) target = $region5
  $region4: #{deep_resnet3d_forward.23} parent=0 // pred_region
    _
  $region5: #{deep_resnet3d_forward.23} parent=0 // pred_fallthru
    _
  // Predicated region
  $region6: #{deep_resnet3d_forward.23} parent=0 // pred_check
    _
  $region7: #{deep_resnet3d_forward.23} parent=0 // pred_check_branch
    %11 = sbr.rel (0) target = $region9
  $region8: #{deep_resnet3d_forward.23} parent=0 // pred_region
    _
  $region9: #{deep_resnet3d_forward.23} parent=0 // pred_fallthru
    _
  // Predicated region
  $region10: #{deep_resnet3d_forward.23} parent=0 // pred_check
    _
  $region11: #{deep_resnet3d_forward.23} parent=0 // pred_check_branch
    %13 = sbr.rel (0) target = $region13
  $region12: #{deep_resnet3d_forward.23} parent=0 // pred_region
    _
  $region13: #{deep_resnet3d_forward.23} parent=0 // pred_fallthru
    _
  %v14 = vld [vmem:[%s0] sm:$0xff]
  %v15 = vld [vmem:[%s0 + $0x8] sm:$0xff]
  %v16 = vld [vmem:[%s0 + $0x10] sm:$0xff]
  %v17 = vld [vmem:[%s0 + $0x18] sm:$0xff]
  %v18 = vld [vmem:[%s0 + $0x20] sm:$0xff]
  %v19 = vld [vmem:[%s0 + $0x28] sm:$0xff]
  %v20 = vld [vmem:[%s0 + $0x30] sm:$0xff]
  %v21 = vld [vmem:[%s0 + $0x38] sm:$0xff]
  %v22 = vld [vmem:[%s1] sm:$0x1]
  %v24 = vlaneseq
  %v25 = vshrl.u32 %v24, 7
  %v26 = vsub.s32 0, %v25
  %v27 = vrot.slane %v22, %v26
  %v29 = vmul.f32 %v14, %v27
  %v30 = vmul.f32 %v15, %v27
  %v31 = vmul.f32 %v16, %v27
  %v32 = vmul.f32 %v17, %v27
  %v33 = vmul.f32 %v18, %v27
  %v34 = vmul.f32 %v19, %v27
  %v35 = vmul.f32 %v20, %v27
  %v36 = vmul.f32 %v21, %v27
  %v37 = vld [vmem:[%s2] sm:$0x1]
  %v39 = vlaneseq
  %v40 = vshrl.u32 %v39, 7
  %v41 = vsub.s32 0, %v40
  %v42 = vrot.slane %v37, %v41
  %v44 = vadd.f32 %v29, %v42
  %v45 = vadd.f32 %v30, %v42
  %v46 = vadd.f32 %v31, %v42
  %v47 = vadd.f32 %v32, %v42
  %v48 = vadd.f32 %v33, %v42
  %v49 = vadd.f32 %v34, %v42
  %v50 = vadd.f32 %v35, %v42
  %v51 = vadd.f32 %v36, %v42
  %v52 = vmax.f32 %v44, 0.0
  %v53 = vmax.f32 %v45, 0.0
  %v54 = vmax.f32 %v46, 0.0
  %v55 = vmax.f32 %v47, 0.0
  %v56 = vmax.f32 %v48, 0.0
  %v57 = vmax.f32 %v49, 0.0
  %v58 = vmax.f32 %v50, 0.0
  %v59 = vmax.f32 %v51, 0.0
  %60 = vst [vmem:[%s3] sm:$0xff] %v52
  %61 = vst [vmem:[%s3 + $0x8] sm:$0xff] %v53
  %62 = vst [vmem:[%s3 + $0x10] sm:$0xff] %v54
  %63 = vst [vmem:[%s3 + $0x18] sm:$0xff] %v55
  %64 = vst [vmem:[%s3 + $0x20] sm:$0xff] %v56
  %65 = vst [vmem:[%s3 + $0x28] sm:$0xff] %v57
  %66 = vst [vmem:[%s3 + $0x30] sm:$0xff] %v58
  %67 = vst [vmem:[%s3 + $0x38] sm:$0xff] %v59
  // Predicated region
  $region14: #{deep_resnet3d_forward.23} parent=0 // pred_check
    _
  $region15: #{deep_resnet3d_forward.23} parent=0 // pred_check_branch
    %69 = sbr.rel (0) target = $region17
  $region16: #{deep_resnet3d_forward.23} parent=0 // pred_region
    _
  $region17: #{deep_resnet3d_forward.23} parent=0 // pred_fallthru
    _
  // Predicated region
  $region18: #{deep_resnet3d_forward.23} parent=0 // pred_check
    _
  $region19: #{deep_resnet3d_forward.23} parent=0 // pred_check_branch
    %71 = sbr.rel (0) target = $region21
  $region20: #{deep_resnet3d_forward.23} parent=0 // pred_region
    _
  $region21: #{deep_resnet3d_forward.23} parent=0 // pred_fallthru
    _

// kernel: deep_resnet3d_forward.24
$region0: #{deep_resnet3d_forward.24}
  #allocation0 [shape = 'u32[]', space=smem, size = 0x4, offset = 0x4, fixed_abs, tag = 'smem constant byte address 0x4 - core index']
  #allocation1 [shape = 'u32[144,128]{1,0:T(1,128)}', space=vmem, size = 0x12000, scoped, tag = 'internal scratch']
  %s0 = inlined_call_operand.vmem [shape: bf16[1024,8], index: 0, kind: input, shape index: {}]
  %s1 = inlined_call_operand.vmem [shape: bf16[8,8], index: 1, kind: input, shape index: {}]
  %s2 = inlined_call_operand.vmem [shape: f32[1,8], index: 2, kind: input, shape index: {}]
  %s3 = inlined_call_operand.vmem [shape: f32[1024,8], index: 3, kind: output, shape index: {}]
  %s4 = sld [smem:[#allocation0]]
  $region45: #{deep_resnet3d_forward.24} parent=0
    _
  %s6 = ssub.s32 1, %s4
  %s7 = scalar_select 0, %s6, %s4
  loop: start=0, step=1, limit=6
  $region2: #{deep_resnet3d_forward.24} parent=0 // loop_pre_header
    _
  $region3: #{deep_resnet3d_forward.24} parent=0 // loop_header
    %s9 = sphi 0, %s13
    %p10 = scmp.ge.s32.totalorder %s9, 6
    %s19 = sphi 0, %s21
    %s22 = sphi 0, %s19
    %s23 = sphi 0, %s22
    %s39 = sphi 0, %s23
    %s43 = sphi 0, %s43
    %s45 = sphi 0, %s43
    %s46 = sphi 0, %s45
    %s60 = sphi 0, %s46
    %s64 = sphi 0, %s64
    %s66 = sphi 0, %s64
    %s67 = sphi 0, %s66
    %s81 = sphi 0, %s67
    %s87 = sphi 0, %s89
    %s90 = sphi 0, %s87
    %s91 = sphi 0, %s90
    %s107 = sphi 0, %s91
  $region4: #{deep_resnet3d_forward.24} parent=0 // loop_header_branch
    %12 = sbr.rel (%p10) target = $region8
  $region5: #{deep_resnet3d_forward.24} parent=0 // loop_body
    %s14 = ssub.s32 %s9, 1
    %s15 = ssub.s32 %s9, 2
    %s16 = sadd.s32 %s9, 1
    %s17 = ssub.s32 %s9, %s16
    %p18 = scmp.eq.s32.totalorder %s17, 0
    %s20 = sadd.s32 %s19, 1
    %s21 = scalar_select %p18, %s19, %s20
    %p24 = pneg %p18
    %p25 = scmp.eq.s32.totalorder %s9, 3
    %p26 = por %p24, %p25
    %p27 = scmp.ne.s32.totalorder %s19, %s22
    %p28 = scmp.eq.s32.totalorder %s9, 0
    %p29 = por %p27, %p28
    %p30 = scmp.ne.s32.totalorder %s19, %s22
    %p31 = scmp.eq.s32.totalorder %s14, 3
    %p32 = por %p30, %p31
    %p33 = scmp.ne.s32.totalorder %s22, %s23
    %p34 = scmp.eq.s32.totalorder %s14, 0
    %p35 = por %p33, %p34
    %p36 = scmp.ne.s32.totalorder %s22, %s23
    %p37 = scmp.eq.s32.totalorder %s15, 3
    %p38 = por %p36, %p37
    %p40 = scmp.ne.s32.totalorder %s23, %s39
    %p41 = scmp.eq.s32.totalorder %s15, 0
    %p42 = por %p40, %p41
    %s44 = sadd.s32 %s43, 1
    %p47 = scmp.eq.s32.totalorder %s9, 3
    %p48 = scmp.ne.s32.totalorder %s43, %s45
    %p49 = scmp.eq.s32.totalorder %s9, 0
    %p50 = por %p48, %p49
    %p51 = scmp.ne.s32.totalorder %s43, %s45
    %p52 = scmp.eq.s32.totalorder %s14, 3
    %p53 = por %p51, %p52
    %p54 = scmp.ne.s32.totalorder %s45, %s46
    %p55 = scmp.eq.s32.totalorder %s14, 0
    %p56 = por %p54, %p55
    %p57 = scmp.ne.s32.totalorder %s45, %s46
    %p58 = scmp.eq.s32.totalorder %s15, 3
    %p59 = por %p57, %p58
    %p61 = scmp.ne.s32.totalorder %s46, %s60
    %p62 = scmp.eq.s32.totalorder %s15, 0
    %p63 = por %p61, %p62
    %s65 = sadd.s32 %s64, 1
    %p68 = scmp.eq.s32.totalorder %s9, 3
    %p69 = scmp.ne.s32.totalorder %s64, %s66
    %p70 = scmp.eq.s32.totalorder %s9, 0
    %p71 = por %p69, %p70
    %p72 = scmp.ne.s32.totalorder %s64, %s66
    %p73 = scmp.eq.s32.totalorder %s14, 3
    %p74 = por %p72, %p73
    %p75 = scmp.ne.s32.totalorder %s66, %s67
    %p76 = scmp.eq.s32.totalorder %s14, 0
    %p77 = por %p75, %p76
    %p78 = scmp.ne.s32.totalorder %s66, %s67
    %p79 = scmp.eq.s32.totalorder %s15, 3
    %p80 = por %p78, %p79
    %p82 = scmp.ne.s32.totalorder %s67, %s81
    %p83 = scmp.eq.s32.totalorder %s15, 0
    %p84 = por %p82, %p83
    %s85 = ssub.s32 %s9, %s16
    %p86 = scmp.eq.s32.totalorder %s85, 0
    %s88 = sadd.s32 %s87, 1
    %s89 = scalar_select %p86, %s87, %s88
    %p92 = pneg %p86
    %p93 = scmp.eq.s32.totalorder %s9, 3
    %p94 = por %p92, %p93
    %p95 = scmp.ne.s32.totalorder %s87, %s90
    %p96 = scmp.eq.s32.totalorder %s9, 0
    %p97 = por %p95, %p96
    %p98 = scmp.ne.s32.totalorder %s87, %s90
    %p99 = scmp.eq.s32.totalorder %s14, 3
    %p100 = por %p98, %p99
    %p101 = scmp.ne.s32.totalorder %s90, %s91
    %p102 = scmp.eq.s32.totalorder %s14, 0
    %p103 = por %p101, %p102
    %p104 = scmp.ne.s32.totalorder %s90, %s91
    %p105 = scmp.eq.s32.totalorder %s15, 3
    %p106 = por %p104, %p105
    %p108 = scmp.ne.s32.totalorder %s91, %s107
    %p109 = scmp.eq.s32.totalorder %s15, 0
    %p110 = por %p108, %p109
    %p111 = scmp.le.s32.totalorder 1, %s9
    %p112 = scmp.lt.s32.totalorder %s9, 5
    %p113 = pnand %p111, %p112
    %p114 = pneg %p113
    // Predicated region
    $region9: #{deep_resnet3d_forward.24} parent=5 // pred_check
      _
    $region10: #{deep_resnet3d_forward.24} parent=5 // pred_check_branch
      %116 = sbr.rel (%p113) target = $region12
    $region11: #{deep_resnet3d_forward.24} parent=5 // pred_region
      %s117 = ssub.s32 %s9, 1
      // Predicated region
      $region13: #{deep_resnet3d_forward.24} parent=11 // pred_check
        %p118 = pneg %p56
      $region14: #{deep_resnet3d_forward.24} parent=11 // pred_check_branch
        %120 = sbr.rel (%p118) target = $region16
      $region15: #{deep_resnet3d_forward.24} parent=11 // pred_region
        _
      $region16: #{deep_resnet3d_forward.24} parent=11 // pred_fallthru
        _
      // Predicated region
      $region17: #{deep_resnet3d_forward.24} parent=11 // pred_check
        %p121 = pneg %p77
      $region18: #{deep_resnet3d_forward.24} parent=11 // pred_check_branch
        %123 = sbr.rel (%p121) target = $region20
      $region19: #{deep_resnet3d_forward.24} parent=11 // pred_region
        _
      $region20: #{deep_resnet3d_forward.24} parent=11 // pred_fallthru
        _
    $region12: #{deep_resnet3d_forward.24} parent=5 // pred_fallthru
      _
    %p124 = scmp.lt.s32.totalorder %s9, 4
    // Predicated region
    $region21: #{deep_resnet3d_forward.24} parent=5 // pred_check
      %p125 = pneg %p124
    $region22: #{deep_resnet3d_forward.24} parent=5 // pred_check_branch
      %127 = sbr.rel (%p125) target = $region24
    $region23: #{deep_resnet3d_forward.24} parent=5 // pred_region
      // Predicated region
      $region25: #{deep_resnet3d_forward.24} parent=23 // pred_check
        %p128 = pneg %p29
      $region26: #{deep_resnet3d_forward.24} parent=23 // pred_check_branch
        %130 = sbr.rel (%p128) target = $region28
      $region27: #{deep_resnet3d_forward.24} parent=23 // pred_region
        %s131 = smul.u32 32, %s9
        %p132 = scmp.lt.s32.totalorder %s131, 127
        %s133 = scalar_select %p132, %s131, 127
        %s134 = smul.addr %s133, 4
        %s135 = scalar_lea.vmem %s0, %s134
        %s136 = smul.u32 32, %s9
      $region28: #{deep_resnet3d_forward.24} parent=23 // pred_fallthru
        _
    $region24: #{deep_resnet3d_forward.24} parent=5 // pred_fallthru
      _
    %p137 = scmp.le.s32.totalorder 1, %s9
    %p138 = scmp.lt.s32.totalorder %s9, 5
    %p139 = pnand %p137, %p138
    %p140 = pneg %p139
    // Predicated region
    $region29: #{deep_resnet3d_forward.24} parent=5 // pred_check
      _
    $region30: #{deep_resnet3d_forward.24} parent=5 // pred_check_branch
      %142 = sbr.rel (%p139) target = $region32
    $region31: #{deep_resnet3d_forward.24} parent=5 // pred_region
      %s143 = ssub.s32 %s9, 1
      %s144 = smul.u32 32, %s14
      %p145 = scmp.lt.s32.totalorder %s144, 127
      %s146 = scalar_select %p145, %s144, 127
      %s147 = smul.addr %s146, 4
      %s148 = scalar_lea.vmem %s0, %s147
      %p149 = pneg %p35
      %p150 = pneg %p32
      %p151 = pneg %p56
      %p152 = pneg %p53
      %p153 = pneg %p77
      %p154 = pneg %p74
      %p155 = pneg %p103
      %p156 = pneg %p100
      %s157 = smul.u32 32, %s14
      %p158 = scmp.lt.s32.totalorder %s157, 127
      %s159 = scalar_select %p158, %s157, 127
      %s160 = smul.addr %s159, 8
      %s161 = scalar_lea.vmem %s3, %s160
      %s162 = smul.u32 32, %s14
      %p163 = scmp.lt.s32.totalorder %s162, 127
      %s164 = scalar_select %p163, %s162, 127
      %s165 = smul.addr %s164, 4
      %s166 = scalar_lea.vmem %s0, %s165
      %s167 = smul.u32 32, %s14
      %s168 = smul.u32 32, %s14
      %p169 = scmp.lt.s32.totalorder %s168, 127
      %s170 = scalar_select %p169, %s168, 127
      %s171 = smul.addr %s170, 8
      %s172 = scalar_lea.vmem %s3, %s171
      %s173 = smul.u32 32, %s14
      %v175 = vld [vmem:[%s166] sm:$0xf]
      %v176 = vld [vmem:[%s166 + $0x4] sm:$0xf]
      %v177 = vld [vmem:[%s166 + $0x8] sm:$0xf]
      %v178 = vld [vmem:[%s166 + $0xc] sm:$0xf]
      %v179 = vld [vmem:[%s166 + $0x10] sm:$0xf]
      %v180 = vld [vmem:[%s166 + $0x14] sm:$0xf]
      %v181 = vld [vmem:[%s166 + $0x18] sm:$0xf]
      %v182 = vld [vmem:[%s166 + $0x1c] sm:$0xf]
      %v183 = vld [vmem:[%s166 + $0x20] sm:$0xf]
      %v184 = vld [vmem:[%s166 + $0x24] sm:$0xf]
      %v185 = vld [vmem:[%s166 + $0x28] sm:$0xf]
      %v186 = vld [vmem:[%s166 + $0x2c] sm:$0xf]
      %v187 = vld [vmem:[%s166 + $0x30] sm:$0xf]
      %v188 = vld [vmem:[%s166 + $0x34] sm:$0xf]
      %v189 = vld [vmem:[%s166 + $0x38] sm:$0xf]
      %v190 = vld [vmem:[%s166 + $0x3c] sm:$0xf]
      %v191 = vld [vmem:[%s166 + $0x40] sm:$0xf]
      %v192 = vld [vmem:[%s166 + $0x44] sm:$0xf]
      %v193 = vld [vmem:[%s166 + $0x48] sm:$0xf]
      %v194 = vld [vmem:[%s166 + $0x4c] sm:$0xf]
      %v195 = vld [vmem:[%s166 + $0x50] sm:$0xf]
      %v196 = vld [vmem:[%s166 + $0x54] sm:$0xf]
      %v197 = vld [vmem:[%s166 + $0x58] sm:$0xf]
      %v198 = vld [vmem:[%s166 + $0x5c] sm:$0xf]
      %v199 = vld [vmem:[%s166 + $0x60] sm:$0xf]
      %v200 = vld [vmem:[%s166 + $0x64] sm:$0xf]
      %v201 = vld [vmem:[%s166 + $0x68] sm:$0xf]
      %v202 = vld [vmem:[%s166 + $0x6c] sm:$0xf]
      %v203 = vld [vmem:[%s166 + $0x70] sm:$0xf]
      %v204 = vld [vmem:[%s166 + $0x74] sm:$0xf]
      %v205 = vld [vmem:[%s166 + $0x78] sm:$0xf]
      %v206 = vld [vmem:[%s166 + $0x7c] sm:$0xf]
      %v207 = vld [vmem:[%s1] sm:$0xf]
      %v208 = vld [vmem:[%s2] sm:$0x1]
      %v210 = vlaneseq
      %v211 = vshrl.u32 %v210, 7
      %v212 = vsub.s32 0, %v211
      %v213 = vrot.slane %v208, %v212
      %v247 = vunpack.c.l.b16 %v175
      %v248 = vunpack.c.l.b16 %v176
      %v249 = vunpack.c.l.b16 %v177
      %v250 = vunpack.c.l.b16 %v178
      %v251 = vunpack.c.l.b16 %v179
      %v252 = vunpack.c.l.b16 %v180
      %v253 = vunpack.c.l.b16 %v181
      %v254 = vunpack.c.l.b16 %v182
      %v255 = vunpack.c.l.b16 %v183
      %v256 = vunpack.c.l.b16 %v184
      %v257 = vunpack.c.l.b16 %v185
      %v258 = vunpack.c.l.b16 %v186
      %v259 = vunpack.c.l.b16 %v187
      %v260 = vunpack.c.l.b16 %v188
      %v261 = vunpack.c.l.b16 %v189
      %v262 = vunpack.c.l.b16 %v190
      %v263 = vunpack.c.l.b16 %v191
      %v264 = vunpack.c.l.b16 %v192
      %v265 = vunpack.c.l.b16 %v193
      %v266 = vunpack.c.l.b16 %v194
      %v267 = vunpack.c.l.b16 %v195
      %v268 = vunpack.c.l.b16 %v196
      %v269 = vunpack.c.l.b16 %v197
      %v270 = vunpack.c.l.b16 %v198
      %v271 = vunpack.c.l.b16 %v199
      %v272 = vunpack.c.l.b16 %v200
      %v273 = vunpack.c.l.b16 %v201
      %v274 = vunpack.c.l.b16 %v202
      %v275 = vunpack.c.l.b16 %v203
      %v276 = vunpack.c.l.b16 %v204
      %v277 = vunpack.c.l.b16 %v205
      %v278 = vunpack.c.l.b16 %v206
      %v279 = vpack.c.b16 %v248, %v247
      %v280 = vpack.c.b16 %v250, %v249
      %v281 = vpack.c.b16 %v252, %v251
      %v282 = vpack.c.b16 %v254, %v253
      %v283 = vpack.c.b16 %v256, %v255
      %v284 = vpack.c.b16 %v258, %v257
      %v285 = vpack.c.b16 %v260, %v259
      %v286 = vpack.c.b16 %v262, %v261
      %v287 = vpack.c.b16 %v264, %v263
      %v288 = vpack.c.b16 %v266, %v265
      %v289 = vpack.c.b16 %v268, %v267
      %v290 = vpack.c.b16 %v270, %v269
      %v291 = vpack.c.b16 %v272, %v271
      %v292 = vpack.c.b16 %v274, %v273
      %v293 = vpack.c.b16 %v276, %v275
      %v294 = vpack.c.b16 %v278, %v277
      %vm295 = vcmask 64512
      %v297 = vsel %vm295, %v279, 0
      %v300 = vsel %vm295, %v280, 0
      %v303 = vsel %vm295, %v281, 0
      %v306 = vsel %vm295, %v282, 0
      %v309 = vsel %vm295, %v283, 0
      %v312 = vsel %vm295, %v284, 0
      %v315 = vsel %vm295, %v285, 0
      %v318 = vsel %vm295, %v286, 0
      %v321 = vsel %vm295, %v287, 0
      %v324 = vsel %vm295, %v288, 0
      %v327 = vsel %vm295, %v289, 0
      %v330 = vsel %vm295, %v290, 0
      %v333 = vsel %vm295, %v291, 0
      %v336 = vsel %vm295, %v292, 0
      %v339 = vsel %vm295, %v293, 0
      %v342 = vsel %vm295, %v294, 0
      %vm344 = vcmask 1043456
      %v346 = vsel %vm344, %v207, 0
      %348 = vmatprep.subr.bf16.mxu0 0
      %349 = vmatpush1.bf16.msra.mxu0 %v346
      %350 = vmatprep.subr.bf16.mxu0 0
      %351 = vmatpush1.bf16.msra.mxu0 0
      %352 = vmatprep.subr.bf16.mxu0 0
      %353 = vmatpush1.bf16.msra.mxu0 0
      %354 = vmatprep.subr.bf16.mxu0 0
      %355 = vmatpush1.bf16.msra.mxu0 0
      %356 = vmatprep.subr.bf16.mxu0 0
      %357 = vmatpush1.bf16.msra.mxu0 0
      %358 = vmatprep.subr.bf16.mxu0 0
      %359 = vmatpush1.bf16.msra.mxu0 0
      %360 = vmatprep.subr.bf16.mxu0 0
      %361 = vmatpush1.bf16.msra.mxu0 0
      %362 = vmatprep.subr.bf16.mxu0 0
      %363 = vmatpush1.bf16.msra.mxu0 0
      %364 = vmatprep.subr.bf16.mxu0 0
      %365 = vmatpush1.bf16.msra.mxu0 0
      %366 = vmatprep.subr.bf16.mxu0 0
      %367 = vmatpush1.bf16.msra.mxu0 0
      %368 = vmatprep.subr.bf16.mxu0 0
      %369 = vmatpush1.bf16.msra.mxu0 0
      %370 = vmatprep.subr.bf16.mxu0 0
      %371 = vmatpush1.bf16.msra.mxu0 0
      %372 = vmatprep.subr.bf16.mxu0 0
      %373 = vmatpush1.bf16.msra.mxu0 0
      %374 = vmatprep.subr.bf16.mxu0 0
      %375 = vmatpush1.bf16.msra.mxu0 0
      %376 = vmatprep.subr.bf16.mxu0 0
      %377 = vmatpush1.bf16.msra.mxu0 0
      %378 = vmatprep.subr.bf16.mxu0 0
      %379 = vmatpush1.bf16.msra.mxu0 0
      %380 = vmatprep.mubr.bf16.mxu0 0
      %381 = vmatmul.mubr.bf16.gmra.mrb[0].mxu0 %v297
      %v382 = vpop.f32.mrb[0].mxu0
      %v383 = vadd.f32 %v213, %v382
      %v384 = vpop.f32.mrb[0].mxu0
      %v385 = vpop.f32.mrb[0].mxu0
      %v386 = vadd.f32 %v213, %v385
      %v387 = vpop.f32.mrb[0].mxu0
      %388 = vmatprep.mubr.bf16.mxu0 0
      %389 = vmatmul.mubr.bf16.gmra.mrb[0].mxu0 %v300
      %v390 = vpop.f32.mrb[0].mxu0
      %v391 = vadd.f32 %v213, %v390
      %v392 = vpop.f32.mrb[0].mxu0
      %v393 = vpop.f32.mrb[0].mxu0
      %v394 = vadd.f32 %v213, %v393
      %v395 = vpop.f32.mrb[0].mxu0
      %396 = vmatprep.mubr.bf16.mxu0 0
      %397 = vmatmul.mubr.bf16.gmra.mrb[0].mxu0 %v303
      %v398 = vpop.f32.mrb[0].mxu0
      %v399 = vadd.f32 %v213, %v398
      %v400 = vpop.f32.mrb[0].mxu0
      %v401 = vpop.f32.mrb[0].mxu0
      %v402 = vadd.f32 %v213, %v401
      %v403 = vpop.f32.mrb[0].mxu0
      %404 = vmatprep.mubr.bf16.mxu0 0
      %405 = vmatmul.mubr.bf16.gmra.mrb[0].mxu0 %v306
      %v406 = vpop.f32.mrb[0].mxu0
      %v407 = vadd.f32 %v213, %v406
      %v408 = vpop.f32.mrb[0].mxu0
      %v409 = vpop.f32.mrb[0].mxu0
      %v410 = vadd.f32 %v213, %v409
      %v411 = vpop.f32.mrb[0].mxu0
      %412 = vmatprep.mubr.bf16.mxu0 0
      %413 = vmatmul.mubr.bf16.gmra.mrb[0].mxu0 %v309
      %v414 = vpop.f32.mrb[0].mxu0
      %v415 = vadd.f32 %v213, %v414
      %v416 = vpop.f32.mrb[0].mxu0
      %v417 = vpop.f32.mrb[0].mxu0
      %v418 = vadd.f32 %v213, %v417
      %v419 = vpop.f32.mrb[0].mxu0
      %420 = vmatprep.mubr.bf16.mxu0 0
      %421 = vmatmul.mubr.bf16.gmra.mrb[0].mxu0 %v312
      %v422 = vpop.f32.mrb[0].mxu0
      %v423 = vadd.f32 %v213, %v422
      %v424 = vpop.f32.mrb[0].mxu0
      %v425 = vpop.f32.mrb[0].mxu0
      %v426 = vadd.f32 %v213, %v425
      %v427 = vpop.f32.mrb[0].mxu0
      %428 = vmatprep.mubr.bf16.mxu0 0
      %429 = vmatmul.mubr.bf16.gmra.mrb[0].mxu0 %v315
      %v430 = vpop.f32.mrb[0].mxu0
      %v431 = vadd.f32 %v213, %v430
      %v432 = vpop.f32.mrb[0].mxu0
      %v433 = vpop.f32.mrb[0].mxu0
      %v434 = vadd.f32 %v213, %v433
      %v435 = vpop.f32.mrb[0].mxu0
      %436 = vmatprep.mubr.bf16.mxu0 0
      %437 = vmatmul.mubr.bf16.gmra.mrb[0].mxu0 %v318
      %v438 = vpop.f32.mrb[0].mxu0
      %v439 = vadd.f32 %v213, %v438
      %v440 = vpop.f32.mrb[0].mxu0
      %v441 = vpop.f32.mrb[0].mxu0
      %v442 = vadd.f32 %v213, %v441
      %v443 = vpop.f32.mrb[0].mxu0
      %444 = vmatprep.mubr.bf16.mxu0 0
      %445 = vmatmul.mubr.bf16.gmra.mrb[0].mxu0 %v321
      %v446 = vpop.f32.mrb[0].mxu0
      %v447 = vadd.f32 %v213, %v446
      %v448 = vpop.f32.mrb[0].mxu0
      %v449 = vpop.f32.mrb[0].mxu0
      %v450 = vadd.f32 %v213, %v449
      %v451 = vpop.f32.mrb[0].mxu0
      %452 = vmatprep.mubr.bf16.mxu0 0
      %453 = vmatmul.mubr.bf16.gmra.mrb[0].mxu0 %v324
      %v454 = vpop.f32.mrb[0].mxu0
      %v455 = vadd.f32 %v213, %v454
      %v456 = vpop.f32.mrb[0].mxu0
      %v457 = vpop.f32.mrb[0].mxu0
      %v458 = vadd.f32 %v213, %v457
      %v459 = vpop.f32.mrb[0].mxu0
      %460 = vmatprep.mubr.bf16.mxu0 0
      %461 = vmatmul.mubr.bf16.gmra.mrb[0].mxu0 %v327
      %v462 = vpop.f32.mrb[0].mxu0
      %v463 = vadd.f32 %v213, %v462
      %v464 = vpop.f32.mrb[0].mxu0
      %v465 = vpop.f32.mrb[0].mxu0
      %v466 = vadd.f32 %v213, %v465
      %v467 = vpop.f32.mrb[0].mxu0
      %468 = vmatprep.mubr.bf16.mxu0 0
      %469 = vmatmul.mubr.bf16.gmra.mrb[0].mxu0 %v330
      %v470 = vpop.f32.mrb[0].mxu0
      %v471 = vadd.f32 %v213, %v470
      %v472 = vpop.f32.mrb[0].mxu0
      %v473 = vpop.f32.mrb[0].mxu0
      %v474 = vadd.f32 %v213, %v473
      %v475 = vpop.f32.mrb[0].mxu0
      %476 = vmatprep.mubr.bf16.mxu0 0
      %477 = vmatmul.mubr.bf16.gmra.mrb[0].mxu0 %v333
      %v478 = vpop.f32.mrb[0].mxu0
      %v479 = vadd.f32 %v213, %v478
      %v480 = vpop.f32.mrb[0].mxu0
      %v481 = vpop.f32.mrb[0].mxu0
      %v482 = vadd.f32 %v213, %v481
      %v483 = vpop.f32.mrb[0].mxu0
      %484 = vmatprep.mubr.bf16.mxu0 0
      %485 = vmatmul.mubr.bf16.gmra.mrb[0].mxu0 %v336
      %v486 = vpop.f32.mrb[0].mxu0
      %v487 = vadd.f32 %v213, %v486
      %v488 = vpop.f32.mrb[0].mxu0
      %v489 = vpop.f32.mrb[0].mxu0
      %v490 = vadd.f32 %v213, %v489
      %v491 = vpop.f32.mrb[0].mxu0
      %492 = vmatprep.mubr.bf16.mxu0 0
      %493 = vmatmul.mubr.bf16.gmra.mrb[0].mxu0 %v339
      %v494 = vpop.f32.mrb[0].mxu0
      %v495 = vadd.f32 %v213, %v494
      %v496 = vpop.f32.mrb[0].mxu0
      %v497 = vpop.f32.mrb[0].mxu0
      %v498 = vadd.f32 %v213, %v497
      %v499 = vpop.f32.mrb[0].mxu0
      %500 = vmatprep.mubr.bf16.mxu0 0
      %501 = vmatmul.mubr.bf16.gmra.mrb[0].mxu0 %v342
      %v502 = vpop.f32.mrb[0].mxu0
      %v503 = vadd.f32 %v213, %v502
      %v504 = vpop.f32.mrb[0].mxu0
      %v505 = vpop.f32.mrb[0].mxu0
      %v506 = vadd.f32 %v213, %v505
      %v507 = vpop.f32.mrb[0].mxu0
      %508 = vdwg.mxu0
      %509 = vst.msk [vmem:[%s172] sm:$0xff] %vm295, %v383
      %510 = vst.msk [vmem:[%s172 + $0x8] sm:$0xff] %vm295, %v386
      %511 = vst.msk [vmem:[%s172 + $0x10] sm:$0xff] %vm295, %v391
      %512 = vst.msk [vmem:[%s172 + $0x18] sm:$0xff] %vm295, %v394
      %513 = vst.msk [vmem:[%s172 + $0x20] sm:$0xff] %vm295, %v399
      %514 = vst.msk [vmem:[%s172 + $0x28] sm:$0xff] %vm295, %v402
      %515 = vst.msk [vmem:[%s172 + $0x30] sm:$0xff] %vm295, %v407
      %516 = vst.msk [vmem:[%s172 + $0x38] sm:$0xff] %vm295, %v410
      %517 = vst.msk [vmem:[%s172 + $0x40] sm:$0xff] %vm295, %v415
      %518 = vst.msk [vmem:[%s172 + $0x48] sm:$0xff] %vm295, %v418
      %519 = vst.msk [vmem:[%s172 + $0x50] sm:$0xff] %vm295, %v423
      %520 = vst.msk [vmem:[%s172 + $0x58] sm:$0xff] %vm295, %v426
      %521 = vst.msk [vmem:[%s172 + $0x60] sm:$0xff] %vm295, %v431
      %522 = vst.msk [vmem:[%s172 + $0x68] sm:$0xff] %vm295, %v434
      %523 = vst.msk [vmem:[%s172 + $0x70] sm:$0xff] %vm295, %v439
      %524 = vst.msk [vmem:[%s172 + $0x78] sm:$0xff] %vm295, %v442
      %525 = vst.msk [vmem:[%s172 + $0x80] sm:$0xff] %vm295, %v447
      %526 = vst.msk [vmem:[%s172 + $0x88] sm:$0xff] %vm295, %v450
      %527 = vst.msk [vmem:[%s172 + $0x90] sm:$0xff] %vm295, %v455
      %528 = vst.msk [vmem:[%s172 + $0x98] sm:$0xff] %vm295, %v458
      %529 = vst.msk [vmem:[%s172 + $0xa0] sm:$0xff] %vm295, %v463
      %530 = vst.msk [vmem:[%s172 + $0xa8] sm:$0xff] %vm295, %v466
      %531 = vst.msk [vmem:[%s172 + $0xb0] sm:$0xff] %vm295, %v471
      %532 = vst.msk [vmem:[%s172 + $0xb8] sm:$0xff] %vm295, %v474
      %533 = vst.msk [vmem:[%s172 + $0xc0] sm:$0xff] %vm295, %v479
      %534 = vst.msk [vmem:[%s172 + $0xc8] sm:$0xff] %vm295, %v482
      %535 = vst.msk [vmem:[%s172 + $0xd0] sm:$0xff] %vm295, %v487
      %536 = vst.msk [vmem:[%s172 + $0xd8] sm:$0xff] %vm295, %v490
      %537 = vst.msk [vmem:[%s172 + $0xe0] sm:$0xff] %vm295, %v495
      %538 = vst.msk [vmem:[%s172 + $0xe8] sm:$0xff] %vm295, %v498
      %539 = vst.msk [vmem:[%s172 + $0xf0] sm:$0xff] %vm295, %v503
      %540 = vst.msk [vmem:[%s172 + $0xf8] sm:$0xff] %vm295, %v506
      %s541 = smul.u32 32, %s14
      %p542 = scmp.lt.s32.totalorder %s541, 127
      %s543 = scalar_select %p542, %s541, 127
      %s544 = smul.addr %s543, 8
      %s545 = scalar_lea.vmem %s3, %s544
      // Predicated region
      $region33: #{deep_resnet3d_forward.24} parent=31 // pred_check
        %p546 = pneg %p100
      $region34: #{deep_resnet3d_forward.24} parent=31 // pred_check_branch
        %548 = sbr.rel (%p546) target = $region36
      $region35: #{deep_resnet3d_forward.24} parent=31 // pred_region
        %s549 = smul.u32 32, %s14
      $region36: #{deep_resnet3d_forward.24} parent=31 // pred_fallthru
        _
    $region32: #{deep_resnet3d_forward.24} parent=5 // pred_fallthru
      _
    %p550 = scmp.le.s32.totalorder 2, %s9
    // Predicated region
    $region37: #{deep_resnet3d_forward.24} parent=5 // pred_check
      %p551 = pneg %p550
    $region38: #{deep_resnet3d_forward.24} parent=5 // pred_check_branch
      %553 = sbr.rel (%p551) target = $region40
    $region39: #{deep_resnet3d_forward.24} parent=5 // pred_region
      %s554 = ssub.s32 %s9, 2
      // Predicated region
      $region41: #{deep_resnet3d_forward.24} parent=39 // pred_check
        %p555 = pneg %p106
      $region42: #{deep_resnet3d_forward.24} parent=39 // pred_check_branch
        %557 = sbr.rel (%p555) target = $region44
      $region43: #{deep_resnet3d_forward.24} parent=39 // pred_region
        %s558 = smul.u32 32, %s15
        %p559 = scmp.lt.s32.totalorder %s558, 127
        %s560 = scalar_select %p559, %s558, 127
        %s561 = smul.addr %s560, 8
        %s562 = scalar_lea.vmem %s3, %s561
      $region44: #{deep_resnet3d_forward.24} parent=39 // pred_fallthru
        _
    $region40: #{deep_resnet3d_forward.24} parent=5 // pred_fallthru
      _
  $region6: #{deep_resnet3d_forward.24} parent=0 // loop_footer
    %s13 = sadd.s32 1, %s9
  $region7: #{deep_resnet3d_forward.24} parent=0 // loop_footer_branch
    %8 = sbr.rel target = $region3
  $region8: #{deep_resnet3d_forward.24} parent=0 // loop_exit
    _

// kernel: deep_resnet3d_forward.25
$region0: #{deep_resnet3d_forward.25}
  #allocation0 [shape = 'u32[]', space=smem, size = 0x4, offset = 0x4, fixed_abs, tag = 'smem constant byte address 0x4 - core index']
  #allocation1 [shape = 'u32[144,128]{1,0:T(1,128)}', space=vmem, size = 0x12000, scoped, tag = 'internal scratch']
  %s0 = inlined_call_operand.vmem [shape: bf16[1024,216], index: 0, kind: input, shape index: {}]
  %s1 = inlined_call_operand.vmem [shape: bf16[216,8], index: 1, kind: input, shape index: {}]
  %s2 = inlined_call_operand.vmem [shape: f32[1024,8], index: 2, kind: output, shape index: {0}]
  %s3 = inlined_call_operand.vmem [shape: f32[1,8], index: 3, kind: output, shape index: {1}]
  %s4 = inlined_call_operand.vmem [shape: f32[1,8], index: 4, kind: output, shape index: {2}]
  %5 = xla_tuple %s2, %s3, %s4
  %s6 = sld [smem:[#allocation0]]
  $region61: #{deep_resnet3d_forward.25} parent=0
    _
  %s8 = ssub.s32 1, %s6
  %s9 = scalar_select 0, %s8, %s6
  loop: start=0, step=1, limit=6
  $region2: #{deep_resnet3d_forward.25} parent=0 // loop_pre_header
    _
  $region3: #{deep_resnet3d_forward.25} parent=0 // loop_header
    %s11 = sphi 0, %s15
    %p12 = scmp.ge.s32.totalorder %s11, 6
    %s21 = sphi 0, %s23
    %s24 = sphi 0, %s21
    %s25 = sphi 0, %s24
    %s41 = sphi 0, %s25
    %s45 = sphi 0, %s45
    %s47 = sphi 0, %s45
    %s48 = sphi 0, %s47
    %s62 = sphi 0, %s48
    %s68 = sphi 0, %s70
    %s71 = sphi 0, %s68
    %s72 = sphi 0, %s71
    %s88 = sphi 0, %s72
    %s92 = sphi 0, %s92
    %s94 = sphi 0, %s92
    %s95 = sphi 0, %s94
    %s109 = sphi 0, %s95
    %s113 = sphi 0, %s113
    %s115 = sphi 0, %s113
    %s116 = sphi 0, %s115
    %s130 = sphi 0, %s116
  $region4: #{deep_resnet3d_forward.25} parent=0 // loop_header_branch
    %14 = sbr.rel (%p12) target = $region8
  $region5: #{deep_resnet3d_forward.25} parent=0 // loop_body
    %s16 = ssub.s32 %s11, 1
    %s17 = ssub.s32 %s11, 2
    %s18 = sadd.s32 %s11, 1
    %s19 = ssub.s32 %s11, %s18
    %p20 = scmp.eq.s32.totalorder %s19, 0
    %s22 = sadd.s32 %s21, 1
    %s23 = scalar_select %p20, %s21, %s22
    %p26 = pneg %p20
    %p27 = scmp.eq.s32.totalorder %s11, 3
    %p28 = por %p26, %p27
    %p29 = scmp.ne.s32.totalorder %s21, %s24
    %p30 = scmp.eq.s32.totalorder %s11, 0
    %p31 = por %p29, %p30
    %p32 = scmp.ne.s32.totalorder %s21, %s24
    %p33 = scmp.eq.s32.totalorder %s16, 3
    %p34 = por %p32, %p33
    %p35 = scmp.ne.s32.totalorder %s24, %s25
    %p36 = scmp.eq.s32.totalorder %s16, 0
    %p37 = por %p35, %p36
    %p38 = scmp.ne.s32.totalorder %s24, %s25
    %p39 = scmp.eq.s32.totalorder %s17, 3
    %p40 = por %p38, %p39
    %p42 = scmp.ne.s32.totalorder %s25, %s41
    %p43 = scmp.eq.s32.totalorder %s17, 0
    %p44 = por %p42, %p43
    %s46 = sadd.s32 %s45, 1
    %p49 = scmp.eq.s32.totalorder %s11, 3
    %p50 = scmp.ne.s32.totalorder %s45, %s47
    %p51 = scmp.eq.s32.totalorder %s11, 0
    %p52 = por %p50, %p51
    %p53 = scmp.ne.s32.totalorder %s45, %s47
    %p54 = scmp.eq.s32.totalorder %s16, 3
    %p55 = por %p53, %p54
    %p56 = scmp.ne.s32.totalorder %s47, %s48
    %p57 = scmp.eq.s32.totalorder %s16, 0
    %p58 = por %p56, %p57
    %p59 = scmp.ne.s32.totalorder %s47, %s48
    %p60 = scmp.eq.s32.totalorder %s17, 3
    %p61 = por %p59, %p60
    %p63 = scmp.ne.s32.totalorder %s48, %s62
    %p64 = scmp.eq.s32.totalorder %s17, 0
    %p65 = por %p63, %p64
    %s66 = ssub.s32 %s11, %s18
    %p67 = scmp.eq.s32.totalorder %s66, 0
    %s69 = sadd.s32 %s68, 1
    %s70 = scalar_select %p67, %s68, %s69
    %p73 = pneg %p67
    %p74 = scmp.eq.s32.totalorder %s11, 3
    %p75 = por %p73, %p74
    %p76 = scmp.ne.s32.totalorder %s68, %s71
    %p77 = scmp.eq.s32.totalorder %s11, 0
    %p78 = por %p76, %p77
    %p79 = scmp.ne.s32.totalorder %s68, %s71
    %p80 = scmp.eq.s32.totalorder %s16, 3
    %p81 = por %p79, %p80
    %p82 = scmp.ne.s32.totalorder %s71, %s72
    %p83 = scmp.eq.s32.totalorder %s16, 0
    %p84 = por %p82, %p83
    %p85 = scmp.ne.s32.totalorder %s71, %s72
    %p86 = scmp.eq.s32.totalorder %s17, 3
    %p87 = por %p85, %p86
    %p89 = scmp.ne.s32.totalorder %s72, %s88
    %p90 = scmp.eq.s32.totalorder %s17, 0
    %p91 = por %p89, %p90
    %s93 = sadd.s32 %s92, 1
    %p96 = scmp.eq.s32.totalorder %s11, 3
    %p97 = scmp.ne.s32.totalorder %s92, %s94
    %p98 = scmp.eq.s32.totalorder %s11, 0
    %p99 = por %p97, %p98
    %p100 = scmp.ne.s32.totalorder %s92, %s94
    %p101 = scmp.eq.s32.totalorder %s16, 3
    %p102 = por %p100, %p101
    %p103 = scmp.ne.s32.totalorder %s94, %s95
    %p104 = scmp.eq.s32.totalorder %s16, 0
    %p105 = por %p103, %p104
    %p106 = scmp.ne.s32.totalorder %s94, %s95
    %p107 = scmp.eq.s32.totalorder %s17, 3
    %p108 = por %p106, %p107
    %p110 = scmp.ne.s32.totalorder %s95, %s109
    %p111 = scmp.eq.s32.totalorder %s17, 0
    %p112 = por %p110, %p111
    %s114 = sadd.s32 %s113, 1
    %p117 = scmp.eq.s32.totalorder %s11, 3
    %p118 = scmp.ne.s32.totalorder %s113, %s115
    %p119 = scmp.eq.s32.totalorder %s11, 0
    %p120 = por %p118, %p119
    %p121 = scmp.ne.s32.totalorder %s113, %s115
    %p122 = scmp.eq.s32.totalorder %s16, 3
    %p123 = por %p121, %p122
    %p124 = scmp.ne.s32.totalorder %s115, %s116
    %p125 = scmp.eq.s32.totalorder %s16, 0
    %p126 = por %p124, %p125
    %p127 = scmp.ne.s32.totalorder %s115, %s116
    %p128 = scmp.eq.s32.totalorder %s17, 3
    %p129 = por %p127, %p128
    %p131 = scmp.ne.s32.totalorder %s116, %s130
    %p132 = scmp.eq.s32.totalorder %s17, 0
    %p133 = por %p131, %p132
    %p134 = scmp.le.s32.totalorder 1, %s11
    %p135 = scmp.lt.s32.totalorder %s11, 5
    %p136 = pnand %p134, %p135
    %p137 = pneg %p136
    // Predicated region
    $region9: #{deep_resnet3d_forward.25} parent=5 // pred_check
      _
    $region10: #{deep_resnet3d_forward.25} parent=5 // pred_check_branch
      %139 = sbr.rel (%p136) target = $region12
    $region11: #{deep_resnet3d_forward.25} parent=5 // pred_region
      %s140 = ssub.s32 %s11, 1
      // Predicated region
      $region13: #{deep_resnet3d_forward.25} parent=11 // pred_check
        %p141 = pneg %p58
      $region14: #{deep_resnet3d_forward.25} parent=11 // pred_check_branch
        %143 = sbr.rel (%p141) target = $region16
      $region15: #{deep_resnet3d_forward.25} parent=11 // pred_region
        _
      $region16: #{deep_resnet3d_forward.25} parent=11 // pred_fallthru
        _
    $region12: #{deep_resnet3d_forward.25} parent=5 // pred_fallthru
      _
    %p144 = scmp.lt.s32.totalorder %s11, 4
    // Predicated region
    $region17: #{deep_resnet3d_forward.25} parent=5 // pred_check
      %p145 = pneg %p144
    $region18: #{deep_resnet3d_forward.25} parent=5 // pred_check_branch
      %147 = sbr.rel (%p145) target = $region20
    $region19: #{deep_resnet3d_forward.25} parent=5 // pred_region
      // Predicated region
      $region21: #{deep_resnet3d_forward.25} parent=19 // pred_check
        %p148 = pneg %p31
      $region22: #{deep_resnet3d_forward.25} parent=19 // pred_check_branch
        %150 = sbr.rel (%p148) target = $region24
      $region23: #{deep_resnet3d_forward.25} parent=19 // pred_region
        %s151 = smul.u32 32, %s11
        %p152 = scmp.lt.s32.totalorder %s151, 127
        %s153 = scalar_select %p152, %s151, 127
        %s154 = smul.addr %s153, 2
        %s155 = smul.addr %s154, 4
        %s156 = scalar_lea.vmem %s0, %s155
        %s157 = smul.u32 32, %s11
      $region24: #{deep_resnet3d_forward.25} parent=19 // pred_fallthru
        _
    $region20: #{deep_resnet3d_forward.25} parent=5 // pred_fallthru
      _
    %p158 = scmp.le.s32.totalorder 1, %s11
    %p159 = scmp.lt.s32.totalorder %s11, 5
    %p160 = pnand %p158, %p159
    %p161 = pneg %p160
    // Predicated region
    $region25: #{deep_resnet3d_forward.25} parent=5 // pred_check
      _
    $region26: #{deep_resnet3d_forward.25} parent=5 // pred_check_branch
      %163 = sbr.rel (%p160) target = $region28
    $region27: #{deep_resnet3d_forward.25} parent=5 // pred_region
      %s164 = ssub.s32 %s11, 1
      %s165 = smul.u32 32, %s16
      %p166 = scmp.lt.s32.totalorder %s165, 127
      %s167 = scalar_select %p166, %s165, 127
      %s168 = smul.addr %s167, 2
      %s169 = smul.addr %s168, 4
      %s170 = scalar_lea.vmem %s0, %s169
      %p171 = pneg %p37
      %p172 = pneg %p34
      %p173 = pneg %p58
      %p174 = pneg %p55
      %p175 = pneg %p84
      %p176 = pneg %p81
      %s177 = smul.u32 32, %s16
      %p178 = scmp.lt.s32.totalorder %s177, 127
      %s179 = scalar_select %p178, %s177, 127
      %s180 = smul.addr %s179, 8
      %s181 = scalar_lea.vmem %s2, %s180
      %p182 = pneg %p105
      %p183 = pneg %p102
      %p184 = pneg %p126
      %p185 = pneg %p123
      %s186 = smul.u32 32, %s16
      %p187 = scmp.lt.s32.totalorder %s186, 127
      %s188 = scalar_select %p187, %s186, 127
      %s189 = smul.addr %s188, 2
      %s190 = smul.addr %s189, 4
      %s191 = scalar_lea.vmem %s0, %s190
      %s192 = smul.u32 32, %s16
      %s193 = smul.u32 32, %s16
      %p194 = scmp.lt.s32.totalorder %s193, 127
      %s195 = scalar_select %p194, %s193, 127
      %s196 = smul.addr %s195, 8
      %s197 = scalar_lea.vmem %s2, %s196
      %s198 = smul.u32 32, %s16
      %p200 = scmp.eq.s32.totalorder %s16, 0
      // Predicated region
      $region29: #{deep_resnet3d_forward.25} parent=27 // pred_check
        %p201 = pneg %p200
      $region30: #{deep_resnet3d_forward.25} parent=27 // pred_check_branch
        %203 = sbr.rel (%p201) target = $region32
      $region31: #{deep_resnet3d_forward.25} parent=27 // pred_region
        %vm204 = vcmask 57344
        %205 = vst.msk [vmem:[%s3] sm:$0x1] %vm204, 0.0
        %206 = vst.msk [vmem:[%s4] sm:$0x1] %vm204, 0.0
      $region32: #{deep_resnet3d_forward.25} parent=27 // pred_fallthru
        _
      %v207 = vld [vmem:[%s191] sm:$0xff]
      %v208 = vld [vmem:[%s191 + $0x8] sm:$0xff]
      %v209 = vld [vmem:[%s191 + $0x10] sm:$0xff]
      %v210 = vld [vmem:[%s191 + $0x18] sm:$0xff]
      %v211 = vld [vmem:[%s191 + $0x20] sm:$0xff]
      %v212 = vld [vmem:[%s191 + $0x28] sm:$0xff]
      %v213 = vld [vmem:[%s191 + $0x30] sm:$0xff]
      %v214 = vld [vmem:[%s191 + $0x38] sm:$0xff]
      %v215 = vld [vmem:[%s191 + $0x40] sm:$0xff]
      %v216 = vld [vmem:[%s191 + $0x48] sm:$0xff]
      %v217 = vld [vmem:[%s191 + $0x50] sm:$0xff]
      %v218 = vld [vmem:[%s191 + $0x58] sm:$0xff]
      %v219 = vld [vmem:[%s191 + $0x60] sm:$0xff]
      %v220 = vld [vmem:[%s191 + $0x68] sm:$0xff]
      %v221 = vld [vmem:[%s191 + $0x70] sm:$0xff]
      %v222 = vld [vmem:[%s191 + $0x78] sm:$0xff]
      %v223 = vld [vmem:[%s191 + $0x80] sm:$0xff]
      %v224 = vld [vmem:[%s191 + $0x88] sm:$0xff]
      %v225 = vld [vmem:[%s191 + $0x90] sm:$0xff]
      %v226 = vld [vmem:[%s191 + $0x98] sm:$0xff]
      %v227 = vld [vmem:[%s191 + $0xa0] sm:$0xff]
      %v228 = vld [vmem:[%s191 + $0xa8] sm:$0xff]
      %v229 = vld [vmem:[%s191 + $0xb0] sm:$0xff]
      %v230 = vld [vmem:[%s191 + $0xb8] sm:$0xff]
      %v231 = vld [vmem:[%s191 + $0xc0] sm:$0xff]
      %v232 = vld [vmem:[%s191 + $0xc8] sm:$0xff]
      %v233 = vld [vmem:[%s191 + $0xd0] sm:$0xff]
      %v234 = vld [vmem:[%s191 + $0xd8] sm:$0xff]
      %v235 = vld [vmem:[%s191 + $0xe0] sm:$0xff]
      %v236 = vld [vmem:[%s191 + $0xe8] sm:$0xff]
      %v237 = vld [vmem:[%s191 + $0xf0] sm:$0xff]
      %v238 = vld [vmem:[%s191 + $0xf8] sm:$0xff]
      %v239 = vld [vmem:[%s1] sm:$0xf]
      %v240 = vld [vmem:[%s1 + $0x4] sm:$0xf]
      %v241 = vld [vmem:[%s1 + $0x8] sm:$0xf]
      %v242 = vld [vmem:[%s1 + $0xc] sm:$0xf]
      %v243 = vld [vmem:[%s1 + $0x10] sm:$0xf]
      %v244 = vld [vmem:[%s1 + $0x14] sm:$0xf]
      %v245 = vld [vmem:[%s1 + $0x18] sm:$0xf]
      %v246 = vld [vmem:[%s1 + $0x1c] sm:$0xf]
      %v247 = vld [vmem:[%s1 + $0x20] sm:$0xf]
      %v248 = vld [vmem:[%s1 + $0x24] sm:$0xf]
      %v249 = vld [vmem:[%s1 + $0x28] sm:$0xf]
      %v250 = vld [vmem:[%s1 + $0x2c] sm:$0xf]
      %v251 = vld [vmem:[%s1 + $0x30] sm:$0xf]
      %v252 = vld [vmem:[%s1 + $0x34] sm:$0xf]
      %v253 = vld [vmem:[%s1 + $0x38] sm:$0xf]
      %v254 = vld [vmem:[%s1 + $0x3c] sm:$0xf]
      %v255 = vld [vmem:[%s1 + $0x40] sm:$0xf]
      %v256 = vld [vmem:[%s1 + $0x44] sm:$0xf]
      %v257 = vld [vmem:[%s1 + $0x48] sm:$0xf]
      %v258 = vld [vmem:[%s1 + $0x4c] sm:$0xf]
      %v259 = vld [vmem:[%s1 + $0x50] sm:$0xf]
      %v260 = vld [vmem:[%s1 + $0x54] sm:$0xf]
      %v261 = vld [vmem:[%s1 + $0x58] sm:$0xf]
      %v262 = vld [vmem:[%s1 + $0x5c] sm:$0xf]
      %v263 = vld [vmem:[%s1 + $0x60] sm:$0xf]
      %v264 = vld [vmem:[%s1 + $0x64] sm:$0xf]
      %v265 = vld [vmem:[%s1 + $0x68] sm:$0xf]
      %v298 = vunpack.c.l.b16 %v207
      %v299 = vunpack.c.h.b16 %v207
      %v300 = vunpack.c.l.b16 %v208
      %v301 = vunpack.c.h.b16 %v208
      %v302 = vunpack.c.l.b16 %v209
      %v303 = vunpack.c.h.b16 %v209
      %v304 = vunpack.c.l.b16 %v210
      %v305 = vunpack.c.h.b16 %v210
      %v306 = vunpack.c.l.b16 %v211
      %v307 = vunpack.c.h.b16 %v211
      %v308 = vunpack.c.l.b16 %v212
      %v309 = vunpack.c.h.b16 %v212
      %v310 = vunpack.c.l.b16 %v213
      %v311 = vunpack.c.h.b16 %v213
      %v312 = vunpack.c.l.b16 %v214
      %v313 = vunpack.c.h.b16 %v214
      %v314 = vunpack.c.l.b16 %v215
      %v315 = vunpack.c.h.b16 %v215
      %v316 = vunpack.c.l.b16 %v216
      %v317 = vunpack.c.h.b16 %v216
      %v318 = vunpack.c.l.b16 %v217
      %v319 = vunpack.c.h.b16 %v217
      %v320 = vunpack.c.l.b16 %v218
      %v321 = vunpack.c.h.b16 %v218
      %v322 = vunpack.c.l.b16 %v219
      %v323 = vunpack.c.h.b16 %v219
      %v324 = vunpack.c.l.b16 %v220
      %v325 = vunpack.c.h.b16 %v220
      %v326 = vunpack.c.l.b16 %v221
      %v327 = vunpack.c.h.b16 %v221
      %v328 = vunpack.c.l.b16 %v222
      %v329 = vunpack.c.h.b16 %v222
      %v330 = vunpack.c.l.b16 %v223
      %v331 = vunpack.c.h.b16 %v223
      %v332 = vunpack.c.l.b16 %v224
      %v333 = vunpack.c.h.b16 %v224
      %v334 = vunpack.c.l.b16 %v225
      %v335 = vunpack.c.h.b16 %v225
      %v336 = vunpack.c.l.b16 %v226
      %v337 = vunpack.c.h.b16 %v226
      %v338 = vunpack.c.l.b16 %v227
      %v339 = vunpack.c.h.b16 %v227
      %v340 = vunpack.c.l.b16 %v228
      %v341 = vunpack.c.h.b16 %v228
      %v342 = vunpack.c.l.b16 %v229
      %v343 = vunpack.c.h.b16 %v229
      %v344 = vunpack.c.l.b16 %v230
      %v345 = vunpack.c.h.b16 %v230
      %v346 = vunpack.c.l.b16 %v231
      %v347 = vunpack.c.h.b16 %v231
      %v348 = vunpack.c.l.b16 %v232
      %v349 = vunpack.c.h.b16 %v232
      %v350 = vunpack.c.l.b16 %v233
      %v351 = vunpack.c.h.b16 %v233
      %v352 = vunpack.c.l.b16 %v234
      %v353 = vunpack.c.h.b16 %v234
      %v354 = vunpack.c.l.b16 %v235
      %v355 = vunpack.c.h.b16 %v235
      %v356 = vunpack.c.l.b16 %v236
      %v357 = vunpack.c.h.b16 %v236
      %v358 = vunpack.c.l.b16 %v237
      %v359 = vunpack.c.h.b16 %v237
      %v360 = vunpack.c.l.b16 %v238
      %v361 = vunpack.c.h.b16 %v238
      %v362 = vpack.c.b16 %v300, %v298
      %v363 = vpack.c.b16 %v301, %v299
      %v364 = vpack.c.b16 %v304, %v302
      %v365 = vpack.c.b16 %v305, %v303
      %v366 = vpack.c.b16 %v308, %v306
      %v367 = vpack.c.b16 %v309, %v307
      %v368 = vpack.c.b16 %v312, %v310
      %v369 = vpack.c.b16 %v313, %v311
      %v370 = vpack.c.b16 %v316, %v314
      %v371 = vpack.c.b16 %v317, %v315
      %v372 = vpack.c.b16 %v320, %v318
      %v373 = vpack.c.b16 %v321, %v319
      %v374 = vpack.c.b16 %v324, %v322
      %v375 = vpack.c.b16 %v325, %v323
      %v376 = vpack.c.b16 %v328, %v326
      %v377 = vpack.c.b16 %v329, %v327
      %v378 = vpack.c.b16 %v332, %v330
      %v379 = vpack.c.b16 %v333, %v331
      %v380 = vpack.c.b16 %v336, %v334
      %v381 = vpack.c.b16 %v337, %v335
      %v382 = vpack.c.b16 %v340, %v338
      %v383 = vpack.c.b16 %v341, %v339
      %v384 = vpack.c.b16 %v344, %v342
      %v385 = vpack.c.b16 %v345, %v343
      %v386 = vpack.c.b16 %v348, %v346
      %v387 = vpack.c.b16 %v349, %v347
      %v388 = vpack.c.b16 %v352, %v350
      %v389 = vpack.c.b16 %v353, %v351
      %v390 = vpack.c.b16 %v356, %v354
      %v391 = vpack.c.b16 %v357, %v355
      %v392 = vpack.c.b16 %v360, %v358
      %v393 = vpack.c.b16 %v361, %v359
      %v437 = vunpack.c.l.b16 %v239
      %v438 = vunpack.c.l.b16 %v240
      %v439 = vunpack.c.l.b16 %v241
      %v440 = vunpack.c.l.b16 %v242
      %v441 = vunpack.c.l.b16 %v243
      %v442 = vunpack.c.l.b16 %v244
      %v443 = vunpack.c.l.b16 %v245
      %v444 = vunpack.c.l.b16 %v246
      %v445 = vunpack.c.l.b16 %v247
      %v446 = vunpack.c.l.b16 %v248
      %v447 = vunpack.c.l.b16 %v249
      %v448 = vunpack.c.l.b16 %v250
      %v449 = vunpack.c.l.b16 %v251
      %v450 = vunpack.c.l.b16 %v252
      %v451 = vunpack.c.l.b16 %v253
      %v452 = vunpack.c.l.b16 %v254
      %v453 = vunpack.c.l.b16 %v255
      %v454 = vunpack.c.l.b16 %v256
      %v455 = vunpack.c.l.b16 %v257
      %v456 = vunpack.c.l.b16 %v258
      %v457 = vunpack.c.l.b16 %v259
      %v458 = vunpack.c.l.b16 %v260
      %v459 = vunpack.c.l.b16 %v261
      %v460 = vunpack.c.l.b16 %v262
      %v461 = vunpack.c.l.b16 %v263
      %v462 = vunpack.c.l.b16 %v264
      %v463 = vunpack.c.l.b16 %v265
      %v464 = vpack.c.b16 %v438, %v437
      %v465 = vpack.c.b16 %v440, %v439
      %v466 = vpack.c.b16 %v442, %v441
      %v467 = vpack.c.b16 %v444, %v443
      %v468 = vpack.c.b16 %v446, %v445
      %v469 = vpack.c.b16 %v448, %v447
      %v470 = vpack.c.b16 %v450, %v449
      %v471 = vpack.c.b16 %v452, %v451
      %v472 = vpack.c.b16 %v454, %v453
      %v473 = vpack.c.b16 %v456, %v455
      %v474 = vpack.c.b16 %v458, %v457
      %v475 = vpack.c.b16 %v460, %v459
      %v476 = vpack.c.b16 %v462, %v461
      %v477 = vpack.c.b16 %v463, %v463
      %vm491 = vcmask 719872
      %v493 = vsel %vm491, %v363, 0
      %v496 = vsel %vm491, %v365, 0
      %v499 = vsel %vm491, %v367, 0
      %v502 = vsel %vm491, %v369, 0
      %v505 = vsel %vm491, %v371, 0
      %v508 = vsel %vm491, %v373, 0
      %v511 = vsel %vm491, %v375, 0
      %v514 = vsel %vm491, %v377, 0
      %v517 = vsel %vm491, %v379, 0
      %v520 = vsel %vm491, %v381, 0
      %v523 = vsel %vm491, %v383, 0
      %v526 = vsel %vm491, %v385, 0
      %v529 = vsel %vm491, %v387, 0
      %v532 = vsel %vm491, %v389, 0
      %v535 = vsel %vm491, %v391, 0
      %v538 = vsel %vm491, %v393, 0
      %vm540 = vcmask 1043456
      %v542 = vsel %vm540, %v477, 0
      %544 = vmatprep.subr.bf16.mxu0 0
      %545 = vmatpush1.bf16.msra.mxu0 %v464
      %546 = vmatprep.subr.bf16.mxu0 0
      %547 = vmatpush1.bf16.msra.mxu0 %v465
      %548 = vmatprep.subr.bf16.mxu0 0
      %549 = vmatpush1.bf16.msra.mxu0 %v466
      %550 = vmatprep.subr.bf16.mxu0 0
      %551 = vmatpush1.bf16.msra.mxu0 %v467
      %552 = vmatprep.subr.bf16.mxu0 0
      %553 = vmatpush1.bf16.msra.mxu0 %v468
      %554 = vmatprep.subr.bf16.mxu0 0
      %555 = vmatpush1.bf16.msra.mxu0 %v469
      %556 = vmatprep.subr.bf16.mxu0 0
      %557 = vmatpush1.bf16.msra.mxu0 %v470
      %558 = vmatprep.subr.bf16.mxu0 0
      %559 = vmatpush1.bf16.msra.mxu0 %v471
      %560 = vmatprep.subr.bf16.mxu0 0
      %561 = vmatpush1.bf16.msra.mxu0 %v472
      %562 = vmatprep.subr.bf16.mxu0 0
      %563 = vmatpush1.bf16.msra.mxu0 %v473
      %564 = vmatprep.subr.bf16.mxu0 0
      %565 = vmatpush1.bf16.msra.mxu0 %v474
      %566 = vmatprep.subr.bf16.mxu0 0
      %567 = vmatpush1.bf16.msra.mxu0 %v475
      %568 = vmatprep.subr.bf16.mxu0 0
      %569 = vmatpush1.bf16.msra.mxu0 %v476
      %570 = vmatprep.subr.bf16.mxu0 0
      %571 = vmatpush1.bf16.msra.mxu0 %v542
      %572 = vmatprep.subr.bf16.mxu0 0
      %573 = vmatpush1.bf16.msra.mxu0 0
      %574 = vmatprep.subr.bf16.mxu0 0
      %575 = vmatpush1.bf16.msra.mxu0 0
      %576 = vmatprep.mubr.bf16.mxu0 %v493
      %577 = vmatmul.mubr.bf16.gmra.mrb[0].mxu0 %v362
      %v578 = vpop.f32.mrb[0].mxu0
      %v579 = vadd.f32 0.0, %v578
      %v580 = vpop.f32.mrb[0].mxu0
      %v581 = vpop.f32.mrb[0].mxu0
      %v582 = vadd.f32 0.0, %v581
      %v583 = vpop.f32.mrb[0].mxu0
      %584 = vmatprep.mubr.bf16.mxu0 %v496
      %585 = vmatmul.mubr.bf16.gmra.mrb[0].mxu0 %v364
      %v586 = vpop.f32.mrb[0].mxu0
      %v587 = vadd.f32 0.0, %v586
      %v588 = vpop.f32.mrb[0].mxu0
      %v589 = vpop.f32.mrb[0].mxu0
      %v590 = vadd.f32 0.0, %v589
      %v591 = vpop.f32.mrb[0].mxu0
      %592 = vmatprep.mubr.bf16.mxu0 %v499
      %593 = vmatmul.mubr.bf16.gmra.mrb[0].mxu0 %v366
      %v594 = vpop.f32.mrb[0].mxu0
      %v595 = vadd.f32 0.0, %v594
      %v596 = vpop.f32.mrb[0].mxu0
      %v597 = vpop.f32.mrb[0].mxu0
      %v598 = vadd.f32 0.0, %v597
      %v599 = vpop.f32.mrb[0].mxu0
      %600 = vmatprep.mubr.bf16.mxu0 %v502
      %601 = vmatmul.mubr.bf16.gmra.mrb[0].mxu0 %v368
      %v602 = vpop.f32.mrb[0].mxu0
      %v603 = vadd.f32 0.0, %v602
      %v604 = vpop.f32.mrb[0].mxu0
      %v605 = vpop.f32.mrb[0].mxu0
      %v606 = vadd.f32 0.0, %v605
      %v607 = vpop.f32.mrb[0].mxu0
      %608 = vmatprep.mubr.bf16.mxu0 %v505
      %609 = vmatmul.mubr.bf16.gmra.mrb[0].mxu0 %v370
      %v610 = vpop.f32.mrb[0].mxu0
      %v611 = vadd.f32 0.0, %v610
      %v612 = vpop.f32.mrb[0].mxu0
      %v613 = vpop.f32.mrb[0].mxu0
      %v614 = vadd.f32 0.0, %v613
      %v615 = vpop.f32.mrb[0].mxu0
      %616 = vmatprep.mubr.bf16.mxu0 %v508
      %617 = vmatmul.mubr.bf16.gmra.mrb[0].mxu0 %v372
      %v618 = vpop.f32.mrb[0].mxu0
      %v619 = vadd.f32 0.0, %v618
      %v620 = vpop.f32.mrb[0].mxu0
      %v621 = vpop.f32.mrb[0].mxu0
      %v622 = vadd.f32 0.0, %v621
      %v623 = vpop.f32.mrb[0].mxu0
      %624 = vmatprep.mubr.bf16.mxu0 %v511
      %625 = vmatmul.mubr.bf16.gmra.mrb[0].mxu0 %v374
      %v626 = vpop.f32.mrb[0].mxu0
      %v627 = vadd.f32 0.0, %v626
      %v628 = vpop.f32.mrb[0].mxu0
      %v629 = vpop.f32.mrb[0].mxu0
      %v630 = vadd.f32 0.0, %v629
      %v631 = vpop.f32.mrb[0].mxu0
      %632 = vmatprep.mubr.bf16.mxu0 %v514
      %633 = vmatmul.mubr.bf16.gmra.mrb[0].mxu0 %v376
      %v634 = vpop.f32.mrb[0].mxu0
      %v635 = vadd.f32 0.0, %v634
      %v636 = vpop.f32.mrb[0].mxu0
      %v637 = vpop.f32.mrb[0].mxu0
      %v638 = vadd.f32 0.0, %v637
      %v639 = vpop.f32.mrb[0].mxu0
      %640 = vmatprep.mubr.bf16.mxu0 %v517
      %641 = vmatmul.mubr.bf16.gmra.mrb[0].mxu0 %v378
      %v642 = vpop.f32.mrb[0].mxu0
      %v643 = vadd.f32 0.0, %v642
      %v644 = vpop.f32.mrb[0].mxu0
      %v645 = vpop.f32.mrb[0].mxu0
      %v646 = vadd.f32 0.0, %v645
      %v647 = vpop.f32.mrb[0].mxu0
      %648 = vmatprep.mubr.bf16.mxu0 %v520
      %649 = vmatmul.mubr.bf16.gmra.mrb[0].mxu0 %v380
      %v650 = vpop.f32.mrb[0].mxu0
      %v651 = vadd.f32 0.0, %v650
      %v652 = vpop.f32.mrb[0].mxu0
      %v653 = vpop.f32.mrb[0].mxu0
      %v654 = vadd.f32 0.0, %v653
      %v655 = vpop.f32.mrb[0].mxu0
      %656 = vmatprep.mubr.bf16.mxu0 %v523
      %657 = vmatmul.mubr.bf16.gmra.mrb[0].mxu0 %v382
      %v658 = vpop.f32.mrb[0].mxu0
      %v659 = vadd.f32 0.0, %v658
      %v660 = vpop.f32.mrb[0].mxu0
      %v661 = vpop.f32.mrb[0].mxu0
      %v662 = vadd.f32 0.0, %v661
      %v663 = vpop.f32.mrb[0].mxu0
      %664 = vmatprep.mubr.bf16.mxu0 %v526
      %665 = vmatmul.mubr.bf16.gmra.mrb[0].mxu0 %v384
      %v666 = vpop.f32.mrb[0].mxu0
      %v667 = vadd.f32 0.0, %v666
      %v668 = vpop.f32.mrb[0].mxu0
      %v669 = vpop.f32.mrb[0].mxu0
      %v670 = vadd.f32 0.0, %v669
      %v671 = vpop.f32.mrb[0].mxu0
      %672 = vmatprep.mubr.bf16.mxu0 %v529
      %673 = vmatmul.mubr.bf16.gmra.mrb[0].mxu0 %v386
      %v674 = vpop.f32.mrb[0].mxu0
      %v675 = vadd.f32 0.0, %v674
      %v676 = vpop.f32.mrb[0].mxu0
      %v677 = vpop.f32.mrb[0].mxu0
      %v678 = vadd.f32 0.0, %v677
      %v679 = vpop.f32.mrb[0].mxu0
      %680 = vmatprep.mubr.bf16.mxu0 %v532
      %681 = vmatmul.mubr.bf16.gmra.mrb[0].mxu0 %v388
      %v682 = vpop.f32.mrb[0].mxu0
      %v683 = vadd.f32 0.0, %v682
      %v684 = vpop.f32.mrb[0].mxu0
      %v685 = vpop.f32.mrb[0].mxu0
      %v686 = vadd.f32 0.0, %v685
      %v687 = vpop.f32.mrb[0].mxu0
      %688 = vmatprep.mubr.bf16.mxu0 %v535
      %689 = vmatmul.mubr.bf16.gmra.mrb[0].mxu0 %v390
      %v690 = vpop.f32.mrb[0].mxu0
      %v691 = vadd.f32 0.0, %v690
      %v692 = vpop.f32.mrb[0].mxu0
      %v693 = vpop.f32.mrb[0].mxu0
      %v694 = vadd.f32 0.0, %v693
      %v695 = vpop.f32.mrb[0].mxu0
      %696 = vmatprep.mubr.bf16.mxu0 %v538
      %697 = vmatmul.mubr.bf16.gmra.mrb[0].mxu0 %v392
      %v698 = vpop.f32.mrb[0].mxu0
      %v699 = vadd.f32 0.0, %v698
      %v700 = vpop.f32.mrb[0].mxu0
      %v701 = vpop.f32.mrb[0].mxu0
      %v702 = vadd.f32 0.0, %v701
      %v703 = vpop.f32.mrb[0].mxu0
      %704 = vdwg.mxu0
      %vm705 = vcmask 64512
      %706 = vst.msk [vmem:[%s197] sm:$0xff] %vm705, %v579
      %707 = vst.msk [vmem:[%s197 + $0x8] sm:$0xff] %vm705, %v582
      %708 = vst.msk [vmem:[%s197 + $0x10] sm:$0xff] %vm705, %v587
      %709 = vst.msk [vmem:[%s197 + $0x18] sm:$0xff] %vm705, %v590
      %710 = vst.msk [vmem:[%s197 + $0x20] sm:$0xff] %vm705, %v595
      %711 = vst.msk [vmem:[%s197 + $0x28] sm:$0xff] %vm705, %v598
      %712 = vst.msk [vmem:[%s197 + $0x30] sm:$0xff] %vm705, %v603
      %713 = vst.msk [vmem:[%s197 + $0x38] sm:$0xff] %vm705, %v606
      %714 = vst.msk [vmem:[%s197 + $0x40] sm:$0xff] %vm705, %v611
      %715 = vst.msk [vmem:[%s197 + $0x48] sm:$0xff] %vm705, %v614
      %716 = vst.msk [vmem:[%s197 + $0x50] sm:$0xff] %vm705, %v619
      %717 = vst.msk [vmem:[%s197 + $0x58] sm:$0xff] %vm705, %v622
      %718 = vst.msk [vmem:[%s197 + $0x60] sm:$0xff] %vm705, %v627
      %719 = vst.msk [vmem:[%s197 + $0x68] sm:$0xff] %vm705, %v630
      %720 = vst.msk [vmem:[%s197 + $0x70] sm:$0xff] %vm705, %v635
      %721 = vst.msk [vmem:[%s197 + $0x78] sm:$0xff] %vm705, %v638
      %722 = vst.msk [vmem:[%s197 + $0x80] sm:$0xff] %vm705, %v643
      %723 = vst.msk [vmem:[%s197 + $0x88] sm:$0xff] %vm705, %v646
      %724 = vst.msk [vmem:[%s197 + $0x90] sm:$0xff] %vm705, %v651
      %725 = vst.msk [vmem:[%s197 + $0x98] sm:$0xff] %vm705, %v654
      %726 = vst.msk [vmem:[%s197 + $0xa0] sm:$0xff] %vm705, %v659
      %727 = vst.msk [vmem:[%s197 + $0xa8] sm:$0xff] %vm705, %v662
      %728 = vst.msk [vmem:[%s197 + $0xb0] sm:$0xff] %vm705, %v667
      %729 = vst.msk [vmem:[%s197 + $0xb8] sm:$0xff] %vm705, %v670
      %730 = vst.msk [vmem:[%s197 + $0xc0] sm:$0xff] %vm705, %v675
      %731 = vst.msk [vmem:[%s197 + $0xc8] sm:$0xff] %vm705, %v678
      %732 = vst.msk [vmem:[%s197 + $0xd0] sm:$0xff] %vm705, %v683
      %733 = vst.msk [vmem:[%s197 + $0xd8] sm:$0xff] %vm705, %v686
      %734 = vst.msk [vmem:[%s197 + $0xe0] sm:$0xff] %vm705, %v691
      %735 = vst.msk [vmem:[%s197 + $0xe8] sm:$0xff] %vm705, %v694
      %736 = vst.msk [vmem:[%s197 + $0xf0] sm:$0xff] %vm705, %v699
      %737 = vst.msk [vmem:[%s197 + $0xf8] sm:$0xff] %vm705, %v702
      %v738 = vld [vmem:[%s3] sm:$0x1]
      %v739 = vsel %vm705, %v579, 0.0
      %v740 = vsel %vm705, %v582, 0.0
      %v741 = vadd.f32 %v739, %v740
      %v742 = vsel %vm705, %v587, 0.0
      %v743 = vadd.f32 %v741, %v742
      %v744 = vsel %vm705, %v590, 0.0
      %v745 = vadd.f32 %v743, %v744
      %v746 = vsel %vm705, %v595, 0.0
      %v747 = vadd.f32 %v745, %v746
      %v748 = vsel %vm705, %v598, 0.0
      %v749 = vadd.f32 %v747, %v748
      %v750 = vsel %vm705, %v603, 0.0
      %v751 = vadd.f32 %v749, %v750
      %v752 = vsel %vm705, %v606, 0.0
      %v753 = vadd.f32 %v751, %v752
      %v754 = vsel %vm705, %v611, 0.0
      %v755 = vadd.f32 %v753, %v754
      %v756 = vsel %vm705, %v614, 0.0
      %v757 = vadd.f32 %v755, %v756
      %v758 = vsel %vm705, %v619, 0.0
      %v759 = vadd.f32 %v757, %v758
      %v760 = vsel %vm705, %v622, 0.0
      %v761 = vadd.f32 %v759, %v760
      %v762 = vsel %vm705, %v627, 0.0
      %v763 = vadd.f32 %v761, %v762
      %v764 = vsel %vm705, %v630, 0.0
      %v765 = vadd.f32 %v763, %v764
      %v766 = vsel %vm705, %v635, 0.0
      %v767 = vadd.f32 %v765, %v766
      %v768 = vsel %vm705, %v638, 0.0
      %v769 = vadd.f32 %v767, %v768
      %v770 = vsel %vm705, %v643, 0.0
      %v771 = vadd.f32 %v769, %v770
      %v772 = vsel %vm705, %v646, 0.0
      %v773 = vadd.f32 %v771, %v772
      %v774 = vsel %vm705, %v651, 0.0
      %v775 = vadd.f32 %v773, %v774
      %v776 = vsel %vm705, %v654, 0.0
      %v777 = vadd.f32 %v775, %v776
      %v778 = vsel %vm705, %v659, 0.0
      %v779 = vadd.f32 %v777, %v778
      %v780 = vsel %vm705, %v662, 0.0
      %v781 = vadd.f32 %v779, %v780
      %v782 = vsel %vm705, %v667, 0.0
      %v783 = vadd.f32 %v781, %v782
      %v784 = vsel %vm705, %v670, 0.0
      %v785 = vadd.f32 %v783, %v784
      %v786 = vsel %vm705, %v675, 0.0
      %v787 = vadd.f32 %v785, %v786
      %v788 = vsel %vm705, %v678, 0.0
      %v789 = vadd.f32 %v787, %v788
      %v790 = vsel %vm705, %v683, 0.0
      %v791 = vadd.f32 %v789, %v790
      %v792 = vsel %vm705, %v686, 0.0
      %v793 = vadd.f32 %v791, %v792
      %v794 = vsel %vm705, %v691, 0.0
      %v795 = vadd.f32 %v793, %v794
      %v796 = vsel %vm705, %v694, 0.0
      %v797 = vadd.f32 %v795, %v796
      %v798 = vsel %vm705, %v699, 0.0
      %v799 = vadd.f32 %v797, %v798
      %v800 = vsel %vm705, %v702, 0.0
      %v801 = vadd.f32 %v799, %v800
      %v802 = vrot.slane %v801, 4
      %v803 = vadd.f32 %v801, %v802
      %v804 = vrot.slane %v803, 2
      %v805 = vadd.f32 %v803, %v804
      %v806 = vrot.slane %v805, 1
      %v807 = vadd.f32 %v805, %v806
      %v808 = vadd.f32 %v738, %v807
      %vm809 = vcmask 57344
      %810 = vst.msk [vmem:[%s3] sm:$0x1] %vm809, %v808
      %v811 = vld [vmem:[%s4] sm:$0x1]
      %v812 = vmul.f32 %v579, %v579
      %v813 = vmul.f32 %v582, %v582
      %v814 = vmul.f32 %v587, %v587
      %v815 = vmul.f32 %v590, %v590
      %v816 = vmul.f32 %v595, %v595
      %v817 = vmul.f32 %v598, %v598
      %v818 = vmul.f32 %v603, %v603
      %v819 = vmul.f32 %v606, %v606
      %v820 = vmul.f32 %v611, %v611
      %v821 = vmul.f32 %v614, %v614
      %v822 = vmul.f32 %v619, %v619
      %v823 = vmul.f32 %v622, %v622
      %v824 = vmul.f32 %v627, %v627
      %v825 = vmul.f32 %v630, %v630
      %v826 = vmul.f32 %v635, %v635
      %v827 = vmul.f32 %v638, %v638
      %v828 = vmul.f32 %v643, %v643
      %v829 = vmul.f32 %v646, %v646
      %v830 = vmul.f32 %v651, %v651
      %v831 = vmul.f32 %v654, %v654
      %v832 = vmul.f32 %v659, %v659
      %v833 = vmul.f32 %v662, %v662
      %v834 = vmul.f32 %v667, %v667
      %v835 = vmul.f32 %v670, %v670
      %v836 = vmul.f32 %v675, %v675
      %v837 = vmul.f32 %v678, %v678
      %v838 = vmul.f32 %v683, %v683
      %v839 = vmul.f32 %v686, %v686
      %v840 = vmul.f32 %v691, %v691
      %v841 = vmul.f32 %v694, %v694
      %v842 = vmul.f32 %v699, %v699
      %v843 = vmul.f32 %v702, %v702
      %v844 = vsel %vm705, %v812, 0.0
      %v845 = vsel %vm705, %v813, 0.0
      %v846 = vadd.f32 %v844, %v845
      %v847 = vsel %vm705, %v814, 0.0
      %v848 = vadd.f32 %v846, %v847
      %v849 = vsel %vm705, %v815, 0.0
      %v850 = vadd.f32 %v848, %v849
      %v851 = vsel %vm705, %v816, 0.0
      %v852 = vadd.f32 %v850, %v851
      %v853 = vsel %vm705, %v817, 0.0
      %v854 = vadd.f32 %v852, %v853
      %v855 = vsel %vm705, %v818, 0.0
      %v856 = vadd.f32 %v854, %v855
      %v857 = vsel %vm705, %v819, 0.0
      %v858 = vadd.f32 %v856, %v857
      %v859 = vsel %vm705, %v820, 0.0
      %v860 = vadd.f32 %v858, %v859
      %v861 = vsel %vm705, %v821, 0.0
      %v862 = vadd.f32 %v860, %v861
      %v863 = vsel %vm705, %v822, 0.0
      %v864 = vadd.f32 %v862, %v863
      %v865 = vsel %vm705, %v823, 0.0
      %v866 = vadd.f32 %v864, %v865
      %v867 = vsel %vm705, %v824, 0.0
      %v868 = vadd.f32 %v866, %v867
      %v869 = vsel %vm705, %v825, 0.0
      %v870 = vadd.f32 %v868, %v869
      %v871 = vsel %vm705, %v826, 0.0
      %v872 = vadd.f32 %v870, %v871
      %v873 = vsel %vm705, %v827, 0.0
      %v874 = vadd.f32 %v872, %v873
      %v875 = vsel %vm705, %v828, 0.0
      %v876 = vadd.f32 %v874, %v875
      %v877 = vsel %vm705, %v829, 0.0
      %v878 = vadd.f32 %v876, %v877
      %v879 = vsel %vm705, %v830, 0.0
      %v880 = vadd.f32 %v878, %v879
      %v881 = vsel %vm705, %v831, 0.0
      %v882 = vadd.f32 %v880, %v881
      %v883 = vsel %vm705, %v832, 0.0
      %v884 = vadd.f32 %v882, %v883
      %v885 = vsel %vm705, %v833, 0.0
      %v886 = vadd.f32 %v884, %v885
      %v887 = vsel %vm705, %v834, 0.0
      %v888 = vadd.f32 %v886, %v887
      %v889 = vsel %vm705, %v835, 0.0
      %v890 = vadd.f32 %v888, %v889
      %v891 = vsel %vm705, %v836, 0.0
      %v892 = vadd.f32 %v890, %v891
      %v893 = vsel %vm705, %v837, 0.0
      %v894 = vadd.f32 %v892, %v893
      %v895 = vsel %vm705, %v838, 0.0
      %v896 = vadd.f32 %v894, %v895
      %v897 = vsel %vm705, %v839, 0.0
      %v898 = vadd.f32 %v896, %v897
      %v899 = vsel %vm705, %v840, 0.0
      %v900 = vadd.f32 %v898, %v899
      %v901 = vsel %vm705, %v841, 0.0
      %v902 = vadd.f32 %v900, %v901
      %v903 = vsel %vm705, %v842, 0.0
      %v904 = vadd.f32 %v902, %v903
      %v905 = vsel %vm705, %v843, 0.0
      %v906 = vadd.f32 %v904, %v905
      %v907 = vrot.slane %v906, 4
      %v908 = vadd.f32 %v906, %v907
      %v909 = vrot.slane %v908, 2
      %v910 = vadd.f32 %v908, %v909
      %v911 = vrot.slane %v910, 1
      %v912 = vadd.f32 %v910, %v911
      %v913 = vadd.f32 %v811, %v912
      %914 = vst.msk [vmem:[%s4] sm:$0x1] %vm809, %v913
      %s915 = smul.u32 32, %s16
      %p916 = scmp.lt.s32.totalorder %s915, 127
      %s917 = scalar_select %p916, %s915, 127
      %s918 = smul.addr %s917, 8
      %s919 = scalar_lea.vmem %s2, %s918
      // Predicated region
      $region33: #{deep_resnet3d_forward.25} parent=27 // pred_check
        %p920 = pneg %p81
      $region34: #{deep_resnet3d_forward.25} parent=27 // pred_check_branch
        %922 = sbr.rel (%p920) target = $region36
      $region35: #{deep_resnet3d_forward.25} parent=27 // pred_region
        %s923 = smul.u32 32, %s16
      $region36: #{deep_resnet3d_forward.25} parent=27 // pred_fallthru
        _
      // Predicated region
      $region37: #{deep_resnet3d_forward.25} parent=27 // pred_check
        %p924 = pneg %p102
      $region38: #{deep_resnet3d_forward.25} parent=27 // pred_check_branch
        %926 = sbr.rel (%p924) target = $region40
      $region39: #{deep_resnet3d_forward.25} parent=27 // pred_region
        _
      $region40: #{deep_resnet3d_forward.25} parent=27 // pred_fallthru
        _
      // Predicated region
      $region41: #{deep_resnet3d_forward.25} parent=27 // pred_check
        %p927 = pneg %p123
      $region42: #{deep_resnet3d_forward.25} parent=27 // pred_check_branch
        %929 = sbr.rel (%p927) target = $region44
      $region43: #{deep_resnet3d_forward.25} parent=27 // pred_region
        _
      $region44: #{deep_resnet3d_forward.25} parent=27 // pred_fallthru
        _
      // Predicated region
      $region45: #{deep_resnet3d_forward.25} parent=27 // pred_check
        %p930 = pneg %p102
      $region46: #{deep_resnet3d_forward.25} parent=27 // pred_check_branch
        %932 = sbr.rel (%p930) target = $region48
      $region47: #{deep_resnet3d_forward.25} parent=27 // pred_region
        _
      $region48: #{deep_resnet3d_forward.25} parent=27 // pred_fallthru
        _
      // Predicated region
      $region49: #{deep_resnet3d_forward.25} parent=27 // pred_check
        %p933 = pneg %p123
      $region50: #{deep_resnet3d_forward.25} parent=27 // pred_check_branch
        %935 = sbr.rel (%p933) target = $region52
      $region51: #{deep_resnet3d_forward.25} parent=27 // pred_region
        _
      $region52: #{deep_resnet3d_forward.25} parent=27 // pred_fallthru
        _
    $region28: #{deep_resnet3d_forward.25} parent=5 // pred_fallthru
      _
    %p936 = scmp.le.s32.totalorder 2, %s11
    // Predicated region
    $region53: #{deep_resnet3d_forward.25} parent=5 // pred_check
      %p937 = pneg %p936
    $region54: #{deep_resnet3d_forward.25} parent=5 // pred_check_branch
      %939 = sbr.rel (%p937) target = $region56
    $region55: #{deep_resnet3d_forward.25} parent=5 // pred_region
      %s940 = ssub.s32 %s11, 2
      // Predicated region
      $region57: #{deep_resnet3d_forward.25} parent=55 // pred_check
        %p941 = pneg %p87
      $region58: #{deep_resnet3d_forward.25} parent=55 // pred_check_branch
        %943 = sbr.rel (%p941) target = $region60
      $region59: #{deep_resnet3d_forward.25} parent=55 // pred_region
        %s944 = smul.u32 32, %s17
        %p945 = scmp.lt.s32.totalorder %s944, 127
        %s946 = scalar_select %p945, %s944, 127
        %s947 = smul.addr %s946, 8
        %s948 = scalar_lea.vmem %s2, %s947
      $region60: #{deep_resnet3d_forward.25} parent=55 // pred_fallthru
        _
    $region56: #{deep_resnet3d_forward.25} parent=5 // pred_fallthru
      _
  $region6: #{deep_resnet3d_forward.25} parent=0 // loop_footer
    %s15 = sadd.s32 1, %s11
  $region7: #{deep_resnet3d_forward.25} parent=0 // loop_footer_branch
    %10 = sbr.rel target = $region3
  $region8: #{deep_resnet3d_forward.25} parent=0 // loop_exit
    _

// kernel: deep_resnet3d_forward.27
$region0: #{deep_resnet3d_forward.27}
  #allocation0 [shape = 'u32[]', space=smem, size = 0x4, offset = 0x4, fixed_abs, tag = 'smem constant byte address 0x4 - core index']
  #allocation1 [shape = 'u32[144,128]{1,0:T(1,128)}', space=vmem, size = 0x12000, scoped, tag = 'internal scratch']
  %s0 = inlined_call_operand.vmem [shape: bf16[128,216], index: 0, kind: input, shape index: {}]
  %s1 = inlined_call_operand.vmem [shape: bf16[216,8], index: 1, kind: input, shape index: {}]
  %s2 = inlined_call_operand.vmem [shape: f32[128,8], index: 2, kind: output, shape index: {0}]
  %s3 = inlined_call_operand.vmem [shape: f32[1,8], index: 3, kind: output, shape index: {1}]
  %s4 = inlined_call_operand.vmem [shape: f32[1,8], index: 4, kind: output, shape index: {2}]
  %5 = xla_tuple %s2, %s3, %s4
  %s6 = sld [smem:[#allocation0]]
  $region38: #{deep_resnet3d_forward.27} parent=0
    _
  %s8 = ssub.s32 1, %s6
  %s9 = scalar_select 0, %s8, %s6
  // Predicated region
  $region2: #{deep_resnet3d_forward.27} parent=0 // pred_check
    _
  $region3: #{deep_resnet3d_forward.27} parent=0 // pred_check_branch
    %11 = sbr.rel (0) target = $region5
  $region4: #{deep_resnet3d_forward.27} parent=0 // pred_region
    _
  $region5: #{deep_resnet3d_forward.27} parent=0 // pred_fallthru
    _
  // Predicated region
  $region6: #{deep_resnet3d_forward.27} parent=0 // pred_check
    _
  $region7: #{deep_resnet3d_forward.27} parent=0 // pred_check_branch
    %13 = sbr.rel (0) target = $region9
  $region8: #{deep_resnet3d_forward.27} parent=0 // pred_region
    _
  $region9: #{deep_resnet3d_forward.27} parent=0 // pred_fallthru
    _
  %p15 = scmp.eq.s32.totalorder 0, 0
  // Predicated region
  $region10: #{deep_resnet3d_forward.27} parent=0 // pred_check
    %p16 = pneg %p15
  $region11: #{deep_resnet3d_forward.27} parent=0 // pred_check_branch
    %18 = sbr.rel (%p16) target = $region13
  $region12: #{deep_resnet3d_forward.27} parent=0 // pred_region
    %vm19 = vcmask 57344
    %20 = vst.msk [vmem:[%s3] sm:$0x1] %vm19, 0.0
    %21 = vst.msk [vmem:[%s4] sm:$0x1] %vm19, 0.0
  $region13: #{deep_resnet3d_forward.27} parent=0 // pred_fallthru
    _
  %v22 = vld [vmem:[%s0] sm:$0xff]
  %v23 = vld [vmem:[%s0 + $0x8] sm:$0xff]
  %v24 = vld [vmem:[%s0 + $0x10] sm:$0xff]
  %v25 = vld [vmem:[%s0 + $0x18] sm:$0xff]
  %v26 = vld [vmem:[%s0 + $0x20] sm:$0xff]
  %v27 = vld [vmem:[%s0 + $0x28] sm:$0xff]
  %v28 = vld [vmem:[%s0 + $0x30] sm:$0xff]
  %v29 = vld [vmem:[%s0 + $0x38] sm:$0xff]
  %v30 = vld [vmem:[%s0 + $0x40] sm:$0xff]
  %v31 = vld [vmem:[%s0 + $0x48] sm:$0xff]
  %v32 = vld [vmem:[%s0 + $0x50] sm:$0xff]
  %v33 = vld [vmem:[%s0 + $0x58] sm:$0xff]
  %v34 = vld [vmem:[%s0 + $0x60] sm:$0xff]
  %v35 = vld [vmem:[%s0 + $0x68] sm:$0xff]
  %v36 = vld [vmem:[%s0 + $0x70] sm:$0xff]
  %v37 = vld [vmem:[%s0 + $0x78] sm:$0xff]
  %v38 = vld [vmem:[%s1] sm:$0xf]
  %v39 = vld [vmem:[%s1 + $0x4] sm:$0xf]
  %v40 = vld [vmem:[%s1 + $0x8] sm:$0xf]
  %v41 = vld [vmem:[%s1 + $0xc] sm:$0xf]
  %v42 = vld [vmem:[%s1 + $0x10] sm:$0xf]
  %v43 = vld [vmem:[%s1 + $0x14] sm:$0xf]
  %v44 = vld [vmem:[%s1 + $0x18] sm:$0xf]
  %v45 = vld [vmem:[%s1 + $0x1c] sm:$0xf]
  %v46 = vld [vmem:[%s1 + $0x20] sm:$0xf]
  %v47 = vld [vmem:[%s1 + $0x24] sm:$0xf]
  %v48 = vld [vmem:[%s1 + $0x28] sm:$0xf]
  %v49 = vld [vmem:[%s1 + $0x2c] sm:$0xf]
  %v50 = vld [vmem:[%s1 + $0x30] sm:$0xf]
  %v51 = vld [vmem:[%s1 + $0x34] sm:$0xf]
  %v52 = vld [vmem:[%s1 + $0x38] sm:$0xf]
  %v53 = vld [vmem:[%s1 + $0x3c] sm:$0xf]
  %v54 = vld [vmem:[%s1 + $0x40] sm:$0xf]
  %v55 = vld [vmem:[%s1 + $0x44] sm:$0xf]
  %v56 = vld [vmem:[%s1 + $0x48] sm:$0xf]
  %v57 = vld [vmem:[%s1 + $0x4c] sm:$0xf]
  %v58 = vld [vmem:[%s1 + $0x50] sm:$0xf]
  %v59 = vld [vmem:[%s1 + $0x54] sm:$0xf]
  %v60 = vld [vmem:[%s1 + $0x58] sm:$0xf]
  %v61 = vld [vmem:[%s1 + $0x5c] sm:$0xf]
  %v62 = vld [vmem:[%s1 + $0x60] sm:$0xf]
  %v63 = vld [vmem:[%s1 + $0x64] sm:$0xf]
  %v64 = vld [vmem:[%s1 + $0x68] sm:$0xf]
  %v81 = vunpack.c.l.b16 %v22
  %v82 = vunpack.c.h.b16 %v22
  %v83 = vunpack.c.l.b16 %v23
  %v84 = vunpack.c.h.b16 %v23
  %v85 = vunpack.c.l.b16 %v24
  %v86 = vunpack.c.h.b16 %v24
  %v87 = vunpack.c.l.b16 %v25
  %v88 = vunpack.c.h.b16 %v25
  %v89 = vunpack.c.l.b16 %v26
  %v90 = vunpack.c.h.b16 %v26
  %v91 = vunpack.c.l.b16 %v27
  %v92 = vunpack.c.h.b16 %v27
  %v93 = vunpack.c.l.b16 %v28
  %v94 = vunpack.c.h.b16 %v28
  %v95 = vunpack.c.l.b16 %v29
  %v96 = vunpack.c.h.b16 %v29
  %v97 = vunpack.c.l.b16 %v30
  %v98 = vunpack.c.h.b16 %v30
  %v99 = vunpack.c.l.b16 %v31
  %v100 = vunpack.c.h.b16 %v31
  %v101 = vunpack.c.l.b16 %v32
  %v102 = vunpack.c.h.b16 %v32
  %v103 = vunpack.c.l.b16 %v33
  %v104 = vunpack.c.h.b16 %v33
  %v105 = vunpack.c.l.b16 %v34
  %v106 = vunpack.c.h.b16 %v34
  %v107 = vunpack.c.l.b16 %v35
  %v108 = vunpack.c.h.b16 %v35
  %v109 = vunpack.c.l.b16 %v36
  %v110 = vunpack.c.h.b16 %v36
  %v111 = vunpack.c.l.b16 %v37
  %v112 = vunpack.c.h.b16 %v37
  %v113 = vpack.c.b16 %v83, %v81
  %v114 = vpack.c.b16 %v84, %v82
  %v115 = vpack.c.b16 %v87, %v85
  %v116 = vpack.c.b16 %v88, %v86
  %v117 = vpack.c.b16 %v91, %v89
  %v118 = vpack.c.b16 %v92, %v90
  %v119 = vpack.c.b16 %v95, %v93
  %v120 = vpack.c.b16 %v96, %v94
  %v121 = vpack.c.b16 %v99, %v97
  %v122 = vpack.c.b16 %v100, %v98
  %v123 = vpack.c.b16 %v103, %v101
  %v124 = vpack.c.b16 %v104, %v102
  %v125 = vpack.c.b16 %v107, %v105
  %v126 = vpack.c.b16 %v108, %v106
  %v127 = vpack.c.b16 %v111, %v109
  %v128 = vpack.c.b16 %v112, %v110
  %v164 = vunpack.c.l.b16 %v38
  %v165 = vunpack.c.l.b16 %v39
  %v166 = vunpack.c.l.b16 %v40
  %v167 = vunpack.c.l.b16 %v41
  %v168 = vunpack.c.l.b16 %v42
  %v169 = vunpack.c.l.b16 %v43
  %v170 = vunpack.c.l.b16 %v44
  %v171 = vunpack.c.l.b16 %v45
  %v172 = vunpack.c.l.b16 %v46
  %v173 = vunpack.c.l.b16 %v47
  %v174 = vunpack.c.l.b16 %v48
  %v175 = vunpack.c.l.b16 %v49
  %v176 = vunpack.c.l.b16 %v50
  %v177 = vunpack.c.l.b16 %v51
  %v178 = vunpack.c.l.b16 %v52
  %v179 = vunpack.c.l.b16 %v53
  %v180 = vunpack.c.l.b16 %v54
  %v181 = vunpack.c.l.b16 %v55
  %v182 = vunpack.c.l.b16 %v56
  %v183 = vunpack.c.l.b16 %v57
  %v184 = vunpack.c.l.b16 %v58
  %v185 = vunpack.c.l.b16 %v59
  %v186 = vunpack.c.l.b16 %v60
  %v187 = vunpack.c.l.b16 %v61
  %v188 = vunpack.c.l.b16 %v62
  %v189 = vunpack.c.l.b16 %v63
  %v190 = vunpack.c.l.b16 %v64
  %v191 = vpack.c.b16 %v165, %v164
  %v192 = vpack.c.b16 %v167, %v166
  %v193 = vpack.c.b16 %v169, %v168
  %v194 = vpack.c.b16 %v171, %v170
  %v195 = vpack.c.b16 %v173, %v172
  %v196 = vpack.c.b16 %v175, %v174
  %v197 = vpack.c.b16 %v177, %v176
  %v198 = vpack.c.b16 %v179, %v178
  %v199 = vpack.c.b16 %v181, %v180
  %v200 = vpack.c.b16 %v183, %v182
  %v201 = vpack.c.b16 %v185, %v184
  %v202 = vpack.c.b16 %v187, %v186
  %v203 = vpack.c.b16 %v189, %v188
  %v204 = vpack.c.b16 %v190, %v190
  %vm218 = vcmask 719872
  %v220 = vsel %vm218, %v114, 0
  %v223 = vsel %vm218, %v116, 0
  %v226 = vsel %vm218, %v118, 0
  %v229 = vsel %vm218, %v120, 0
  %v232 = vsel %vm218, %v122, 0
  %v235 = vsel %vm218, %v124, 0
  %v238 = vsel %vm218, %v126, 0
  %v241 = vsel %vm218, %v128, 0
  %vm243 = vcmask 1043456
  %v245 = vsel %vm243, %v204, 0
  %247 = vmatprep.subr.bf16.mxu0 0
  %248 = vmatpush1.bf16.msra.mxu0 %v191
  %249 = vmatprep.subr.bf16.mxu0 0
  %250 = vmatpush1.bf16.msra.mxu0 %v192
  %251 = vmatprep.subr.bf16.mxu0 0
  %252 = vmatpush1.bf16.msra.mxu0 %v193
  %253 = vmatprep.subr.bf16.mxu0 0
  %254 = vmatpush1.bf16.msra.mxu0 %v194
  %255 = vmatprep.subr.bf16.mxu0 0
  %256 = vmatpush1.bf16.msra.mxu0 %v195
  %257 = vmatprep.subr.bf16.mxu0 0
  %258 = vmatpush1.bf16.msra.mxu0 %v196
  %259 = vmatprep.subr.bf16.mxu0 0
  %260 = vmatpush1.bf16.msra.mxu0 %v197
  %261 = vmatprep.subr.bf16.mxu0 0
  %262 = vmatpush1.bf16.msra.mxu0 %v198
  %263 = vmatprep.subr.bf16.mxu0 0
  %264 = vmatpush1.bf16.msra.mxu0 %v199
  %265 = vmatprep.subr.bf16.mxu0 0
  %266 = vmatpush1.bf16.msra.mxu0 %v200
  %267 = vmatprep.subr.bf16.mxu0 0
  %268 = vmatpush1.bf16.msra.mxu0 %v201
  %269 = vmatprep.subr.bf16.mxu0 0
  %270 = vmatpush1.bf16.msra.mxu0 %v202
  %271 = vmatprep.subr.bf16.mxu0 0
  %272 = vmatpush1.bf16.msra.mxu0 %v203
  %273 = vmatprep.subr.bf16.mxu0 0
  %274 = vmatpush1.bf16.msra.mxu0 %v245
  %275 = vmatprep.subr.bf16.mxu0 0
  %276 = vmatpush1.bf16.msra.mxu0 0
  %277 = vmatprep.subr.bf16.mxu0 0
  %278 = vmatpush1.bf16.msra.mxu0 0
  %279 = vmatprep.mubr.bf16.mxu0 %v220
  %280 = vmatmul.mubr.bf16.gmra.mrb[0].mxu0 %v113
  %v281 = vpop.f32.mrb[0].mxu0
  %v282 = vadd.f32 0.0, %v281
  %v283 = vpop.f32.mrb[0].mxu0
  %v284 = vpop.f32.mrb[0].mxu0
  %v285 = vadd.f32 0.0, %v284
  %v286 = vpop.f32.mrb[0].mxu0
  %287 = vmatprep.mubr.bf16.mxu0 %v223
  %288 = vmatmul.mubr.bf16.gmra.mrb[0].mxu0 %v115
  %v289 = vpop.f32.mrb[0].mxu0
  %v290 = vadd.f32 0.0, %v289
  %v291 = vpop.f32.mrb[0].mxu0
  %v292 = vpop.f32.mrb[0].mxu0
  %v293 = vadd.f32 0.0, %v292
  %v294 = vpop.f32.mrb[0].mxu0
  %295 = vmatprep.mubr.bf16.mxu0 %v226
  %296 = vmatmul.mubr.bf16.gmra.mrb[0].mxu0 %v117
  %v297 = vpop.f32.mrb[0].mxu0
  %v298 = vadd.f32 0.0, %v297
  %v299 = vpop.f32.mrb[0].mxu0
  %v300 = vpop.f32.mrb[0].mxu0
  %v301 = vadd.f32 0.0, %v300
  %v302 = vpop.f32.mrb[0].mxu0
  %303 = vmatprep.mubr.bf16.mxu0 %v229
  %304 = vmatmul.mubr.bf16.gmra.mrb[0].mxu0 %v119
  %v305 = vpop.f32.mrb[0].mxu0
  %v306 = vadd.f32 0.0, %v305
  %v307 = vpop.f32.mrb[0].mxu0
  %v308 = vpop.f32.mrb[0].mxu0
  %v309 = vadd.f32 0.0, %v308
  %v310 = vpop.f32.mrb[0].mxu0
  %311 = vmatprep.mubr.bf16.mxu0 %v232
  %312 = vmatmul.mubr.bf16.gmra.mrb[0].mxu0 %v121
  %v313 = vpop.f32.mrb[0].mxu0
  %v314 = vadd.f32 0.0, %v313
  %v315 = vpop.f32.mrb[0].mxu0
  %v316 = vpop.f32.mrb[0].mxu0
  %v317 = vadd.f32 0.0, %v316
  %v318 = vpop.f32.mrb[0].mxu0
  %319 = vmatprep.mubr.bf16.mxu0 %v235
  %320 = vmatmul.mubr.bf16.gmra.mrb[0].mxu0 %v123
  %v321 = vpop.f32.mrb[0].mxu0
  %v322 = vadd.f32 0.0, %v321
  %v323 = vpop.f32.mrb[0].mxu0
  %v324 = vpop.f32.mrb[0].mxu0
  %v325 = vadd.f32 0.0, %v324
  %v326 = vpop.f32.mrb[0].mxu0
  %327 = vmatprep.mubr.bf16.mxu0 %v238
  %328 = vmatmul.mubr.bf16.gmra.mrb[0].mxu0 %v125
  %v329 = vpop.f32.mrb[0].mxu0
  %v330 = vadd.f32 0.0, %v329
  %v331 = vpop.f32.mrb[0].mxu0
  %v332 = vpop.f32.mrb[0].mxu0
  %v333 = vadd.f32 0.0, %v332
  %v334 = vpop.f32.mrb[0].mxu0
  %335 = vmatprep.mubr.bf16.mxu0 %v241
  %336 = vmatmul.mubr.bf16.gmra.mrb[0].mxu0 %v127
  %v337 = vpop.f32.mrb[0].mxu0
  %v338 = vadd.f32 0.0, %v337
  %v339 = vpop.f32.mrb[0].mxu0
  %v340 = vpop.f32.mrb[0].mxu0
  %v341 = vadd.f32 0.0, %v340
  %v342 = vpop.f32.mrb[0].mxu0
  %343 = vdwg.mxu0
  %vm344 = vcmask 64512
  %345 = vst.msk [vmem:[%s2] sm:$0xff] %vm344, %v282
  %346 = vst.msk [vmem:[%s2 + $0x8] sm:$0xff] %vm344, %v285
  %347 = vst.msk [vmem:[%s2 + $0x10] sm:$0xff] %vm344, %v290
  %348 = vst.msk [vmem:[%s2 + $0x18] sm:$0xff] %vm344, %v293
  %349 = vst.msk [vmem:[%s2 + $0x20] sm:$0xff] %vm344, %v298
  %350 = vst.msk [vmem:[%s2 + $0x28] sm:$0xff] %vm344, %v301
  %351 = vst.msk [vmem:[%s2 + $0x30] sm:$0xff] %vm344, %v306
  %352 = vst.msk [vmem:[%s2 + $0x38] sm:$0xff] %vm344, %v309
  %353 = vst.msk [vmem:[%s2 + $0x40] sm:$0xff] %vm344, %v314
  %354 = vst.msk [vmem:[%s2 + $0x48] sm:$0xff] %vm344, %v317
  %355 = vst.msk [vmem:[%s2 + $0x50] sm:$0xff] %vm344, %v322
  %356 = vst.msk [vmem:[%s2 + $0x58] sm:$0xff] %vm344, %v325
  %357 = vst.msk [vmem:[%s2 + $0x60] sm:$0xff] %vm344, %v330
  %358 = vst.msk [vmem:[%s2 + $0x68] sm:$0xff] %vm344, %v333
  %359 = vst.msk [vmem:[%s2 + $0x70] sm:$0xff] %vm344, %v338
  %360 = vst.msk [vmem:[%s2 + $0x78] sm:$0xff] %vm344, %v341
  %v361 = vld [vmem:[%s3] sm:$0x1]
  %v362 = vsel %vm344, %v282, 0.0
  %v363 = vsel %vm344, %v285, 0.0
  %v364 = vadd.f32 %v362, %v363
  %v365 = vsel %vm344, %v290, 0.0
  %v366 = vadd.f32 %v364, %v365
  %v367 = vsel %vm344, %v293, 0.0
  %v368 = vadd.f32 %v366, %v367
  %v369 = vsel %vm344, %v298, 0.0
  %v370 = vadd.f32 %v368, %v369
  %v371 = vsel %vm344, %v301, 0.0
  %v372 = vadd.f32 %v370, %v371
  %v373 = vsel %vm344, %v306, 0.0
  %v374 = vadd.f32 %v372, %v373
  %v375 = vsel %vm344, %v309, 0.0
  %v376 = vadd.f32 %v374, %v375
  %v377 = vsel %vm344, %v314, 0.0
  %v378 = vadd.f32 %v376, %v377
  %v379 = vsel %vm344, %v317, 0.0
  %v380 = vadd.f32 %v378, %v379
  %v381 = vsel %vm344, %v322, 0.0
  %v382 = vadd.f32 %v380, %v381
  %v383 = vsel %vm344, %v325, 0.0
  %v384 = vadd.f32 %v382, %v383
  %v385 = vsel %vm344, %v330, 0.0
  %v386 = vadd.f32 %v384, %v385
  %v387 = vsel %vm344, %v333, 0.0
  %v388 = vadd.f32 %v386, %v387
  %v389 = vsel %vm344, %v338, 0.0
  %v390 = vadd.f32 %v388, %v389
  %v391 = vsel %vm344, %v341, 0.0
  %v392 = vadd.f32 %v390, %v391
  %v393 = vrot.slane %v392, 4
  %v394 = vadd.f32 %v392, %v393
  %v395 = vrot.slane %v394, 2
  %v396 = vadd.f32 %v394, %v395
  %v397 = vrot.slane %v396, 1
  %v398 = vadd.f32 %v396, %v397
  %v399 = vadd.f32 %v361, %v398
  %vm400 = vcmask 57344
  %401 = vst.msk [vmem:[%s3] sm:$0x1] %vm400, %v399
  %v402 = vld [vmem:[%s4] sm:$0x1]
  %v403 = vmul.f32 %v282, %v282
  %v404 = vmul.f32 %v285, %v285
  %v405 = vmul.f32 %v290, %v290
  %v406 = vmul.f32 %v293, %v293
  %v407 = vmul.f32 %v298, %v298
  %v408 = vmul.f32 %v301, %v301
  %v409 = vmul.f32 %v306, %v306
  %v410 = vmul.f32 %v309, %v309
  %v411 = vmul.f32 %v314, %v314
  %v412 = vmul.f32 %v317, %v317
  %v413 = vmul.f32 %v322, %v322
  %v414 = vmul.f32 %v325, %v325
  %v415 = vmul.f32 %v330, %v330
  %v416 = vmul.f32 %v333, %v333
  %v417 = vmul.f32 %v338, %v338
  %v418 = vmul.f32 %v341, %v341
  %v419 = vsel %vm344, %v403, 0.0
  %v420 = vsel %vm344, %v404, 0.0
  %v421 = vadd.f32 %v419, %v420
  %v422 = vsel %vm344, %v405, 0.0
  %v423 = vadd.f32 %v421, %v422
  %v424 = vsel %vm344, %v406, 0.0
  %v425 = vadd.f32 %v423, %v424
  %v426 = vsel %vm344, %v407, 0.0
  %v427 = vadd.f32 %v425, %v426
  %v428 = vsel %vm344, %v408, 0.0
  %v429 = vadd.f32 %v427, %v428
  %v430 = vsel %vm344, %v409, 0.0
  %v431 = vadd.f32 %v429, %v430
  %v432 = vsel %vm344, %v410, 0.0
  %v433 = vadd.f32 %v431, %v432
  %v434 = vsel %vm344, %v411, 0.0
  %v435 = vadd.f32 %v433, %v434
  %v436 = vsel %vm344, %v412, 0.0
  %v437 = vadd.f32 %v435, %v436
  %v438 = vsel %vm344, %v413, 0.0
  %v439 = vadd.f32 %v437, %v438
  %v440 = vsel %vm344, %v414, 0.0
  %v441 = vadd.f32 %v439, %v440
  %v442 = vsel %vm344, %v415, 0.0
  %v443 = vadd.f32 %v441, %v442
  %v444 = vsel %vm344, %v416, 0.0
  %v445 = vadd.f32 %v443, %v444
  %v446 = vsel %vm344, %v417, 0.0
  %v447 = vadd.f32 %v445, %v446
  %v448 = vsel %vm344, %v418, 0.0
  %v449 = vadd.f32 %v447, %v448
  %v450 = vrot.slane %v449, 4
  %v451 = vadd.f32 %v449, %v450
  %v452 = vrot.slane %v451, 2
  %v453 = vadd.f32 %v451, %v452
  %v454 = vrot.slane %v453, 1
  %v455 = vadd.f32 %v453, %v454
  %v456 = vadd.f32 %v402, %v455
  %457 = vst.msk [vmem:[%s4] sm:$0x1] %vm400, %v456
  // Predicated region
  $region14: #{deep_resnet3d_forward.27} parent=0 // pred_check
    _
  $region15: #{deep_resnet3d_forward.27} parent=0 // pred_check_branch
    %459 = sbr.rel (0) target = $region17
  $region16: #{deep_resnet3d_forward.27} parent=0 // pred_region
    _
  $region17: #{deep_resnet3d_forward.27} parent=0 // pred_fallthru
    _
  // Predicated region
  $region18: #{deep_resnet3d_forward.27} parent=0 // pred_check
    _
  $region19: #{deep_resnet3d_forward.27} parent=0 // pred_check_branch
    %461 = sbr.rel (0) target = $region21
  $region20: #{deep_resnet3d_forward.27} parent=0 // pred_region
    _
  $region21: #{deep_resnet3d_forward.27} parent=0 // pred_fallthru
    _
  // Predicated region
  $region22: #{deep_resnet3d_forward.27} parent=0 // pred_check
    _
  $region23: #{deep_resnet3d_forward.27} parent=0 // pred_check_branch
    %463 = sbr.rel (0) target = $region25
  $region24: #{deep_resnet3d_forward.27} parent=0 // pred_region
    _
  $region25: #{deep_resnet3d_forward.27} parent=0 // pred_fallthru
    _
  // Predicated region
  $region26: #{deep_resnet3d_forward.27} parent=0 // pred_check
    _
  $region27: #{deep_resnet3d_forward.27} parent=0 // pred_check_branch
    %465 = sbr.rel (0) target = $region29
  $region28: #{deep_resnet3d_forward.27} parent=0 // pred_region
    _
  $region29: #{deep_resnet3d_forward.27} parent=0 // pred_fallthru
    _
  // Predicated region
  $region30: #{deep_resnet3d_forward.27} parent=0 // pred_check
    _
  $region31: #{deep_resnet3d_forward.27} parent=0 // pred_check_branch
    %467 = sbr.rel (0) target = $region33
  $region32: #{deep_resnet3d_forward.27} parent=0 // pred_region
    _
  $region33: #{deep_resnet3d_forward.27} parent=0 // pred_fallthru
    _
  // Predicated region
  $region34: #{deep_resnet3d_forward.27} parent=0 // pred_check
    _
  $region35: #{deep_resnet3d_forward.27} parent=0 // pred_check_branch
    %469 = sbr.rel (0) target = $region37
  $region36: #{deep_resnet3d_forward.27} parent=0 // pred_region
    _
  $region37: #{deep_resnet3d_forward.27} parent=0 // pred_fallthru
    _

// kernel: deep_resnet3d_forward.28
$region0: #{deep_resnet3d_forward.28}
  #allocation0 [shape = 'u32[]', space=smem, size = 0x4, offset = 0x4, fixed_abs, tag = 'smem constant byte address 0x4 - core index']
  #allocation1 [shape = 'u32[144,128]{1,0:T(1,128)}', space=vmem, size = 0x12000, scoped, tag = 'internal scratch']
  %s0 = inlined_call_operand.vmem [shape: f32[8,128], index: 0, kind: input, shape index: {}]
  %s1 = inlined_call_operand.vmem [shape: f32[1,128], index: 1, kind: input, shape index: {}]
  %s2 = inlined_call_operand.vmem [shape: f32[1,128], index: 2, kind: input, shape index: {}]
  %s3 = inlined_call_operand.vmem [shape: f32[8,128], index: 3, kind: output, shape index: {}]
  %s4 = sld [smem:[#allocation0]]
  $region22: #{deep_resnet3d_forward.28} parent=0
    _
  %s6 = ssub.s32 1, %s4
  %s7 = scalar_select 0, %s6, %s4
  // Predicated region
  $region2: #{deep_resnet3d_forward.28} parent=0 // pred_check
    _
  $region3: #{deep_resnet3d_forward.28} parent=0 // pred_check_branch
    %9 = sbr.rel (0) target = $region5
  $region4: #{deep_resnet3d_forward.28} parent=0 // pred_region
    _
  $region5: #{deep_resnet3d_forward.28} parent=0 // pred_fallthru
    _
  // Predicated region
  $region6: #{deep_resnet3d_forward.28} parent=0 // pred_check
    _
  $region7: #{deep_resnet3d_forward.28} parent=0 // pred_check_branch
    %11 = sbr.rel (0) target = $region9
  $region8: #{deep_resnet3d_forward.28} parent=0 // pred_region
    _
  $region9: #{deep_resnet3d_forward.28} parent=0 // pred_fallthru
    _
  // Predicated region
  $region10: #{deep_resnet3d_forward.28} parent=0 // pred_check
    _
  $region11: #{deep_resnet3d_forward.28} parent=0 // pred_check_branch
    %13 = sbr.rel (0) target = $region13
  $region12: #{deep_resnet3d_forward.28} parent=0 // pred_region
    _
  $region13: #{deep_resnet3d_forward.28} parent=0 // pred_fallthru
    _
  %v14 = vld [vmem:[%s0] sm:$0xff]
  %v15 = vld [vmem:[%s1] sm:$0x1]
  %v17 = vlaneseq
  %v18 = vshrl.u32 %v17, 7
  %v19 = vsub.s32 0, %v18
  %v20 = vrot.slane %v15, %v19
  %v22 = vmul.f32 %v14, %v20
  %v23 = vld [vmem:[%s2] sm:$0x1]
  %v25 = vlaneseq
  %v26 = vshrl.u32 %v25, 7
  %v27 = vsub.s32 0, %v26
  %v28 = vrot.slane %v23, %v27
  %v30 = vadd.f32 %v22, %v28
  %v31 = vmax.f32 %v30, 0.0
  %32 = vst [vmem:[%s3] sm:$0xff] %v31
  // Predicated region
  $region14: #{deep_resnet3d_forward.28} parent=0 // pred_check
    _
  $region15: #{deep_resnet3d_forward.28} parent=0 // pred_check_branch
    %34 = sbr.rel (0) target = $region17
  $region16: #{deep_resnet3d_forward.28} parent=0 // pred_region
    _
  $region17: #{deep_resnet3d_forward.28} parent=0 // pred_fallthru
    _
  // Predicated region
  $region18: #{deep_resnet3d_forward.28} parent=0 // pred_check
    _
  $region19: #{deep_resnet3d_forward.28} parent=0 // pred_check_branch
    %36 = sbr.rel (0) target = $region21
  $region20: #{deep_resnet3d_forward.28} parent=0 // pred_region
    _
  $region21: #{deep_resnet3d_forward.28} parent=0 // pred_fallthru
    _

// kernel: deep_resnet3d_forward.30
$region0: #{deep_resnet3d_forward.30}
  #allocation0 [shape = 'u32[]', space=smem, size = 0x4, offset = 0x4, fixed_abs, tag = 'smem constant byte address 0x4 - core index']
  #allocation1 [shape = 'u32[144,128]{1,0:T(1,128)}', space=vmem, size = 0x12000, scoped, tag = 'internal scratch']
  %s0 = inlined_call_operand.vmem [shape: f32[8,128], index: 0, kind: input, shape index: {}]
  %s1 = inlined_call_operand.vmem [shape: f32[1,128], index: 1, kind: input, shape index: {}]
  %s2 = inlined_call_operand.vmem [shape: f32[1,128], index: 2, kind: input, shape index: {}]
  %s3 = inlined_call_operand.vmem [shape: f32[8,128], index: 3, kind: input, shape index: {}]
  %s4 = inlined_call_operand.vmem [shape: f32[8,128], index: 4, kind: output, shape index: {}]
  %s5 = sld [smem:[#allocation0]]
  $region26: #{deep_resnet3d_forward.30} parent=0
    _
  %s7 = ssub.s32 1, %s5
  %s8 = scalar_select 0, %s7, %s5
  // Predicated region
  $region2: #{deep_resnet3d_forward.30} parent=0 // pred_check
    _
  $region3: #{deep_resnet3d_forward.30} parent=0 // pred_check_branch
    %10 = sbr.rel (0) target = $region5
  $region4: #{deep_resnet3d_forward.30} parent=0 // pred_region
    _
  $region5: #{deep_resnet3d_forward.30} parent=0 // pred_fallthru
    _
  // Predicated region
  $region6: #{deep_resnet3d_forward.30} parent=0 // pred_check
    _
  $region7: #{deep_resnet3d_forward.30} parent=0 // pred_check_branch
    %12 = sbr.rel (0) target = $region9
  $region8: #{deep_resnet3d_forward.30} parent=0 // pred_region
    _
  $region9: #{deep_resnet3d_forward.30} parent=0 // pred_fallthru
    _
  // Predicated region
  $region10: #{deep_resnet3d_forward.30} parent=0 // pred_check
    _
  $region11: #{deep_resnet3d_forward.30} parent=0 // pred_check_branch
    %14 = sbr.rel (0) target = $region13
  $region12: #{deep_resnet3d_forward.30} parent=0 // pred_region
    _
  $region13: #{deep_resnet3d_forward.30} parent=0 // pred_fallthru
    _
  // Predicated region
  $region14: #{deep_resnet3d_forward.30} parent=0 // pred_check
    _
  $region15: #{deep_resnet3d_forward.30} parent=0 // pred_check_branch
    %16 = sbr.rel (0) target = $region17
  $region16: #{deep_resnet3d_forward.30} parent=0 // pred_region
    _
  $region17: #{deep_resnet3d_forward.30} parent=0 // pred_fallthru
    _
  %v17 = vld [vmem:[%s0] sm:$0xff]
  %v18 = vld [vmem:[%s1] sm:$0x1]
  %v20 = vlaneseq
  %v21 = vshrl.u32 %v20, 7
  %v22 = vsub.s32 0, %v21
  %v23 = vrot.slane %v18, %v22
  %v25 = vmul.f32 %v17, %v23
  %v26 = vld [vmem:[%s2] sm:$0x1]
  %v28 = vlaneseq
  %v29 = vshrl.u32 %v28, 7
  %v30 = vsub.s32 0, %v29
  %v31 = vrot.slane %v26, %v30
  %v33 = vadd.f32 %v25, %v31
  %v34 = vld [vmem:[%s3] sm:$0xff]
  %v35 = vadd.f32 %v33, %v34
  %v36 = vmax.f32 %v35, 0.0
  %37 = vst [vmem:[%s4] sm:$0xff] %v36
  // Predicated region
  $region18: #{deep_resnet3d_forward.30} parent=0 // pred_check
    _
  $region19: #{deep_resnet3d_forward.30} parent=0 // pred_check_branch
    %39 = sbr.rel (0) target = $region21
  $region20: #{deep_resnet3d_forward.30} parent=0 // pred_region
    _
  $region21: #{deep_resnet3d_forward.30} parent=0 // pred_fallthru
    _
  // Predicated region
  $region22: #{deep_resnet3d_forward.30} parent=0 // pred_check
    _
  $region23: #{deep_resnet3d_forward.30} parent=0 // pred_check_branch
    %41 = sbr.rel (0) target = $region25
  $region24: #{deep_resnet3d_forward.30} parent=0 // pred_region
    _
  $region25: #{deep_resnet3d_forward.30} parent=0 // pred_fallthru
    _

// kernel: deep_resnet3d_forward.36
$region0: #{deep_resnet3d_forward.36}
  #allocation0 [shape = 'u32[]', space=smem, size = 0x4, offset = 0x4, fixed_abs, tag = 'smem constant byte address 0x4 - core index']
  #allocation1 [shape = 'u32[144,128]{1,0:T(1,128)}', space=vmem, size = 0x12000, scoped, tag = 'internal scratch']
  %s0 = inlined_call_operand.vmem [shape: bf16[128,216], index: 0, kind: input, shape index: {}]
  %s1 = inlined_call_operand.vmem [shape: bf16[216,16], index: 1, kind: input, shape index: {}]
  %s2 = inlined_call_operand.vmem [shape: f32[128,16], index: 2, kind: output, shape index: {0}]
  %s3 = inlined_call_operand.vmem [shape: f32[1,16], index: 3, kind: output, shape index: {1}]
  %s4 = inlined_call_operand.vmem [shape: f32[1,16], index: 4, kind: output, shape index: {2}]
  %5 = xla_tuple %s2, %s3, %s4
  %s6 = sld [smem:[#allocation0]]
  $region38: #{deep_resnet3d_forward.36} parent=0
    _
  %s8 = ssub.s32 1, %s6
  %s9 = scalar_select 0, %s8, %s6
  // Predicated region
  $region2: #{deep_resnet3d_forward.36} parent=0 // pred_check
    _
  $region3: #{deep_resnet3d_forward.36} parent=0 // pred_check_branch
    %11 = sbr.rel (0) target = $region5
  $region4: #{deep_resnet3d_forward.36} parent=0 // pred_region
    _
  $region5: #{deep_resnet3d_forward.36} parent=0 // pred_fallthru
    _
  // Predicated region
  $region6: #{deep_resnet3d_forward.36} parent=0 // pred_check
    _
  $region7: #{deep_resnet3d_forward.36} parent=0 // pred_check_branch
    %13 = sbr.rel (0) target = $region9
  $region8: #{deep_resnet3d_forward.36} parent=0 // pred_region
    _
  $region9: #{deep_resnet3d_forward.36} parent=0 // pred_fallthru
    _
  %p15 = scmp.eq.s32.totalorder 0, 0
  // Predicated region
  $region10: #{deep_resnet3d_forward.36} parent=0 // pred_check
    %p16 = pneg %p15
  $region11: #{deep_resnet3d_forward.36} parent=0 // pred_check_branch
    %18 = sbr.rel (%p16) target = $region13
  $region12: #{deep_resnet3d_forward.36} parent=0 // pred_region
    %vm19 = vcmask 122880
    %20 = vst.msk [vmem:[%s3] sm:$0x1] %vm19, 0.0
    %21 = vst.msk [vmem:[%s4] sm:$0x1] %vm19, 0.0
  $region13: #{deep_resnet3d_forward.36} parent=0 // pred_fallthru
    _
  %v22 = vld [vmem:[%s0] sm:$0xff]
  %v23 = vld [vmem:[%s0 + $0x8] sm:$0xff]
  %v24 = vld [vmem:[%s0 + $0x10] sm:$0xff]
  %v25 = vld [vmem:[%s0 + $0x18] sm:$0xff]
  %v26 = vld [vmem:[%s0 + $0x20] sm:$0xff]
  %v27 = vld [vmem:[%s0 + $0x28] sm:$0xff]
  %v28 = vld [vmem:[%s0 + $0x30] sm:$0xff]
  %v29 = vld [vmem:[%s0 + $0x38] sm:$0xff]
  %v30 = vld [vmem:[%s0 + $0x40] sm:$0xff]
  %v31 = vld [vmem:[%s0 + $0x48] sm:$0xff]
  %v32 = vld [vmem:[%s0 + $0x50] sm:$0xff]
  %v33 = vld [vmem:[%s0 + $0x58] sm:$0xff]
  %v34 = vld [vmem:[%s0 + $0x60] sm:$0xff]
  %v35 = vld [vmem:[%s0 + $0x68] sm:$0xff]
  %v36 = vld [vmem:[%s0 + $0x70] sm:$0xff]
  %v37 = vld [vmem:[%s0 + $0x78] sm:$0xff]
  %v38 = vld [vmem:[%s1] sm:$0xf]
  %v39 = vld [vmem:[%s1 + $0x4] sm:$0xf]
  %v40 = vld [vmem:[%s1 + $0x8] sm:$0xf]
  %v41 = vld [vmem:[%s1 + $0xc] sm:$0xf]
  %v42 = vld [vmem:[%s1 + $0x10] sm:$0xf]
  %v43 = vld [vmem:[%s1 + $0x14] sm:$0xf]
  %v44 = vld [vmem:[%s1 + $0x18] sm:$0xf]
  %v45 = vld [vmem:[%s1 + $0x1c] sm:$0xf]
  %v46 = vld [vmem:[%s1 + $0x20] sm:$0xf]
  %v47 = vld [vmem:[%s1 + $0x24] sm:$0xf]
  %v48 = vld [vmem:[%s1 + $0x28] sm:$0xf]
  %v49 = vld [vmem:[%s1 + $0x2c] sm:$0xf]
  %v50 = vld [vmem:[%s1 + $0x30] sm:$0xf]
  %v51 = vld [vmem:[%s1 + $0x34] sm:$0xf]
  %v52 = vld [vmem:[%s1 + $0x38] sm:$0xf]
  %v53 = vld [vmem:[%s1 + $0x3c] sm:$0xf]
  %v54 = vld [vmem:[%s1 + $0x40] sm:$0xf]
  %v55 = vld [vmem:[%s1 + $0x44] sm:$0xf]
  %v56 = vld [vmem:[%s1 + $0x48] sm:$0xf]
  %v57 = vld [vmem:[%s1 + $0x4c] sm:$0xf]
  %v58 = vld [vmem:[%s1 + $0x50] sm:$0xf]
  %v59 = vld [vmem:[%s1 + $0x54] sm:$0xf]
  %v60 = vld [vmem:[%s1 + $0x58] sm:$0xf]
  %v61 = vld [vmem:[%s1 + $0x5c] sm:$0xf]
  %v62 = vld [vmem:[%s1 + $0x60] sm:$0xf]
  %v63 = vld [vmem:[%s1 + $0x64] sm:$0xf]
  %v64 = vld [vmem:[%s1 + $0x68] sm:$0xf]
  %v81 = vunpack.c.l.b16 %v22
  %v82 = vunpack.c.h.b16 %v22
  %v83 = vunpack.c.l.b16 %v23
  %v84 = vunpack.c.h.b16 %v23
  %v85 = vunpack.c.l.b16 %v24
  %v86 = vunpack.c.h.b16 %v24
  %v87 = vunpack.c.l.b16 %v25
  %v88 = vunpack.c.h.b16 %v25
  %v89 = vunpack.c.l.b16 %v26
  %v90 = vunpack.c.h.b16 %v26
  %v91 = vunpack.c.l.b16 %v27
  %v92 = vunpack.c.h.b16 %v27
  %v93 = vunpack.c.l.b16 %v28
  %v94 = vunpack.c.h.b16 %v28
  %v95 = vunpack.c.l.b16 %v29
  %v96 = vunpack.c.h.b16 %v29
  %v97 = vunpack.c.l.b16 %v30
  %v98 = vunpack.c.h.b16 %v30
  %v99 = vunpack.c.l.b16 %v31
  %v100 = vunpack.c.h.b16 %v31
  %v101 = vunpack.c.l.b16 %v32
  %v102 = vunpack.c.h.b16 %v32
  %v103 = vunpack.c.l.b16 %v33
  %v104 = vunpack.c.h.b16 %v33
  %v105 = vunpack.c.l.b16 %v34
  %v106 = vunpack.c.h.b16 %v34
  %v107 = vunpack.c.l.b16 %v35
  %v108 = vunpack.c.h.b16 %v35
  %v109 = vunpack.c.l.b16 %v36
  %v110 = vunpack.c.h.b16 %v36
  %v111 = vunpack.c.l.b16 %v37
  %v112 = vunpack.c.h.b16 %v37
  %v113 = vpack.c.b16 %v83, %v81
  %v114 = vpack.c.b16 %v84, %v82
  %v115 = vpack.c.b16 %v87, %v85
  %v116 = vpack.c.b16 %v88, %v86
  %v117 = vpack.c.b16 %v91, %v89
  %v118 = vpack.c.b16 %v92, %v90
  %v119 = vpack.c.b16 %v95, %v93
  %v120 = vpack.c.b16 %v96, %v94
  %v121 = vpack.c.b16 %v99, %v97
  %v122 = vpack.c.b16 %v100, %v98
  %v123 = vpack.c.b16 %v103, %v101
  %v124 = vpack.c.b16 %v104, %v102
  %v125 = vpack.c.b16 %v107, %v105
  %v126 = vpack.c.b16 %v108, %v106
  %v127 = vpack.c.b16 %v111, %v109
  %v128 = vpack.c.b16 %v112, %v110
  %v164 = vunpack.c.l.b16 %v38
  %v165 = vunpack.c.l.b16 %v39
  %v166 = vunpack.c.l.b16 %v40
  %v167 = vunpack.c.l.b16 %v41
  %v168 = vunpack.c.l.b16 %v42
  %v169 = vunpack.c.l.b16 %v43
  %v170 = vunpack.c.l.b16 %v44
  %v171 = vunpack.c.l.b16 %v45
  %v172 = vunpack.c.l.b16 %v46
  %v173 = vunpack.c.l.b16 %v47
  %v174 = vunpack.c.l.b16 %v48
  %v175 = vunpack.c.l.b16 %v49
  %v176 = vunpack.c.l.b16 %v50
  %v177 = vunpack.c.l.b16 %v51
  %v178 = vunpack.c.l.b16 %v52
  %v179 = vunpack.c.l.b16 %v53
  %v180 = vunpack.c.l.b16 %v54
  %v181 = vunpack.c.l.b16 %v55
  %v182 = vunpack.c.l.b16 %v56
  %v183 = vunpack.c.l.b16 %v57
  %v184 = vunpack.c.l.b16 %v58
  %v185 = vunpack.c.l.b16 %v59
  %v186 = vunpack.c.l.b16 %v60
  %v187 = vunpack.c.l.b16 %v61
  %v188 = vunpack.c.l.b16 %v62
  %v189 = vunpack.c.l.b16 %v63
  %v190 = vunpack.c.l.b16 %v64
  %v191 = vpack.c.b16 %v165, %v164
  %v192 = vpack.c.b16 %v167, %v166
  %v193 = vpack.c.b16 %v169, %v168
  %v194 = vpack.c.b16 %v171, %v170
  %v195 = vpack.c.b16 %v173, %v172
  %v196 = vpack.c.b16 %v175, %v174
  %v197 = vpack.c.b16 %v177, %v176
  %v198 = vpack.c.b16 %v179, %v178
  %v199 = vpack.c.b16 %v181, %v180
  %v200 = vpack.c.b16 %v183, %v182
  %v201 = vpack.c.b16 %v185, %v184
  %v202 = vpack.c.b16 %v187, %v186
  %v203 = vpack.c.b16 %v189, %v188
  %v204 = vpack.c.b16 %v190, %v190
  %vm218 = vcmask 719872
  %v220 = vsel %vm218, %v114, 0
  %v223 = vsel %vm218, %v116, 0
  %v226 = vsel %vm218, %v118, 0
  %v229 = vsel %vm218, %v120, 0
  %v232 = vsel %vm218, %v122, 0
  %v235 = vsel %vm218, %v124, 0
  %v238 = vsel %vm218, %v126, 0
  %v241 = vsel %vm218, %v128, 0
  %vm243 = vcmask 1043456
  %v245 = vsel %vm243, %v204, 0
  %247 = vmatprep.subr.bf16.mxu0 0
  %248 = vmatpush1.bf16.msra.mxu0 %v191
  %249 = vmatprep.subr.bf16.mxu0 0
  %250 = vmatpush1.bf16.msra.mxu0 %v192
  %251 = vmatprep.subr.bf16.mxu0 0
  %252 = vmatpush1.bf16.msra.mxu0 %v193
  %253 = vmatprep.subr.bf16.mxu0 0
  %254 = vmatpush1.bf16.msra.mxu0 %v194
  %255 = vmatprep.subr.bf16.mxu0 0
  %256 = vmatpush1.bf16.msra.mxu0 %v195
  %257 = vmatprep.subr.bf16.mxu0 0
  %258 = vmatpush1.bf16.msra.mxu0 %v196
  %259 = vmatprep.subr.bf16.mxu0 0
  %260 = vmatpush1.bf16.msra.mxu0 %v197
  %261 = vmatprep.subr.bf16.mxu0 0
  %262 = vmatpush1.bf16.msra.mxu0 %v198
  %263 = vmatprep.subr.bf16.mxu0 0
  %264 = vmatpush1.bf16.msra.mxu0 %v199
  %265 = vmatprep.subr.bf16.mxu0 0
  %266 = vmatpush1.bf16.msra.mxu0 %v200
  %267 = vmatprep.subr.bf16.mxu0 0
  %268 = vmatpush1.bf16.msra.mxu0 %v201
  %269 = vmatprep.subr.bf16.mxu0 0
  %270 = vmatpush1.bf16.msra.mxu0 %v202
  %271 = vmatprep.subr.bf16.mxu0 0
  %272 = vmatpush1.bf16.msra.mxu0 %v203
  %273 = vmatprep.subr.bf16.mxu0 0
  %274 = vmatpush1.bf16.msra.mxu0 %v245
  %275 = vmatprep.subr.bf16.mxu0 0
  %276 = vmatpush1.bf16.msra.mxu0 0
  %277 = vmatprep.subr.bf16.mxu0 0
  %278 = vmatpush1.bf16.msra.mxu0 0
  %279 = vmatprep.mubr.bf16.mxu0 %v220
  %280 = vmatmul.mubr.bf16.gmra.mrb[0].mxu0 %v113
  %v281 = vpop.f32.mrb[0].mxu0
  %v282 = vadd.f32 0.0, %v281
  %v283 = vpop.f32.mrb[0].mxu0
  %v284 = vpop.f32.mrb[0].mxu0
  %v285 = vadd.f32 0.0, %v284
  %v286 = vpop.f32.mrb[0].mxu0
  %287 = vmatprep.mubr.bf16.mxu0 %v223
  %288 = vmatmul.mubr.bf16.gmra.mrb[0].mxu0 %v115
  %v289 = vpop.f32.mrb[0].mxu0
  %v290 = vadd.f32 0.0, %v289
  %v291 = vpop.f32.mrb[0].mxu0
  %v292 = vpop.f32.mrb[0].mxu0
  %v293 = vadd.f32 0.0, %v292
  %v294 = vpop.f32.mrb[0].mxu0
  %295 = vmatprep.mubr.bf16.mxu0 %v226
  %296 = vmatmul.mubr.bf16.gmra.mrb[0].mxu0 %v117
  %v297 = vpop.f32.mrb[0].mxu0
  %v298 = vadd.f32 0.0, %v297
  %v299 = vpop.f32.mrb[0].mxu0
  %v300 = vpop.f32.mrb[0].mxu0
  %v301 = vadd.f32 0.0, %v300
  %v302 = vpop.f32.mrb[0].mxu0
  %303 = vmatprep.mubr.bf16.mxu0 %v229
  %304 = vmatmul.mubr.bf16.gmra.mrb[0].mxu0 %v119
  %v305 = vpop.f32.mrb[0].mxu0
  %v306 = vadd.f32 0.0, %v305
  %v307 = vpop.f32.mrb[0].mxu0
  %v308 = vpop.f32.mrb[0].mxu0
  %v309 = vadd.f32 0.0, %v308
  %v310 = vpop.f32.mrb[0].mxu0
  %311 = vmatprep.mubr.bf16.mxu0 %v232
  %312 = vmatmul.mubr.bf16.gmra.mrb[0].mxu0 %v121
  %v313 = vpop.f32.mrb[0].mxu0
  %v314 = vadd.f32 0.0, %v313
  %v315 = vpop.f32.mrb[0].mxu0
  %v316 = vpop.f32.mrb[0].mxu0
  %v317 = vadd.f32 0.0, %v316
  %v318 = vpop.f32.mrb[0].mxu0
  %319 = vmatprep.mubr.bf16.mxu0 %v235
  %320 = vmatmul.mubr.bf16.gmra.mrb[0].mxu0 %v123
  %v321 = vpop.f32.mrb[0].mxu0
  %v322 = vadd.f32 0.0, %v321
  %v323 = vpop.f32.mrb[0].mxu0
  %v324 = vpop.f32.mrb[0].mxu0
  %v325 = vadd.f32 0.0, %v324
  %v326 = vpop.f32.mrb[0].mxu0
  %327 = vmatprep.mubr.bf16.mxu0 %v238
  %328 = vmatmul.mubr.bf16.gmra.mrb[0].mxu0 %v125
  %v329 = vpop.f32.mrb[0].mxu0
  %v330 = vadd.f32 0.0, %v329
  %v331 = vpop.f32.mrb[0].mxu0
  %v332 = vpop.f32.mrb[0].mxu0
  %v333 = vadd.f32 0.0, %v332
  %v334 = vpop.f32.mrb[0].mxu0
  %335 = vmatprep.mubr.bf16.mxu0 %v241
  %336 = vmatmul.mubr.bf16.gmra.mrb[0].mxu0 %v127
  %v337 = vpop.f32.mrb[0].mxu0
  %v338 = vadd.f32 0.0, %v337
  %v339 = vpop.f32.mrb[0].mxu0
  %v340 = vpop.f32.mrb[0].mxu0
  %v341 = vadd.f32 0.0, %v340
  %v342 = vpop.f32.mrb[0].mxu0
  %343 = vdwg.mxu0
  %vm344 = vcmask 130048
  %345 = vst.msk [vmem:[%s2] sm:$0xff] %vm344, %v282
  %346 = vst.msk [vmem:[%s2 + $0x8] sm:$0xff] %vm344, %v285
  %347 = vst.msk [vmem:[%s2 + $0x10] sm:$0xff] %vm344, %v290
  %348 = vst.msk [vmem:[%s2 + $0x18] sm:$0xff] %vm344, %v293
  %349 = vst.msk [vmem:[%s2 + $0x20] sm:$0xff] %vm344, %v298
  %350 = vst.msk [vmem:[%s2 + $0x28] sm:$0xff] %vm344, %v301
  %351 = vst.msk [vmem:[%s2 + $0x30] sm:$0xff] %vm344, %v306
  %352 = vst.msk [vmem:[%s2 + $0x38] sm:$0xff] %vm344, %v309
  %353 = vst.msk [vmem:[%s2 + $0x40] sm:$0xff] %vm344, %v314
  %354 = vst.msk [vmem:[%s2 + $0x48] sm:$0xff] %vm344, %v317
  %355 = vst.msk [vmem:[%s2 + $0x50] sm:$0xff] %vm344, %v322
  %356 = vst.msk [vmem:[%s2 + $0x58] sm:$0xff] %vm344, %v325
  %357 = vst.msk [vmem:[%s2 + $0x60] sm:$0xff] %vm344, %v330
  %358 = vst.msk [vmem:[%s2 + $0x68] sm:$0xff] %vm344, %v333
  %359 = vst.msk [vmem:[%s2 + $0x70] sm:$0xff] %vm344, %v338
  %360 = vst.msk [vmem:[%s2 + $0x78] sm:$0xff] %vm344, %v341
  %v361 = vld [vmem:[%s3] sm:$0x1]
  %v362 = vsel %vm344, %v282, 0.0
  %v363 = vsel %vm344, %v285, 0.0
  %v364 = vadd.f32 %v362, %v363
  %v365 = vsel %vm344, %v290, 0.0
  %v366 = vadd.f32 %v364, %v365
  %v367 = vsel %vm344, %v293, 0.0
  %v368 = vadd.f32 %v366, %v367
  %v369 = vsel %vm344, %v298, 0.0
  %v370 = vadd.f32 %v368, %v369
  %v371 = vsel %vm344, %v301, 0.0
  %v372 = vadd.f32 %v370, %v371
  %v373 = vsel %vm344, %v306, 0.0
  %v374 = vadd.f32 %v372, %v373
  %v375 = vsel %vm344, %v309, 0.0
  %v376 = vadd.f32 %v374, %v375
  %v377 = vsel %vm344, %v314, 0.0
  %v378 = vadd.f32 %v376, %v377
  %v379 = vsel %vm344, %v317, 0.0
  %v380 = vadd.f32 %v378, %v379
  %v381 = vsel %vm344, %v322, 0.0
  %v382 = vadd.f32 %v380, %v381
  %v383 = vsel %vm344, %v325, 0.0
  %v384 = vadd.f32 %v382, %v383
  %v385 = vsel %vm344, %v330, 0.0
  %v386 = vadd.f32 %v384, %v385
  %v387 = vsel %vm344, %v333, 0.0
  %v388 = vadd.f32 %v386, %v387
  %v389 = vsel %vm344, %v338, 0.0
  %v390 = vadd.f32 %v388, %v389
  %v391 = vsel %vm344, %v341, 0.0
  %v392 = vadd.f32 %v390, %v391
  %v393 = vrot.slane %v392, 4
  %v394 = vadd.f32 %v392, %v393
  %v395 = vrot.slane %v394, 2
  %v396 = vadd.f32 %v394, %v395
  %v397 = vrot.slane %v396, 1
  %v398 = vadd.f32 %v396, %v397
  %v399 = vadd.f32 %v361, %v398
  %vm400 = vcmask 122880
  %401 = vst.msk [vmem:[%s3] sm:$0x1] %vm400, %v399
  %v402 = vld [vmem:[%s4] sm:$0x1]
  %v403 = vmul.f32 %v282, %v282
  %v404 = vmul.f32 %v285, %v285
  %v405 = vmul.f32 %v290, %v290
  %v406 = vmul.f32 %v293, %v293
  %v407 = vmul.f32 %v298, %v298
  %v408 = vmul.f32 %v301, %v301
  %v409 = vmul.f32 %v306, %v306
  %v410 = vmul.f32 %v309, %v309
  %v411 = vmul.f32 %v314, %v314
  %v412 = vmul.f32 %v317, %v317
  %v413 = vmul.f32 %v322, %v322
  %v414 = vmul.f32 %v325, %v325
  %v415 = vmul.f32 %v330, %v330
  %v416 = vmul.f32 %v333, %v333
  %v417 = vmul.f32 %v338, %v338
  %v418 = vmul.f32 %v341, %v341
  %v419 = vsel %vm344, %v403, 0.0
  %v420 = vsel %vm344, %v404, 0.0
  %v421 = vadd.f32 %v419, %v420
  %v422 = vsel %vm344, %v405, 0.0
  %v423 = vadd.f32 %v421, %v422
  %v424 = vsel %vm344, %v406, 0.0
  %v425 = vadd.f32 %v423, %v424
  %v426 = vsel %vm344, %v407, 0.0
  %v427 = vadd.f32 %v425, %v426
  %v428 = vsel %vm344, %v408, 0.0
  %v429 = vadd.f32 %v427, %v428
  %v430 = vsel %vm344, %v409, 0.0
  %v431 = vadd.f32 %v429, %v430
  %v432 = vsel %vm344, %v410, 0.0
  %v433 = vadd.f32 %v431, %v432
  %v434 = vsel %vm344, %v411, 0.0
  %v435 = vadd.f32 %v433, %v434
  %v436 = vsel %vm344, %v412, 0.0
  %v437 = vadd.f32 %v435, %v436
  %v438 = vsel %vm344, %v413, 0.0
  %v439 = vadd.f32 %v437, %v438
  %v440 = vsel %vm344, %v414, 0.0
  %v441 = vadd.f32 %v439, %v440
  %v442 = vsel %vm344, %v415, 0.0
  %v443 = vadd.f32 %v441, %v442
  %v444 = vsel %vm344, %v416, 0.0
  %v445 = vadd.f32 %v443, %v444
  %v446 = vsel %vm344, %v417, 0.0
  %v447 = vadd.f32 %v445, %v446
  %v448 = vsel %vm344, %v418, 0.0
  %v449 = vadd.f32 %v447, %v448
  %v450 = vrot.slane %v449, 4
  %v451 = vadd.f32 %v449, %v450
  %v452 = vrot.slane %v451, 2
  %v453 = vadd.f32 %v451, %v452
  %v454 = vrot.slane %v453, 1
  %v455 = vadd.f32 %v453, %v454
  %v456 = vadd.f32 %v402, %v455
  %457 = vst.msk [vmem:[%s4] sm:$0x1] %vm400, %v456
  // Predicated region
  $region14: #{deep_resnet3d_forward.36} parent=0 // pred_check
    _
  $region15: #{deep_resnet3d_forward.36} parent=0 // pred_check_branch
    %459 = sbr.rel (0) target = $region17
  $region16: #{deep_resnet3d_forward.36} parent=0 // pred_region
    _
  $region17: #{deep_resnet3d_forward.36} parent=0 // pred_fallthru
    _
  // Predicated region
  $region18: #{deep_resnet3d_forward.36} parent=0 // pred_check
    _
  $region19: #{deep_resnet3d_forward.36} parent=0 // pred_check_branch
    %461 = sbr.rel (0) target = $region21
  $region20: #{deep_resnet3d_forward.36} parent=0 // pred_region
    _
  $region21: #{deep_resnet3d_forward.36} parent=0 // pred_fallthru
    _
  // Predicated region
  $region22: #{deep_resnet3d_forward.36} parent=0 // pred_check
    _
  $region23: #{deep_resnet3d_forward.36} parent=0 // pred_check_branch
    %463 = sbr.rel (0) target = $region25
  $region24: #{deep_resnet3d_forward.36} parent=0 // pred_region
    _
  $region25: #{deep_resnet3d_forward.36} parent=0 // pred_fallthru
    _
  // Predicated region
  $region26: #{deep_resnet3d_forward.36} parent=0 // pred_check
    _
  $region27: #{deep_resnet3d_forward.36} parent=0 // pred_check_branch
    %465 = sbr.rel (0) target = $region29
  $region28: #{deep_resnet3d_forward.36} parent=0 // pred_region
    _
  $region29: #{deep_resnet3d_forward.36} parent=0 // pred_fallthru
    _
  // Predicated region
  $region30: #{deep_resnet3d_forward.36} parent=0 // pred_check
    _
  $region31: #{deep_resnet3d_forward.36} parent=0 // pred_check_branch
    %467 = sbr.rel (0) target = $region33
  $region32: #{deep_resnet3d_forward.36} parent=0 // pred_region
    _
  $region33: #{deep_resnet3d_forward.36} parent=0 // pred_fallthru
    _
  // Predicated region
  $region34: #{deep_resnet3d_forward.36} parent=0 // pred_check
    _
  $region35: #{deep_resnet3d_forward.36} parent=0 // pred_check_branch
    %469 = sbr.rel (0) target = $region37
  $region36: #{deep_resnet3d_forward.36} parent=0 // pred_region
    _
  $region37: #{deep_resnet3d_forward.36} parent=0 // pred_fallthru
    _

// kernel: tile.163
$region0: #{tile.163}
  #allocation0 [shape = 's32[1]{0}', space=sflag, size = 0x4, scoped, tag = 'scoped memory for tile.163']
  %s0 = inlined_call_operand.vmem [shape: f32[16], index: 0, kind: input, shape index: {}]
  %s1 = inlined_call_operand.vmem [shape: f32[8,16], index: 1, kind: output, shape index: {}]
  // Predicated region
  $region2: #{tile.163} parent=0 // pred_check
    _
  $region3: #{tile.163} parent=0 // pred_check_branch
    %3 = sbr.rel (0) target = $region5
  $region4: #{tile.163} parent=0 // pred_region
    _
  $region5: #{tile.163} parent=0 // pred_fallthru
    _
  %v4 = vld [vmem:[%s0] ss:$0 sm:$0xff]
  %5 = vst [vmem:[%s1] sm:$0xff] %v4

// kernel: tile.164
$region0: #{tile.164}
  %s0 = inlined_call_operand.vmem [shape: f32[8,16], index: 0, kind: input, shape index: {}]
  %s1 = inlined_call_operand.vmem [shape: f32[1,128], index: 1, kind: output, shape index: {}]
  $region1: #{tile.164} parent=0
    #allocation0 [shape = 'u8[4096]{0}', space=vmem, size = 0x1000, scoped, tag = 'scoped mem for output reshape']
    %v2 = vld [vmem:[%s0] sm:$0x1]
    %vm3 = vcmask 130048
    %4 = vst.msk [vmem:[#allocation0] sm:$0x1] %vm3, %v2
    %s5 = scalar_lea.vmem %s0, 7
    %v6 = vld [vmem:[%s5] sm:$0x1]
    %7 = vrot.lane.b32.xlu0 %v6, 112
    %v8 = vpop.permute.xlu0 %7
    %vm9 = vcmask 1048448
    %10 = vst.msk [vmem:[#allocation0] sm:$0x1] %vm9, %v8
    %s11 = scalar_lea.vmem %s0, 6
    %v12 = vld [vmem:[%s11] sm:$0x1]
    %13 = vrot.lane.b32.xlu0 %v12, 96
    %v14 = vpop.permute.xlu0 %13
    %vm15 = vcmask 917248
    %16 = vst.msk [vmem:[#allocation0] sm:$0x1] %vm15, %v14
    %s17 = scalar_lea.vmem %s0, 5
    %v18 = vld [vmem:[%s17] sm:$0x1]
    %19 = vrot.lane.b32.xlu0 %v18, 80
    %v20 = vpop.permute.xlu0 %19
    %vm21 = vcmask 786048
    %22 = vst.msk [vmem:[#allocation0] sm:$0x1] %vm21, %v20
    %s23 = scalar_lea.vmem %s0, 4
    %v24 = vld [vmem:[%s23] sm:$0x1]
    %25 = vrot.lane.b32.xlu0 %v24, 64
    %v26 = vpop.permute.xlu0 %25
    %vm27 = vcmask 654848
    %28 = vst.msk [vmem:[#allocation0] sm:$0x1] %vm27, %v26
    %s29 = scalar_lea.vmem %s0, 3
    %v30 = vld [vmem:[%s29] sm:$0x1]
    %31 = vrot.lane.b32.xlu0 %v30, 48
    %v32 = vpop.permute.xlu0 %31
    %vm33 = vcmask 523648
    %34 = vst.msk [vmem:[#allocation0] sm:$0x1] %vm33, %v32
    %s35 = scalar_lea.vmem %s0, 2
    %v36 = vld [vmem:[%s35] sm:$0x1]
    %37 = vrot.lane.b32.xlu0 %v36, 32
    %v38 = vpop.permute.xlu0 %37
    %vm39 = vcmask 392448
    %40 = vst.msk [vmem:[#allocation0] sm:$0x1] %vm39, %v38
    %s41 = scalar_lea.vmem %s0, 1
    %v42 = vld [vmem:[%s41] sm:$0x1]
    %43 = vrot.lane.b32.xlu0 %v42, 16
    %v44 = vpop.permute.xlu0 %43
    %vm45 = vcmask 261248
    %46 = vst.msk [vmem:[#allocation0] sm:$0x1] %vm45, %v44
    %s48 = sshllo.u32 0, 1
    %v50 = vld [vmem:[#allocation0] sm:%s48]
    %s51 = sshllo.u32 0, 1
    %52 = vst [vmem:[%s1] sm:%s51] %v50

// kernel: deep_resnet3d_forward.31
$region0: #{deep_resnet3d_forward.31}
  #allocation0 [shape = 'u32[]', space=smem, size = 0x4, offset = 0x4, fixed_abs, tag = 'smem constant byte address 0x4 - core index']
  #allocation1 [shape = 'u32[144,128]{1,0:T(1,128)}', space=vmem, size = 0x12000, scoped, tag = 'internal scratch']
  %s0 = inlined_call_operand.vmem [shape: bf16[128,8], index: 0, kind: input, shape index: {}]
  %s1 = inlined_call_operand.vmem [shape: bf16[8,16], index: 1, kind: input, shape index: {}]
  %s2 = inlined_call_operand.vmem [shape: f32[1,16], index: 2, kind: input, shape index: {}]
  %s3 = inlined_call_operand.vmem [shape: f32[128,16], index: 3, kind: output, shape index: {}]
  %s4 = sld [smem:[#allocation0]]
  $region22: #{deep_resnet3d_forward.31} parent=0
    _
  %s6 = ssub.s32 1, %s4
  %s7 = scalar_select 0, %s6, %s4
  // Predicated region
  $region2: #{deep_resnet3d_forward.31} parent=0 // pred_check
    _
  $region3: #{deep_resnet3d_forward.31} parent=0 // pred_check_branch
    %9 = sbr.rel (0) target = $region5
  $region4: #{deep_resnet3d_forward.31} parent=0 // pred_region
    _
  $region5: #{deep_resnet3d_forward.31} parent=0 // pred_fallthru
    _
  // Predicated region
  $region6: #{deep_resnet3d_forward.31} parent=0 // pred_check
    _
  $region7: #{deep_resnet3d_forward.31} parent=0 // pred_check_branch
    %11 = sbr.rel (0) target = $region9
  $region8: #{deep_resnet3d_forward.31} parent=0 // pred_region
    _
  $region9: #{deep_resnet3d_forward.31} parent=0 // pred_fallthru
    _
  // Predicated region
  $region10: #{deep_resnet3d_forward.31} parent=0 // pred_check
    _
  $region11: #{deep_resnet3d_forward.31} parent=0 // pred_check_branch
    %13 = sbr.rel (0) target = $region13
  $region12: #{deep_resnet3d_forward.31} parent=0 // pred_region
    _
  $region13: #{deep_resnet3d_forward.31} parent=0 // pred_fallthru
    _
  %v15 = vld [vmem:[%s0] sm:$0xf]
  %v16 = vld [vmem:[%s0 + $0x4] sm:$0xf]
  %v17 = vld [vmem:[%s0 + $0x8] sm:$0xf]
  %v18 = vld [vmem:[%s0 + $0xc] sm:$0xf]
  %v19 = vld [vmem:[%s0 + $0x10] sm:$0xf]
  %v20 = vld [vmem:[%s0 + $0x14] sm:$0xf]
  %v21 = vld [vmem:[%s0 + $0x18] sm:$0xf]
  %v22 = vld [vmem:[%s0 + $0x1c] sm:$0xf]
  %v23 = vld [vmem:[%s0 + $0x20] sm:$0xf]
  %v24 = vld [vmem:[%s0 + $0x24] sm:$0xf]
  %v25 = vld [vmem:[%s0 + $0x28] sm:$0xf]
  %v26 = vld [vmem:[%s0 + $0x2c] sm:$0xf]
  %v27 = vld [vmem:[%s0 + $0x30] sm:$0xf]
  %v28 = vld [vmem:[%s0 + $0x34] sm:$0xf]
  %v29 = vld [vmem:[%s0 + $0x38] sm:$0xf]
  %v30 = vld [vmem:[%s0 + $0x3c] sm:$0xf]
  %v31 = vld [vmem:[%s1] sm:$0xf]
  %v32 = vld [vmem:[%s2] sm:$0x1]
  %v34 = vlaneseq
  %v35 = vshrl.u32 %v34, 7
  %v36 = vsub.s32 0, %v35
  %v37 = vrot.slane %v32, %v36
  %v55 = vunpack.c.l.b16 %v15
  %v56 = vunpack.c.l.b16 %v16
  %v57 = vunpack.c.l.b16 %v17
  %v58 = vunpack.c.l.b16 %v18
  %v59 = vunpack.c.l.b16 %v19
  %v60 = vunpack.c.l.b16 %v20
  %v61 = vunpack.c.l.b16 %v21
  %v62 = vunpack.c.l.b16 %v22
  %v63 = vunpack.c.l.b16 %v23
  %v64 = vunpack.c.l.b16 %v24
  %v65 = vunpack.c.l.b16 %v25
  %v66 = vunpack.c.l.b16 %v26
  %v67 = vunpack.c.l.b16 %v27
  %v68 = vunpack.c.l.b16 %v28
  %v69 = vunpack.c.l.b16 %v29
  %v70 = vunpack.c.l.b16 %v30
  %v71 = vpack.c.b16 %v56, %v55
  %v72 = vpack.c.b16 %v58, %v57
  %v73 = vpack.c.b16 %v60, %v59
  %v74 = vpack.c.b16 %v62, %v61
  %v75 = vpack.c.b16 %v64, %v63
  %v76 = vpack.c.b16 %v66, %v65
  %v77 = vpack.c.b16 %v68, %v67
  %v78 = vpack.c.b16 %v70, %v69
  %vm79 = vcmask 64512
  %v81 = vsel %vm79, %v71, 0
  %v84 = vsel %vm79, %v72, 0
  %v87 = vsel %vm79, %v73, 0
  %v90 = vsel %vm79, %v74, 0
  %v93 = vsel %vm79, %v75, 0
  %v96 = vsel %vm79, %v76, 0
  %v99 = vsel %vm79, %v77, 0
  %v102 = vsel %vm79, %v78, 0
  %vm104 = vcmask 1043456
  %v106 = vsel %vm104, %v31, 0
  %108 = vmatprep.subr.bf16.mxu0 0
  %109 = vmatpush1.bf16.msra.mxu0 %v106
  %110 = vmatprep.subr.bf16.mxu0 0
  %111 = vmatpush1.bf16.msra.mxu0 0
  %112 = vmatprep.subr.bf16.mxu0 0
  %113 = vmatpush1.bf16.msra.mxu0 0
  %114 = vmatprep.subr.bf16.mxu0 0
  %115 = vmatpush1.bf16.msra.mxu0 0
  %116 = vmatprep.subr.bf16.mxu0 0
  %117 = vmatpush1.bf16.msra.mxu0 0
  %118 = vmatprep.subr.bf16.mxu0 0
  %119 = vmatpush1.bf16.msra.mxu0 0
  %120 = vmatprep.subr.bf16.mxu0 0
  %121 = vmatpush1.bf16.msra.mxu0 0
  %122 = vmatprep.subr.bf16.mxu0 0
  %123 = vmatpush1.bf16.msra.mxu0 0
  %124 = vmatprep.subr.bf16.mxu0 0
  %125 = vmatpush1.bf16.msra.mxu0 0
  %126 = vmatprep.subr.bf16.mxu0 0
  %127 = vmatpush1.bf16.msra.mxu0 0
  %128 = vmatprep.subr.bf16.mxu0 0
  %129 = vmatpush1.bf16.msra.mxu0 0
  %130 = vmatprep.subr.bf16.mxu0 0
  %131 = vmatpush1.bf16.msra.mxu0 0
  %132 = vmatprep.subr.bf16.mxu0 0
  %133 = vmatpush1.bf16.msra.mxu0 0
  %134 = vmatprep.subr.bf16.mxu0 0
  %135 = vmatpush1.bf16.msra.mxu0 0
  %136 = vmatprep.subr.bf16.mxu0 0
  %137 = vmatpush1.bf16.msra.mxu0 0
  %138 = vmatprep.subr.bf16.mxu0 0
  %139 = vmatpush1.bf16.msra.mxu0 0
  %140 = vmatprep.mubr.bf16.mxu0 0
  %141 = vmatmul.mubr.bf16.gmra.mrb[0].mxu0 %v81
  %v142 = vpop.f32.mrb[0].mxu0
  %v143 = vadd.f32 %v37, %v142
  %v144 = vpop.f32.mrb[0].mxu0
  %v145 = vpop.f32.mrb[0].mxu0
  %v146 = vadd.f32 %v37, %v145
  %v147 = vpop.f32.mrb[0].mxu0
  %148 = vmatprep.mubr.bf16.mxu0 0
  %149 = vmatmul.mubr.bf16.gmra.mrb[0].mxu0 %v84
  %v150 = vpop.f32.mrb[0].mxu0
  %v151 = vadd.f32 %v37, %v150
  %v152 = vpop.f32.mrb[0].mxu0
  %v153 = vpop.f32.mrb[0].mxu0
  %v154 = vadd.f32 %v37, %v153
  %v155 = vpop.f32.mrb[0].mxu0
  %156 = vmatprep.mubr.bf16.mxu0 0
  %157 = vmatmul.mubr.bf16.gmra.mrb[0].mxu0 %v87
  %v158 = vpop.f32.mrb[0].mxu0
  %v159 = vadd.f32 %v37, %v158
  %v160 = vpop.f32.mrb[0].mxu0
  %v161 = vpop.f32.mrb[0].mxu0
  %v162 = vadd.f32 %v37, %v161
  %v163 = vpop.f32.mrb[0].mxu0
  %164 = vmatprep.mubr.bf16.mxu0 0
  %165 = vmatmul.mubr.bf16.gmra.mrb[0].mxu0 %v90
  %v166 = vpop.f32.mrb[0].mxu0
  %v167 = vadd.f32 %v37, %v166
  %v168 = vpop.f32.mrb[0].mxu0
  %v169 = vpop.f32.mrb[0].mxu0
  %v170 = vadd.f32 %v37, %v169
  %v171 = vpop.f32.mrb[0].mxu0
  %172 = vmatprep.mubr.bf16.mxu0 0
  %173 = vmatmul.mubr.bf16.gmra.mrb[0].mxu0 %v93
  %v174 = vpop.f32.mrb[0].mxu0
  %v175 = vadd.f32 %v37, %v174
  %v176 = vpop.f32.mrb[0].mxu0
  %v177 = vpop.f32.mrb[0].mxu0
  %v178 = vadd.f32 %v37, %v177
  %v179 = vpop.f32.mrb[0].mxu0
  %180 = vmatprep.mubr.bf16.mxu0 0
  %181 = vmatmul.mubr.bf16.gmra.mrb[0].mxu0 %v96
  %v182 = vpop.f32.mrb[0].mxu0
  %v183 = vadd.f32 %v37, %v182
  %v184 = vpop.f32.mrb[0].mxu0
  %v185 = vpop.f32.mrb[0].mxu0
  %v186 = vadd.f32 %v37, %v185
  %v187 = vpop.f32.mrb[0].mxu0
  %188 = vmatprep.mubr.bf16.mxu0 0
  %189 = vmatmul.mubr.bf16.gmra.mrb[0].mxu0 %v99
  %v190 = vpop.f32.mrb[0].mxu0
  %v191 = vadd.f32 %v37, %v190
  %v192 = vpop.f32.mrb[0].mxu0
  %v193 = vpop.f32.mrb[0].mxu0
  %v194 = vadd.f32 %v37, %v193
  %v195 = vpop.f32.mrb[0].mxu0
  %196 = vmatprep.mubr.bf16.mxu0 0
  %197 = vmatmul.mubr.bf16.gmra.mrb[0].mxu0 %v102
  %v198 = vpop.f32.mrb[0].mxu0
  %v199 = vadd.f32 %v37, %v198
  %v200 = vpop.f32.mrb[0].mxu0
  %v201 = vpop.f32.mrb[0].mxu0
  %v202 = vadd.f32 %v37, %v201
  %v203 = vpop.f32.mrb[0].mxu0
  %204 = vdwg.mxu0
  %vm205 = vcmask 130048
  %206 = vst.msk [vmem:[%s3] sm:$0xff] %vm205, %v143
  %207 = vst.msk [vmem:[%s3 + $0x8] sm:$0xff] %vm205, %v146
  %208 = vst.msk [vmem:[%s3 + $0x10] sm:$0xff] %vm205, %v151
  %209 = vst.msk [vmem:[%s3 + $0x18] sm:$0xff] %vm205, %v154
  %210 = vst.msk [vmem:[%s3 + $0x20] sm:$0xff] %vm205, %v159
  %211 = vst.msk [vmem:[%s3 + $0x28] sm:$0xff] %vm205, %v162
  %212 = vst.msk [vmem:[%s3 + $0x30] sm:$0xff] %vm205, %v167
  %213 = vst.msk [vmem:[%s3 + $0x38] sm:$0xff] %vm205, %v170
  %214 = vst.msk [vmem:[%s3 + $0x40] sm:$0xff] %vm205, %v175
  %215 = vst.msk [vmem:[%s3 + $0x48] sm:$0xff] %vm205, %v178
  %216 = vst.msk [vmem:[%s3 + $0x50] sm:$0xff] %vm205, %v183
  %217 = vst.msk [vmem:[%s3 + $0x58] sm:$0xff] %vm205, %v186
  %218 = vst.msk [vmem:[%s3 + $0x60] sm:$0xff] %vm205, %v191
  %219 = vst.msk [vmem:[%s3 + $0x68] sm:$0xff] %vm205, %v194
  %220 = vst.msk [vmem:[%s3 + $0x70] sm:$0xff] %vm205, %v199
  %221 = vst.msk [vmem:[%s3 + $0x78] sm:$0xff] %vm205, %v202
  // Predicated region
  $region14: #{deep_resnet3d_forward.31} parent=0 // pred_check
    _
  $region15: #{deep_resnet3d_forward.31} parent=0 // pred_check_branch
    %223 = sbr.rel (0) target = $region17
  $region16: #{deep_resnet3d_forward.31} parent=0 // pred_region
    _
  $region17: #{deep_resnet3d_forward.31} parent=0 // pred_fallthru
    _
  // Predicated region
  $region18: #{deep_resnet3d_forward.31} parent=0 // pred_check
    _
  $region19: #{deep_resnet3d_forward.31} parent=0 // pred_check_branch
    %225 = sbr.rel (0) target = $region21
  $region20: #{deep_resnet3d_forward.31} parent=0 // pred_region
    _
  $region21: #{deep_resnet3d_forward.31} parent=0 // pred_fallthru
    _

// kernel: deep_resnet3d_forward.37
$region0: #{deep_resnet3d_forward.37}
  #allocation0 [shape = 'u32[]', space=smem, size = 0x4, offset = 0x4, fixed_abs, tag = 'smem constant byte address 0x4 - core index']
  #allocation1 [shape = 'u32[144,128]{1,0:T(1,128)}', space=vmem, size = 0x12000, scoped, tag = 'internal scratch']
  %s0 = inlined_call_operand.vmem [shape: f32[16,128], index: 0, kind: input, shape index: {}]
  %s1 = inlined_call_operand.vmem [shape: f32[1,128], index: 1, kind: input, shape index: {}]
  %s2 = inlined_call_operand.vmem [shape: f32[1,128], index: 2, kind: input, shape index: {}]
  %s3 = inlined_call_operand.vmem [shape: f32[16,128], index: 3, kind: input, shape index: {}]
  %s4 = inlined_call_operand.vmem [shape: f32[16,128], index: 4, kind: output, shape index: {}]
  %s5 = sld [smem:[#allocation0]]
  $region26: #{deep_resnet3d_forward.37} parent=0
    _
  %s7 = ssub.s32 1, %s5
  %s8 = scalar_select 0, %s7, %s5
  // Predicated region
  $region2: #{deep_resnet3d_forward.37} parent=0 // pred_check
    _
  $region3: #{deep_resnet3d_forward.37} parent=0 // pred_check_branch
    %10 = sbr.rel (0) target = $region5
  $region4: #{deep_resnet3d_forward.37} parent=0 // pred_region
    _
  $region5: #{deep_resnet3d_forward.37} parent=0 // pred_fallthru
    _
  // Predicated region
  $region6: #{deep_resnet3d_forward.37} parent=0 // pred_check
    _
  $region7: #{deep_resnet3d_forward.37} parent=0 // pred_check_branch
    %12 = sbr.rel (0) target = $region9
  $region8: #{deep_resnet3d_forward.37} parent=0 // pred_region
    _
  $region9: #{deep_resnet3d_forward.37} parent=0 // pred_fallthru
    _
  // Predicated region
  $region10: #{deep_resnet3d_forward.37} parent=0 // pred_check
    _
  $region11: #{deep_resnet3d_forward.37} parent=0 // pred_check_branch
    %14 = sbr.rel (0) target = $region13
  $region12: #{deep_resnet3d_forward.37} parent=0 // pred_region
    _
  $region13: #{deep_resnet3d_forward.37} parent=0 // pred_fallthru
    _
  // Predicated region
  $region14: #{deep_resnet3d_forward.37} parent=0 // pred_check
    _
  $region15: #{deep_resnet3d_forward.37} parent=0 // pred_check_branch
    %16 = sbr.rel (0) target = $region17
  $region16: #{deep_resnet3d_forward.37} parent=0 // pred_region
    _
  $region17: #{deep_resnet3d_forward.37} parent=0 // pred_fallthru
    _
  %v17 = vld [vmem:[%s0] sm:$0xff]
  %v18 = vld [vmem:[%s0 + $0x8] sm:$0xff]
  %v19 = vld [vmem:[%s1] sm:$0x1]
  %v21 = vlaneseq
  %v22 = vshrl.u32 %v21, 7
  %v23 = vsub.s32 0, %v22
  %v24 = vrot.slane %v19, %v23
  %v26 = vmul.f32 %v17, %v24
  %v27 = vmul.f32 %v18, %v24
  %v28 = vld [vmem:[%s2] sm:$0x1]
  %v30 = vlaneseq
  %v31 = vshrl.u32 %v30, 7
  %v32 = vsub.s32 0, %v31
  %v33 = vrot.slane %v28, %v32
  %v35 = vadd.f32 %v26, %v33
  %v36 = vadd.f32 %v27, %v33
  %v37 = vld [vmem:[%s3] sm:$0xff]
  %v38 = vld [vmem:[%s3 + $0x8] sm:$0xff]
  %v39 = vadd.f32 %v35, %v37
  %v40 = vadd.f32 %v36, %v38
  %v41 = vmax.f32 %v39, 0.0
  %v42 = vmax.f32 %v40, 0.0
  %43 = vst [vmem:[%s4] sm:$0xff] %v41
  %44 = vst [vmem:[%s4 + $0x8] sm:$0xff] %v42
  // Predicated region
  $region18: #{deep_resnet3d_forward.37} parent=0 // pred_check
    _
  $region19: #{deep_resnet3d_forward.37} parent=0 // pred_check_branch
    %46 = sbr.rel (0) target = $region21
  $region20: #{deep_resnet3d_forward.37} parent=0 // pred_region
    _
  $region21: #{deep_resnet3d_forward.37} parent=0 // pred_fallthru
    _
  // Predicated region
  $region22: #{deep_resnet3d_forward.37} parent=0 // pred_check
    _
  $region23: #{deep_resnet3d_forward.37} parent=0 // pred_check_branch
    %48 = sbr.rel (0) target = $region25
  $region24: #{deep_resnet3d_forward.37} parent=0 // pred_region
    _
  $region25: #{deep_resnet3d_forward.37} parent=0 // pred_fallthru
    _

// kernel: deep_resnet3d_forward.38
$region0: #{deep_resnet3d_forward.38}
  #allocation0 [shape = 'u32[]', space=smem, size = 0x4, offset = 0x4, fixed_abs, tag = 'smem constant byte address 0x4 - core index']
  #allocation1 [shape = 'u32[144,128]{1,0:T(1,128)}', space=vmem, size = 0x12000, scoped, tag = 'internal scratch']
  %s0 = inlined_call_operand.vmem [shape: bf16[128,432], index: 0, kind: input, shape index: {}]
  %s1 = inlined_call_operand.vmem [shape: bf16[432,16], index: 1, kind: input, shape index: {}]
  %s2 = inlined_call_operand.vmem [shape: f32[128,16], index: 2, kind: output, shape index: {0}]
  %s3 = inlined_call_operand.vmem [shape: f32[1,16], index: 3, kind: output, shape index: {1}]
  %s4 = inlined_call_operand.vmem [shape: f32[1,16], index: 4, kind: output, shape index: {2}]
  %5 = xla_tuple %s2, %s3, %s4
  %s6 = sld [smem:[#allocation0]]
  $region38: #{deep_resnet3d_forward.38} parent=0
    _
  %s8 = ssub.s32 1, %s6
  %s9 = scalar_select 0, %s8, %s6
  // Predicated region
  $region2: #{deep_resnet3d_forward.38} parent=0 // pred_check
    _
  $region3: #{deep_resnet3d_forward.38} parent=0 // pred_check_branch
    %11 = sbr.rel (0) target = $region5
  $region4: #{deep_resnet3d_forward.38} parent=0 // pred_region
    _
  $region5: #{deep_resnet3d_forward.38} parent=0 // pred_fallthru
    _
  // Predicated region
  $region6: #{deep_resnet3d_forward.38} parent=0 // pred_check
    _
  $region7: #{deep_resnet3d_forward.38} parent=0 // pred_check_branch
    %13 = sbr.rel (0) target = $region9
  $region8: #{deep_resnet3d_forward.38} parent=0 // pred_region
    _
  $region9: #{deep_resnet3d_forward.38} parent=0 // pred_fallthru
    _
  %p15 = scmp.eq.s32.totalorder 0, 0
  // Predicated region
  $region10: #{deep_resnet3d_forward.38} parent=0 // pred_check
    %p16 = pneg %p15
  $region11: #{deep_resnet3d_forward.38} parent=0 // pred_check_branch
    %18 = sbr.rel (%p16) target = $region13
  $region12: #{deep_resnet3d_forward.38} parent=0 // pred_region
    %vm19 = vcmask 122880
    %20 = vst.msk [vmem:[%s3] sm:$0x1] %vm19, 0.0
    %21 = vst.msk [vmem:[%s4] sm:$0x1] %vm19, 0.0
  $region13: #{deep_resnet3d_forward.38} parent=0 // pred_fallthru
    _
  %v22 = vld [vmem:[%s0] sm:$0xff]
  %v23 = vld [vmem:[%s0 + $0x8] sm:$0xff]
  %v24 = vld [vmem:[%s0 + $0x10] sm:$0xff]
  %v25 = vld [vmem:[%s0 + $0x18] sm:$0xff]
  %v26 = vld [vmem:[%s0 + $0x20] sm:$0xff]
  %v27 = vld [vmem:[%s0 + $0x28] sm:$0xff]
  %v28 = vld [vmem:[%s0 + $0x30] sm:$0xff]
  %v29 = vld [vmem:[%s0 + $0x38] sm:$0xff]
  %v30 = vld [vmem:[%s0 + $0x40] sm:$0xff]
  %v31 = vld [vmem:[%s0 + $0x48] sm:$0xff]
  %v32 = vld [vmem:[%s0 + $0x50] sm:$0xff]
  %v33 = vld [vmem:[%s0 + $0x58] sm:$0xff]
  %v34 = vld [vmem:[%s0 + $0x60] sm:$0xff]
  %v35 = vld [vmem:[%s0 + $0x68] sm:$0xff]
  %v36 = vld [vmem:[%s0 + $0x70] sm:$0xff]
  %v37 = vld [vmem:[%s0 + $0x78] sm:$0xff]
  %v38 = vld [vmem:[%s0 + $0x80] sm:$0xff]
  %v39 = vld [vmem:[%s0 + $0x88] sm:$0xff]
  %v40 = vld [vmem:[%s0 + $0x90] sm:$0xff]
  %v41 = vld [vmem:[%s0 + $0x98] sm:$0xff]
  %v42 = vld [vmem:[%s0 + $0xa0] sm:$0xff]
  %v43 = vld [vmem:[%s0 + $0xa8] sm:$0xff]
  %v44 = vld [vmem:[%s0 + $0xb0] sm:$0xff]
  %v45 = vld [vmem:[%s0 + $0xb8] sm:$0xff]
  %v46 = vld [vmem:[%s0 + $0xc0] sm:$0xff]
  %v47 = vld [vmem:[%s0 + $0xc8] sm:$0xff]
  %v48 = vld [vmem:[%s0 + $0xd0] sm:$0xff]
  %v49 = vld [vmem:[%s0 + $0xd8] sm:$0xff]
  %v50 = vld [vmem:[%s0 + $0xe0] sm:$0xff]
  %v51 = vld [vmem:[%s0 + $0xe8] sm:$0xff]
  %v52 = vld [vmem:[%s0 + $0xf0] sm:$0xff]
  %v53 = vld [vmem:[%s0 + $0xf8] sm:$0xff]
  %v54 = vld [vmem:[%s1] sm:$0xf]
  %v55 = vld [vmem:[%s1 + $0x4] sm:$0xf]
  %v56 = vld [vmem:[%s1 + $0x8] sm:$0xf]
  %v57 = vld [vmem:[%s1 + $0xc] sm:$0xf]
  %v58 = vld [vmem:[%s1 + $0x10] sm:$0xf]
  %v59 = vld [vmem:[%s1 + $0x14] sm:$0xf]
  %v60 = vld [vmem:[%s1 + $0x18] sm:$0xf]
  %v61 = vld [vmem:[%s1 + $0x1c] sm:$0xf]
  %v62 = vld [vmem:[%s1 + $0x20] sm:$0xf]
  %v63 = vld [vmem:[%s1 + $0x24] sm:$0xf]
  %v64 = vld [vmem:[%s1 + $0x28] sm:$0xf]
  %v65 = vld [vmem:[%s1 + $0x2c] sm:$0xf]
  %v66 = vld [vmem:[%s1 + $0x30] sm:$0xf]
  %v67 = vld [vmem:[%s1 + $0x34] sm:$0xf]
  %v68 = vld [vmem:[%s1 + $0x38] sm:$0xf]
  %v69 = vld [vmem:[%s1 + $0x3c] sm:$0xf]
  %v70 = vld [vmem:[%s1 + $0x40] sm:$0xf]
  %v71 = vld [vmem:[%s1 + $0x44] sm:$0xf]
  %v72 = vld [vmem:[%s1 + $0x48] sm:$0xf]
  %v73 = vld [vmem:[%s1 + $0x4c] sm:$0xf]
  %v74 = vld [vmem:[%s1 + $0x50] sm:$0xf]
  %v75 = vld [vmem:[%s1 + $0x54] sm:$0xf]
  %v76 = vld [vmem:[%s1 + $0x58] sm:$0xf]
  %v77 = vld [vmem:[%s1 + $0x5c] sm:$0xf]
  %v78 = vld [vmem:[%s1 + $0x60] sm:$0xf]
  %v79 = vld [vmem:[%s1 + $0x64] sm:$0xf]
  %v80 = vld [vmem:[%s1 + $0x68] sm:$0xf]
  %v81 = vld [vmem:[%s1 + $0x6c] sm:$0xf]
  %v82 = vld [vmem:[%s1 + $0x70] sm:$0xf]
  %v83 = vld [vmem:[%s1 + $0x74] sm:$0xf]
  %v84 = vld [vmem:[%s1 + $0x78] sm:$0xf]
  %v85 = vld [vmem:[%s1 + $0x7c] sm:$0xf]
  %v86 = vld [vmem:[%s1 + $0x80] sm:$0xf]
  %v87 = vld [vmem:[%s1 + $0x84] sm:$0xf]
  %v88 = vld [vmem:[%s1 + $0x88] sm:$0xf]
  %v89 = vld [vmem:[%s1 + $0x8c] sm:$0xf]
  %v90 = vld [vmem:[%s1 + $0x90] sm:$0xf]
  %v91 = vld [vmem:[%s1 + $0x94] sm:$0xf]
  %v92 = vld [vmem:[%s1 + $0x98] sm:$0xf]
  %v93 = vld [vmem:[%s1 + $0x9c] sm:$0xf]
  %v94 = vld [vmem:[%s1 + $0xa0] sm:$0xf]
  %v95 = vld [vmem:[%s1 + $0xa4] sm:$0xf]
  %v96 = vld [vmem:[%s1 + $0xa8] sm:$0xf]
  %v97 = vld [vmem:[%s1 + $0xac] sm:$0xf]
  %v98 = vld [vmem:[%s1 + $0xb0] sm:$0xf]
  %v99 = vld [vmem:[%s1 + $0xb4] sm:$0xf]
  %v100 = vld [vmem:[%s1 + $0xb8] sm:$0xf]
  %v101 = vld [vmem:[%s1 + $0xbc] sm:$0xf]
  %v102 = vld [vmem:[%s1 + $0xc0] sm:$0xf]
  %v103 = vld [vmem:[%s1 + $0xc4] sm:$0xf]
  %v104 = vld [vmem:[%s1 + $0xc8] sm:$0xf]
  %v105 = vld [vmem:[%s1 + $0xcc] sm:$0xf]
  %v106 = vld [vmem:[%s1 + $0xd0] sm:$0xf]
  %v107 = vld [vmem:[%s1 + $0xd4] sm:$0xf]
  %v140 = vunpack.c.l.b16 %v22
  %v141 = vunpack.c.h.b16 %v22
  %v142 = vunpack.c.l.b16 %v23
  %v143 = vunpack.c.h.b16 %v23
  %v144 = vunpack.c.l.b16 %v24
  %v145 = vunpack.c.h.b16 %v24
  %v146 = vunpack.c.l.b16 %v25
  %v147 = vunpack.c.h.b16 %v25
  %v148 = vunpack.c.l.b16 %v26
  %v149 = vunpack.c.h.b16 %v26
  %v150 = vunpack.c.l.b16 %v27
  %v151 = vunpack.c.h.b16 %v27
  %v152 = vunpack.c.l.b16 %v28
  %v153 = vunpack.c.h.b16 %v28
  %v154 = vunpack.c.l.b16 %v29
  %v155 = vunpack.c.h.b16 %v29
  %v156 = vunpack.c.l.b16 %v30
  %v157 = vunpack.c.h.b16 %v30
  %v158 = vunpack.c.l.b16 %v31
  %v159 = vunpack.c.h.b16 %v31
  %v160 = vunpack.c.l.b16 %v32
  %v161 = vunpack.c.h.b16 %v32
  %v162 = vunpack.c.l.b16 %v33
  %v163 = vunpack.c.h.b16 %v33
  %v164 = vunpack.c.l.b16 %v34
  %v165 = vunpack.c.h.b16 %v34
  %v166 = vunpack.c.l.b16 %v35
  %v167 = vunpack.c.h.b16 %v35
  %v168 = vunpack.c.l.b16 %v36
  %v169 = vunpack.c.h.b16 %v36
  %v170 = vunpack.c.l.b16 %v37
  %v171 = vunpack.c.h.b16 %v37
  %v172 = vunpack.c.l.b16 %v38
  %v173 = vunpack.c.h.b16 %v38
  %v174 = vunpack.c.l.b16 %v39
  %v175 = vunpack.c.h.b16 %v39
  %v176 = vunpack.c.l.b16 %v40
  %v177 = vunpack.c.h.b16 %v40
  %v178 = vunpack.c.l.b16 %v41
  %v179 = vunpack.c.h.b16 %v41
  %v180 = vunpack.c.l.b16 %v42
  %v181 = vunpack.c.h.b16 %v42
  %v182 = vunpack.c.l.b16 %v43
  %v183 = vunpack.c.h.b16 %v43
  %v184 = vunpack.c.l.b16 %v44
  %v185 = vunpack.c.h.b16 %v44
  %v186 = vunpack.c.l.b16 %v45
  %v187 = vunpack.c.h.b16 %v45
  %v188 = vunpack.c.l.b16 %v46
  %v189 = vunpack.c.h.b16 %v46
  %v190 = vunpack.c.l.b16 %v47
  %v191 = vunpack.c.h.b16 %v47
  %v192 = vunpack.c.l.b16 %v48
  %v193 = vunpack.c.h.b16 %v48
  %v194 = vunpack.c.l.b16 %v49
  %v195 = vunpack.c.h.b16 %v49
  %v196 = vunpack.c.l.b16 %v50
  %v197 = vunpack.c.h.b16 %v50
  %v198 = vunpack.c.l.b16 %v51
  %v199 = vunpack.c.h.b16 %v51
  %v200 = vunpack.c.l.b16 %v52
  %v201 = vunpack.c.h.b16 %v52
  %v202 = vunpack.c.l.b16 %v53
  %v203 = vunpack.c.h.b16 %v53
  %v204 = vpack.c.b16 %v144, %v140
  %v205 = vpack.c.b16 %v145, %v141
  %v206 = vpack.c.b16 %v146, %v142
  %v207 = vpack.c.b16 %v147, %v143
  %v208 = vpack.c.b16 %v152, %v148
  %v209 = vpack.c.b16 %v153, %v149
  %v210 = vpack.c.b16 %v154, %v150
  %v211 = vpack.c.b16 %v155, %v151
  %v212 = vpack.c.b16 %v160, %v156
  %v213 = vpack.c.b16 %v161, %v157
  %v214 = vpack.c.b16 %v162, %v158
  %v215 = vpack.c.b16 %v163, %v159
  %v216 = vpack.c.b16 %v168, %v164
  %v217 = vpack.c.b16 %v169, %v165
  %v218 = vpack.c.b16 %v170, %v166
  %v219 = vpack.c.b16 %v171, %v167
  %v220 = vpack.c.b16 %v176, %v172
  %v221 = vpack.c.b16 %v177, %v173
  %v222 = vpack.c.b16 %v178, %v174
  %v223 = vpack.c.b16 %v179, %v175
  %v224 = vpack.c.b16 %v184, %v180
  %v225 = vpack.c.b16 %v185, %v181
  %v226 = vpack.c.b16 %v186, %v182
  %v227 = vpack.c.b16 %v187, %v183
  %v228 = vpack.c.b16 %v192, %v188
  %v229 = vpack.c.b16 %v193, %v189
  %v230 = vpack.c.b16 %v194, %v190
  %v231 = vpack.c.b16 %v195, %v191
  %v232 = vpack.c.b16 %v200, %v196
  %v233 = vpack.c.b16 %v201, %v197
  %v234 = vpack.c.b16 %v202, %v198
  %v235 = vpack.c.b16 %v203, %v199
  %v314 = vunpack.c.l.b16 %v54
  %v315 = vunpack.c.l.b16 %v55
  %v316 = vunpack.c.l.b16 %v56
  %v317 = vunpack.c.l.b16 %v57
  %v318 = vunpack.c.l.b16 %v58
  %v319 = vunpack.c.l.b16 %v59
  %v320 = vunpack.c.l.b16 %v60
  %v321 = vunpack.c.l.b16 %v61
  %v322 = vunpack.c.l.b16 %v62
  %v323 = vunpack.c.l.b16 %v63
  %v324 = vunpack.c.l.b16 %v64
  %v325 = vunpack.c.l.b16 %v65
  %v326 = vunpack.c.l.b16 %v66
  %v327 = vunpack.c.l.b16 %v67
  %v328 = vunpack.c.l.b16 %v68
  %v329 = vunpack.c.l.b16 %v69
  %v330 = vunpack.c.l.b16 %v70
  %v331 = vunpack.c.l.b16 %v71
  %v332 = vunpack.c.l.b16 %v72
  %v333 = vunpack.c.l.b16 %v73
  %v334 = vunpack.c.l.b16 %v74
  %v335 = vunpack.c.l.b16 %v75
  %v336 = vunpack.c.l.b16 %v76
  %v337 = vunpack.c.l.b16 %v77
  %v338 = vunpack.c.l.b16 %v78
  %v339 = vunpack.c.l.b16 %v79
  %v340 = vunpack.c.l.b16 %v80
  %v341 = vunpack.c.l.b16 %v81
  %v342 = vunpack.c.l.b16 %v82
  %v343 = vunpack.c.l.b16 %v83
  %v344 = vunpack.c.l.b16 %v84
  %v345 = vunpack.c.l.b16 %v85
  %v346 = vunpack.c.l.b16 %v86
  %v347 = vunpack.c.l.b16 %v87
  %v348 = vunpack.c.l.b16 %v88
  %v349 = vunpack.c.l.b16 %v89
  %v350 = vunpack.c.l.b16 %v90
  %v351 = vunpack.c.l.b16 %v91
  %v352 = vunpack.c.l.b16 %v92
  %v353 = vunpack.c.l.b16 %v93
  %v354 = vunpack.c.l.b16 %v94
  %v355 = vunpack.c.l.b16 %v95
  %v356 = vunpack.c.l.b16 %v96
  %v357 = vunpack.c.l.b16 %v97
  %v358 = vunpack.c.l.b16 %v98
  %v359 = vunpack.c.l.b16 %v99
  %v360 = vunpack.c.l.b16 %v100
  %v361 = vunpack.c.l.b16 %v101
  %v362 = vunpack.c.l.b16 %v102
  %v363 = vunpack.c.l.b16 %v103
  %v364 = vunpack.c.l.b16 %v104
  %v365 = vunpack.c.l.b16 %v105
  %v366 = vunpack.c.l.b16 %v106
  %v367 = vunpack.c.l.b16 %v107
  %v368 = vpack.c.b16 %v315, %v314
  %v369 = vpack.c.b16 %v317, %v316
  %v370 = vpack.c.b16 %v319, %v318
  %v371 = vpack.c.b16 %v321, %v320
  %v372 = vpack.c.b16 %v323, %v322
  %v373 = vpack.c.b16 %v325, %v324
  %v374 = vpack.c.b16 %v327, %v326
  %v375 = vpack.c.b16 %v329, %v328
  %v376 = vpack.c.b16 %v331, %v330
  %v377 = vpack.c.b16 %v333, %v332
  %v378 = vpack.c.b16 %v335, %v334
  %v379 = vpack.c.b16 %v337, %v336
  %v380 = vpack.c.b16 %v339, %v338
  %v381 = vpack.c.b16 %v341, %v340
  %v382 = vpack.c.b16 %v343, %v342
  %v383 = vpack.c.b16 %v345, %v344
  %v384 = vpack.c.b16 %v347, %v346
  %v385 = vpack.c.b16 %v349, %v348
  %v386 = vpack.c.b16 %v351, %v350
  %v387 = vpack.c.b16 %v353, %v352
  %v388 = vpack.c.b16 %v355, %v354
  %v389 = vpack.c.b16 %v357, %v356
  %v390 = vpack.c.b16 %v359, %v358
  %v391 = vpack.c.b16 %v361, %v360
  %v392 = vpack.c.b16 %v363, %v362
  %v393 = vpack.c.b16 %v365, %v364
  %v394 = vpack.c.b16 %v367, %v366
  %vm422 = vcmask 392192
  %v424 = vsel %vm422, %v207, 0
  %v427 = vsel %vm422, %v211, 0
  %v430 = vsel %vm422, %v215, 0
  %v433 = vsel %vm422, %v219, 0
  %v436 = vsel %vm422, %v223, 0
  %v439 = vsel %vm422, %v227, 0
  %v442 = vsel %vm422, %v231, 0
  %v445 = vsel %vm422, %v235, 0
  %447 = vmatprep.subr.bf16.mxu0 0
  %448 = vmatpush1.bf16.msra.mxu0 %v368
  %449 = vmatprep.subr.bf16.mxu0 0
  %450 = vmatpush1.bf16.msra.mxu0 %v369
  %451 = vmatprep.subr.bf16.mxu0 0
  %452 = vmatpush1.bf16.msra.mxu0 %v370
  %453 = vmatprep.subr.bf16.mxu0 0
  %454 = vmatpush1.bf16.msra.mxu0 %v371
  %455 = vmatprep.subr.bf16.mxu0 0
  %456 = vmatpush1.bf16.msra.mxu0 %v372
  %457 = vmatprep.subr.bf16.mxu0 0
  %458 = vmatpush1.bf16.msra.mxu0 %v373
  %459 = vmatprep.subr.bf16.mxu0 0
  %460 = vmatpush1.bf16.msra.mxu0 %v374
  %461 = vmatprep.subr.bf16.mxu0 0
  %462 = vmatpush1.bf16.msra.mxu0 %v375
  %463 = vmatprep.subr.bf16.mxu0 0
  %464 = vmatpush1.bf16.msra.mxu0 %v376
  %465 = vmatprep.subr.bf16.mxu0 0
  %466 = vmatpush1.bf16.msra.mxu0 %v377
  %467 = vmatprep.subr.bf16.mxu0 0
  %468 = vmatpush1.bf16.msra.mxu0 %v378
  %469 = vmatprep.subr.bf16.mxu0 0
  %470 = vmatpush1.bf16.msra.mxu0 %v379
  %471 = vmatprep.subr.bf16.mxu0 0
  %472 = vmatpush1.bf16.msra.mxu0 %v380
  %473 = vmatprep.subr.bf16.mxu0 0
  %474 = vmatpush1.bf16.msra.mxu0 %v381
  %475 = vmatprep.subr.bf16.mxu0 0
  %476 = vmatpush1.bf16.msra.mxu0 %v382
  %477 = vmatprep.subr.bf16.mxu0 0
  %478 = vmatpush1.bf16.msra.mxu0 %v383
  %479 = vmatprep.mubr.bf16.mxu0 %v205
  %480 = vmatmul.mubr.bf16.gmra.mrb[0].mxu0 %v204
  %v481 = vpop.f32.mrb[0].mxu0
  %v482 = vadd.f32 0.0, %v481
  %v483 = vpop.f32.mrb[0].mxu0
  %v484 = vpop.f32.mrb[0].mxu0
  %v485 = vadd.f32 0.0, %v484
  %v486 = vpop.f32.mrb[0].mxu0
  %487 = vmatprep.mubr.bf16.mxu0 %v209
  %488 = vmatmul.mubr.bf16.gmra.mrb[0].mxu0 %v208
  %v489 = vpop.f32.mrb[0].mxu0
  %v490 = vadd.f32 0.0, %v489
  %v491 = vpop.f32.mrb[0].mxu0
  %v492 = vpop.f32.mrb[0].mxu0
  %v493 = vadd.f32 0.0, %v492
  %v494 = vpop.f32.mrb[0].mxu0
  %495 = vmatprep.mubr.bf16.mxu0 %v213
  %496 = vmatmul.mubr.bf16.gmra.mrb[0].mxu0 %v212
  %v497 = vpop.f32.mrb[0].mxu0
  %v498 = vadd.f32 0.0, %v497
  %v499 = vpop.f32.mrb[0].mxu0
  %v500 = vpop.f32.mrb[0].mxu0
  %v501 = vadd.f32 0.0, %v500
  %v502 = vpop.f32.mrb[0].mxu0
  %503 = vmatprep.mubr.bf16.mxu0 %v217
  %504 = vmatmul.mubr.bf16.gmra.mrb[0].mxu0 %v216
  %v505 = vpop.f32.mrb[0].mxu0
  %v506 = vadd.f32 0.0, %v505
  %v507 = vpop.f32.mrb[0].mxu0
  %v508 = vpop.f32.mrb[0].mxu0
  %v509 = vadd.f32 0.0, %v508
  %v510 = vpop.f32.mrb[0].mxu0
  %511 = vmatprep.mubr.bf16.mxu0 %v221
  %512 = vmatmul.mubr.bf16.gmra.mrb[0].mxu0 %v220
  %v513 = vpop.f32.mrb[0].mxu0
  %v514 = vadd.f32 0.0, %v513
  %v515 = vpop.f32.mrb[0].mxu0
  %v516 = vpop.f32.mrb[0].mxu0
  %v517 = vadd.f32 0.0, %v516
  %v518 = vpop.f32.mrb[0].mxu0
  %519 = vmatprep.mubr.bf16.mxu0 %v225
  %520 = vmatmul.mubr.bf16.gmra.mrb[0].mxu0 %v224
  %v521 = vpop.f32.mrb[0].mxu0
  %v522 = vadd.f32 0.0, %v521
  %v523 = vpop.f32.mrb[0].mxu0
  %v524 = vpop.f32.mrb[0].mxu0
  %v525 = vadd.f32 0.0, %v524
  %v526 = vpop.f32.mrb[0].mxu0
  %527 = vmatprep.mubr.bf16.mxu0 %v229
  %528 = vmatmul.mubr.bf16.gmra.mrb[0].mxu0 %v228
  %v529 = vpop.f32.mrb[0].mxu0
  %v530 = vadd.f32 0.0, %v529
  %v531 = vpop.f32.mrb[0].mxu0
  %v532 = vpop.f32.mrb[0].mxu0
  %v533 = vadd.f32 0.0, %v532
  %v534 = vpop.f32.mrb[0].mxu0
  %535 = vmatprep.mubr.bf16.mxu0 %v233
  %536 = vmatmul.mubr.bf16.gmra.mrb[0].mxu0 %v232
  %v537 = vpop.f32.mrb[0].mxu0
  %v538 = vadd.f32 0.0, %v537
  %v539 = vpop.f32.mrb[0].mxu0
  %v540 = vpop.f32.mrb[0].mxu0
  %v541 = vadd.f32 0.0, %v540
  %v542 = vpop.f32.mrb[0].mxu0
  %543 = vdwg.mxu0
  %544 = vmatprep.subr.bf16.mxu0 0
  %545 = vmatpush1.bf16.msra.mxu0 %v384
  %546 = vmatprep.subr.bf16.mxu0 0
  %547 = vmatpush1.bf16.msra.mxu0 %v385
  %548 = vmatprep.subr.bf16.mxu0 0
  %549 = vmatpush1.bf16.msra.mxu0 %v386
  %550 = vmatprep.subr.bf16.mxu0 0
  %551 = vmatpush1.bf16.msra.mxu0 %v387
  %552 = vmatprep.subr.bf16.mxu0 0
  %553 = vmatpush1.bf16.msra.mxu0 %v388
  %554 = vmatprep.subr.bf16.mxu0 0
  %555 = vmatpush1.bf16.msra.mxu0 %v389
  %556 = vmatprep.subr.bf16.mxu0 0
  %557 = vmatpush1.bf16.msra.mxu0 %v390
  %558 = vmatprep.subr.bf16.mxu0 0
  %559 = vmatpush1.bf16.msra.mxu0 %v391
  %560 = vmatprep.subr.bf16.mxu0 0
  %561 = vmatpush1.bf16.msra.mxu0 %v392
  %562 = vmatprep.subr.bf16.mxu0 0
  %563 = vmatpush1.bf16.msra.mxu0 %v393
  %564 = vmatprep.subr.bf16.mxu0 0
  %565 = vmatpush1.bf16.msra.mxu0 %v394
  %566 = vmatprep.subr.bf16.mxu0 0
  %567 = vmatpush1.bf16.msra.mxu0 0
  %568 = vmatprep.subr.bf16.mxu0 0
  %569 = vmatpush1.bf16.msra.mxu0 0
  %570 = vmatprep.subr.bf16.mxu0 0
  %571 = vmatpush1.bf16.msra.mxu0 0
  %572 = vmatprep.subr.bf16.mxu0 0
  %573 = vmatpush1.bf16.msra.mxu0 0
  %574 = vmatprep.subr.bf16.mxu0 0
  %575 = vmatpush1.bf16.msra.mxu0 0
  %576 = vmatprep.mubr.bf16.mxu0 %v424
  %577 = vmatmul.mubr.bf16.gmra.mrb[0].mxu0 %v206
  %v578 = vpop.f32.mrb[0].mxu0
  %v579 = vadd.f32 %v482, %v578
  %v580 = vpop.f32.mrb[0].mxu0
  %v581 = vpop.f32.mrb[0].mxu0
  %v582 = vadd.f32 %v485, %v581
  %v583 = vpop.f32.mrb[0].mxu0
  %584 = vmatprep.mubr.bf16.mxu0 %v427
  %585 = vmatmul.mubr.bf16.gmra.mrb[0].mxu0 %v210
  %v586 = vpop.f32.mrb[0].mxu0
  %v587 = vadd.f32 %v490, %v586
  %v588 = vpop.f32.mrb[0].mxu0
  %v589 = vpop.f32.mrb[0].mxu0
  %v590 = vadd.f32 %v493, %v589
  %v591 = vpop.f32.mrb[0].mxu0
  %592 = vmatprep.mubr.bf16.mxu0 %v430
  %593 = vmatmul.mubr.bf16.gmra.mrb[0].mxu0 %v214
  %v594 = vpop.f32.mrb[0].mxu0
  %v595 = vadd.f32 %v498, %v594
  %v596 = vpop.f32.mrb[0].mxu0
  %v597 = vpop.f32.mrb[0].mxu0
  %v598 = vadd.f32 %v501, %v597
  %v599 = vpop.f32.mrb[0].mxu0
  %600 = vmatprep.mubr.bf16.mxu0 %v433
  %601 = vmatmul.mubr.bf16.gmra.mrb[0].mxu0 %v218
  %v602 = vpop.f32.mrb[0].mxu0
  %v603 = vadd.f32 %v506, %v602
  %v604 = vpop.f32.mrb[0].mxu0
  %v605 = vpop.f32.mrb[0].mxu0
  %v606 = vadd.f32 %v509, %v605
  %v607 = vpop.f32.mrb[0].mxu0
  %608 = vmatprep.mubr.bf16.mxu0 %v436
  %609 = vmatmul.mubr.bf16.gmra.mrb[0].mxu0 %v222
  %v610 = vpop.f32.mrb[0].mxu0
  %v611 = vadd.f32 %v514, %v610
  %v612 = vpop.f32.mrb[0].mxu0
  %v613 = vpop.f32.mrb[0].mxu0
  %v614 = vadd.f32 %v517, %v613
  %v615 = vpop.f32.mrb[0].mxu0
  %616 = vmatprep.mubr.bf16.mxu0 %v439
  %617 = vmatmul.mubr.bf16.gmra.mrb[0].mxu0 %v226
  %v618 = vpop.f32.mrb[0].mxu0
  %v619 = vadd.f32 %v522, %v618
  %v620 = vpop.f32.mrb[0].mxu0
  %v621 = vpop.f32.mrb[0].mxu0
  %v622 = vadd.f32 %v525, %v621
  %v623 = vpop.f32.mrb[0].mxu0
  %624 = vmatprep.mubr.bf16.mxu0 %v442
  %625 = vmatmul.mubr.bf16.gmra.mrb[0].mxu0 %v230
  %v626 = vpop.f32.mrb[0].mxu0
  %v627 = vadd.f32 %v530, %v626
  %v628 = vpop.f32.mrb[0].mxu0
  %v629 = vpop.f32.mrb[0].mxu0
  %v630 = vadd.f32 %v533, %v629
  %v631 = vpop.f32.mrb[0].mxu0
  %632 = vmatprep.mubr.bf16.mxu0 %v445
  %633 = vmatmul.mubr.bf16.gmra.mrb[0].mxu0 %v234
  %v634 = vpop.f32.mrb[0].mxu0
  %v635 = vadd.f32 %v538, %v634
  %v636 = vpop.f32.mrb[0].mxu0
  %v637 = vpop.f32.mrb[0].mxu0
  %v638 = vadd.f32 %v541, %v637
  %v639 = vpop.f32.mrb[0].mxu0
  %640 = vdwg.mxu0
  %vm641 = vcmask 130048
  %642 = vst.msk [vmem:[%s2] sm:$0xff] %vm641, %v579
  %643 = vst.msk [vmem:[%s2 + $0x8] sm:$0xff] %vm641, %v582
  %644 = vst.msk [vmem:[%s2 + $0x10] sm:$0xff] %vm641, %v587
  %645 = vst.msk [vmem:[%s2 + $0x18] sm:$0xff] %vm641, %v590
  %646 = vst.msk [vmem:[%s2 + $0x20] sm:$0xff] %vm641, %v595
  %647 = vst.msk [vmem:[%s2 + $0x28] sm:$0xff] %vm641, %v598
  %648 = vst.msk [vmem:[%s2 + $0x30] sm:$0xff] %vm641, %v603
  %649 = vst.msk [vmem:[%s2 + $0x38] sm:$0xff] %vm641, %v606
  %650 = vst.msk [vmem:[%s2 + $0x40] sm:$0xff] %vm641, %v611
  %651 = vst.msk [vmem:[%s2 + $0x48] sm:$0xff] %vm641, %v614
  %652 = vst.msk [vmem:[%s2 + $0x50] sm:$0xff] %vm641, %v619
  %653 = vst.msk [vmem:[%s2 + $0x58] sm:$0xff] %vm641, %v622
  %654 = vst.msk [vmem:[%s2 + $0x60] sm:$0xff] %vm641, %v627
  %655 = vst.msk [vmem:[%s2 + $0x68] sm:$0xff] %vm641, %v630
  %656 = vst.msk [vmem:[%s2 + $0x70] sm:$0xff] %vm641, %v635
  %657 = vst.msk [vmem:[%s2 + $0x78] sm:$0xff] %vm641, %v638
  %v658 = vld [vmem:[%s3] sm:$0x1]
  %v659 = vsel %vm641, %v579, 0.0
  %v660 = vsel %vm641, %v582, 0.0
  %v661 = vadd.f32 %v659, %v660
  %v662 = vsel %vm641, %v587, 0.0
  %v663 = vadd.f32 %v661, %v662
  %v664 = vsel %vm641, %v590, 0.0
  %v665 = vadd.f32 %v663, %v664
  %v666 = vsel %vm641, %v595, 0.0
  %v667 = vadd.f32 %v665, %v666
  %v668 = vsel %vm641, %v598, 0.0
  %v669 = vadd.f32 %v667, %v668
  %v670 = vsel %vm641, %v603, 0.0
  %v671 = vadd.f32 %v669, %v670
  %v672 = vsel %vm641, %v606, 0.0
  %v673 = vadd.f32 %v671, %v672
  %v674 = vsel %vm641, %v611, 0.0
  %v675 = vadd.f32 %v673, %v674
  %v676 = vsel %vm641, %v614, 0.0
  %v677 = vadd.f32 %v675, %v676
  %v678 = vsel %vm641, %v619, 0.0
  %v679 = vadd.f32 %v677, %v678
  %v680 = vsel %vm641, %v622, 0.0
  %v681 = vadd.f32 %v679, %v680
  %v682 = vsel %vm641, %v627, 0.0
  %v683 = vadd.f32 %v681, %v682
  %v684 = vsel %vm641, %v630, 0.0
  %v685 = vadd.f32 %v683, %v684
  %v686 = vsel %vm641, %v635, 0.0
  %v687 = vadd.f32 %v685, %v686
  %v688 = vsel %vm641, %v638, 0.0
  %v689 = vadd.f32 %v687, %v688
  %v690 = vrot.slane %v689, 4
  %v691 = vadd.f32 %v689, %v690
  %v692 = vrot.slane %v691, 2
  %v693 = vadd.f32 %v691, %v692
  %v694 = vrot.slane %v693, 1
  %v695 = vadd.f32 %v693, %v694
  %v696 = vadd.f32 %v658, %v695
  %vm697 = vcmask 122880
  %698 = vst.msk [vmem:[%s3] sm:$0x1] %vm697, %v696
  %v699 = vld [vmem:[%s4] sm:$0x1]
  %v700 = vmul.f32 %v579, %v579
  %v701 = vmul.f32 %v582, %v582
  %v702 = vmul.f32 %v587, %v587
  %v703 = vmul.f32 %v590, %v590
  %v704 = vmul.f32 %v595, %v595
  %v705 = vmul.f32 %v598, %v598
  %v706 = vmul.f32 %v603, %v603
  %v707 = vmul.f32 %v606, %v606
  %v708 = vmul.f32 %v611, %v611
  %v709 = vmul.f32 %v614, %v614
  %v710 = vmul.f32 %v619, %v619
  %v711 = vmul.f32 %v622, %v622
  %v712 = vmul.f32 %v627, %v627
  %v713 = vmul.f32 %v630, %v630
  %v714 = vmul.f32 %v635, %v635
  %v715 = vmul.f32 %v638, %v638
  %v716 = vsel %vm641, %v700, 0.0
  %v717 = vsel %vm641, %v701, 0.0
  %v718 = vadd.f32 %v716, %v717
  %v719 = vsel %vm641, %v702, 0.0
  %v720 = vadd.f32 %v718, %v719
  %v721 = vsel %vm641, %v703, 0.0
  %v722 = vadd.f32 %v720, %v721
  %v723 = vsel %vm641, %v704, 0.0
  %v724 = vadd.f32 %v722, %v723
  %v725 = vsel %vm641, %v705, 0.0
  %v726 = vadd.f32 %v724, %v725
  %v727 = vsel %vm641, %v706, 0.0
  %v728 = vadd.f32 %v726, %v727
  %v729 = vsel %vm641, %v707, 0.0
  %v730 = vadd.f32 %v728, %v729
  %v731 = vsel %vm641, %v708, 0.0
  %v732 = vadd.f32 %v730, %v731
  %v733 = vsel %vm641, %v709, 0.0
  %v734 = vadd.f32 %v732, %v733
  %v735 = vsel %vm641, %v710, 0.0
  %v736 = vadd.f32 %v734, %v735
  %v737 = vsel %vm641, %v711, 0.0
  %v738 = vadd.f32 %v736, %v737
  %v739 = vsel %vm641, %v712, 0.0
  %v740 = vadd.f32 %v738, %v739
  %v741 = vsel %vm641, %v713, 0.0
  %v742 = vadd.f32 %v740, %v741
  %v743 = vsel %vm641, %v714, 0.0
  %v744 = vadd.f32 %v742, %v743
  %v745 = vsel %vm641, %v715, 0.0
  %v746 = vadd.f32 %v744, %v745
  %v747 = vrot.slane %v746, 4
  %v748 = vadd.f32 %v746, %v747
  %v749 = vrot.slane %v748, 2
  %v750 = vadd.f32 %v748, %v749
  %v751 = vrot.slane %v750, 1
  %v752 = vadd.f32 %v750, %v751
  %v753 = vadd.f32 %v699, %v752
  %754 = vst.msk [vmem:[%s4] sm:$0x1] %vm697, %v753
  // Predicated region
  $region14: #{deep_resnet3d_forward.38} parent=0 // pred_check
    _
  $region15: #{deep_resnet3d_forward.38} parent=0 // pred_check_branch
    %756 = sbr.rel (0) target = $region17
  $region16: #{deep_resnet3d_forward.38} parent=0 // pred_region
    _
  $region17: #{deep_resnet3d_forward.38} parent=0 // pred_fallthru
    _
  // Predicated region
  $region18: #{deep_resnet3d_forward.38} parent=0 // pred_check
    _
  $region19: #{deep_resnet3d_forward.38} parent=0 // pred_check_branch
    %758 = sbr.rel (0) target = $region21
  $region20: #{deep_resnet3d_forward.38} parent=0 // pred_region
    _
  $region21: #{deep_resnet3d_forward.38} parent=0 // pred_fallthru
    _
  // Predicated region
  $region22: #{deep_resnet3d_forward.38} parent=0 // pred_check
    _
  $region23: #{deep_resnet3d_forward.38} parent=0 // pred_check_branch
    %760 = sbr.rel (0) target = $region25
  $region24: #{deep_resnet3d_forward.38} parent=0 // pred_region
    _
  $region25: #{deep_resnet3d_forward.38} parent=0 // pred_fallthru
    _
  // Predicated region
  $region26: #{deep_resnet3d_forward.38} parent=0 // pred_check
    _
  $region27: #{deep_resnet3d_forward.38} parent=0 // pred_check_branch
    %762 = sbr.rel (0) target = $region29
  $region28: #{deep_resnet3d_forward.38} parent=0 // pred_region
    _
  $region29: #{deep_resnet3d_forward.38} parent=0 // pred_fallthru
    _
  // Predicated region
  $region30: #{deep_resnet3d_forward.38} parent=0 // pred_check
    _
  $region31: #{deep_resnet3d_forward.38} parent=0 // pred_check_branch
    %764 = sbr.rel (0) target = $region33
  $region32: #{deep_resnet3d_forward.38} parent=0 // pred_region
    _
  $region33: #{deep_resnet3d_forward.38} parent=0 // pred_fallthru
    _
  // Predicated region
  $region34: #{deep_resnet3d_forward.38} parent=0 // pred_check
    _
  $region35: #{deep_resnet3d_forward.38} parent=0 // pred_check_branch
    %766 = sbr.rel (0) target = $region37
  $region36: #{deep_resnet3d_forward.38} parent=0 // pred_region
    _
  $region37: #{deep_resnet3d_forward.38} parent=0 // pred_fallthru
    _

// kernel: deep_resnet3d_forward.39
$region0: #{deep_resnet3d_forward.39}
  #allocation0 [shape = 'u32[]', space=smem, size = 0x4, offset = 0x4, fixed_abs, tag = 'smem constant byte address 0x4 - core index']
  #allocation1 [shape = 'u32[144,128]{1,0:T(1,128)}', space=vmem, size = 0x12000, scoped, tag = 'internal scratch']
  %s0 = inlined_call_operand.vmem [shape: f32[16,128], index: 0, kind: input, shape index: {}]
  %s1 = inlined_call_operand.vmem [shape: f32[1,128], index: 1, kind: input, shape index: {}]
  %s2 = inlined_call_operand.vmem [shape: f32[1,128], index: 2, kind: input, shape index: {}]
  %s3 = inlined_call_operand.vmem [shape: f32[16,128], index: 3, kind: output, shape index: {}]
  %s4 = sld [smem:[#allocation0]]
  $region22: #{deep_resnet3d_forward.39} parent=0
    _
  %s6 = ssub.s32 1, %s4
  %s7 = scalar_select 0, %s6, %s4
  // Predicated region
  $region2: #{deep_resnet3d_forward.39} parent=0 // pred_check
    _
  $region3: #{deep_resnet3d_forward.39} parent=0 // pred_check_branch
    %9 = sbr.rel (0) target = $region5
  $region4: #{deep_resnet3d_forward.39} parent=0 // pred_region
    _
  $region5: #{deep_resnet3d_forward.39} parent=0 // pred_fallthru
    _
  // Predicated region
  $region6: #{deep_resnet3d_forward.39} parent=0 // pred_check
    _
  $region7: #{deep_resnet3d_forward.39} parent=0 // pred_check_branch
    %11 = sbr.rel (0) target = $region9
  $region8: #{deep_resnet3d_forward.39} parent=0 // pred_region
    _
  $region9: #{deep_resnet3d_forward.39} parent=0 // pred_fallthru
    _
  // Predicated region
  $region10: #{deep_resnet3d_forward.39} parent=0 // pred_check
    _
  $region11: #{deep_resnet3d_forward.39} parent=0 // pred_check_branch
    %13 = sbr.rel (0) target = $region13
  $region12: #{deep_resnet3d_forward.39} parent=0 // pred_region
    _
  $region13: #{deep_resnet3d_forward.39} parent=0 // pred_fallthru
    _
  %v14 = vld [vmem:[%s0] sm:$0xff]
  %v15 = vld [vmem:[%s0 + $0x8] sm:$0xff]
  %v16 = vld [vmem:[%s1] sm:$0x1]
  %v18 = vlaneseq
  %v19 = vshrl.u32 %v18, 7
  %v20 = vsub.s32 0, %v19
  %v21 = vrot.slane %v16, %v20
  %v23 = vmul.f32 %v14, %v21
  %v24 = vmul.f32 %v15, %v21
  %v25 = vld [vmem:[%s2] sm:$0x1]
  %v27 = vlaneseq
  %v28 = vshrl.u32 %v27, 7
  %v29 = vsub.s32 0, %v28
  %v30 = vrot.slane %v25, %v29
  %v32 = vadd.f32 %v23, %v30
  %v33 = vadd.f32 %v24, %v30
  %v34 = vmax.f32 %v32, 0.0
  %v35 = vmax.f32 %v33, 0.0
  %36 = vst [vmem:[%s3] sm:$0xff] %v34
  %37 = vst [vmem:[%s3 + $0x8] sm:$0xff] %v35
  // Predicated region
  $region14: #{deep_resnet3d_forward.39} parent=0 // pred_check
    _
  $region15: #{deep_resnet3d_forward.39} parent=0 // pred_check_branch
    %39 = sbr.rel (0) target = $region17
  $region16: #{deep_resnet3d_forward.39} parent=0 // pred_region
    _
  $region17: #{deep_resnet3d_forward.39} parent=0 // pred_fallthru
    _
  // Predicated region
  $region18: #{deep_resnet3d_forward.39} parent=0 // pred_check
    _
  $region19: #{deep_resnet3d_forward.39} parent=0 // pred_check_branch
    %41 = sbr.rel (0) target = $region21
  $region20: #{deep_resnet3d_forward.39} parent=0 // pred_region
    _
  $region21: #{deep_resnet3d_forward.39} parent=0 // pred_fallthru
    _

// kernel: deep_resnet3d_forward.40
$region0: #{deep_resnet3d_forward.40}
  #allocation0 [shape = 'u32[]', space=smem, size = 0x4, offset = 0x4, fixed_abs, tag = 'smem constant byte address 0x4 - core index']
  #allocation1 [shape = 'u32[144,128]{1,0:T(1,128)}', space=vmem, size = 0x12000, scoped, tag = 'internal scratch']
  %s0 = inlined_call_operand.vmem [shape: bf16[16,432], index: 0, kind: input, shape index: {}]
  %s1 = inlined_call_operand.vmem [shape: bf16[432,16], index: 1, kind: input, shape index: {}]
  %s2 = inlined_call_operand.vmem [shape: f32[16,16], index: 2, kind: output, shape index: {0}]
  %s3 = inlined_call_operand.vmem [shape: f32[1,16], index: 3, kind: output, shape index: {1}]
  %s4 = inlined_call_operand.vmem [shape: f32[1,16], index: 4, kind: output, shape index: {2}]
  %5 = xla_tuple %s2, %s3, %s4
  %s6 = sld [smem:[#allocation0]]
  $region38: #{deep_resnet3d_forward.40} parent=0
    _
  %s8 = ssub.s32 1, %s6
  %s9 = scalar_select 0, %s8, %s6
  // Predicated region
  $region2: #{deep_resnet3d_forward.40} parent=0 // pred_check
    _
  $region3: #{deep_resnet3d_forward.40} parent=0 // pred_check_branch
    %11 = sbr.rel (0) target = $region5
  $region4: #{deep_resnet3d_forward.40} parent=0 // pred_region
    _
  $region5: #{deep_resnet3d_forward.40} parent=0 // pred_fallthru
    _
  // Predicated region
  $region6: #{deep_resnet3d_forward.40} parent=0 // pred_check
    _
  $region7: #{deep_resnet3d_forward.40} parent=0 // pred_check_branch
    %13 = sbr.rel (0) target = $region9
  $region8: #{deep_resnet3d_forward.40} parent=0 // pred_region
    _
  $region9: #{deep_resnet3d_forward.40} parent=0 // pred_fallthru
    _
  %p15 = scmp.eq.s32.totalorder 0, 0
  // Predicated region
  $region10: #{deep_resnet3d_forward.40} parent=0 // pred_check
    %p16 = pneg %p15
  $region11: #{deep_resnet3d_forward.40} parent=0 // pred_check_branch
    %18 = sbr.rel (%p16) target = $region13
  $region12: #{deep_resnet3d_forward.40} parent=0 // pred_region
    %vm19 = vcmask 122880
    %20 = vst.msk [vmem:[%s3] sm:$0x1] %vm19, 0.0
    %21 = vst.msk [vmem:[%s4] sm:$0x1] %vm19, 0.0
  $region13: #{deep_resnet3d_forward.40} parent=0 // pred_fallthru
    _
  %v22 = vld [vmem:[%s0] sm:$0xff]
  %v23 = vld [vmem:[%s0 + $0x8] sm:$0xff]
  %v24 = vld [vmem:[%s0 + $0x10] sm:$0xff]
  %v25 = vld [vmem:[%s0 + $0x18] sm:$0xff]
  %v26 = vld [vmem:[%s1] sm:$0xf]
  %v27 = vld [vmem:[%s1 + $0x4] sm:$0xf]
  %v28 = vld [vmem:[%s1 + $0x8] sm:$0xf]
  %v29 = vld [vmem:[%s1 + $0xc] sm:$0xf]
  %v30 = vld [vmem:[%s1 + $0x10] sm:$0xf]
  %v31 = vld [vmem:[%s1 + $0x14] sm:$0xf]
  %v32 = vld [vmem:[%s1 + $0x18] sm:$0xf]
  %v33 = vld [vmem:[%s1 + $0x1c] sm:$0xf]
  %v34 = vld [vmem:[%s1 + $0x20] sm:$0xf]
  %v35 = vld [vmem:[%s1 + $0x24] sm:$0xf]
  %v36 = vld [vmem:[%s1 + $0x28] sm:$0xf]
  %v37 = vld [vmem:[%s1 + $0x2c] sm:$0xf]
  %v38 = vld [vmem:[%s1 + $0x30] sm:$0xf]
  %v39 = vld [vmem:[%s1 + $0x34] sm:$0xf]
  %v40 = vld [vmem:[%s1 + $0x38] sm:$0xf]
  %v41 = vld [vmem:[%s1 + $0x3c] sm:$0xf]
  %v42 = vld [vmem:[%s1 + $0x40] sm:$0xf]
  %v43 = vld [vmem:[%s1 + $0x44] sm:$0xf]
  %v44 = vld [vmem:[%s1 + $0x48] sm:$0xf]
  %v45 = vld [vmem:[%s1 + $0x4c] sm:$0xf]
  %v46 = vld [vmem:[%s1 + $0x50] sm:$0xf]
  %v47 = vld [vmem:[%s1 + $0x54] sm:$0xf]
  %v48 = vld [vmem:[%s1 + $0x58] sm:$0xf]
  %v49 = vld [vmem:[%s1 + $0x5c] sm:$0xf]
  %v50 = vld [vmem:[%s1 + $0x60] sm:$0xf]
  %v51 = vld [vmem:[%s1 + $0x64] sm:$0xf]
  %v52 = vld [vmem:[%s1 + $0x68] sm:$0xf]
  %v53 = vld [vmem:[%s1 + $0x6c] sm:$0xf]
  %v54 = vld [vmem:[%s1 + $0x70] sm:$0xf]
  %v55 = vld [vmem:[%s1 + $0x74] sm:$0xf]
  %v56 = vld [vmem:[%s1 + $0x78] sm:$0xf]
  %v57 = vld [vmem:[%s1 + $0x7c] sm:$0xf]
  %v58 = vld [vmem:[%s1 + $0x80] sm:$0xf]
  %v59 = vld [vmem:[%s1 + $0x84] sm:$0xf]
  %v60 = vld [vmem:[%s1 + $0x88] sm:$0xf]
  %v61 = vld [vmem:[%s1 + $0x8c] sm:$0xf]
  %v62 = vld [vmem:[%s1 + $0x90] sm:$0xf]
  %v63 = vld [vmem:[%s1 + $0x94] sm:$0xf]
  %v64 = vld [vmem:[%s1 + $0x98] sm:$0xf]
  %v65 = vld [vmem:[%s1 + $0x9c] sm:$0xf]
  %v66 = vld [vmem:[%s1 + $0xa0] sm:$0xf]
  %v67 = vld [vmem:[%s1 + $0xa4] sm:$0xf]
  %v68 = vld [vmem:[%s1 + $0xa8] sm:$0xf]
  %v69 = vld [vmem:[%s1 + $0xac] sm:$0xf]
  %v70 = vld [vmem:[%s1 + $0xb0] sm:$0xf]
  %v71 = vld [vmem:[%s1 + $0xb4] sm:$0xf]
  %v72 = vld [vmem:[%s1 + $0xb8] sm:$0xf]
  %v73 = vld [vmem:[%s1 + $0xbc] sm:$0xf]
  %v74 = vld [vmem:[%s1 + $0xc0] sm:$0xf]
  %v75 = vld [vmem:[%s1 + $0xc4] sm:$0xf]
  %v76 = vld [vmem:[%s1 + $0xc8] sm:$0xf]
  %v77 = vld [vmem:[%s1 + $0xcc] sm:$0xf]
  %v78 = vld [vmem:[%s1 + $0xd0] sm:$0xf]
  %v79 = vld [vmem:[%s1 + $0xd4] sm:$0xf]
  %v84 = vunpack.c.l.b16 %v22
  %v85 = vunpack.c.h.b16 %v22
  %v86 = vunpack.c.l.b16 %v23
  %v87 = vunpack.c.h.b16 %v23
  %v88 = vunpack.c.l.b16 %v24
  %v89 = vunpack.c.h.b16 %v24
  %v90 = vunpack.c.l.b16 %v25
  %v91 = vunpack.c.h.b16 %v25
  %v92 = vpack.c.b16 %v88, %v84
  %v93 = vpack.c.b16 %v89, %v85
  %v94 = vpack.c.b16 %v90, %v86
  %v95 = vpack.c.b16 %v91, %v87
  %v153 = vunpack.c.l.b16 %v26
  %v154 = vunpack.c.l.b16 %v27
  %v155 = vunpack.c.l.b16 %v28
  %v156 = vunpack.c.l.b16 %v29
  %v157 = vunpack.c.l.b16 %v30
  %v158 = vunpack.c.l.b16 %v31
  %v159 = vunpack.c.l.b16 %v32
  %v160 = vunpack.c.l.b16 %v33
  %v161 = vunpack.c.l.b16 %v34
  %v162 = vunpack.c.l.b16 %v35
  %v163 = vunpack.c.l.b16 %v36
  %v164 = vunpack.c.l.b16 %v37
  %v165 = vunpack.c.l.b16 %v38
  %v166 = vunpack.c.l.b16 %v39
  %v167 = vunpack.c.l.b16 %v40
  %v168 = vunpack.c.l.b16 %v41
  %v169 = vunpack.c.l.b16 %v42
  %v170 = vunpack.c.l.b16 %v43
  %v171 = vunpack.c.l.b16 %v44
  %v172 = vunpack.c.l.b16 %v45
  %v173 = vunpack.c.l.b16 %v46
  %v174 = vunpack.c.l.b16 %v47
  %v175 = vunpack.c.l.b16 %v48
  %v176 = vunpack.c.l.b16 %v49
  %v177 = vunpack.c.l.b16 %v50
  %v178 = vunpack.c.l.b16 %v51
  %v179 = vunpack.c.l.b16 %v52
  %v180 = vunpack.c.l.b16 %v53
  %v181 = vunpack.c.l.b16 %v54
  %v182 = vunpack.c.l.b16 %v55
  %v183 = vunpack.c.l.b16 %v56
  %v184 = vunpack.c.l.b16 %v57
  %v185 = vunpack.c.l.b16 %v58
  %v186 = vunpack.c.l.b16 %v59
  %v187 = vunpack.c.l.b16 %v60
  %v188 = vunpack.c.l.b16 %v61
  %v189 = vunpack.c.l.b16 %v62
  %v190 = vunpack.c.l.b16 %v63
  %v191 = vunpack.c.l.b16 %v64
  %v192 = vunpack.c.l.b16 %v65
  %v193 = vunpack.c.l.b16 %v66
  %v194 = vunpack.c.l.b16 %v67
  %v195 = vunpack.c.l.b16 %v68
  %v196 = vunpack.c.l.b16 %v69
  %v197 = vunpack.c.l.b16 %v70
  %v198 = vunpack.c.l.b16 %v71
  %v199 = vunpack.c.l.b16 %v72
  %v200 = vunpack.c.l.b16 %v73
  %v201 = vunpack.c.l.b16 %v74
  %v202 = vunpack.c.l.b16 %v75
  %v203 = vunpack.c.l.b16 %v76
  %v204 = vunpack.c.l.b16 %v77
  %v205 = vunpack.c.l.b16 %v78
  %v206 = vunpack.c.l.b16 %v79
  %v207 = vpack.c.b16 %v154, %v153
  %v208 = vpack.c.b16 %v156, %v155
  %v209 = vpack.c.b16 %v158, %v157
  %v210 = vpack.c.b16 %v160, %v159
  %v211 = vpack.c.b16 %v162, %v161
  %v212 = vpack.c.b16 %v164, %v163
  %v213 = vpack.c.b16 %v166, %v165
  %v214 = vpack.c.b16 %v168, %v167
  %v215 = vpack.c.b16 %v170, %v169
  %v216 = vpack.c.b16 %v172, %v171
  %v217 = vpack.c.b16 %v174, %v173
  %v218 = vpack.c.b16 %v176, %v175
  %v219 = vpack.c.b16 %v178, %v177
  %v220 = vpack.c.b16 %v180, %v179
  %v221 = vpack.c.b16 %v182, %v181
  %v222 = vpack.c.b16 %v184, %v183
  %v223 = vpack.c.b16 %v186, %v185
  %v224 = vpack.c.b16 %v188, %v187
  %v225 = vpack.c.b16 %v190, %v189
  %v226 = vpack.c.b16 %v192, %v191
  %v227 = vpack.c.b16 %v194, %v193
  %v228 = vpack.c.b16 %v196, %v195
  %v229 = vpack.c.b16 %v198, %v197
  %v230 = vpack.c.b16 %v200, %v199
  %v231 = vpack.c.b16 %v202, %v201
  %v232 = vpack.c.b16 %v204, %v203
  %v233 = vpack.c.b16 %v206, %v205
  %vm261 = vcmask 392192
  %v263 = vsel %vm261, %v95, 0
  %265 = vmatprep.subr.bf16.mxu0 0
  %266 = vmatpush1.bf16.msra.mxu0 %v207
  %267 = vmatprep.subr.bf16.mxu0 0
  %268 = vmatpush1.bf16.msra.mxu0 %v208
  %269 = vmatprep.subr.bf16.mxu0 0
  %270 = vmatpush1.bf16.msra.mxu0 %v209
  %271 = vmatprep.subr.bf16.mxu0 0
  %272 = vmatpush1.bf16.msra.mxu0 %v210
  %273 = vmatprep.subr.bf16.mxu0 0
  %274 = vmatpush1.bf16.msra.mxu0 %v211
  %275 = vmatprep.subr.bf16.mxu0 0
  %276 = vmatpush1.bf16.msra.mxu0 %v212
  %277 = vmatprep.subr.bf16.mxu0 0
  %278 = vmatpush1.bf16.msra.mxu0 %v213
  %279 = vmatprep.subr.bf16.mxu0 0
  %280 = vmatpush1.bf16.msra.mxu0 %v214
  %281 = vmatprep.subr.bf16.mxu0 0
  %282 = vmatpush1.bf16.msra.mxu0 %v215
  %283 = vmatprep.subr.bf16.mxu0 0
  %284 = vmatpush1.bf16.msra.mxu0 %v216
  %285 = vmatprep.subr.bf16.mxu0 0
  %286 = vmatpush1.bf16.msra.mxu0 %v217
  %287 = vmatprep.subr.bf16.mxu0 0
  %288 = vmatpush1.bf16.msra.mxu0 %v218
  %289 = vmatprep.subr.bf16.mxu0 0
  %290 = vmatpush1.bf16.msra.mxu0 %v219
  %291 = vmatprep.subr.bf16.mxu0 0
  %292 = vmatpush1.bf16.msra.mxu0 %v220
  %293 = vmatprep.subr.bf16.mxu0 0
  %294 = vmatpush1.bf16.msra.mxu0 %v221
  %295 = vmatprep.subr.bf16.mxu0 0
  %296 = vmatpush1.bf16.msra.mxu0 %v222
  %297 = vmatprep.mubr.bf16.mxu0 %v93
  %298 = vmatmul.mubr.bf16.gmra.mrb[0].mxu0 %v92
  %v299 = vpop.f32.mrb[0].mxu0
  %v300 = vadd.f32 0.0, %v299
  %v301 = vpop.f32.mrb[0].mxu0
  %v302 = vpop.f32.mrb[0].mxu0
  %v303 = vadd.f32 0.0, %v302
  %v304 = vpop.f32.mrb[0].mxu0
  %305 = vdwg.mxu0
  %306 = vmatprep.subr.bf16.mxu0 0
  %307 = vmatpush1.bf16.msra.mxu0 %v223
  %308 = vmatprep.subr.bf16.mxu0 0
  %309 = vmatpush1.bf16.msra.mxu0 %v224
  %310 = vmatprep.subr.bf16.mxu0 0
  %311 = vmatpush1.bf16.msra.mxu0 %v225
  %312 = vmatprep.subr.bf16.mxu0 0
  %313 = vmatpush1.bf16.msra.mxu0 %v226
  %314 = vmatprep.subr.bf16.mxu0 0
  %315 = vmatpush1.bf16.msra.mxu0 %v227
  %316 = vmatprep.subr.bf16.mxu0 0
  %317 = vmatpush1.bf16.msra.mxu0 %v228
  %318 = vmatprep.subr.bf16.mxu0 0
  %319 = vmatpush1.bf16.msra.mxu0 %v229
  %320 = vmatprep.subr.bf16.mxu0 0
  %321 = vmatpush1.bf16.msra.mxu0 %v230
  %322 = vmatprep.subr.bf16.mxu0 0
  %323 = vmatpush1.bf16.msra.mxu0 %v231
  %324 = vmatprep.subr.bf16.mxu0 0
  %325 = vmatpush1.bf16.msra.mxu0 %v232
  %326 = vmatprep.subr.bf16.mxu0 0
  %327 = vmatpush1.bf16.msra.mxu0 %v233
  %328 = vmatprep.subr.bf16.mxu0 0
  %329 = vmatpush1.bf16.msra.mxu0 0
  %330 = vmatprep.subr.bf16.mxu0 0
  %331 = vmatpush1.bf16.msra.mxu0 0
  %332 = vmatprep.subr.bf16.mxu0 0
  %333 = vmatpush1.bf16.msra.mxu0 0
  %334 = vmatprep.subr.bf16.mxu0 0
  %335 = vmatpush1.bf16.msra.mxu0 0
  %336 = vmatprep.subr.bf16.mxu0 0
  %337 = vmatpush1.bf16.msra.mxu0 0
  %338 = vmatprep.mubr.bf16.mxu0 %v263
  %339 = vmatmul.mubr.bf16.gmra.mrb[0].mxu0 %v94
  %v340 = vpop.f32.mrb[0].mxu0
  %v341 = vadd.f32 %v300, %v340
  %v342 = vpop.f32.mrb[0].mxu0
  %v343 = vpop.f32.mrb[0].mxu0
  %v344 = vadd.f32 %v303, %v343
  %v345 = vpop.f32.mrb[0].mxu0
  %346 = vdwg.mxu0
  %vm347 = vcmask 130048
  %348 = vst.msk [vmem:[%s2] sm:$0xff] %vm347, %v341
  %349 = vst.msk [vmem:[%s2 + $0x8] sm:$0xff] %vm347, %v344
  %v350 = vld [vmem:[%s3] sm:$0x1]
  %v351 = vsel %vm347, %v341, 0.0
  %v352 = vsel %vm347, %v344, 0.0
  %v353 = vadd.f32 %v351, %v352
  %v354 = vrot.slane %v353, 4
  %v355 = vadd.f32 %v353, %v354
  %v356 = vrot.slane %v355, 2
  %v357 = vadd.f32 %v355, %v356
  %v358 = vrot.slane %v357, 1
  %v359 = vadd.f32 %v357, %v358
  %v360 = vadd.f32 %v350, %v359
  %vm361 = vcmask 122880
  %362 = vst.msk [vmem:[%s3] sm:$0x1] %vm361, %v360
  %v363 = vld [vmem:[%s4] sm:$0x1]
  %v364 = vmul.f32 %v341, %v341
  %v365 = vmul.f32 %v344, %v344
  %v366 = vsel %vm347, %v364, 0.0
  %v367 = vsel %vm347, %v365, 0.0
  %v368 = vadd.f32 %v366, %v367
  %v369 = vrot.slane %v368, 4
  %v370 = vadd.f32 %v368, %v369
  %v371 = vrot.slane %v370, 2
  %v372 = vadd.f32 %v370, %v371
  %v373 = vrot.slane %v372, 1
  %v374 = vadd.f32 %v372, %v373
  %v375 = vadd.f32 %v363, %v374
  %376 = vst.msk [vmem:[%s4] sm:$0x1] %vm361, %v375
  // Predicated region
  $region14: #{deep_resnet3d_forward.40} parent=0 // pred_check
    _
  $region15: #{deep_resnet3d_forward.40} parent=0 // pred_check_branch
    %378 = sbr.rel (0) target = $region17
  $region16: #{deep_resnet3d_forward.40} parent=0 // pred_region
    _
  $region17: #{deep_resnet3d_forward.40} parent=0 // pred_fallthru
    _
  // Predicated region
  $region18: #{deep_resnet3d_forward.40} parent=0 // pred_check
    _
  $region19: #{deep_resnet3d_forward.40} parent=0 // pred_check_branch
    %380 = sbr.rel (0) target = $region21
  $region20: #{deep_resnet3d_forward.40} parent=0 // pred_region
    _
  $region21: #{deep_resnet3d_forward.40} parent=0 // pred_fallthru
    _
  // Predicated region
  $region22: #{deep_resnet3d_forward.40} parent=0 // pred_check
    _
  $region23: #{deep_resnet3d_forward.40} parent=0 // pred_check_branch
    %382 = sbr.rel (0) target = $region25
  $region24: #{deep_resnet3d_forward.40} parent=0 // pred_region
    _
  $region25: #{deep_resnet3d_forward.40} parent=0 // pred_fallthru
    _
  // Predicated region
  $region26: #{deep_resnet3d_forward.40} parent=0 // pred_check
    _
  $region27: #{deep_resnet3d_forward.40} parent=0 // pred_check_branch
    %384 = sbr.rel (0) target = $region29
  $region28: #{deep_resnet3d_forward.40} parent=0 // pred_region
    _
  $region29: #{deep_resnet3d_forward.40} parent=0 // pred_fallthru
    _
  // Predicated region
  $region30: #{deep_resnet3d_forward.40} parent=0 // pred_check
    _
  $region31: #{deep_resnet3d_forward.40} parent=0 // pred_check_branch
    %386 = sbr.rel (0) target = $region33
  $region32: #{deep_resnet3d_forward.40} parent=0 // pred_region
    _
  $region33: #{deep_resnet3d_forward.40} parent=0 // pred_fallthru
    _
  // Predicated region
  $region34: #{deep_resnet3d_forward.40} parent=0 // pred_check
    _
  $region35: #{deep_resnet3d_forward.40} parent=0 // pred_check_branch
    %388 = sbr.rel (0) target = $region37
  $region36: #{deep_resnet3d_forward.40} parent=0 // pred_region
    _
  $region37: #{deep_resnet3d_forward.40} parent=0 // pred_fallthru
    _

</llo_original>
